<compile_context>
chip_gen: v7x
topology: tpu7x:2x2x1
jax: 0.10.0
libtpu: 0.0.40
codegen_flags: <defaults>
</compile_context>

<pallas_src>
import jax
import jax.numpy as jnp
import numpy as np
from jax.experimental import pallas as pl
from jax.experimental.pallas import tpu as pltpu

Q_BIT_WIDTH = 8    # stand-in for args.qweight (CLI arg in the original script)
ACT_BIT_WIDTH = 8  # stand-in for args.qrelu   (see QuantReLU TODO below)
# Dropout(p = 1 - keep_prob) with keep_prob = 1 -> p = 0 -> identity.

# Geometry implied by the module for a 1x16x16 input.
H1 = W1 = 16                 # layer-1 / layer-2 conv spatial size
H3 = W3 = 8                  # layer-3 conv spatial size (after first pool)
HO = WO = 5                  # final spatial size (pool with padding=1)
C1, C2, C3 = 32, 64, 128     # output channels per layer

# Conv staging constants (row-flattened activations + zero halo rows, 8-aligned).
_TOP2 = 24                   # halo rows above the layer-2 conv input (>= W1 + 1)
_ROWS2 = 304                 # 24 + 256 + 24
_TOP3 = 16                   # halo rows above the layer-3 conv input (>= W3 + 1)
_ROWS3 = 96                  # 16 + 64 + 16


# -----------------------------------------------------------------------------
# In-kernel helpers (traced inline; only well-supported ops: ref loads/stores
# with pl.ds, matmuls, iota, compares, where, maximum).
# -----------------------------------------------------------------------------
def _stage(ref, x, top):
    """ref[top:top+n, :] <- x ; zero the halo rows above and below."""
    n = x.shape[0]
    total, c = ref.shape
    ref[pl.ds(0, top), :] = jnp.zeros((top, c), ref.dtype)
    ref[pl.ds(top, n), :] = x
    bot = total - top - n
    ref[pl.ds(top + n, bot), :] = jnp.zeros((bot, c), ref.dtype)


def _conv3x3_relu(stage, x, w_ref, b_ref, ws, top):
    """3x3 'same' conv + bias + ReLU on a row-flattened (h*ws, cin) activation.

    One full-image (h*ws, cin) x (cin, cout) MXU matmul per tap; the zeroed
    halo rows provide the vertical padding, a VPU mask kills the two
    horizontal wrap columns.
    """
    hw, cin = x.shape
    cout = w_ref.shape[-1]
    _stage(stage, x, top)
    col = jax.lax.broadcasted_iota(jnp.int32, (hw, cin), 0) & (ws - 1)
    wrap_mask = {-1: col >= 1, 0: None, 1: col <= ws - 2}
    acc = jnp.zeros((hw, cout), jnp.float32)
    for dy in (-1, 0, 1):
        for dx in (-1, 0, 1):
            tap = (dy + 1) * 3 + (dx + 1)
            xs = stage[pl.ds(top + dy * ws + dx, hw), :]
            if wrap_mask[dx] is not None:
                xs = jnp.where(wrap_mask[dx], xs, 0.0)
            acc = acc + jnp.dot(xs, w_ref[tap],
                                preferred_element_type=jnp.float32)
    # TODO(synk): brevitas QuantReLU also applies a learned/calibrated output
    # scale + clipping; without that runtime state we apply the plain ReLU.
    return jnp.maximum(acc + b_ref[...], 0.0)


def _pool2x2(taps_ref, x):
    """2x2/stride-2 max pool via 4 constant 0/1 selection matmuls + max.

    taps_ref: (4, out_rows, in_rows) with one selection matrix per 2x2 tap.
    Out-of-bounds taps (padded pool) are all-zero rows; safe since x >= 0.
    """
    u = jnp.dot(taps_ref[0], x, preferred_element_type=jnp.float32)
    for k in range(1, 4):
        u = jnp.maximum(u, jnp.dot(taps_ref[k], x,
                                   preferred_element_type=jnp.float32))
    return u


# -----------------------------------------------------------------------------
# Fused whole-network kernel: one grid step == one image, everything in VMEM.
# -----------------------------------------------------------------------------
def _net_kernel(patches_ref, w1_ref, b1_ref, w2_ref, b2_ref, w3_ref, b3_ref,
                p2_ref, p3_ref, o_ref, st_a1, st_a2):
    f32 = jnp.float32

    # ---- layer 1: im2col'd conv == one (256, 9) x (9, 32) matmul ------------
    a1 = jnp.dot(patches_ref[0], w1_ref[...], preferred_element_type=f32)
    a1 = jnp.maximum(a1 + b1_ref[...], 0.0)                     # (256, 32)

    # ---- layer 2: conv + ReLU + MaxPool2d(2, 2) ------------------------------
    c2 = _conv3x3_relu(st_a1, a1, w2_ref, b2_ref, W1, _TOP2)    # (256, 64)
    a2 = _pool2x2(p2_ref, c2)                                   # (64, 64)

    # ---- layer 3: conv + ReLU + MaxPool2d(2, 2, padding=1) -------------------
    c3 = _conv3x3_relu(st_a2, a2, w3_ref, b3_ref, W3, _TOP3)    # (64, 128)
    out = _pool2x2(p3_ref, c3)                                  # (25, 128)

    o_ref[0] = out.astype(o_ref.dtype)


# -----------------------------------------------------------------------------
# Host-side preparation (done once, outside the per-call forward).
# -----------------------------------------------------------------------------
def _fake_quant_weight(w, bits):
    """Brevitas-style per-tensor symmetric (narrow-range) weight fake-quant."""
    qmax = 2.0 ** (bits - 1) - 1.0
    scale = jnp.maximum(jnp.max(jnp.abs(w)), 1e-8) / qmax
    return jnp.clip(jnp.round(w / scale), -qmax, qmax) * scale


def _make_pool_taps(in_hw, out_hw, pad):
    """(4, out_hw^2, in_hw^2) 0/1 selection tensors, one per 2x2 pool tap.

    Tap (dy, dx) of output (ho, wo) selects input row (2ho-pad+dy)*in_hw +
    (2wo-pad+dx); out-of-range taps leave the row all-zero (harmless for
    max-pooling of non-negative post-ReLU activations).
    """
    t = np.zeros((4, out_hw * out_hw, in_hw * in_hw), np.float32)
    for k, (dy, dx) in enumerate(((0, 0), (0, 1), (1, 0), (1, 1))):
        for ho in range(out_hw):
            for wo in range(out_hw):
                y = 2 * ho - pad + dy
                x = 2 * wo - pad + dx
                if 0 <= y < in_hw and 0 <= x < in_hw:
                    t[k, ho * out_hw + wo, y * in_hw + x] = 1.0
    return jnp.asarray(t)


def prepare_kernel_params(params):
    """Fake-quantize + relayout the weights ONCE (hoisted out of the forward)."""
    w1 = _fake_quant_weight(params["w1"], Q_BIT_WIDTH)          # (32, 1, 3, 3)
    w2 = _fake_quant_weight(params["w2"], Q_BIT_WIDTH)          # (64, 32, 3, 3)
    w3 = _fake_quant_weight(params["w3"], Q_BIT_WIDTH)          # (128, 64, 3, 3)
    return {
        # (tap = ky*3+kx, Cin, Cout) layouts feeding the per-tap matmuls.
        "w1t": jnp.transpose(w1[:, 0], (1, 2, 0)).reshape(9, C1),
        "w2t": jnp.transpose(w2, (2, 3, 1, 0)).reshape(9, C1, C2),
        "w3t": jnp.transpose(w3, (2, 3, 1, 0)).reshape(9, C2, C3),
        "b1": params["b1"].reshape(1, C1),
        "b2": params["b2"].reshape(1, C2),
        "b3": params["b3"].reshape(1, C3),
        # Constant per-tap pool selection matrices.
        "p2": _make_pool_taps(W1, W3, pad=0),                    # (4, 64, 256)
        "p3": _make_pool_taps(W3, WO, pad=1),                    # (4, 25, 64)
    }


def quant_weight_net_forward(kparams, x_nchw):
    """QuantWeightNet.forward: NCHW in -> NCHW out via one fused Pallas kernel."""
    n = x_nchw.shape[0]

    # Layer-1 im2col at the kernel boundary (Cin == 1): the first conv becomes a
    # single lane-friendly (256, 9) x (9, 32) matmul inside the kernel.
    xpad = jnp.pad(x_nchw[:, 0], ((0, 0), (1, 1), (1, 1)))
    patches = jnp.stack(
        [xpad[:, ky:ky + H1, kx:kx + W1] for ky in range(3) for kx in range(3)],
        axis=-1).reshape(n, H1 * W1, 9)

    out_flat = pl.pallas_call(
        _net_kernel,
        out_shape=jax.ShapeDtypeStruct((n, HO * WO, C3), jnp.float32),
        grid=(n,),
        in_specs=[
            pl.BlockSpec((1, H1 * W1, 9), lambda i: (i, 0, 0)),
            pl.BlockSpec((9, C1), lambda i: (0, 0)),
            pl.BlockSpec((1, C1), lambda i: (0, 0)),
            pl.BlockSpec((9, C1, C2), lambda i: (0, 0, 0)),
            pl.BlockSpec((1, C2), lambda i: (0, 0)),
            pl.BlockSpec((9, C2, C3), lambda i: (0, 0, 0)),
            pl.BlockSpec((1, C3), lambda i: (0, 0)),
            pl.BlockSpec((4, H3 * W3, H1 * W1), lambda i: (0, 0, 0)),
            pl.BlockSpec((4, HO * WO, H3 * W3), lambda i: (0, 0, 0)),
        ],
        out_specs=pl.BlockSpec((1, HO * WO, C3), lambda i: (i, 0, 0)),
        scratch_shapes=[
            pltpu.VMEM((_ROWS2, C1), jnp.float32),   # staged layer-2 conv input
            pltpu.VMEM((_ROWS3, C2), jnp.float32),   # staged layer-3 conv input
        ],
        compiler_params=pltpu.CompilerParams(
            dimension_semantics=("parallel",)),      # v7x: one image per TensorCore
    )(patches, kparams["w1t"], kparams["b1"], kparams["w2t"], kparams["b2"],
      kparams["w3t"], kparams["b3"], kparams["p2"], kparams["p3"])

    # (N, 25, 128) -> NCHW (N, 128, 5, 5)
    return jnp.transpose(out_flat.reshape(n, HO, WO, C3), (0, 3, 1, 2))


# -----------------------------------------------------------------------------
# Pure-XLA reference (same fake-quantized weights) used as a numerical self-check.
# -----------------------------------------------------------------------------
def _reference_forward(kparams, x_nchw):
    def conv_relu(y, wt, b, cin, cout):
        w = wt.reshape(3, 3, cin, cout)
        y = jax.lax.conv_general_dilated(
            y, w, (1, 1), "SAME", dimension_numbers=("NHWC", "HWIO", "NHWC"))
        return jnp.maximum(y + b.reshape(1, 1, 1, cout), 0.0)

    def pool(y, pad):
        return jax.lax.reduce_window(
            y, -jnp.inf, jax.lax.max, (1, 2, 2, 1), (1, 2, 2, 1),
            ((0, 0), (pad, pad), (pad, pad), (0, 0)))

    y = jnp.transpose(x_nchw, (0, 2, 3, 1))
    y = conv_relu(y, kparams["w1t"], kparams["b1"], 1, C1)
    y = pool(conv_relu(y, kparams["w2t"], kparams["b2"], C1, C2), 0)
    y = pool(conv_relu(y, kparams["w3t"], kparams["b3"], C2, C3), 1)
    return jnp.transpose(y, (0, 3, 1, 2))


def init_params(key):
    ks = jax.random.split(key, 8)
    return {
        "w1": 0.20 * jax.random.normal(ks[0], (32, 1, 3, 3), jnp.float32),
        "b1": 0.05 * jax.random.normal(ks[1], (32,), jnp.float32),
        "w2": 0.10 * jax.random.normal(ks[2], (64, 32, 3, 3), jnp.float32),
        "b2": 0.05 * jax.random.normal(ks[3], (64,), jnp.float32),
        "w3": 0.10 * jax.random.normal(ks[4], (128, 64, 3, 3), jnp.float32),
        "b3": 0.05 * jax.random.normal(ks[5], (128,), jnp.float32),
        # fc1 / fc2 exist in __init__ but are never used by forward().
        "fc1_w": 0.05 * jax.random.normal(ks[6], (20, 512), jnp.float32),
        "fc1_b": jnp.zeros((20,), jnp.float32),
        "fc2_w": 0.05 * jax.random.normal(ks[7], (1, 20), jnp.float32),
        "fc2_b": jnp.zeros((1,), jnp.float32),
    }


if __name__ == "__main__":
    key = jax.random.PRNGKey(0)
    k_params, k_x = jax.random.split(key)
    params = init_params(k_params)
    kparams = prepare_kernel_params(params)     # weight prep hoisted out of forward

    # NCHW input consistent with the module: 1 input channel, 16x16.
    x = jax.random.normal(k_x, (2, 1, 16, 16), jnp.float32)

    fwd = jax.jit(quant_weight_net_forward)
    out = fwd(kparams, x)
    jax.block_until_ready(out)

    assert out.shape == (2, 128, 5, 5), out.shape          # 16 -> pool 8 -> pool(pad=1) 5
    assert bool(jnp.all(jnp.isfinite(out)))

    # Numerical self-check against a pure-XLA reference on the same quantized weights.
    ref = _reference_forward(kparams, x)
    err = float(jnp.max(jnp.abs(out - ref)) / (jnp.max(jnp.abs(ref)) + 1e-6))
    assert err < 5e-2, f"kernel/reference mismatch: rel err {err}"

    print("KERNEL_OK")
</pallas_src>

<mosaic_0001>
module attributes {stable_mosaic.version = 11 : i64} {
  func.func @_net_kernel(%arg0: i32, %arg1: memref<1x256x9xf32, #tpu.memory_space<vmem>>, %arg2: memref<9x32xf32, #tpu.memory_space<vmem>>, %arg3: memref<1x32xf32, #tpu.memory_space<vmem>>, %arg4: memref<9x32x64xf32, #tpu.memory_space<vmem>>, %arg5: memref<1x64xf32, #tpu.memory_space<vmem>>, %arg6: memref<9x64x128xf32, #tpu.memory_space<vmem>>, %arg7: memref<1x128xf32, #tpu.memory_space<vmem>>, %arg8: memref<4x64x256xf32, #tpu.memory_space<vmem>>, %arg9: memref<4x25x64xf32, #tpu.memory_space<vmem>>, %arg10: memref<1x25x128xf32, #tpu.memory_space<vmem>>, %arg11: memref<304x32xf32, #tpu.memory_space<vmem>>, %arg12: memref<96x64xf32, #tpu.memory_space<vmem>>) attributes {dimension_semantics = [#tpu.dimension_semantics<parallel>], iteration_bounds = array<i64: 2>, scalar_prefetch = 0 : i64, scratch_operands = 2 : i64, tpu.core_type = #tpu.core_type<tc>, window_params = [{transform_indices = @transform_0, window_bounds = array<i64: 1, 256, 9>}, {pipeline_mode = #tpu.pipeline_mode<synchronous>, transform_indices = @transform_1, window_bounds = array<i64: 9, 32>}, {pipeline_mode = #tpu.pipeline_mode<synchronous>, transform_indices = @transform_2, window_bounds = array<i64: 1, 32>}, {pipeline_mode = #tpu.pipeline_mode<synchronous>, transform_indices = @transform_3, window_bounds = array<i64: 9, 32, 64>}, {pipeline_mode = #tpu.pipeline_mode<synchronous>, transform_indices = @transform_4, window_bounds = array<i64: 1, 64>}, {pipeline_mode = #tpu.pipeline_mode<synchronous>, transform_indices = @transform_5, window_bounds = array<i64: 9, 64, 128>}, {pipeline_mode = #tpu.pipeline_mode<synchronous>, transform_indices = @transform_6, window_bounds = array<i64: 1, 128>}, {pipeline_mode = #tpu.pipeline_mode<synchronous>, transform_indices = @transform_7, window_bounds = array<i64: 4, 64, 256>}, {pipeline_mode = #tpu.pipeline_mode<synchronous>, transform_indices = @transform_8, window_bounds = array<i64: 4, 25, 64>}, {transform_indices = @transform_9, window_bounds = array<i64: 1, 25, 128>}]} {
    %c0 = arith.constant 0 : index
    %c0_0 = arith.constant 0 : index
    %c0_1 = arith.constant 0 : index
    %0 = vector.load %arg1[%c0, %c0_0, %c0_1] : memref<1x256x9xf32, #tpu.memory_space<vmem>>, vector<1x256x9xf32>
    %1 = vector.shape_cast %0 : vector<1x256x9xf32> to vector<256x9xf32>
    %c0_2 = arith.constant 0 : index
    %c0_3 = arith.constant 0 : index
    %2 = vector.load %arg2[%c0_2, %c0_3] : memref<9x32xf32, #tpu.memory_space<vmem>>, vector<9x32xf32>
    %cst = arith.constant dense<0.000000e+00> : vector<256x32xf32>
    %3 = tpu.matmul %1, %2, %cst {dimension_numbers = #tpu.dot_dimension_numbers<[1], [0], [0], [1], [0, 0, 1, 1], [], []>} : vector<256x9xf32>, vector<9x32xf32>, vector<256x32xf32> -> vector<256x32xf32>
    %c0_4 = arith.constant 0 : index
    %c0_5 = arith.constant 0 : index
    %4 = vector.load %arg3[%c0_4, %c0_5] : memref<1x32xf32, #tpu.memory_space<vmem>>, vector<1x32xf32>
    %5 = vector.broadcast %4 : vector<1x32xf32> to vector<256x32xf32>
    %6 = arith.addf %3, %5 : vector<256x32xf32>
    %cst_6 = arith.constant 0.000000e+00 : f32
    %7 = vector.broadcast %cst_6 : f32 to vector<256x32xf32>
    %8 = arith.maximumf %6, %7 : vector<256x32xf32>
    %cst_7 = arith.constant 0.000000e+00 : f32
    %9 = vector.broadcast %cst_7 : f32 to vector<24x32xf32>
    %c0_8 = arith.constant 0 : index
    %c0_9 = arith.constant 0 : index
    %10 = vector.load %arg11[%c0_8, %c0_9] : memref<304x32xf32, #tpu.memory_space<vmem>>, vector<24x32xf32>
    tpu.vector_store %arg11[%c0_8, %c0_9], %9 {strides = array<i32>} : memref<304x32xf32, #tpu.memory_space<vmem>>, vector<24x32xf32>,
    %c24 = arith.constant 24 : index
    %c0_10 = arith.constant 0 : index
    %11 = vector.load %arg11[%c24, %c0_10] : memref<304x32xf32, #tpu.memory_space<vmem>>, vector<256x32xf32>
    tpu.vector_store %arg11[%c24, %c0_10], %8 {strides = array<i32>} : memref<304x32xf32, #tpu.memory_space<vmem>>, vector<256x32xf32>,
    %cst_11 = arith.constant 0.000000e+00 : f32
    %12 = vector.broadcast %cst_11 : f32 to vector<24x32xf32>
    %c280 = arith.constant 280 : index
    %c0_12 = arith.constant 0 : index
    %13 = vector.load %arg11[%c280, %c0_12] : memref<304x32xf32, #tpu.memory_space<vmem>>, vector<24x32xf32>
    tpu.vector_store %arg11[%c280, %c0_12], %12 {strides = array<i32>} : memref<304x32xf32, #tpu.memory_space<vmem>>, vector<24x32xf32>,
    %14 = tpu.iota {dimensions = array<i32: 0>} : vector<256x32xi32>
    %c15_i32 = arith.constant 15 : i32
    %15 = vector.broadcast %c15_i32 : i32 to vector<256x32xi32>
    %16 = arith.andi %14, %15 : vector<256x32xi32>
    %c1_i32 = arith.constant 1 : i32
    %17 = vector.broadcast %c1_i32 : i32 to vector<256x32xi32>
    %18 = arith.cmpi sge, %16, %17 : vector<256x32xi32>
    %c14_i32 = arith.constant 14 : i32
    %19 = vector.broadcast %c14_i32 : i32 to vector<256x32xi32>
    %20 = arith.cmpi sle, %16, %19 : vector<256x32xi32>
    %cst_13 = arith.constant 0.000000e+00 : f32
    %21 = vector.broadcast %cst_13 : f32 to vector<256x64xf32>
    %c7 = arith.constant 7 : index
    %c0_14 = arith.constant 0 : index
    %22 = vector.load %arg11[%c7, %c0_14] : memref<304x32xf32, #tpu.memory_space<vmem>>, vector<256x32xf32>
    %cst_15 = arith.constant 0.000000e+00 : f32
    %23 = vector.broadcast %cst_15 : f32 to vector<256x32xf32>
    %24 = arith.select %18, %22, %23 : vector<256x32xi1>, vector<256x32xf32>
    %c0_16 = arith.constant 0 : index
    %c0_17 = arith.constant 0 : index
    %c0_18 = arith.constant 0 : index
    %25 = vector.load %arg4[%c0_16, %c0_17, %c0_18] : memref<9x32x64xf32, #tpu.memory_space<vmem>>, vector<1x32x64xf32>
    %26 = vector.shape_cast %25 : vector<1x32x64xf32> to vector<32x64xf32>
    %cst_19 = arith.constant dense<0.000000e+00> : vector<256x64xf32>
    %27 = tpu.matmul %24, %26, %cst_19 {dimension_numbers = #tpu.dot_dimension_numbers<[1], [0], [0], [1], [0, 0, 1, 1], [], []>} : vector<256x32xf32>, vector<32x64xf32>, vector<256x64xf32> -> vector<256x64xf32>
    %28 = arith.addf %21, %27 : vector<256x64xf32>
    %c8 = arith.constant 8 : index
    %c0_20 = arith.constant 0 : index
    %29 = vector.load %arg11[%c8, %c0_20] : memref<304x32xf32, #tpu.memory_space<vmem>>, vector<256x32xf32>
    %c1 = arith.constant 1 : index
    %c0_21 = arith.constant 0 : index
    %c0_22 = arith.constant 0 : index
    %30 = vector.load %arg4[%c1, %c0_21, %c0_22] : memref<9x32x64xf32, #tpu.memory_space<vmem>>, vector<1x32x64xf32>
    %31 = vector.shape_cast %30 : vector<1x32x64xf32> to vector<32x64xf32>
    %cst_23 = arith.constant dense<0.000000e+00> : vector<256x64xf32>
    %32 = tpu.matmul %29, %31, %cst_23 {dimension_numbers = #tpu.dot_dimension_numbers<[1], [0], [0], [1], [0, 0, 1, 1], [], []>} : vector<256x32xf32>, vector<32x64xf32>, vector<256x64xf32> -> vector<256x64xf32>
    %33 = arith.addf %28, %32 : vector<256x64xf32>
    %c9 = arith.constant 9 : index
    %c0_24 = arith.constant 0 : index
    %34 = vector.load %arg11[%c9, %c0_24] : memref<304x32xf32, #tpu.memory_space<vmem>>, vector<256x32xf32>
    %cst_25 = arith.constant 0.000000e+00 : f32
    %35 = vector.broadcast %cst_25 : f32 to vector<256x32xf32>
    %36 = arith.select %20, %34, %35 : vector<256x32xi1>, vector<256x32xf32>
    %c2 = arith.constant 2 : index
    %c0_26 = arith.constant 0 : index
    %c0_27 = arith.constant 0 : index
    %37 = vector.load %arg4[%c2, %c0_26, %c0_27] : memref<9x32x64xf32, #tpu.memory_space<vmem>>, vector<1x32x64xf32>
    %38 = vector.shape_cast %37 : vector<1x32x64xf32> to vector<32x64xf32>
    %cst_28 = arith.constant dense<0.000000e+00> : vector<256x64xf32>
    %39 = tpu.matmul %36, %38, %cst_28 {dimension_numbers = #tpu.dot_dimension_numbers<[1], [0], [0], [1], [0, 0, 1, 1], [], []>} : vector<256x32xf32>, vector<32x64xf32>, vector<256x64xf32> -> vector<256x64xf32>
    %40 = arith.addf %33, %39 : vector<256x64xf32>
    %c23 = arith.constant 23 : index
    %c0_29 = arith.constant 0 : index
    %41 = vector.load %arg11[%c23, %c0_29] : memref<304x32xf32, #tpu.memory_space<vmem>>, vector<256x32xf32>
    %cst_30 = arith.constant 0.000000e+00 : f32
    %42 = vector.broadcast %cst_30 : f32 to vector<256x32xf32>
    %43 = arith.select %18, %41, %42 : vector<256x32xi1>, vector<256x32xf32>
    %c3 = arith.constant 3 : index
    %c0_31 = arith.constant 0 : index
    %c0_32 = arith.constant 0 : index
    %44 = vector.load %arg4[%c3, %c0_31, %c0_32] : memref<9x32x64xf32, #tpu.memory_space<vmem>>, vector<1x32x64xf32>
    %45 = vector.shape_cast %44 : vector<1x32x64xf32> to vector<32x64xf32>
    %cst_33 = arith.constant dense<0.000000e+00> : vector<256x64xf32>
    %46 = tpu.matmul %43, %45, %cst_33 {dimension_numbers = #tpu.dot_dimension_numbers<[1], [0], [0], [1], [0, 0, 1, 1], [], []>} : vector<256x32xf32>, vector<32x64xf32>, vector<256x64xf32> -> vector<256x64xf32>
    %47 = arith.addf %40, %46 : vector<256x64xf32>
    %c24_34 = arith.constant 24 : index
    %c0_35 = arith.constant 0 : index
    %48 = vector.load %arg11[%c24_34, %c0_35] : memref<304x32xf32, #tpu.memory_space<vmem>>, vector<256x32xf32>
    %c4 = arith.constant 4 : index
    %c0_36 = arith.constant 0 : index
    %c0_37 = arith.constant 0 : index
    %49 = vector.load %arg4[%c4, %c0_36, %c0_37] : memref<9x32x64xf32, #tpu.memory_space<vmem>>, vector<1x32x64xf32>
    %50 = vector.shape_cast %49 : vector<1x32x64xf32> to vector<32x64xf32>
    %cst_38 = arith.constant dense<0.000000e+00> : vector<256x64xf32>
    %51 = tpu.matmul %48, %50, %cst_38 {dimension_numbers = #tpu.dot_dimension_numbers<[1], [0], [0], [1], [0, 0, 1, 1], [], []>} : vector<256x32xf32>, vector<32x64xf32>, vector<256x64xf32> -> vector<256x64xf32>
    %52 = arith.addf %47, %51 : vector<256x64xf32>
    %c25 = arith.constant 25 : index
    %c0_39 = arith.constant 0 : index
    %53 = vector.load %arg11[%c25, %c0_39] : memref<304x32xf32, #tpu.memory_space<vmem>>, vector<256x32xf32>
    %cst_40 = arith.constant 0.000000e+00 : f32
    %54 = vector.broadcast %cst_40 : f32 to vector<256x32xf32>
    %55 = arith.select %20, %53, %54 : vector<256x32xi1>, vector<256x32xf32>
    %c5 = arith.constant 5 : index
    %c0_41 = arith.constant 0 : index
    %c0_42 = arith.constant 0 : index
    %56 = vector.load %arg4[%c5, %c0_41, %c0_42] : memref<9x32x64xf32, #tpu.memory_space<vmem>>, vector<1x32x64xf32>
    %57 = vector.shape_cast %56 : vector<1x32x64xf32> to vector<32x64xf32>
    %cst_43 = arith.constant dense<0.000000e+00> : vector<256x64xf32>
    %58 = tpu.matmul %55, %57, %cst_43 {dimension_numbers = #tpu.dot_dimension_numbers<[1], [0], [0], [1], [0, 0, 1, 1], [], []>} : vector<256x32xf32>, vector<32x64xf32>, vector<256x64xf32> -> vector<256x64xf32>
    %59 = arith.addf %52, %58 : vector<256x64xf32>
    %c39 = arith.constant 39 : index
    %c0_44 = arith.constant 0 : index
    %60 = vector.load %arg11[%c39, %c0_44] : memref<304x32xf32, #tpu.memory_space<vmem>>, vector<256x32xf32>
    %cst_45 = arith.constant 0.000000e+00 : f32
    %61 = vector.broadcast %cst_45 : f32 to vector<256x32xf32>
    %62 = arith.select %18, %60, %61 : vector<256x32xi1>, vector<256x32xf32>
    %c6 = arith.constant 6 : index
    %c0_46 = arith.constant 0 : index
    %c0_47 = arith.constant 0 : index
    %63 = vector.load %arg4[%c6, %c0_46, %c0_47] : memref<9x32x64xf32, #tpu.memory_space<vmem>>, vector<1x32x64xf32>
    %64 = vector.shape_cast %63 : vector<1x32x64xf32> to vector<32x64xf32>
    %cst_48 = arith.constant dense<0.000000e+00> : vector<256x64xf32>
    %65 = tpu.matmul %62, %64, %cst_48 {dimension_numbers = #tpu.dot_dimension_numbers<[1], [0], [0], [1], [0, 0, 1, 1], [], []>} : vector<256x32xf32>, vector<32x64xf32>, vector<256x64xf32> -> vector<256x64xf32>
    %66 = arith.addf %59, %65 : vector<256x64xf32>
    %c40 = arith.constant 40 : index
    %c0_49 = arith.constant 0 : index
    %67 = vector.load %arg11[%c40, %c0_49] : memref<304x32xf32, #tpu.memory_space<vmem>>, vector<256x32xf32>
    %c7_50 = arith.constant 7 : index
    %c0_51 = arith.constant 0 : index
    %c0_52 = arith.constant 0 : index
    %68 = vector.load %arg4[%c7_50, %c0_51, %c0_52] : memref<9x32x64xf32, #tpu.memory_space<vmem>>, vector<1x32x64xf32>
    %69 = vector.shape_cast %68 : vector<1x32x64xf32> to vector<32x64xf32>
    %cst_53 = arith.constant dense<0.000000e+00> : vector<256x64xf32>
    %70 = tpu.matmul %67, %69, %cst_53 {dimension_numbers = #tpu.dot_dimension_numbers<[1], [0], [0], [1], [0, 0, 1, 1], [], []>} : vector<256x32xf32>, vector<32x64xf32>, vector<256x64xf32> -> vector<256x64xf32>
    %71 = arith.addf %66, %70 : vector<256x64xf32>
    %c41 = arith.constant 41 : index
    %c0_54 = arith.constant 0 : index
    %72 = vector.load %arg11[%c41, %c0_54] : memref<304x32xf32, #tpu.memory_space<vmem>>, vector<256x32xf32>
    %cst_55 = arith.constant 0.000000e+00 : f32
    %73 = vector.broadcast %cst_55 : f32 to vector<256x32xf32>
    %74 = arith.select %20, %72, %73 : vector<256x32xi1>, vector<256x32xf32>
    %c8_56 = arith.constant 8 : index
    %c0_57 = arith.constant 0 : index
    %c0_58 = arith.constant 0 : index
    %75 = vector.load %arg4[%c8_56, %c0_57, %c0_58] : memref<9x32x64xf32, #tpu.memory_space<vmem>>, vector<1x32x64xf32>
    %76 = vector.shape_cast %75 : vector<1x32x64xf32> to vector<32x64xf32>
    %cst_59 = arith.constant dense<0.000000e+00> : vector<256x64xf32>
    %77 = tpu.matmul %74, %76, %cst_59 {dimension_numbers = #tpu.dot_dimension_numbers<[1], [0], [0], [1], [0, 0, 1, 1], [], []>} : vector<256x32xf32>, vector<32x64xf32>, vector<256x64xf32> -> vector<256x64xf32>
    %78 = arith.addf %71, %77 : vector<256x64xf32>
    %c0_60 = arith.constant 0 : index
    %c0_61 = arith.constant 0 : index
    %79 = vector.load %arg5[%c0_60, %c0_61] : memref<1x64xf32, #tpu.memory_space<vmem>>, vector<1x64xf32>
    %80 = vector.broadcast %79 : vector<1x64xf32> to vector<256x64xf32>
    %81 = arith.addf %78, %80 : vector<256x64xf32>
    %cst_62 = arith.constant 0.000000e+00 : f32
    %82 = vector.broadcast %cst_62 : f32 to vector<256x64xf32>
    %83 = arith.maximumf %81, %82 : vector<256x64xf32>
    %c0_63 = arith.constant 0 : index
    %c0_64 = arith.constant 0 : index
    %c0_65 = arith.constant 0 : index
    %84 = vector.load %arg8[%c0_63, %c0_64, %c0_65] : memref<4x64x256xf32, #tpu.memory_space<vmem>>, vector<1x64x256xf32>
    %85 = vector.shape_cast %84 : vector<1x64x256xf32> to vector<64x256xf32>
    %cst_66 = arith.constant dense<0.000000e+00> : vector<64x64xf32>
    %86 = tpu.matmul %85, %83, %cst_66 {dimension_numbers = #tpu.dot_dimension_numbers<[1], [0], [0], [1], [0, 0, 1, 1], [], []>} : vector<64x256xf32>, vector<256x64xf32>, vector<64x64xf32> -> vector<64x64xf32>
    %c1_67 = arith.constant 1 : index
    %c0_68 = arith.constant 0 : index
    %c0_69 = arith.constant 0 : index
    %87 = vector.load %arg8[%c1_67, %c0_68, %c0_69] : memref<4x64x256xf32, #tpu.memory_space<vmem>>, vector<1x64x256xf32>
    %88 = vector.shape_cast %87 : vector<1x64x256xf32> to vector<64x256xf32>
    %cst_70 = arith.constant dense<0.000000e+00> : vector<64x64xf32>
    %89 = tpu.matmul %88, %83, %cst_70 {dimension_numbers = #tpu.dot_dimension_numbers<[1], [0], [0], [1], [0, 0, 1, 1], [], []>} : vector<64x256xf32>, vector<256x64xf32>, vector<64x64xf32> -> vector<64x64xf32>
    %90 = arith.maximumf %86, %89 : vector<64x64xf32>
    %c2_71 = arith.constant 2 : index
    %c0_72 = arith.constant 0 : index
    %c0_73 = arith.constant 0 : index
    %91 = vector.load %arg8[%c2_71, %c0_72, %c0_73] : memref<4x64x256xf32, #tpu.memory_space<vmem>>, vector<1x64x256xf32>
    %92 = vector.shape_cast %91 : vector<1x64x256xf32> to vector<64x256xf32>
    %cst_74 = arith.constant dense<0.000000e+00> : vector<64x64xf32>
    %93 = tpu.matmul %92, %83, %cst_74 {dimension_numbers = #tpu.dot_dimension_numbers<[1], [0], [0], [1], [0, 0, 1, 1], [], []>} : vector<64x256xf32>, vector<256x64xf32>, vector<64x64xf32> -> vector<64x64xf32>
    %94 = arith.maximumf %90, %93 : vector<64x64xf32>
    %c3_75 = arith.constant 3 : index
    %c0_76 = arith.constant 0 : index
    %c0_77 = arith.constant 0 : index
    %95 = vector.load %arg8[%c3_75, %c0_76, %c0_77] : memref<4x64x256xf32, #tpu.memory_space<vmem>>, vector<1x64x256xf32>
    %96 = vector.shape_cast %95 : vector<1x64x256xf32> to vector<64x256xf32>
    %cst_78 = arith.constant dense<0.000000e+00> : vector<64x64xf32>
    %97 = tpu.matmul %96, %83, %cst_78 {dimension_numbers = #tpu.dot_dimension_numbers<[1], [0], [0], [1], [0, 0, 1, 1], [], []>} : vector<64x256xf32>, vector<256x64xf32>, vector<64x64xf32> -> vector<64x64xf32>
    %98 = arith.maximumf %94, %97 : vector<64x64xf32>
    %cst_79 = arith.constant 0.000000e+00 : f32
    %99 = vector.broadcast %cst_79 : f32 to vector<16x64xf32>
    %c0_80 = arith.constant 0 : index
    %c0_81 = arith.constant 0 : index
    %100 = vector.load %arg12[%c0_80, %c0_81] : memref<96x64xf32, #tpu.memory_space<vmem>>, vector<16x64xf32>
    tpu.vector_store %arg12[%c0_80, %c0_81], %99 {strides = array<i32>} : memref<96x64xf32, #tpu.memory_space<vmem>>, vector<16x64xf32>,
    %c16 = arith.constant 16 : index
    %c0_82 = arith.constant 0 : index
    %101 = vector.load %arg12[%c16, %c0_82] : memref<96x64xf32, #tpu.memory_space<vmem>>, vector<64x64xf32>
    tpu.vector_store %arg12[%c16, %c0_82], %98 {strides = array<i32>} : memref<96x64xf32, #tpu.memory_space<vmem>>, vector<64x64xf32>,
    %cst_83 = arith.constant 0.000000e+00 : f32
    %102 = vector.broadcast %cst_83 : f32 to vector<16x64xf32>
    %c80 = arith.constant 80 : index
    %c0_84 = arith.constant 0 : index
    %103 = vector.load %arg12[%c80, %c0_84] : memref<96x64xf32, #tpu.memory_space<vmem>>, vector<16x64xf32>
    tpu.vector_store %arg12[%c80, %c0_84], %102 {strides = array<i32>} : memref<96x64xf32, #tpu.memory_space<vmem>>, vector<16x64xf32>,
    %104 = tpu.iota {dimensions = array<i32: 0>} : vector<64x64xi32>
    %c7_i32 = arith.constant 7 : i32
    %105 = vector.broadcast %c7_i32 : i32 to vector<64x64xi32>
    %106 = arith.andi %104, %105 : vector<64x64xi32>
    %c1_i32_85 = arith.constant 1 : i32
    %107 = vector.broadcast %c1_i32_85 : i32 to vector<64x64xi32>
    %108 = arith.cmpi sge, %106, %107 : vector<64x64xi32>
    %c6_i32 = arith.constant 6 : i32
    %109 = vector.broadcast %c6_i32 : i32 to vector<64x64xi32>
    %110 = arith.cmpi sle, %106, %109 : vector<64x64xi32>
    %cst_86 = arith.constant 0.000000e+00 : f32
    %111 = vector.broadcast %cst_86 : f32 to vector<64x128xf32>
    %c7_87 = arith.constant 7 : index
    %c0_88 = arith.constant 0 : index
    %112 = vector.load %arg12[%c7_87, %c0_88] : memref<96x64xf32, #tpu.memory_space<vmem>>, vector<64x64xf32>
    %cst_89 = arith.constant 0.000000e+00 : f32
    %113 = vector.broadcast %cst_89 : f32 to vector<64x64xf32>
    %114 = arith.select %108, %112, %113 : vector<64x64xi1>, vector<64x64xf32>
    %c0_90 = arith.constant 0 : index
    %c0_91 = arith.constant 0 : index
    %c0_92 = arith.constant 0 : index
    %115 = vector.load %arg6[%c0_90, %c0_91, %c0_92] : memref<9x64x128xf32, #tpu.memory_space<vmem>>, vector<1x64x128xf32>
    %116 = vector.shape_cast %115 : vector<1x64x128xf32> to vector<64x128xf32>
    %cst_93 = arith.constant dense<0.000000e+00> : vector<64x128xf32>
    %117 = tpu.matmul %114, %116, %cst_93 {dimension_numbers = #tpu.dot_dimension_numbers<[1], [0], [0], [1], [0, 0, 1, 1], [], []>} : vector<64x64xf32>, vector<64x128xf32>, vector<64x128xf32> -> vector<64x128xf32>
    %118 = arith.addf %111, %117 : vector<64x128xf32>
    %c8_94 = arith.constant 8 : index
    %c0_95 = arith.constant 0 : index
    %119 = vector.load %arg12[%c8_94, %c0_95] : memref<96x64xf32, #tpu.memory_space<vmem>>, vector<64x64xf32>
    %c1_96 = arith.constant 1 : index
    %c0_97 = arith.constant 0 : index
    %c0_98 = arith.constant 0 : index
    %120 = vector.load %arg6[%c1_96, %c0_97, %c0_98] : memref<9x64x128xf32, #tpu.memory_space<vmem>>, vector<1x64x128xf32>
    %121 = vector.shape_cast %120 : vector<1x64x128xf32> to vector<64x128xf32>
    %cst_99 = arith.constant dense<0.000000e+00> : vector<64x128xf32>
    %122 = tpu.matmul %119, %121, %cst_99 {dimension_numbers = #tpu.dot_dimension_numbers<[1], [0], [0], [1], [0, 0, 1, 1], [], []>} : vector<64x64xf32>, vector<64x128xf32>, vector<64x128xf32> -> vector<64x128xf32>
    %123 = arith.addf %118, %122 : vector<64x128xf32>
    %c9_100 = arith.constant 9 : index
    %c0_101 = arith.constant 0 : index
    %124 = vector.load %arg12[%c9_100, %c0_101] : memref<96x64xf32, #tpu.memory_space<vmem>>, vector<64x64xf32>
    %cst_102 = arith.constant 0.000000e+00 : f32
    %125 = vector.broadcast %cst_102 : f32 to vector<64x64xf32>
    %126 = arith.select %110, %124, %125 : vector<64x64xi1>, vector<64x64xf32>
    %c2_103 = arith.constant 2 : index
    %c0_104 = arith.constant 0 : index
    %c0_105 = arith.constant 0 : index
    %127 = vector.load %arg6[%c2_103, %c0_104, %c0_105] : memref<9x64x128xf32, #tpu.memory_space<vmem>>, vector<1x64x128xf32>
    %128 = vector.shape_cast %127 : vector<1x64x128xf32> to vector<64x128xf32>
    %cst_106 = arith.constant dense<0.000000e+00> : vector<64x128xf32>
    %129 = tpu.matmul %126, %128, %cst_106 {dimension_numbers = #tpu.dot_dimension_numbers<[1], [0], [0], [1], [0, 0, 1, 1], [], []>} : vector<64x64xf32>, vector<64x128xf32>, vector<64x128xf32> -> vector<64x128xf32>
    %130 = arith.addf %123, %129 : vector<64x128xf32>
    %c15 = arith.constant 15 : index
    %c0_107 = arith.constant 0 : index
    %131 = vector.load %arg12[%c15, %c0_107] : memref<96x64xf32, #tpu.memory_space<vmem>>, vector<64x64xf32>
    %cst_108 = arith.constant 0.000000e+00 : f32
    %132 = vector.broadcast %cst_108 : f32 to vector<64x64xf32>
    %133 = arith.select %108, %131, %132 : vector<64x64xi1>, vector<64x64xf32>
    %c3_109 = arith.constant 3 : index
    %c0_110 = arith.constant 0 : index
    %c0_111 = arith.constant 0 : index
    %134 = vector.load %arg6[%c3_109, %c0_110, %c0_111] : memref<9x64x128xf32, #tpu.memory_space<vmem>>, vector<1x64x128xf32>
    %135 = vector.shape_cast %134 : vector<1x64x128xf32> to vector<64x128xf32>
    %cst_112 = arith.constant dense<0.000000e+00> : vector<64x128xf32>
    %136 = tpu.matmul %133, %135, %cst_112 {dimension_numbers = #tpu.dot_dimension_numbers<[1], [0], [0], [1], [0, 0, 1, 1], [], []>} : vector<64x64xf32>, vector<64x128xf32>, vector<64x128xf32> -> vector<64x128xf32>
    %137 = arith.addf %130, %136 : vector<64x128xf32>
    %c16_113 = arith.constant 16 : index
    %c0_114 = arith.constant 0 : index
    %138 = vector.load %arg12[%c16_113, %c0_114] : memref<96x64xf32, #tpu.memory_space<vmem>>, vector<64x64xf32>
    %c4_115 = arith.constant 4 : index
    %c0_116 = arith.constant 0 : index
    %c0_117 = arith.constant 0 : index
    %139 = vector.load %arg6[%c4_115, %c0_116, %c0_117] : memref<9x64x128xf32, #tpu.memory_space<vmem>>, vector<1x64x128xf32>
    %140 = vector.shape_cast %139 : vector<1x64x128xf32> to vector<64x128xf32>
    %cst_118 = arith.constant dense<0.000000e+00> : vector<64x128xf32>
    %141 = tpu.matmul %138, %140, %cst_118 {dimension_numbers = #tpu.dot_dimension_numbers<[1], [0], [0], [1], [0, 0, 1, 1], [], []>} : vector<64x64xf32>, vector<64x128xf32>, vector<64x128xf32> -> vector<64x128xf32>
    %142 = arith.addf %137, %141 : vector<64x128xf32>
    %c17 = arith.constant 17 : index
    %c0_119 = arith.constant 0 : index
    %143 = vector.load %arg12[%c17, %c0_119] : memref<96x64xf32, #tpu.memory_space<vmem>>, vector<64x64xf32>
    %cst_120 = arith.constant 0.000000e+00 : f32
    %144 = vector.broadcast %cst_120 : f32 to vector<64x64xf32>
    %145 = arith.select %110, %143, %144 : vector<64x64xi1>, vector<64x64xf32>
    %c5_121 = arith.constant 5 : index
    %c0_122 = arith.constant 0 : index
    %c0_123 = arith.constant 0 : index
    %146 = vector.load %arg6[%c5_121, %c0_122, %c0_123] : memref<9x64x128xf32, #tpu.memory_space<vmem>>, vector<1x64x128xf32>
    %147 = vector.shape_cast %146 : vector<1x64x128xf32> to vector<64x128xf32>
    %cst_124 = arith.constant dense<0.000000e+00> : vector<64x128xf32>
    %148 = tpu.matmul %145, %147, %cst_124 {dimension_numbers = #tpu.dot_dimension_numbers<[1], [0], [0], [1], [0, 0, 1, 1], [], []>} : vector<64x64xf32>, vector<64x128xf32>, vector<64x128xf32> -> vector<64x128xf32>
    %149 = arith.addf %142, %148 : vector<64x128xf32>
    %c23_125 = arith.constant 23 : index
    %c0_126 = arith.constant 0 : index
    %150 = vector.load %arg12[%c23_125, %c0_126] : memref<96x64xf32, #tpu.memory_space<vmem>>, vector<64x64xf32>
    %cst_127 = arith.constant 0.000000e+00 : f32
    %151 = vector.broadcast %cst_127 : f32 to vector<64x64xf32>
    %152 = arith.select %108, %150, %151 : vector<64x64xi1>, vector<64x64xf32>
    %c6_128 = arith.constant 6 : index
    %c0_129 = arith.constant 0 : index
    %c0_130 = arith.constant 0 : index
    %153 = vector.load %arg6[%c6_128, %c0_129, %c0_130] : memref<9x64x128xf32, #tpu.memory_space<vmem>>, vector<1x64x128xf32>
    %154 = vector.shape_cast %153 : vector<1x64x128xf32> to vector<64x128xf32>
    %cst_131 = arith.constant dense<0.000000e+00> : vector<64x128xf32>
    %155 = tpu.matmul %152, %154, %cst_131 {dimension_numbers = #tpu.dot_dimension_numbers<[1], [0], [0], [1], [0, 0, 1, 1], [], []>} : vector<64x64xf32>, vector<64x128xf32>, vector<64x128xf32> -> vector<64x128xf32>
    %156 = arith.addf %149, %155 : vector<64x128xf32>
    %c24_132 = arith.constant 24 : index
    %c0_133 = arith.constant 0 : index
    %157 = vector.load %arg12[%c24_132, %c0_133] : memref<96x64xf32, #tpu.memory_space<vmem>>, vector<64x64xf32>
    %c7_134 = arith.constant 7 : index
    %c0_135 = arith.constant 0 : index
    %c0_136 = arith.constant 0 : index
    %158 = vector.load %arg6[%c7_134, %c0_135, %c0_136] : memref<9x64x128xf32, #tpu.memory_space<vmem>>, vector<1x64x128xf32>
    %159 = vector.shape_cast %158 : vector<1x64x128xf32> to vector<64x128xf32>
    %cst_137 = arith.constant dense<0.000000e+00> : vector<64x128xf32>
    %160 = tpu.matmul %157, %159, %cst_137 {dimension_numbers = #tpu.dot_dimension_numbers<[1], [0], [0], [1], [0, 0, 1, 1], [], []>} : vector<64x64xf32>, vector<64x128xf32>, vector<64x128xf32> -> vector<64x128xf32>
    %161 = arith.addf %156, %160 : vector<64x128xf32>
    %c25_138 = arith.constant 25 : index
    %c0_139 = arith.constant 0 : index
    %162 = vector.load %arg12[%c25_138, %c0_139] : memref<96x64xf32, #tpu.memory_space<vmem>>, vector<64x64xf32>
    %cst_140 = arith.constant 0.000000e+00 : f32
    %163 = vector.broadcast %cst_140 : f32 to vector<64x64xf32>
    %164 = arith.select %110, %162, %163 : vector<64x64xi1>, vector<64x64xf32>
    %c8_141 = arith.constant 8 : index
    %c0_142 = arith.constant 0 : index
    %c0_143 = arith.constant 0 : index
    %165 = vector.load %arg6[%c8_141, %c0_142, %c0_143] : memref<9x64x128xf32, #tpu.memory_space<vmem>>, vector<1x64x128xf32>
    %166 = vector.shape_cast %165 : vector<1x64x128xf32> to vector<64x128xf32>
    %cst_144 = arith.constant dense<0.000000e+00> : vector<64x128xf32>
    %167 = tpu.matmul %164, %166, %cst_144 {dimension_numbers = #tpu.dot_dimension_numbers<[1], [0], [0], [1], [0, 0, 1, 1], [], []>} : vector<64x64xf32>, vector<64x128xf32>, vector<64x128xf32> -> vector<64x128xf32>
    %168 = arith.addf %161, %167 : vector<64x128xf32>
    %c0_145 = arith.constant 0 : index
    %c0_146 = arith.constant 0 : index
    %169 = vector.load %arg7[%c0_145, %c0_146] : memref<1x128xf32, #tpu.memory_space<vmem>>, vector<1x128xf32>
    %170 = vector.broadcast %169 : vector<1x128xf32> to vector<64x128xf32>
    %171 = arith.addf %168, %170 : vector<64x128xf32>
    %cst_147 = arith.constant 0.000000e+00 : f32
    %172 = vector.broadcast %cst_147 : f32 to vector<64x128xf32>
    %173 = arith.maximumf %171, %172 : vector<64x128xf32>
    %c0_148 = arith.constant 0 : index
    %c0_149 = arith.constant 0 : index
    %c0_150 = arith.constant 0 : index
    %174 = vector.load %arg9[%c0_148, %c0_149, %c0_150] : memref<4x25x64xf32, #tpu.memory_space<vmem>>, vector<1x25x64xf32>
    %175 = vector.shape_cast %174 : vector<1x25x64xf32> to vector<25x64xf32>
    %cst_151 = arith.constant dense<0.000000e+00> : vector<25x128xf32>
    %176 = tpu.matmul %175, %173, %cst_151 {dimension_numbers = #tpu.dot_dimension_numbers<[1], [0], [0], [1], [0, 0, 1, 1], [], []>} : vector<25x64xf32>, vector<64x128xf32>, vector<25x128xf32> -> vector<25x128xf32>
    %c1_152 = arith.constant 1 : index
    %c0_153 = arith.constant 0 : index
    %c0_154 = arith.constant 0 : index
    %177 = vector.load %arg9[%c1_152, %c0_153, %c0_154] : memref<4x25x64xf32, #tpu.memory_space<vmem>>, vector<1x25x64xf32>
    %178 = vector.shape_cast %177 : vector<1x25x64xf32> to vector<25x64xf32>
    %cst_155 = arith.constant dense<0.000000e+00> : vector<25x128xf32>
    %179 = tpu.matmul %178, %173, %cst_155 {dimension_numbers = #tpu.dot_dimension_numbers<[1], [0], [0], [1], [0, 0, 1, 1], [], []>} : vector<25x64xf32>, vector<64x128xf32>, vector<25x128xf32> -> vector<25x128xf32>
    %180 = arith.maximumf %176, %179 : vector<25x128xf32>
    %c2_156 = arith.constant 2 : index
    %c0_157 = arith.constant 0 : index
    %c0_158 = arith.constant 0 : index
    %181 = vector.load %arg9[%c2_156, %c0_157, %c0_158] : memref<4x25x64xf32, #tpu.memory_space<vmem>>, vector<1x25x64xf32>
    %182 = vector.shape_cast %181 : vector<1x25x64xf32> to vector<25x64xf32>
    %cst_159 = arith.constant dense<0.000000e+00> : vector<25x128xf32>
    %183 = tpu.matmul %182, %173, %cst_159 {dimension_numbers = #tpu.dot_dimension_numbers<[1], [0], [0], [1], [0, 0, 1, 1], [], []>} : vector<25x64xf32>, vector<64x128xf32>, vector<25x128xf32> -> vector<25x128xf32>
    %184 = arith.maximumf %180, %183 : vector<25x128xf32>
    %c3_160 = arith.constant 3 : index
    %c0_161 = arith.constant 0 : index
    %c0_162 = arith.constant 0 : index
    %185 = vector.load %arg9[%c3_160, %c0_161, %c0_162] : memref<4x25x64xf32, #tpu.memory_space<vmem>>, vector<1x25x64xf32>
    %186 = vector.shape_cast %185 : vector<1x25x64xf32> to vector<25x64xf32>
    %cst_163 = arith.constant dense<0.000000e+00> : vector<25x128xf32>
    %187 = tpu.matmul %186, %173, %cst_163 {dimension_numbers = #tpu.dot_dimension_numbers<[1], [0], [0], [1], [0, 0, 1, 1], [], []>} : vector<25x64xf32>, vector<64x128xf32>, vector<25x128xf32> -> vector<25x128xf32>
    %188 = arith.maximumf %184, %187 : vector<25x128xf32>
    %c0_164 = arith.constant 0 : index
    %c0_165 = arith.constant 0 : index
    %c0_166 = arith.constant 0 : index
    %189 = vector.load %arg10[%c0_164, %c0_165, %c0_166] : memref<1x25x128xf32, #tpu.memory_space<vmem>>, vector<1x25x128xf32>
    %190 = vector.shape_cast %189 : vector<1x25x128xf32> to vector<25x128xf32>
    %191 = vector.shape_cast %188 : vector<25x128xf32> to vector<1x25x128xf32>
    tpu.vector_store %arg10[%c0_164, %c0_165, %c0_166], %191 {strides = array<i32>} : memref<1x25x128xf32, #tpu.memory_space<vmem>>, vector<1x25x128xf32>,
    return
  }
  func.func @transform_0(%arg0: i32) -> (i32, i32, i32) {
    %c0_i32 = arith.constant 0 : i32
    %c0_i32_0 = arith.constant 0 : i32
    %c0_i32_1 = arith.constant 0 : i32
    return %arg0, %c0_i32, %c0_i32_0 : i32, i32, i32
  }
  func.func @transform_1(%arg0: i32) -> (i32, i32) {
    %c0_i32 = arith.constant 0 : i32
    %c0_i32_0 = arith.constant 0 : i32
    %c0_i32_1 = arith.constant 0 : i32
    return %c0_i32, %c0_i32_0 : i32, i32
  }
  func.func @transform_2(%arg0: i32) -> (i32, i32) {
    %c0_i32 = arith.constant 0 : i32
    %c0_i32_0 = arith.constant 0 : i32
    %c0_i32_1 = arith.constant 0 : i32
    return %c0_i32, %c0_i32_0 : i32, i32
  }
  func.func @transform_3(%arg0: i32) -> (i32, i32, i32) {
    %c0_i32 = arith.constant 0 : i32
    %c0_i32_0 = arith.constant 0 : i32
    %c0_i32_1 = arith.constant 0 : i32
    %c0_i32_2 = arith.constant 0 : i32
    return %c0_i32, %c0_i32_0, %c0_i32_1 : i32, i32, i32
  }
  func.func @transform_4(%arg0: i32) -> (i32, i32) {
    %c0_i32 = arith.constant 0 : i32
    %c0_i32_0 = arith.constant 0 : i32
    %c0_i32_1 = arith.constant 0 : i32
    return %c0_i32, %c0_i32_0 : i32, i32
  }
  func.func @transform_5(%arg0: i32) -> (i32, i32, i32) {
    %c0_i32 = arith.constant 0 : i32
    %c0_i32_0 = arith.constant 0 : i32
    %c0_i32_1 = arith.constant 0 : i32
    %c0_i32_2 = arith.constant 0 : i32
    return %c0_i32, %c0_i32_0, %c0_i32_1 : i32, i32, i32
  }
  func.func @transform_6(%arg0: i32) -> (i32, i32) {
    %c0_i32 = arith.constant 0 : i32
    %c0_i32_0 = arith.constant 0 : i32
    %c0_i32_1 = arith.constant 0 : i32
    return %c0_i32, %c0_i32_0 : i32, i32
  }
  func.func @transform_7(%arg0: i32) -> (i32, i32, i32) {
    %c0_i32 = arith.constant 0 : i32
    %c0_i32_0 = arith.constant 0 : i32
    %c0_i32_1 = arith.constant 0 : i32
    %c0_i32_2 = arith.constant 0 : i32
    return %c0_i32, %c0_i32_0, %c0_i32_1 : i32, i32, i32
  }
  func.func @transform_8(%arg0: i32) -> (i32, i32, i32) {
    %c0_i32 = arith.constant 0 : i32
    %c0_i32_0 = arith.constant 0 : i32
    %c0_i32_1 = arith.constant 0 : i32
    %c0_i32_2 = arith.constant 0 : i32
    return %c0_i32, %c0_i32_0, %c0_i32_1 : i32, i32, i32
  }
  func.func @transform_9(%arg0: i32) -> (i32, i32, i32) {
    %c0_i32 = arith.constant 0 : i32
    %c0_i32_0 = arith.constant 0 : i32
    %c0_i32_1 = arith.constant 0 : i32
    return %arg0, %c0_i32, %c0_i32_0 : i32, i32, i32
  }
}

</mosaic_0001>

<llo_original>
// kernel: quant_weight_net_forward.1
$region0: #{quant_weight_net_forward.1}
  #allocation0 [shape = 'u32[]', space=smem, size = 0x4, offset = 0x4, fixed_abs, tag = 'smem constant byte address 0x4 - core index']
  #allocation1 [shape = 'u32[144,128]{1,0:T(1,128)}', space=vmem, size = 0x12000, scoped, tag = 'internal scratch']
  #allocation2 [shape = 'f32[304,32]{1,0:T(8,128)}', space=vmem, size = 0x26000, scoped, tag = 'scratch operand']
  #allocation3 [shape = 'f32[96,64]{1,0:T(8,128)}', space=vmem, size = 0xc000, scoped, tag = 'scratch operand']
  %s0 = inlined_call_operand.vmem [shape: f32[2,256,9], index: 0, kind: input, shape index: {}]
  %s1 = inlined_call_operand.vmem [shape: f32[9,32], index: 1, kind: input, shape index: {}]
  %s2 = inlined_call_operand.vmem [shape: f32[1,32], index: 2, kind: input, shape index: {}]
  %s3 = inlined_call_operand.vmem [shape: f32[9,32,64], index: 3, kind: input, shape index: {}]
  %s4 = inlined_call_operand.vmem [shape: f32[1,64], index: 4, kind: input, shape index: {}]
  %s5 = inlined_call_operand.vmem [shape: f32[9,64,128], index: 5, kind: input, shape index: {}]
  %s6 = inlined_call_operand.vmem [shape: f32[1,128], index: 6, kind: input, shape index: {}]
  %s7 = inlined_call_operand.vmem [shape: f32[4,64,256], index: 7, kind: input, shape index: {}]
  %s8 = inlined_call_operand.vmem [shape: f32[4,25,64], index: 8, kind: input, shape index: {}]
  %s9 = inlined_call_operand.vmem [shape: f32[2,25,128], index: 9, kind: output, shape index: {}]
  %s10 = sld [smem:[#allocation0]]
  $region69: #{quant_weight_net_forward.1} parent=0
    _
  %s12 = ssub.s32 1, %s10
  %s13 = scalar_select 0, %s12, %s10
  loop: start=0, step=1, limit=4
  $region2: #{quant_weight_net_forward.1} parent=0 // loop_pre_header
    _
  $region3: #{quant_weight_net_forward.1} parent=0 // loop_header
    %s15 = sphi 0, %s19
    %p16 = scmp.ge.s32.totalorder %s15, 4
    %s25 = sphi 0, %s27
    %s28 = sphi 0, %s25
    %s29 = sphi 0, %s28
    %s45 = sphi 0, %s29
    %s49 = sphi 0, %s49
    %s51 = sphi 0, %s49
    %s52 = sphi 0, %s51
    %s66 = sphi 0, %s52
    %s70 = sphi 0, %s70
    %s72 = sphi 0, %s70
    %s73 = sphi 0, %s72
    %s87 = sphi 0, %s73
    %s91 = sphi 0, %s91
    %s93 = sphi 0, %s91
    %s94 = sphi 0, %s93
    %s108 = sphi 0, %s94
    %s112 = sphi 0, %s112
    %s114 = sphi 0, %s112
    %s115 = sphi 0, %s114
    %s129 = sphi 0, %s115
    %s133 = sphi 0, %s133
    %s135 = sphi 0, %s133
    %s136 = sphi 0, %s135
    %s150 = sphi 0, %s136
    %s154 = sphi 0, %s154
    %s156 = sphi 0, %s154
    %s157 = sphi 0, %s156
    %s171 = sphi 0, %s157
    %s175 = sphi 0, %s175
    %s177 = sphi 0, %s175
    %s178 = sphi 0, %s177
    %s192 = sphi 0, %s178
    %s196 = sphi 0, %s196
    %s198 = sphi 0, %s196
    %s199 = sphi 0, %s198
    %s213 = sphi 0, %s199
    %s219 = sphi 0, %s221
    %s222 = sphi 0, %s219
    %s223 = sphi 0, %s222
    %s239 = sphi 0, %s223
  $region4: #{quant_weight_net_forward.1} parent=0 // loop_header_branch
    %18 = sbr.rel (%p16) target = $region8
  $region5: #{quant_weight_net_forward.1} parent=0 // loop_body
    %s20 = ssub.s32 %s15, 1
    %s21 = ssub.s32 %s15, 2
    %s22 = sadd.s32 %s15, 1
    %s23 = ssub.s32 %s15, %s22
    %p24 = scmp.eq.s32.totalorder %s23, 0
    %s26 = sadd.s32 %s25, 1
    %s27 = scalar_select %p24, %s25, %s26
    %p30 = pneg %p24
    %p31 = scmp.eq.s32.totalorder %s15, 1
    %p32 = por %p30, %p31
    %p33 = scmp.ne.s32.totalorder %s25, %s28
    %p34 = scmp.eq.s32.totalorder %s15, 0
    %p35 = por %p33, %p34
    %p36 = scmp.ne.s32.totalorder %s25, %s28
    %p37 = scmp.eq.s32.totalorder %s20, 1
    %p38 = por %p36, %p37
    %p39 = scmp.ne.s32.totalorder %s28, %s29
    %p40 = scmp.eq.s32.totalorder %s20, 0
    %p41 = por %p39, %p40
    %p42 = scmp.ne.s32.totalorder %s28, %s29
    %p43 = scmp.eq.s32.totalorder %s21, 1
    %p44 = por %p42, %p43
    %p46 = scmp.ne.s32.totalorder %s29, %s45
    %p47 = scmp.eq.s32.totalorder %s21, 0
    %p48 = por %p46, %p47
    %s50 = sadd.s32 %s49, 1
    %p53 = scmp.eq.s32.totalorder %s15, 1
    %p54 = scmp.ne.s32.totalorder %s49, %s51
    %p55 = scmp.eq.s32.totalorder %s15, 0
    %p56 = por %p54, %p55
    %p57 = scmp.ne.s32.totalorder %s49, %s51
    %p58 = scmp.eq.s32.totalorder %s20, 1
    %p59 = por %p57, %p58
    %p60 = scmp.ne.s32.totalorder %s51, %s52
    %p61 = scmp.eq.s32.totalorder %s20, 0
    %p62 = por %p60, %p61
    %p63 = scmp.ne.s32.totalorder %s51, %s52
    %p64 = scmp.eq.s32.totalorder %s21, 1
    %p65 = por %p63, %p64
    %p67 = scmp.ne.s32.totalorder %s52, %s66
    %p68 = scmp.eq.s32.totalorder %s21, 0
    %p69 = por %p67, %p68
    %s71 = sadd.s32 %s70, 1
    %p74 = scmp.eq.s32.totalorder %s15, 1
    %p75 = scmp.ne.s32.totalorder %s70, %s72
    %p76 = scmp.eq.s32.totalorder %s15, 0
    %p77 = por %p75, %p76
    %p78 = scmp.ne.s32.totalorder %s70, %s72
    %p79 = scmp.eq.s32.totalorder %s20, 1
    %p80 = por %p78, %p79
    %p81 = scmp.ne.s32.totalorder %s72, %s73
    %p82 = scmp.eq.s32.totalorder %s20, 0
    %p83 = por %p81, %p82
    %p84 = scmp.ne.s32.totalorder %s72, %s73
    %p85 = scmp.eq.s32.totalorder %s21, 1
    %p86 = por %p84, %p85
    %p88 = scmp.ne.s32.totalorder %s73, %s87
    %p89 = scmp.eq.s32.totalorder %s21, 0
    %p90 = por %p88, %p89
    %s92 = sadd.s32 %s91, 1
    %p95 = scmp.eq.s32.totalorder %s15, 1
    %p96 = scmp.ne.s32.totalorder %s91, %s93
    %p97 = scmp.eq.s32.totalorder %s15, 0
    %p98 = por %p96, %p97
    %p99 = scmp.ne.s32.totalorder %s91, %s93
    %p100 = scmp.eq.s32.totalorder %s20, 1
    %p101 = por %p99, %p100
    %p102 = scmp.ne.s32.totalorder %s93, %s94
    %p103 = scmp.eq.s32.totalorder %s20, 0
    %p104 = por %p102, %p103
    %p105 = scmp.ne.s32.totalorder %s93, %s94
    %p106 = scmp.eq.s32.totalorder %s21, 1
    %p107 = por %p105, %p106
    %p109 = scmp.ne.s32.totalorder %s94, %s108
    %p110 = scmp.eq.s32.totalorder %s21, 0
    %p111 = por %p109, %p110
    %s113 = sadd.s32 %s112, 1
    %p116 = scmp.eq.s32.totalorder %s15, 1
    %p117 = scmp.ne.s32.totalorder %s112, %s114
    %p118 = scmp.eq.s32.totalorder %s15, 0
    %p119 = por %p117, %p118
    %p120 = scmp.ne.s32.totalorder %s112, %s114
    %p121 = scmp.eq.s32.totalorder %s20, 1
    %p122 = por %p120, %p121
    %p123 = scmp.ne.s32.totalorder %s114, %s115
    %p124 = scmp.eq.s32.totalorder %s20, 0
    %p125 = por %p123, %p124
    %p126 = scmp.ne.s32.totalorder %s114, %s115
    %p127 = scmp.eq.s32.totalorder %s21, 1
    %p128 = por %p126, %p127
    %p130 = scmp.ne.s32.totalorder %s115, %s129
    %p131 = scmp.eq.s32.totalorder %s21, 0
    %p132 = por %p130, %p131
    %s134 = sadd.s32 %s133, 1
    %p137 = scmp.eq.s32.totalorder %s15, 1
    %p138 = scmp.ne.s32.totalorder %s133, %s135
    %p139 = scmp.eq.s32.totalorder %s15, 0
    %p140 = por %p138, %p139
    %p141 = scmp.ne.s32.totalorder %s133, %s135
    %p142 = scmp.eq.s32.totalorder %s20, 1
    %p143 = por %p141, %p142
    %p144 = scmp.ne.s32.totalorder %s135, %s136
    %p145 = scmp.eq.s32.totalorder %s20, 0
    %p146 = por %p144, %p145
    %p147 = scmp.ne.s32.totalorder %s135, %s136
    %p148 = scmp.eq.s32.totalorder %s21, 1
    %p149 = por %p147, %p148
    %p151 = scmp.ne.s32.totalorder %s136, %s150
    %p152 = scmp.eq.s32.totalorder %s21, 0
    %p153 = por %p151, %p152
    %s155 = sadd.s32 %s154, 1
    %p158 = scmp.eq.s32.totalorder %s15, 1
    %p159 = scmp.ne.s32.totalorder %s154, %s156
    %p160 = scmp.eq.s32.totalorder %s15, 0
    %p161 = por %p159, %p160
    %p162 = scmp.ne.s32.totalorder %s154, %s156
    %p163 = scmp.eq.s32.totalorder %s20, 1
    %p164 = por %p162, %p163
    %p165 = scmp.ne.s32.totalorder %s156, %s157
    %p166 = scmp.eq.s32.totalorder %s20, 0
    %p167 = por %p165, %p166
    %p168 = scmp.ne.s32.totalorder %s156, %s157
    %p169 = scmp.eq.s32.totalorder %s21, 1
    %p170 = por %p168, %p169
    %p172 = scmp.ne.s32.totalorder %s157, %s171
    %p173 = scmp.eq.s32.totalorder %s21, 0
    %p174 = por %p172, %p173
    %s176 = sadd.s32 %s175, 1
    %p179 = scmp.eq.s32.totalorder %s15, 1
    %p180 = scmp.ne.s32.totalorder %s175, %s177
    %p181 = scmp.eq.s32.totalorder %s15, 0
    %p182 = por %p180, %p181
    %p183 = scmp.ne.s32.totalorder %s175, %s177
    %p184 = scmp.eq.s32.totalorder %s20, 1
    %p185 = por %p183, %p184
    %p186 = scmp.ne.s32.totalorder %s177, %s178
    %p187 = scmp.eq.s32.totalorder %s20, 0
    %p188 = por %p186, %p187
    %p189 = scmp.ne.s32.totalorder %s177, %s178
    %p190 = scmp.eq.s32.totalorder %s21, 1
    %p191 = por %p189, %p190
    %p193 = scmp.ne.s32.totalorder %s178, %s192
    %p194 = scmp.eq.s32.totalorder %s21, 0
    %p195 = por %p193, %p194
    %s197 = sadd.s32 %s196, 1
    %p200 = scmp.eq.s32.totalorder %s15, 1
    %p201 = scmp.ne.s32.totalorder %s196, %s198
    %p202 = scmp.eq.s32.totalorder %s15, 0
    %p203 = por %p201, %p202
    %p204 = scmp.ne.s32.totalorder %s196, %s198
    %p205 = scmp.eq.s32.totalorder %s20, 1
    %p206 = por %p204, %p205
    %p207 = scmp.ne.s32.totalorder %s198, %s199
    %p208 = scmp.eq.s32.totalorder %s20, 0
    %p209 = por %p207, %p208
    %p210 = scmp.ne.s32.totalorder %s198, %s199
    %p211 = scmp.eq.s32.totalorder %s21, 1
    %p212 = por %p210, %p211
    %p214 = scmp.ne.s32.totalorder %s199, %s213
    %p215 = scmp.eq.s32.totalorder %s21, 0
    %p216 = por %p214, %p215
    %s217 = ssub.s32 %s15, %s22
    %p218 = scmp.eq.s32.totalorder %s217, 0
    %s220 = sadd.s32 %s219, 1
    %s221 = scalar_select %p218, %s219, %s220
    %p224 = pneg %p218
    %p225 = scmp.eq.s32.totalorder %s15, 1
    %p226 = por %p224, %p225
    %p227 = scmp.ne.s32.totalorder %s219, %s222
    %p228 = scmp.eq.s32.totalorder %s15, 0
    %p229 = por %p227, %p228
    %p230 = scmp.ne.s32.totalorder %s219, %s222
    %p231 = scmp.eq.s32.totalorder %s20, 1
    %p232 = por %p230, %p231
    %p233 = scmp.ne.s32.totalorder %s222, %s223
    %p234 = scmp.eq.s32.totalorder %s20, 0
    %p235 = por %p233, %p234
    %p236 = scmp.ne.s32.totalorder %s222, %s223
    %p237 = scmp.eq.s32.totalorder %s21, 1
    %p238 = por %p236, %p237
    %p240 = scmp.ne.s32.totalorder %s223, %s239
    %p241 = scmp.eq.s32.totalorder %s21, 0
    %p242 = por %p240, %p241
    %p243 = scmp.le.s32.totalorder 1, %s15
    %p244 = scmp.lt.s32.totalorder %s15, 3
    %p245 = pnand %p243, %p244
    %p246 = pneg %p245
    // Predicated region
    $region9: #{quant_weight_net_forward.1} parent=5 // pred_check
      _
    $region10: #{quant_weight_net_forward.1} parent=5 // pred_check_branch
      %248 = sbr.rel (%p245) target = $region12
    $region11: #{quant_weight_net_forward.1} parent=5 // pred_region
      %s249 = ssub.s32 %s15, 1
      // Predicated region
      $region13: #{quant_weight_net_forward.1} parent=11 // pred_check
        %p250 = pneg %p62
      $region14: #{quant_weight_net_forward.1} parent=11 // pred_check_branch
        %252 = sbr.rel (%p250) target = $region16
      $region15: #{quant_weight_net_forward.1} parent=11 // pred_region
        _
      $region16: #{quant_weight_net_forward.1} parent=11 // pred_fallthru
        _
      // Predicated region
      $region17: #{quant_weight_net_forward.1} parent=11 // pred_check
        %p253 = pneg %p83
      $region18: #{quant_weight_net_forward.1} parent=11 // pred_check_branch
        %255 = sbr.rel (%p253) target = $region20
      $region19: #{quant_weight_net_forward.1} parent=11 // pred_region
        _
      $region20: #{quant_weight_net_forward.1} parent=11 // pred_fallthru
        _
      // Predicated region
      $region21: #{quant_weight_net_forward.1} parent=11 // pred_check
        %p256 = pneg %p104
      $region22: #{quant_weight_net_forward.1} parent=11 // pred_check_branch
        %258 = sbr.rel (%p256) target = $region24
      $region23: #{quant_weight_net_forward.1} parent=11 // pred_region
        _
      $region24: #{quant_weight_net_forward.1} parent=11 // pred_fallthru
        _
      // Predicated region
      $region25: #{quant_weight_net_forward.1} parent=11 // pred_check
        %p259 = pneg %p125
      $region26: #{quant_weight_net_forward.1} parent=11 // pred_check_branch
        %261 = sbr.rel (%p259) target = $region28
      $region27: #{quant_weight_net_forward.1} parent=11 // pred_region
        _
      $region28: #{quant_weight_net_forward.1} parent=11 // pred_fallthru
        _
      // Predicated region
      $region29: #{quant_weight_net_forward.1} parent=11 // pred_check
        %p262 = pneg %p146
      $region30: #{quant_weight_net_forward.1} parent=11 // pred_check_branch
        %264 = sbr.rel (%p262) target = $region32
      $region31: #{quant_weight_net_forward.1} parent=11 // pred_region
        _
      $region32: #{quant_weight_net_forward.1} parent=11 // pred_fallthru
        _
      // Predicated region
      $region33: #{quant_weight_net_forward.1} parent=11 // pred_check
        %p265 = pneg %p167
      $region34: #{quant_weight_net_forward.1} parent=11 // pred_check_branch
        %267 = sbr.rel (%p265) target = $region36
      $region35: #{quant_weight_net_forward.1} parent=11 // pred_region
        _
      $region36: #{quant_weight_net_forward.1} parent=11 // pred_fallthru
        _
      // Predicated region
      $region37: #{quant_weight_net_forward.1} parent=11 // pred_check
        %p268 = pneg %p188
      $region38: #{quant_weight_net_forward.1} parent=11 // pred_check_branch
        %270 = sbr.rel (%p268) target = $region40
      $region39: #{quant_weight_net_forward.1} parent=11 // pred_region
        _
      $region40: #{quant_weight_net_forward.1} parent=11 // pred_fallthru
        _
      // Predicated region
      $region41: #{quant_weight_net_forward.1} parent=11 // pred_check
        %p271 = pneg %p209
      $region42: #{quant_weight_net_forward.1} parent=11 // pred_check_branch
        %273 = sbr.rel (%p271) target = $region44
      $region43: #{quant_weight_net_forward.1} parent=11 // pred_region
        _
      $region44: #{quant_weight_net_forward.1} parent=11 // pred_fallthru
        _
    $region12: #{quant_weight_net_forward.1} parent=5 // pred_fallthru
      _
    %p274 = scmp.lt.s32.totalorder %s15, 2
    // Predicated region
    $region45: #{quant_weight_net_forward.1} parent=5 // pred_check
      %p275 = pneg %p274
    $region46: #{quant_weight_net_forward.1} parent=5 // pred_check_branch
      %277 = sbr.rel (%p275) target = $region48
    $region47: #{quant_weight_net_forward.1} parent=5 // pred_region
      // Predicated region
      $region49: #{quant_weight_net_forward.1} parent=47 // pred_check
        %p278 = pneg %p35
      $region50: #{quant_weight_net_forward.1} parent=47 // pred_check_branch
        %280 = sbr.rel (%p278) target = $region52
      $region51: #{quant_weight_net_forward.1} parent=47 // pred_region
        %p281 = scmp.lt.s32.totalorder %s15, 1
        %s282 = scalar_select %p281, %s15, 1
        %s283 = smul.addr %s282, 32
        %s284 = smul.addr %s283, 8
        %s285 = scalar_lea.vmem %s0, %s284
      $region52: #{quant_weight_net_forward.1} parent=47 // pred_fallthru
        _
    $region48: #{quant_weight_net_forward.1} parent=5 // pred_fallthru
      _
    %p286 = scmp.le.s32.totalorder 1, %s15
    %p287 = scmp.lt.s32.totalorder %s15, 3
    %p288 = pnand %p286, %p287
    %p289 = pneg %p288
    // Predicated region
    $region53: #{quant_weight_net_forward.1} parent=5 // pred_check
      _
    $region54: #{quant_weight_net_forward.1} parent=5 // pred_check_branch
      %291 = sbr.rel (%p288) target = $region56
    $region55: #{quant_weight_net_forward.1} parent=5 // pred_region
      %s292 = ssub.s32 %s15, 1
      %p293 = scmp.lt.s32.totalorder %s20, 1
      %s294 = scalar_select %p293, %s20, 1
      %s295 = smul.addr %s294, 32
      %s296 = smul.addr %s295, 8
      %s297 = scalar_lea.vmem %s0, %s296
      %p298 = pneg %p41
      %p299 = pneg %p38
      %p300 = pneg %p62
      %p301 = pneg %p59
      %p302 = pneg %p83
      %p303 = pneg %p80
      %p304 = pneg %p104
      %p305 = pneg %p101
      %p306 = pneg %p125
      %p307 = pneg %p122
      %p308 = pneg %p146
      %p309 = pneg %p143
      %p310 = pneg %p167
      %p311 = pneg %p164
      %p312 = pneg %p188
      %p313 = pneg %p185
      %p314 = pneg %p209
      %p315 = pneg %p206
      %p316 = pneg %p235
      %p317 = pneg %p232
      %p318 = scmp.lt.s32.totalorder %s20, 1
      %s319 = scalar_select %p318, %s20, 1
      %s320 = smul.addr %s319, 4
      %s321 = smul.addr %s320, 8
      %s322 = scalar_lea.vmem %s9, %s321
      %p323 = scmp.lt.s32.totalorder %s20, 1
      %s324 = scalar_select %p323, %s20, 1
      %s325 = smul.addr %s324, 32
      %s326 = smul.addr %s325, 8
      %s327 = scalar_lea.vmem %s0, %s326
      %p328 = scmp.lt.s32.totalorder %s20, 1
      %s329 = scalar_select %p328, %s20, 1
      %s330 = smul.addr %s329, 4
      %s331 = smul.addr %s330, 8
      %s332 = scalar_lea.vmem %s9, %s331
      %v333 = vld [vmem:[%s327] sm:$0xff]
      %v334 = vld [vmem:[%s327 + $0x8] sm:$0xff]
      %v335 = vld [vmem:[%s327 + $0x10] sm:$0xff]
      %v336 = vld [vmem:[%s327 + $0x18] sm:$0xff]
      %v337 = vld [vmem:[%s327 + $0x20] sm:$0xff]
      %v338 = vld [vmem:[%s327 + $0x28] sm:$0xff]
      %v339 = vld [vmem:[%s327 + $0x30] sm:$0xff]
      %v340 = vld [vmem:[%s327 + $0x38] sm:$0xff]
      %v341 = vld [vmem:[%s327 + $0x40] sm:$0xff]
      %v342 = vld [vmem:[%s327 + $0x48] sm:$0xff]
      %v343 = vld [vmem:[%s327 + $0x50] sm:$0xff]
      %v344 = vld [vmem:[%s327 + $0x58] sm:$0xff]
      %v345 = vld [vmem:[%s327 + $0x60] sm:$0xff]
      %v346 = vld [vmem:[%s327 + $0x68] sm:$0xff]
      %v347 = vld [vmem:[%s327 + $0x70] sm:$0xff]
      %v348 = vld [vmem:[%s327 + $0x78] sm:$0xff]
      %v349 = vld [vmem:[%s327 + $0x80] sm:$0xff]
      %v350 = vld [vmem:[%s327 + $0x88] sm:$0xff]
      %v351 = vld [vmem:[%s327 + $0x90] sm:$0xff]
      %v352 = vld [vmem:[%s327 + $0x98] sm:$0xff]
      %v353 = vld [vmem:[%s327 + $0xa0] sm:$0xff]
      %v354 = vld [vmem:[%s327 + $0xa8] sm:$0xff]
      %v355 = vld [vmem:[%s327 + $0xb0] sm:$0xff]
      %v356 = vld [vmem:[%s327 + $0xb8] sm:$0xff]
      %v357 = vld [vmem:[%s327 + $0xc0] sm:$0xff]
      %v358 = vld [vmem:[%s327 + $0xc8] sm:$0xff]
      %v359 = vld [vmem:[%s327 + $0xd0] sm:$0xff]
      %v360 = vld [vmem:[%s327 + $0xd8] sm:$0xff]
      %v361 = vld [vmem:[%s327 + $0xe0] sm:$0xff]
      %v362 = vld [vmem:[%s327 + $0xe8] sm:$0xff]
      %v363 = vld [vmem:[%s327 + $0xf0] sm:$0xff]
      %v364 = vld [vmem:[%s327 + $0xf8] sm:$0xff]
      %v365 = vld [vmem:[%s1] sm:$0xff]
      %v366 = vld [vmem:[%s1 + $0x8] sm:$0x1]
      %v367 = vld [vmem:[%s2] sm:$0x1]
      %v369 = vlaneseq
      %v370 = vshrl.u32 %v369, 7
      %v371 = vsub.s32 0, %v370
      %v372 = vrot.slane %v367, %v371
      %vm374 = vcmask 72704
      %v376 = vsel %vm374, %v333, 0
      %v379 = vsel %vm374, %v334, 0
      %v382 = vsel %vm374, %v335, 0
      %v385 = vsel %vm374, %v336, 0
      %v388 = vsel %vm374, %v337, 0
      %v391 = vsel %vm374, %v338, 0
      %v394 = vsel %vm374, %v339, 0
      %v397 = vsel %vm374, %v340, 0
      %v400 = vsel %vm374, %v341, 0
      %v403 = vsel %vm374, %v342, 0
      %v406 = vsel %vm374, %v343, 0
      %v409 = vsel %vm374, %v344, 0
      %v412 = vsel %vm374, %v345, 0
      %v415 = vsel %vm374, %v346, 0
      %v418 = vsel %vm374, %v347, 0
      %v421 = vsel %vm374, %v348, 0
      %v424 = vsel %vm374, %v349, 0
      %v427 = vsel %vm374, %v350, 0
      %v430 = vsel %vm374, %v351, 0
      %v433 = vsel %vm374, %v352, 0
      %v436 = vsel %vm374, %v353, 0
      %v439 = vsel %vm374, %v354, 0
      %v442 = vsel %vm374, %v355, 0
      %v445 = vsel %vm374, %v356, 0
      %v448 = vsel %vm374, %v357, 0
      %v451 = vsel %vm374, %v358, 0
      %v454 = vsel %vm374, %v359, 0
      %v457 = vsel %vm374, %v360, 0
      %v460 = vsel %vm374, %v361, 0
      %v463 = vsel %vm374, %v362, 0
      %v466 = vsel %vm374, %v363, 0
      %v469 = vsel %vm374, %v364, 0
      %vm471 = vcmask 1040384
      %v473 = vsel %vm471, %v366, 0
      %475 = vmatprep.subr.mxu0 0.0
      %476 = vmatpush1.msra.mxu0 %v365
      %477 = vmatprep.subr.mxu0 0.0
      %478 = vmatpush1.msra.mxu0 %v473
      %479 = vmatprep.subr.mxu0 0.0
      %480 = vmatpush1.msra.mxu0 0.0
      %481 = vmatprep.subr.mxu0 0.0
      %482 = vmatpush1.msra.mxu0 0.0
      %483 = vmatprep.subr.mxu0 0.0
      %484 = vmatpush1.msra.mxu0 0.0
      %485 = vmatprep.subr.mxu0 0.0
      %486 = vmatpush1.msra.mxu0 0.0
      %487 = vmatprep.subr.mxu0 0.0
      %488 = vmatpush1.msra.mxu0 0.0
      %489 = vmatprep.subr.mxu0 0.0
      %490 = vmatpush1.msra.mxu0 0.0
      %491 = vmatprep.subr.mxu0 0.0
      %492 = vmatpush1.msra.mxu0 0.0
      %493 = vmatprep.subr.mxu0 0.0
      %494 = vmatpush1.msra.mxu0 0.0
      %495 = vmatprep.subr.mxu0 0.0
      %496 = vmatpush1.msra.mxu0 0.0
      %497 = vmatprep.subr.mxu0 0.0
      %498 = vmatpush1.msra.mxu0 0.0
      %499 = vmatprep.subr.mxu0 0.0
      %500 = vmatpush1.msra.mxu0 0.0
      %501 = vmatprep.subr.mxu0 0.0
      %502 = vmatpush1.msra.mxu0 0.0
      %503 = vmatprep.subr.mxu0 0.0
      %504 = vmatpush1.msra.mxu0 0.0
      %505 = vmatprep.subr.mxu0 0.0
      %506 = vmatpush1.msra.mxu0 0.0
      %507 = vmatprep.subr.mxu0 0.0
      %508 = vmatpush1.msra.mxu0 0.0
      %509 = vmatprep.subr.mxu0 0.0
      %510 = vmatpush1.msra.mxu0 0.0
      %511 = vmatprep.subr.mxu0 0.0
      %512 = vmatpush1.msra.mxu0 0.0
      %513 = vmatprep.subr.mxu0 0.0
      %514 = vmatpush1.msra.mxu0 0.0
      %515 = vmatprep.subr.mxu0 0.0
      %516 = vmatpush1.msra.mxu0 0.0
      %517 = vmatprep.subr.mxu0 0.0
      %518 = vmatpush1.msra.mxu0 0.0
      %519 = vmatprep.subr.mxu0 0.0
      %520 = vmatpush1.msra.mxu0 0.0
      %521 = vmatprep.subr.mxu0 0.0
      %522 = vmatpush1.msra.mxu0 0.0
      %523 = vmatprep.subr.mxu0 0.0
      %524 = vmatpush1.msra.mxu0 0.0
      %525 = vmatprep.subr.mxu0 0.0
      %526 = vmatpush1.msra.mxu0 0.0
      %527 = vmatprep.subr.mxu0 0.0
      %528 = vmatpush1.msra.mxu0 0.0
      %529 = vmatprep.subr.mxu0 0.0
      %530 = vmatpush1.msra.mxu0 0.0
      %531 = vmatprep.subr.mxu0 0.0
      %532 = vmatpush1.msra.mxu0 0.0
      %533 = vmatprep.subr.mxu0 0.0
      %534 = vmatpush1.msra.mxu0 0.0
      %535 = vmatprep.subr.mxu0 0.0
      %536 = vmatpush1.msra.mxu0 0.0
      %537 = vmatprep.subr.mxu0 0.0
      %538 = vmatpush1.msra.mxu0 0.0
      %539 = vmatprep.mubr.f32.mxu0 0.0
      %540 = vmatmul.mubr.f32.gmra.mrb[0].mxu0 %v376
      %v541 = vpop.f32.mrb[0].mxu0
      %v542 = vadd.f32 %v372, %v541
      %v543 = vpop.f32.mrb[0].mxu0
      %544 = vmatprep.mubr.f32.mxu0 0.0
      %545 = vmatmul.mubr.f32.gmra.mrb[0].mxu0 %v379
      %v546 = vpop.f32.mrb[0].mxu0
      %v547 = vadd.f32 %v372, %v546
      %v548 = vpop.f32.mrb[0].mxu0
      %549 = vmatprep.mubr.f32.mxu0 0.0
      %550 = vmatmul.mubr.f32.gmra.mrb[0].mxu0 %v382
      %v551 = vpop.f32.mrb[0].mxu0
      %v552 = vadd.f32 %v372, %v551
      %v553 = vpop.f32.mrb[0].mxu0
      %554 = vmatprep.mubr.f32.mxu0 0.0
      %555 = vmatmul.mubr.f32.gmra.mrb[0].mxu0 %v385
      %v556 = vpop.f32.mrb[0].mxu0
      %v557 = vadd.f32 %v372, %v556
      %v558 = vpop.f32.mrb[0].mxu0
      %559 = vmatprep.mubr.f32.mxu0 0.0
      %560 = vmatmul.mubr.f32.gmra.mrb[0].mxu0 %v388
      %v561 = vpop.f32.mrb[0].mxu0
      %v562 = vadd.f32 %v372, %v561
      %v563 = vpop.f32.mrb[0].mxu0
      %564 = vmatprep.mubr.f32.mxu0 0.0
      %565 = vmatmul.mubr.f32.gmra.mrb[0].mxu0 %v391
      %v566 = vpop.f32.mrb[0].mxu0
      %v567 = vadd.f32 %v372, %v566
      %v568 = vpop.f32.mrb[0].mxu0
      %569 = vmatprep.mubr.f32.mxu0 0.0
      %570 = vmatmul.mubr.f32.gmra.mrb[0].mxu0 %v394
      %v571 = vpop.f32.mrb[0].mxu0
      %v572 = vadd.f32 %v372, %v571
      %v573 = vpop.f32.mrb[0].mxu0
      %574 = vmatprep.mubr.f32.mxu0 0.0
      %575 = vmatmul.mubr.f32.gmra.mrb[0].mxu0 %v397
      %v576 = vpop.f32.mrb[0].mxu0
      %v577 = vadd.f32 %v372, %v576
      %v578 = vpop.f32.mrb[0].mxu0
      %579 = vmatprep.mubr.f32.mxu0 0.0
      %580 = vmatmul.mubr.f32.gmra.mrb[0].mxu0 %v400
      %v581 = vpop.f32.mrb[0].mxu0
      %v582 = vadd.f32 %v372, %v581
      %v583 = vpop.f32.mrb[0].mxu0
      %584 = vmatprep.mubr.f32.mxu0 0.0
      %585 = vmatmul.mubr.f32.gmra.mrb[0].mxu0 %v403
      %v586 = vpop.f32.mrb[0].mxu0
      %v587 = vadd.f32 %v372, %v586
      %v588 = vpop.f32.mrb[0].mxu0
      %589 = vmatprep.mubr.f32.mxu0 0.0
      %590 = vmatmul.mubr.f32.gmra.mrb[0].mxu0 %v406
      %v591 = vpop.f32.mrb[0].mxu0
      %v592 = vadd.f32 %v372, %v591
      %v593 = vpop.f32.mrb[0].mxu0
      %594 = vmatprep.mubr.f32.mxu0 0.0
      %595 = vmatmul.mubr.f32.gmra.mrb[0].mxu0 %v409
      %v596 = vpop.f32.mrb[0].mxu0
      %v597 = vadd.f32 %v372, %v596
      %v598 = vpop.f32.mrb[0].mxu0
      %599 = vmatprep.mubr.f32.mxu0 0.0
      %600 = vmatmul.mubr.f32.gmra.mrb[0].mxu0 %v412
      %v601 = vpop.f32.mrb[0].mxu0
      %v602 = vadd.f32 %v372, %v601
      %v603 = vpop.f32.mrb[0].mxu0
      %604 = vmatprep.mubr.f32.mxu0 0.0
      %605 = vmatmul.mubr.f32.gmra.mrb[0].mxu0 %v415
      %v606 = vpop.f32.mrb[0].mxu0
      %v607 = vadd.f32 %v372, %v606
      %v608 = vpop.f32.mrb[0].mxu0
      %609 = vmatprep.mubr.f32.mxu0 0.0
      %610 = vmatmul.mubr.f32.gmra.mrb[0].mxu0 %v418
      %v611 = vpop.f32.mrb[0].mxu0
      %v612 = vadd.f32 %v372, %v611
      %v613 = vpop.f32.mrb[0].mxu0
      %614 = vmatprep.mubr.f32.mxu0 0.0
      %615 = vmatmul.mubr.f32.gmra.mrb[0].mxu0 %v421
      %v616 = vpop.f32.mrb[0].mxu0
      %v617 = vadd.f32 %v372, %v616
      %v618 = vpop.f32.mrb[0].mxu0
      %619 = vmatprep.mubr.f32.mxu0 0.0
      %620 = vmatmul.mubr.f32.gmra.mrb[0].mxu0 %v424
      %v621 = vpop.f32.mrb[0].mxu0
      %v622 = vadd.f32 %v372, %v621
      %v623 = vpop.f32.mrb[0].mxu0
      %624 = vmatprep.mubr.f32.mxu0 0.0
      %625 = vmatmul.mubr.f32.gmra.mrb[0].mxu0 %v427
      %v626 = vpop.f32.mrb[0].mxu0
      %v627 = vadd.f32 %v372, %v626
      %v628 = vpop.f32.mrb[0].mxu0
      %629 = vmatprep.mubr.f32.mxu0 0.0
      %630 = vmatmul.mubr.f32.gmra.mrb[0].mxu0 %v430
      %v631 = vpop.f32.mrb[0].mxu0
      %v632 = vadd.f32 %v372, %v631
      %v633 = vpop.f32.mrb[0].mxu0
      %634 = vmatprep.mubr.f32.mxu0 0.0
      %635 = vmatmul.mubr.f32.gmra.mrb[0].mxu0 %v433
      %v636 = vpop.f32.mrb[0].mxu0
      %v637 = vadd.f32 %v372, %v636
      %v638 = vpop.f32.mrb[0].mxu0
      %639 = vmatprep.mubr.f32.mxu0 0.0
      %640 = vmatmul.mubr.f32.gmra.mrb[0].mxu0 %v436
      %v641 = vpop.f32.mrb[0].mxu0
      %v642 = vadd.f32 %v372, %v641
      %v643 = vpop.f32.mrb[0].mxu0
      %644 = vmatprep.mubr.f32.mxu0 0.0
      %645 = vmatmul.mubr.f32.gmra.mrb[0].mxu0 %v439
      %v646 = vpop.f32.mrb[0].mxu0
      %v647 = vadd.f32 %v372, %v646
      %v648 = vpop.f32.mrb[0].mxu0
      %649 = vmatprep.mubr.f32.mxu0 0.0
      %650 = vmatmul.mubr.f32.gmra.mrb[0].mxu0 %v442
      %v651 = vpop.f32.mrb[0].mxu0
      %v652 = vadd.f32 %v372, %v651
      %v653 = vpop.f32.mrb[0].mxu0
      %654 = vmatprep.mubr.f32.mxu0 0.0
      %655 = vmatmul.mubr.f32.gmra.mrb[0].mxu0 %v445
      %v656 = vpop.f32.mrb[0].mxu0
      %v657 = vadd.f32 %v372, %v656
      %v658 = vpop.f32.mrb[0].mxu0
      %659 = vmatprep.mubr.f32.mxu0 0.0
      %660 = vmatmul.mubr.f32.gmra.mrb[0].mxu0 %v448
      %v661 = vpop.f32.mrb[0].mxu0
      %v662 = vadd.f32 %v372, %v661
      %v663 = vpop.f32.mrb[0].mxu0
      %664 = vmatprep.mubr.f32.mxu0 0.0
      %665 = vmatmul.mubr.f32.gmra.mrb[0].mxu0 %v451
      %v666 = vpop.f32.mrb[0].mxu0
      %v667 = vadd.f32 %v372, %v666
      %v668 = vpop.f32.mrb[0].mxu0
      %669 = vmatprep.mubr.f32.mxu0 0.0
      %670 = vmatmul.mubr.f32.gmra.mrb[0].mxu0 %v454
      %v671 = vpop.f32.mrb[0].mxu0
      %v672 = vadd.f32 %v372, %v671
      %v673 = vpop.f32.mrb[0].mxu0
      %674 = vmatprep.mubr.f32.mxu0 0.0
      %675 = vmatmul.mubr.f32.gmra.mrb[0].mxu0 %v457
      %v676 = vpop.f32.mrb[0].mxu0
      %v677 = vadd.f32 %v372, %v676
      %v678 = vpop.f32.mrb[0].mxu0
      %679 = vmatprep.mubr.f32.mxu0 0.0
      %680 = vmatmul.mubr.f32.gmra.mrb[0].mxu0 %v460
      %v681 = vpop.f32.mrb[0].mxu0
      %v682 = vadd.f32 %v372, %v681
      %v683 = vpop.f32.mrb[0].mxu0
      %684 = vmatprep.mubr.f32.mxu0 0.0
      %685 = vmatmul.mubr.f32.gmra.mrb[0].mxu0 %v463
      %v686 = vpop.f32.mrb[0].mxu0
      %v687 = vadd.f32 %v372, %v686
      %v688 = vpop.f32.mrb[0].mxu0
      %689 = vmatprep.mubr.f32.mxu0 0.0
      %690 = vmatmul.mubr.f32.gmra.mrb[0].mxu0 %v466
      %v691 = vpop.f32.mrb[0].mxu0
      %v692 = vadd.f32 %v372, %v691
      %v693 = vpop.f32.mrb[0].mxu0
      %694 = vmatprep.mubr.f32.mxu0 0.0
      %695 = vmatmul.mubr.f32.gmra.mrb[0].mxu0 %v469
      %v696 = vpop.f32.mrb[0].mxu0
      %v697 = vadd.f32 %v372, %v696
      %v698 = vpop.f32.mrb[0].mxu0
      %699 = vdwg.mxu0
      %v700 = vmax.f32 %v542, 0.0
      %v701 = vmax.f32 %v547, 0.0
      %v702 = vmax.f32 %v552, 0.0
      %v703 = vmax.f32 %v557, 0.0
      %v704 = vmax.f32 %v562, 0.0
      %v705 = vmax.f32 %v567, 0.0
      %v706 = vmax.f32 %v572, 0.0
      %v707 = vmax.f32 %v577, 0.0
      %v708 = vmax.f32 %v582, 0.0
      %v709 = vmax.f32 %v587, 0.0
      %v710 = vmax.f32 %v592, 0.0
      %v711 = vmax.f32 %v597, 0.0
      %v712 = vmax.f32 %v602, 0.0
      %v713 = vmax.f32 %v607, 0.0
      %v714 = vmax.f32 %v612, 0.0
      %v715 = vmax.f32 %v617, 0.0
      %v716 = vmax.f32 %v622, 0.0
      %v717 = vmax.f32 %v627, 0.0
      %v718 = vmax.f32 %v632, 0.0
      %v719 = vmax.f32 %v637, 0.0
      %v720 = vmax.f32 %v642, 0.0
      %v721 = vmax.f32 %v647, 0.0
      %v722 = vmax.f32 %v652, 0.0
      %v723 = vmax.f32 %v657, 0.0
      %v724 = vmax.f32 %v662, 0.0
      %v725 = vmax.f32 %v667, 0.0
      %v726 = vmax.f32 %v672, 0.0
      %v727 = vmax.f32 %v677, 0.0
      %v728 = vmax.f32 %v682, 0.0
      %v729 = vmax.f32 %v687, 0.0
      %v730 = vmax.f32 %v692, 0.0
      %v731 = vmax.f32 %v697, 0.0
      %vm732 = vcmask 261120
      %733 = vst.msk [vmem:[#allocation2] sm:$0xff] %vm732, 0.0
      %734 = vst.msk [vmem:[#allocation2 + $0x8] sm:$0xff] %vm732, 0.0
      %735 = vst.msk [vmem:[#allocation2 + $0x10] sm:$0xff] %vm732, 0.0
      %736 = vst.msk [vmem:[#allocation2 + $0x18] sm:$0xff] %vm732, %v700
      %737 = vst.msk [vmem:[#allocation2 + $0x20] sm:$0xff] %vm732, %v701
      %738 = vst.msk [vmem:[#allocation2 + $0x28] sm:$0xff] %vm732, %v702
      %739 = vst.msk [vmem:[#allocation2 + $0x30] sm:$0xff] %vm732, %v703
      %740 = vst.msk [vmem:[#allocation2 + $0x38] sm:$0xff] %vm732, %v704
      %741 = vst.msk [vmem:[#allocation2 + $0x40] sm:$0xff] %vm732, %v705
      %742 = vst.msk [vmem:[#allocation2 + $0x48] sm:$0xff] %vm732, %v706
      %743 = vst.msk [vmem:[#allocation2 + $0x50] sm:$0xff] %vm732, %v707
      %744 = vst.msk [vmem:[#allocation2 + $0x58] sm:$0xff] %vm732, %v708
      %745 = vst.msk [vmem:[#allocation2 + $0x60] sm:$0xff] %vm732, %v709
      %746 = vst.msk [vmem:[#allocation2 + $0x68] sm:$0xff] %vm732, %v710
      %747 = vst.msk [vmem:[#allocation2 + $0x70] sm:$0xff] %vm732, %v711
      %748 = vst.msk [vmem:[#allocation2 + $0x78] sm:$0xff] %vm732, %v712
      %749 = vst.msk [vmem:[#allocation2 + $0x80] sm:$0xff] %vm732, %v713
      %750 = vst.msk [vmem:[#allocation2 + $0x88] sm:$0xff] %vm732, %v714
      %751 = vst.msk [vmem:[#allocation2 + $0x90] sm:$0xff] %vm732, %v715
      %752 = vst.msk [vmem:[#allocation2 + $0x98] sm:$0xff] %vm732, %v716
      %753 = vst.msk [vmem:[#allocation2 + $0xa0] sm:$0xff] %vm732, %v717
      %754 = vst.msk [vmem:[#allocation2 + $0xa8] sm:$0xff] %vm732, %v718
      %755 = vst.msk [vmem:[#allocation2 + $0xb0] sm:$0xff] %vm732, %v719
      %756 = vst.msk [vmem:[#allocation2 + $0xb8] sm:$0xff] %vm732, %v720
      %757 = vst.msk [vmem:[#allocation2 + $0xc0] sm:$0xff] %vm732, %v721
      %758 = vst.msk [vmem:[#allocation2 + $0xc8] sm:$0xff] %vm732, %v722
      %759 = vst.msk [vmem:[#allocation2 + $0xd0] sm:$0xff] %vm732, %v723
      %760 = vst.msk [vmem:[#allocation2 + $0xd8] sm:$0xff] %vm732, %v724
      %761 = vst.msk [vmem:[#allocation2 + $0xe0] sm:$0xff] %vm732, %v725
      %762 = vst.msk [vmem:[#allocation2 + $0xe8] sm:$0xff] %vm732, %v726
      %763 = vst.msk [vmem:[#allocation2 + $0xf0] sm:$0xff] %vm732, %v727
      %764 = vst.msk [vmem:[#allocation2 + $0xf8] sm:$0xff] %vm732, %v728
      %765 = vst.msk [vmem:[#allocation2 + $0x100] sm:$0xff] %vm732, %v729
      %766 = vst.msk [vmem:[#allocation2 + $0x108] sm:$0xff] %vm732, %v730
      %767 = vst.msk [vmem:[#allocation2 + $0x110] sm:$0xff] %vm732, %v731
      %768 = vst.msk [vmem:[#allocation2 + $0x118] sm:$0xff] %vm732, 0.0
      %769 = vst.msk [vmem:[#allocation2 + $0x120] sm:$0xff] %vm732, 0.0
      %770 = vst.msk [vmem:[#allocation2 + $0x128] sm:$0xff] %vm732, 0.0
      %v771 = vlaneseq
      %v772 = vshrl.u32 %v771, 7
      %v773 = vadd.s32 %v772, 8
      %v774 = vadd.s32 %v772, 16
      %v775 = vadd.s32 %v772, 24
      %v776 = vadd.s32 %v772, 32
      %v777 = vadd.s32 %v772, 40
      %v778 = vadd.s32 %v772, 48
      %v779 = vadd.s32 %v772, 56
      %v780 = vadd.s32 %v772, 64
      %v781 = vadd.s32 %v772, 72
      %v782 = vadd.s32 %v772, 80
      %v783 = vadd.s32 %v772, 88
      %v784 = vadd.s32 %v772, 96
      %v785 = vadd.s32 %v772, 104
      %v786 = vadd.s32 %v772, 112
      %v787 = vadd.s32 %v772, 120
      %v788 = vadd.s32 %v772, 128
      %v789 = vadd.s32 %v772, 136
      %v790 = vadd.s32 %v772, 144
      %v791 = vadd.s32 %v772, 152
      %v792 = vadd.s32 %v772, 160
      %v793 = vadd.s32 %v772, 168
      %v794 = vadd.s32 %v772, 176
      %v795 = vadd.s32 %v772, 184
      %v796 = vadd.s32 %v772, 192
      %v797 = vadd.s32 %v772, 200
      %v798 = vadd.s32 %v772, 208
      %v799 = vadd.s32 %v772, 216
      %v800 = vadd.s32 %v772, 224
      %v801 = vadd.s32 %v772, 232
      %v802 = vadd.s32 %v772, 240
      %v803 = vadd.s32 %v772, 248
      %v804 = vand.u32 %v772, 15
      %v805 = vand.u32 %v773, 15
      %v806 = vand.u32 %v774, 15
      %v807 = vand.u32 %v775, 15
      %v808 = vand.u32 %v776, 15
      %v809 = vand.u32 %v777, 15
      %v810 = vand.u32 %v778, 15
      %v811 = vand.u32 %v779, 15
      %v812 = vand.u32 %v780, 15
      %v813 = vand.u32 %v781, 15
      %v814 = vand.u32 %v782, 15
      %v815 = vand.u32 %v783, 15
      %v816 = vand.u32 %v784, 15
      %v817 = vand.u32 %v785, 15
      %v818 = vand.u32 %v786, 15
      %v819 = vand.u32 %v787, 15
      %v820 = vand.u32 %v788, 15
      %v821 = vand.u32 %v789, 15
      %v822 = vand.u32 %v790, 15
      %v823 = vand.u32 %v791, 15
      %v824 = vand.u32 %v792, 15
      %v825 = vand.u32 %v793, 15
      %v826 = vand.u32 %v794, 15
      %v827 = vand.u32 %v795, 15
      %v828 = vand.u32 %v796, 15
      %v829 = vand.u32 %v797, 15
      %v830 = vand.u32 %v798, 15
      %v831 = vand.u32 %v799, 15
      %v832 = vand.u32 %v800, 15
      %v833 = vand.u32 %v801, 15
      %v834 = vand.u32 %v802, 15
      %v835 = vand.u32 %v803, 15
      %vm836 = vcmp.ge.s32.totalorder %v804, 1
      %vm837 = vcmp.ge.s32.totalorder %v805, 1
      %vm838 = vcmp.ge.s32.totalorder %v806, 1
      %vm839 = vcmp.ge.s32.totalorder %v807, 1
      %vm840 = vcmp.ge.s32.totalorder %v808, 1
      %vm841 = vcmp.ge.s32.totalorder %v809, 1
      %vm842 = vcmp.ge.s32.totalorder %v810, 1
      %vm843 = vcmp.ge.s32.totalorder %v811, 1
      %vm844 = vcmp.ge.s32.totalorder %v812, 1
      %vm845 = vcmp.ge.s32.totalorder %v813, 1
      %vm846 = vcmp.ge.s32.totalorder %v814, 1
      %vm847 = vcmp.ge.s32.totalorder %v815, 1
      %vm848 = vcmp.ge.s32.totalorder %v816, 1
      %vm849 = vcmp.ge.s32.totalorder %v817, 1
      %vm850 = vcmp.ge.s32.totalorder %v818, 1
      %vm851 = vcmp.ge.s32.totalorder %v819, 1
      %vm852 = vcmp.ge.s32.totalorder %v820, 1
      %vm853 = vcmp.ge.s32.totalorder %v821, 1
      %vm854 = vcmp.ge.s32.totalorder %v822, 1
      %vm855 = vcmp.ge.s32.totalorder %v823, 1
      %vm856 = vcmp.ge.s32.totalorder %v824, 1
      %vm857 = vcmp.ge.s32.totalorder %v825, 1
      %vm858 = vcmp.ge.s32.totalorder %v826, 1
      %vm859 = vcmp.ge.s32.totalorder %v827, 1
      %vm860 = vcmp.ge.s32.totalorder %v828, 1
      %vm861 = vcmp.ge.s32.totalorder %v829, 1
      %vm862 = vcmp.ge.s32.totalorder %v830, 1
      %vm863 = vcmp.ge.s32.totalorder %v831, 1
      %vm864 = vcmp.ge.s32.totalorder %v832, 1
      %vm865 = vcmp.ge.s32.totalorder %v833, 1
      %vm866 = vcmp.ge.s32.totalorder %v834, 1
      %vm867 = vcmp.ge.s32.totalorder %v835, 1
      %vm868 = vcmp.le.s32.totalorder %v804, 14
      %vm869 = vcmp.le.s32.totalorder %v805, 14
      %vm870 = vcmp.le.s32.totalorder %v806, 14
      %vm871 = vcmp.le.s32.totalorder %v807, 14
      %vm872 = vcmp.le.s32.totalorder %v808, 14
      %vm873 = vcmp.le.s32.totalorder %v809, 14
      %vm874 = vcmp.le.s32.totalorder %v810, 14
      %vm875 = vcmp.le.s32.totalorder %v811, 14
      %vm876 = vcmp.le.s32.totalorder %v812, 14
      %vm877 = vcmp.le.s32.totalorder %v813, 14
      %vm878 = vcmp.le.s32.totalorder %v814, 14
      %vm879 = vcmp.le.s32.totalorder %v815, 14
      %vm880 = vcmp.le.s32.totalorder %v816, 14
      %vm881 = vcmp.le.s32.totalorder %v817, 14
      %vm882 = vcmp.le.s32.totalorder %v818, 14
      %vm883 = vcmp.le.s32.totalorder %v819, 14
      %vm884 = vcmp.le.s32.totalorder %v820, 14
      %vm885 = vcmp.le.s32.totalorder %v821, 14
      %vm886 = vcmp.le.s32.totalorder %v822, 14
      %vm887 = vcmp.le.s32.totalorder %v823, 14
      %vm888 = vcmp.le.s32.totalorder %v824, 14
      %vm889 = vcmp.le.s32.totalorder %v825, 14
      %vm890 = vcmp.le.s32.totalorder %v826, 14
      %vm891 = vcmp.le.s32.totalorder %v827, 14
      %vm892 = vcmp.le.s32.totalorder %v828, 14
      %vm893 = vcmp.le.s32.totalorder %v829, 14
      %vm894 = vcmp.le.s32.totalorder %v830, 14
      %vm895 = vcmp.le.s32.totalorder %v831, 14
      %vm896 = vcmp.le.s32.totalorder %v832, 14
      %vm897 = vcmp.le.s32.totalorder %v833, 14
      %vm898 = vcmp.le.s32.totalorder %v834, 14
      %vm899 = vcmp.le.s32.totalorder %v835, 14
      %v900 = vld [vmem:[#allocation2 + $0x7] sm:$0xff]
      %v901 = vld [vmem:[#allocation2 + $0xf] sm:$0xff]
      %v902 = vld [vmem:[#allocation2 + $0x17] sm:$0xff]
      %v903 = vld [vmem:[#allocation2 + $0x1f] sm:$0xff]
      %v904 = vld [vmem:[#allocation2 + $0x27] sm:$0xff]
      %v905 = vld [vmem:[#allocation2 + $0x2f] sm:$0xff]
      %v906 = vld [vmem:[#allocation2 + $0x37] sm:$0xff]
      %v907 = vld [vmem:[#allocation2 + $0x3f] sm:$0xff]
      %v908 = vld [vmem:[#allocation2 + $0x47] sm:$0xff]
      %v909 = vld [vmem:[#allocation2 + $0x4f] sm:$0xff]
      %v910 = vld [vmem:[#allocation2 + $0x57] sm:$0xff]
      %v911 = vld [vmem:[#allocation2 + $0x5f] sm:$0xff]
      %v912 = vld [vmem:[#allocation2 + $0x67] sm:$0xff]
      %v913 = vld [vmem:[#allocation2 + $0x6f] sm:$0xff]
      %v914 = vld [vmem:[#allocation2 + $0x77] sm:$0xff]
      %v915 = vld [vmem:[#allocation2 + $0x7f] sm:$0xff]
      %v916 = vld [vmem:[#allocation2 + $0x87] sm:$0xff]
      %v917 = vld [vmem:[#allocation2 + $0x8f] sm:$0xff]
      %v918 = vld [vmem:[#allocation2 + $0x97] sm:$0xff]
      %v919 = vld [vmem:[#allocation2 + $0x9f] sm:$0xff]
      %v920 = vld [vmem:[#allocation2 + $0xa7] sm:$0xff]
      %v921 = vld [vmem:[#allocation2 + $0xaf] sm:$0xff]
      %v922 = vld [vmem:[#allocation2 + $0xb7] sm:$0xff]
      %v923 = vld [vmem:[#allocation2 + $0xbf] sm:$0xff]
      %v924 = vld [vmem:[#allocation2 + $0xc7] sm:$0xff]
      %v925 = vld [vmem:[#allocation2 + $0xcf] sm:$0xff]
      %v926 = vld [vmem:[#allocation2 + $0xd7] sm:$0xff]
      %v927 = vld [vmem:[#allocation2 + $0xdf] sm:$0xff]
      %v928 = vld [vmem:[#allocation2 + $0xe7] sm:$0xff]
      %v929 = vld [vmem:[#allocation2 + $0xef] sm:$0xff]
      %v930 = vld [vmem:[#allocation2 + $0xf7] sm:$0xff]
      %v931 = vld [vmem:[#allocation2 + $0xff] sm:$0xff]
      %v932 = vsel %vm836, %v900, 0.0
      %v933 = vsel %vm837, %v901, 0.0
      %v934 = vsel %vm838, %v902, 0.0
      %v935 = vsel %vm839, %v903, 0.0
      %v936 = vsel %vm840, %v904, 0.0
      %v937 = vsel %vm841, %v905, 0.0
      %v938 = vsel %vm842, %v906, 0.0
      %v939 = vsel %vm843, %v907, 0.0
      %v940 = vsel %vm844, %v908, 0.0
      %v941 = vsel %vm845, %v909, 0.0
      %v942 = vsel %vm846, %v910, 0.0
      %v943 = vsel %vm847, %v911, 0.0
      %v944 = vsel %vm848, %v912, 0.0
      %v945 = vsel %vm849, %v913, 0.0
      %v946 = vsel %vm850, %v914, 0.0
      %v947 = vsel %vm851, %v915, 0.0
      %v948 = vsel %vm852, %v916, 0.0
      %v949 = vsel %vm853, %v917, 0.0
      %v950 = vsel %vm854, %v918, 0.0
      %v951 = vsel %vm855, %v919, 0.0
      %v952 = vsel %vm856, %v920, 0.0
      %v953 = vsel %vm857, %v921, 0.0
      %v954 = vsel %vm858, %v922, 0.0
      %v955 = vsel %vm859, %v923, 0.0
      %v956 = vsel %vm860, %v924, 0.0
      %v957 = vsel %vm861, %v925, 0.0
      %v958 = vsel %vm862, %v926, 0.0
      %v959 = vsel %vm863, %v927, 0.0
      %v960 = vsel %vm864, %v928, 0.0
      %v961 = vsel %vm865, %v929, 0.0
      %v962 = vsel %vm866, %v930, 0.0
      %v963 = vsel %vm867, %v931, 0.0
      %v964 = vld [vmem:[%s3] sm:$0xff]
      %v965 = vld [vmem:[%s3 + $0x8] sm:$0xff]
      %v966 = vld [vmem:[%s3 + $0x10] sm:$0xff]
      %v967 = vld [vmem:[%s3 + $0x18] sm:$0xff]
      %v968 = vld [vmem:[#allocation2 + $0x8] sm:$0xff]
      %v969 = vld [vmem:[#allocation2 + $0x10] sm:$0xff]
      %v970 = vld [vmem:[#allocation2 + $0x18] sm:$0xff]
      %v971 = vld [vmem:[#allocation2 + $0x20] sm:$0xff]
      %v972 = vld [vmem:[#allocation2 + $0x28] sm:$0xff]
      %v973 = vld [vmem:[#allocation2 + $0x30] sm:$0xff]
      %v974 = vld [vmem:[#allocation2 + $0x38] sm:$0xff]
      %v975 = vld [vmem:[#allocation2 + $0x40] sm:$0xff]
      %v976 = vld [vmem:[#allocation2 + $0x48] sm:$0xff]
      %v977 = vld [vmem:[#allocation2 + $0x50] sm:$0xff]
      %v978 = vld [vmem:[#allocation2 + $0x58] sm:$0xff]
      %v979 = vld [vmem:[#allocation2 + $0x60] sm:$0xff]
      %v980 = vld [vmem:[#allocation2 + $0x68] sm:$0xff]
      %v981 = vld [vmem:[#allocation2 + $0x70] sm:$0xff]
      %v982 = vld [vmem:[#allocation2 + $0x78] sm:$0xff]
      %v983 = vld [vmem:[#allocation2 + $0x80] sm:$0xff]
      %v984 = vld [vmem:[#allocation2 + $0x88] sm:$0xff]
      %v985 = vld [vmem:[#allocation2 + $0x90] sm:$0xff]
      %v986 = vld [vmem:[#allocation2 + $0x98] sm:$0xff]
      %v987 = vld [vmem:[#allocation2 + $0xa0] sm:$0xff]
      %v988 = vld [vmem:[#allocation2 + $0xa8] sm:$0xff]
      %v989 = vld [vmem:[#allocation2 + $0xb0] sm:$0xff]
      %v990 = vld [vmem:[#allocation2 + $0xb8] sm:$0xff]
      %v991 = vld [vmem:[#allocation2 + $0xc0] sm:$0xff]
      %v992 = vld [vmem:[#allocation2 + $0xc8] sm:$0xff]
      %v993 = vld [vmem:[#allocation2 + $0xd0] sm:$0xff]
      %v994 = vld [vmem:[#allocation2 + $0xd8] sm:$0xff]
      %v995 = vld [vmem:[#allocation2 + $0xe0] sm:$0xff]
      %v996 = vld [vmem:[#allocation2 + $0xe8] sm:$0xff]
      %v997 = vld [vmem:[#allocation2 + $0xf0] sm:$0xff]
      %v998 = vld [vmem:[#allocation2 + $0xf8] sm:$0xff]
      %v999 = vld [vmem:[#allocation2 + $0x100] sm:$0xff]
      %s1000 = scalar_lea.vmem %s3, 32
      %v1001 = vld [vmem:[%s1000] sm:$0xff]
      %v1002 = vld [vmem:[%s1000 + $0x8] sm:$0xff]
      %v1003 = vld [vmem:[%s1000 + $0x10] sm:$0xff]
      %v1004 = vld [vmem:[%s1000 + $0x18] sm:$0xff]
      %v1006 = vsel %vm732, %v968, 0
      %v1009 = vsel %vm732, %v969, 0
      %v1012 = vsel %vm732, %v970, 0
      %v1015 = vsel %vm732, %v971, 0
      %v1018 = vsel %vm732, %v972, 0
      %v1021 = vsel %vm732, %v973, 0
      %v1024 = vsel %vm732, %v974, 0
      %v1027 = vsel %vm732, %v975, 0
      %v1030 = vsel %vm732, %v976, 0
      %v1033 = vsel %vm732, %v977, 0
      %v1036 = vsel %vm732, %v978, 0
      %v1039 = vsel %vm732, %v979, 0
      %v1042 = vsel %vm732, %v980, 0
      %v1045 = vsel %vm732, %v981, 0
      %v1048 = vsel %vm732, %v982, 0
      %v1051 = vsel %vm732, %v983, 0
      %v1054 = vsel %vm732, %v984, 0
      %v1057 = vsel %vm732, %v985, 0
      %v1060 = vsel %vm732, %v986, 0
      %v1063 = vsel %vm732, %v987, 0
      %v1066 = vsel %vm732, %v988, 0
      %v1069 = vsel %vm732, %v989, 0
      %v1072 = vsel %vm732, %v990, 0
      %v1075 = vsel %vm732, %v991, 0
      %v1078 = vsel %vm732, %v992, 0
      %v1081 = vsel %vm732, %v993, 0
      %v1084 = vsel %vm732, %v994, 0
      %v1087 = vsel %vm732, %v995, 0
      %v1090 = vsel %vm732, %v996, 0
      %v1093 = vsel %vm732, %v997, 0
      %v1096 = vsel %vm732, %v998, 0
      %v1099 = vsel %vm732, %v999, 0
      %1101 = vmatprep.subr.mxu0 0.0
      %1102 = vmatpush1.msra.mxu0 %v1001
      %1103 = vmatprep.subr.mxu0 0.0
      %1104 = vmatpush1.msra.mxu0 %v1002
      %1105 = vmatprep.subr.mxu0 0.0
      %1106 = vmatpush1.msra.mxu0 %v1003
      %1107 = vmatprep.subr.mxu0 0.0
      %1108 = vmatpush1.msra.mxu0 %v1004
      %1109 = vmatprep.subr.mxu0 0.0
      %1110 = vmatpush1.msra.mxu0 0.0
      %1111 = vmatprep.subr.mxu0 0.0
      %1112 = vmatpush1.msra.mxu0 0.0
      %1113 = vmatprep.subr.mxu0 0.0
      %1114 = vmatpush1.msra.mxu0 0.0
      %1115 = vmatprep.subr.mxu0 0.0
      %1116 = vmatpush1.msra.mxu0 0.0
      %1117 = vmatprep.subr.mxu0 0.0
      %1118 = vmatpush1.msra.mxu0 0.0
      %1119 = vmatprep.subr.mxu0 0.0
      %1120 = vmatpush1.msra.mxu0 0.0
      %1121 = vmatprep.subr.mxu0 0.0
      %1122 = vmatpush1.msra.mxu0 0.0
      %1123 = vmatprep.subr.mxu0 0.0
      %1124 = vmatpush1.msra.mxu0 0.0
      %1125 = vmatprep.subr.mxu0 0.0
      %1126 = vmatpush1.msra.mxu0 0.0
      %1127 = vmatprep.subr.mxu0 0.0
      %1128 = vmatpush1.msra.mxu0 0.0
      %1129 = vmatprep.subr.mxu0 0.0
      %1130 = vmatpush1.msra.mxu0 0.0
      %1131 = vmatprep.subr.mxu0 0.0
      %1132 = vmatpush1.msra.mxu0 0.0
      %1133 = vmatprep.subr.mxu0 0.0
      %1134 = vmatpush1.msra.mxu0 0.0
      %1135 = vmatprep.subr.mxu0 0.0
      %1136 = vmatpush1.msra.mxu0 0.0
      %1137 = vmatprep.subr.mxu0 0.0
      %1138 = vmatpush1.msra.mxu0 0.0
      %1139 = vmatprep.subr.mxu0 0.0
      %1140 = vmatpush1.msra.mxu0 0.0
      %1141 = vmatprep.subr.mxu0 0.0
      %1142 = vmatpush1.msra.mxu0 0.0
      %1143 = vmatprep.subr.mxu0 0.0
      %1144 = vmatpush1.msra.mxu0 0.0
      %1145 = vmatprep.subr.mxu0 0.0
      %1146 = vmatpush1.msra.mxu0 0.0
      %1147 = vmatprep.subr.mxu0 0.0
      %1148 = vmatpush1.msra.mxu0 0.0
      %1149 = vmatprep.subr.mxu0 0.0
      %1150 = vmatpush1.msra.mxu0 0.0
      %1151 = vmatprep.subr.mxu0 0.0
      %1152 = vmatpush1.msra.mxu0 0.0
      %1153 = vmatprep.subr.mxu0 0.0
      %1154 = vmatpush1.msra.mxu0 0.0
      %1155 = vmatprep.subr.mxu0 0.0
      %1156 = vmatpush1.msra.mxu0 0.0
      %1157 = vmatprep.subr.mxu0 0.0
      %1158 = vmatpush1.msra.mxu0 0.0
      %1159 = vmatprep.subr.mxu0 0.0
      %1160 = vmatpush1.msra.mxu0 0.0
      %1161 = vmatprep.subr.mxu0 0.0
      %1162 = vmatpush1.msra.mxu0 0.0
      %1163 = vmatprep.subr.mxu0 0.0
      %1164 = vmatpush1.msra.mxu0 0.0
      %1165 = vmatprep.mubr.f32.mxu0 0.0
      %1166 = vmatmul.mubr.f32.gmra.mrb[0].mxu0 %v1006
      %v1167 = vpop.f32.mrb[0].mxu0
      %v1168 = vadd.f32 0.0, %v1167
      %v1169 = vpop.f32.mrb[0].mxu0
      %1170 = vmatprep.mubr.f32.mxu0 0.0
      %1171 = vmatmul.mubr.f32.gmra.mrb[0].mxu0 %v1009
      %v1172 = vpop.f32.mrb[0].mxu0
      %v1173 = vadd.f32 0.0, %v1172
      %v1174 = vpop.f32.mrb[0].mxu0
      %1175 = vmatprep.mubr.f32.mxu0 0.0
      %1176 = vmatmul.mubr.f32.gmra.mrb[0].mxu0 %v1012
      %v1177 = vpop.f32.mrb[0].mxu0
      %v1178 = vadd.f32 0.0, %v1177
      %v1179 = vpop.f32.mrb[0].mxu0
      %1180 = vmatprep.mubr.f32.mxu0 0.0
      %1181 = vmatmul.mubr.f32.gmra.mrb[0].mxu0 %v1015
      %v1182 = vpop.f32.mrb[0].mxu0
      %v1183 = vadd.f32 0.0, %v1182
      %v1184 = vpop.f32.mrb[0].mxu0
      %1185 = vmatprep.mubr.f32.mxu0 0.0
      %1186 = vmatmul.mubr.f32.gmra.mrb[0].mxu0 %v1018
      %v1187 = vpop.f32.mrb[0].mxu0
      %v1188 = vadd.f32 0.0, %v1187
      %v1189 = vpop.f32.mrb[0].mxu0
      %1190 = vmatprep.mubr.f32.mxu0 0.0
      %1191 = vmatmul.mubr.f32.gmra.mrb[0].mxu0 %v1021
      %v1192 = vpop.f32.mrb[0].mxu0
      %v1193 = vadd.f32 0.0, %v1192
      %v1194 = vpop.f32.mrb[0].mxu0
      %1195 = vmatprep.mubr.f32.mxu0 0.0
      %1196 = vmatmul.mubr.f32.gmra.mrb[0].mxu0 %v1024
      %v1197 = vpop.f32.mrb[0].mxu0
      %v1198 = vadd.f32 0.0, %v1197
      %v1199 = vpop.f32.mrb[0].mxu0
      %1200 = vmatprep.mubr.f32.mxu0 0.0
      %1201 = vmatmul.mubr.f32.gmra.mrb[0].mxu0 %v1027
      %v1202 = vpop.f32.mrb[0].mxu0
      %v1203 = vadd.f32 0.0, %v1202
      %v1204 = vpop.f32.mrb[0].mxu0
      %1205 = vmatprep.mubr.f32.mxu0 0.0
      %1206 = vmatmul.mubr.f32.gmra.mrb[0].mxu0 %v1030
      %v1207 = vpop.f32.mrb[0].mxu0
      %v1208 = vadd.f32 0.0, %v1207
      %v1209 = vpop.f32.mrb[0].mxu0
      %1210 = vmatprep.mubr.f32.mxu0 0.0
      %1211 = vmatmul.mubr.f32.gmra.mrb[0].mxu0 %v1033
      %v1212 = vpop.f32.mrb[0].mxu0
      %v1213 = vadd.f32 0.0, %v1212
      %v1214 = vpop.f32.mrb[0].mxu0
      %1215 = vmatprep.mubr.f32.mxu0 0.0
      %1216 = vmatmul.mubr.f32.gmra.mrb[0].mxu0 %v1036
      %v1217 = vpop.f32.mrb[0].mxu0
      %v1218 = vadd.f32 0.0, %v1217
      %v1219 = vpop.f32.mrb[0].mxu0
      %1220 = vmatprep.mubr.f32.mxu0 0.0
      %1221 = vmatmul.mubr.f32.gmra.mrb[0].mxu0 %v1039
      %v1222 = vpop.f32.mrb[0].mxu0
      %v1223 = vadd.f32 0.0, %v1222
      %v1224 = vpop.f32.mrb[0].mxu0
      %1225 = vmatprep.mubr.f32.mxu0 0.0
      %1226 = vmatmul.mubr.f32.gmra.mrb[0].mxu0 %v1042
      %v1227 = vpop.f32.mrb[0].mxu0
      %v1228 = vadd.f32 0.0, %v1227
      %v1229 = vpop.f32.mrb[0].mxu0
      %1230 = vmatprep.mubr.f32.mxu0 0.0
      %1231 = vmatmul.mubr.f32.gmra.mrb[0].mxu0 %v1045
      %v1232 = vpop.f32.mrb[0].mxu0
      %v1233 = vadd.f32 0.0, %v1232
      %v1234 = vpop.f32.mrb[0].mxu0
      %1235 = vmatprep.mubr.f32.mxu0 0.0
      %1236 = vmatmul.mubr.f32.gmra.mrb[0].mxu0 %v1048
      %v1237 = vpop.f32.mrb[0].mxu0
      %v1238 = vadd.f32 0.0, %v1237
      %v1239 = vpop.f32.mrb[0].mxu0
      %1240 = vmatprep.mubr.f32.mxu0 0.0
      %1241 = vmatmul.mubr.f32.gmra.mrb[0].mxu0 %v1051
      %v1242 = vpop.f32.mrb[0].mxu0
      %v1243 = vadd.f32 0.0, %v1242
      %v1244 = vpop.f32.mrb[0].mxu0
      %1245 = vmatprep.mubr.f32.mxu0 0.0
      %1246 = vmatmul.mubr.f32.gmra.mrb[0].mxu0 %v1054
      %v1247 = vpop.f32.mrb[0].mxu0
      %v1248 = vadd.f32 0.0, %v1247
      %v1249 = vpop.f32.mrb[0].mxu0
      %1250 = vmatprep.mubr.f32.mxu0 0.0
      %1251 = vmatmul.mubr.f32.gmra.mrb[0].mxu0 %v1057
      %v1252 = vpop.f32.mrb[0].mxu0
      %v1253 = vadd.f32 0.0, %v1252
      %v1254 = vpop.f32.mrb[0].mxu0
      %1255 = vmatprep.mubr.f32.mxu0 0.0
      %1256 = vmatmul.mubr.f32.gmra.mrb[0].mxu0 %v1060
      %v1257 = vpop.f32.mrb[0].mxu0
      %v1258 = vadd.f32 0.0, %v1257
      %v1259 = vpop.f32.mrb[0].mxu0
      %1260 = vmatprep.mubr.f32.mxu0 0.0
      %1261 = vmatmul.mubr.f32.gmra.mrb[0].mxu0 %v1063
      %v1262 = vpop.f32.mrb[0].mxu0
      %v1263 = vadd.f32 0.0, %v1262
      %v1264 = vpop.f32.mrb[0].mxu0
      %1265 = vmatprep.mubr.f32.mxu0 0.0
      %1266 = vmatmul.mubr.f32.gmra.mrb[0].mxu0 %v1066
      %v1267 = vpop.f32.mrb[0].mxu0
      %v1268 = vadd.f32 0.0, %v1267
      %v1269 = vpop.f32.mrb[0].mxu0
      %1270 = vmatprep.mubr.f32.mxu0 0.0
      %1271 = vmatmul.mubr.f32.gmra.mrb[0].mxu0 %v1069
      %v1272 = vpop.f32.mrb[0].mxu0
      %v1273 = vadd.f32 0.0, %v1272
      %v1274 = vpop.f32.mrb[0].mxu0
      %1275 = vmatprep.mubr.f32.mxu0 0.0
      %1276 = vmatmul.mubr.f32.gmra.mrb[0].mxu0 %v1072
      %v1277 = vpop.f32.mrb[0].mxu0
      %v1278 = vadd.f32 0.0, %v1277
      %v1279 = vpop.f32.mrb[0].mxu0
      %1280 = vmatprep.mubr.f32.mxu0 0.0
      %1281 = vmatmul.mubr.f32.gmra.mrb[0].mxu0 %v1075
      %v1282 = vpop.f32.mrb[0].mxu0
      %v1283 = vadd.f32 0.0, %v1282
      %v1284 = vpop.f32.mrb[0].mxu0
      %1285 = vmatprep.mubr.f32.mxu0 0.0
      %1286 = vmatmul.mubr.f32.gmra.mrb[0].mxu0 %v1078
      %v1287 = vpop.f32.mrb[0].mxu0
      %v1288 = vadd.f32 0.0, %v1287
      %v1289 = vpop.f32.mrb[0].mxu0
      %1290 = vmatprep.mubr.f32.mxu0 0.0
      %1291 = vmatmul.mubr.f32.gmra.mrb[0].mxu0 %v1081
      %v1292 = vpop.f32.mrb[0].mxu0
      %v1293 = vadd.f32 0.0, %v1292
      %v1294 = vpop.f32.mrb[0].mxu0
      %1295 = vmatprep.mubr.f32.mxu0 0.0
      %1296 = vmatmul.mubr.f32.gmra.mrb[0].mxu0 %v1084
      %v1297 = vpop.f32.mrb[0].mxu0
      %v1298 = vadd.f32 0.0, %v1297
      %v1299 = vpop.f32.mrb[0].mxu0
      %1300 = vmatprep.mubr.f32.mxu0 0.0
      %1301 = vmatmul.mubr.f32.gmra.mrb[0].mxu0 %v1087
      %v1302 = vpop.f32.mrb[0].mxu0
      %v1303 = vadd.f32 0.0, %v1302
      %v1304 = vpop.f32.mrb[0].mxu0
      %1305 = vmatprep.mubr.f32.mxu0 0.0
      %1306 = vmatmul.mubr.f32.gmra.mrb[0].mxu0 %v1090
      %v1307 = vpop.f32.mrb[0].mxu0
      %v1308 = vadd.f32 0.0, %v1307
      %v1309 = vpop.f32.mrb[0].mxu0
      %1310 = vmatprep.mubr.f32.mxu0 0.0
      %1311 = vmatmul.mubr.f32.gmra.mrb[0].mxu0 %v1093
      %v1312 = vpop.f32.mrb[0].mxu0
      %v1313 = vadd.f32 0.0, %v1312
      %v1314 = vpop.f32.mrb[0].mxu0
      %1315 = vmatprep.mubr.f32.mxu0 0.0
      %1316 = vmatmul.mubr.f32.gmra.mrb[0].mxu0 %v1096
      %v1317 = vpop.f32.mrb[0].mxu0
      %v1318 = vadd.f32 0.0, %v1317
      %v1319 = vpop.f32.mrb[0].mxu0
      %1320 = vmatprep.mubr.f32.mxu0 0.0
      %1321 = vmatmul.mubr.f32.gmra.mrb[0].mxu0 %v1099
      %v1322 = vpop.f32.mrb[0].mxu0
      %v1323 = vadd.f32 0.0, %v1322
      %v1324 = vpop.f32.mrb[0].mxu0
      %1325 = vdwg.mxu0
      %v1327 = vsel %vm732, %v932, 0
      %v1330 = vsel %vm732, %v933, 0
      %v1333 = vsel %vm732, %v934, 0
      %v1336 = vsel %vm732, %v935, 0
      %v1339 = vsel %vm732, %v936, 0
      %v1342 = vsel %vm732, %v937, 0
      %v1345 = vsel %vm732, %v938, 0
      %v1348 = vsel %vm732, %v939, 0
      %v1351 = vsel %vm732, %v940, 0
      %v1354 = vsel %vm732, %v941, 0
      %v1357 = vsel %vm732, %v942, 0
      %v1360 = vsel %vm732, %v943, 0
      %v1363 = vsel %vm732, %v944, 0
      %v1366 = vsel %vm732, %v945, 0
      %v1369 = vsel %vm732, %v946, 0
      %v1372 = vsel %vm732, %v947, 0
      %v1375 = vsel %vm732, %v948, 0
      %v1378 = vsel %vm732, %v949, 0
      %v1381 = vsel %vm732, %v950, 0
      %v1384 = vsel %vm732, %v951, 0
      %v1387 = vsel %vm732, %v952, 0
      %v1390 = vsel %vm732, %v953, 0
      %v1393 = vsel %vm732, %v954, 0
      %v1396 = vsel %vm732, %v955, 0
      %v1399 = vsel %vm732, %v956, 0
      %v1402 = vsel %vm732, %v957, 0
      %v1405 = vsel %vm732, %v958, 0
      %v1408 = vsel %vm732, %v959, 0
      %v1411 = vsel %vm732, %v960, 0
      %v1414 = vsel %vm732, %v961, 0
      %v1417 = vsel %vm732, %v962, 0
      %v1420 = vsel %vm732, %v963, 0
      %1422 = vmatprep.subr.mxu0 0.0
      %1423 = vmatpush1.msra.mxu0 %v964
      %1424 = vmatprep.subr.mxu0 0.0
      %1425 = vmatpush1.msra.mxu0 %v965
      %1426 = vmatprep.subr.mxu0 0.0
      %1427 = vmatpush1.msra.mxu0 %v966
      %1428 = vmatprep.subr.mxu0 0.0
      %1429 = vmatpush1.msra.mxu0 %v967
      %1430 = vmatprep.subr.mxu0 0.0
      %1431 = vmatpush1.msra.mxu0 0.0
      %1432 = vmatprep.subr.mxu0 0.0
      %1433 = vmatpush1.msra.mxu0 0.0
      %1434 = vmatprep.subr.mxu0 0.0
      %1435 = vmatpush1.msra.mxu0 0.0
      %1436 = vmatprep.subr.mxu0 0.0
      %1437 = vmatpush1.msra.mxu0 0.0
      %1438 = vmatprep.subr.mxu0 0.0
      %1439 = vmatpush1.msra.mxu0 0.0
      %1440 = vmatprep.subr.mxu0 0.0
      %1441 = vmatpush1.msra.mxu0 0.0
      %1442 = vmatprep.subr.mxu0 0.0
      %1443 = vmatpush1.msra.mxu0 0.0
      %1444 = vmatprep.subr.mxu0 0.0
      %1445 = vmatpush1.msra.mxu0 0.0
      %1446 = vmatprep.subr.mxu0 0.0
      %1447 = vmatpush1.msra.mxu0 0.0
      %1448 = vmatprep.subr.mxu0 0.0
      %1449 = vmatpush1.msra.mxu0 0.0
      %1450 = vmatprep.subr.mxu0 0.0
      %1451 = vmatpush1.msra.mxu0 0.0
      %1452 = vmatprep.subr.mxu0 0.0
      %1453 = vmatpush1.msra.mxu0 0.0
      %1454 = vmatprep.subr.mxu0 0.0
      %1455 = vmatpush1.msra.mxu0 0.0
      %1456 = vmatprep.subr.mxu0 0.0
      %1457 = vmatpush1.msra.mxu0 0.0
      %1458 = vmatprep.subr.mxu0 0.0
      %1459 = vmatpush1.msra.mxu0 0.0
      %1460 = vmatprep.subr.mxu0 0.0
      %1461 = vmatpush1.msra.mxu0 0.0
      %1462 = vmatprep.subr.mxu0 0.0
      %1463 = vmatpush1.msra.mxu0 0.0
      %1464 = vmatprep.subr.mxu0 0.0
      %1465 = vmatpush1.msra.mxu0 0.0
      %1466 = vmatprep.subr.mxu0 0.0
      %1467 = vmatpush1.msra.mxu0 0.0
      %1468 = vmatprep.subr.mxu0 0.0
      %1469 = vmatpush1.msra.mxu0 0.0
      %1470 = vmatprep.subr.mxu0 0.0
      %1471 = vmatpush1.msra.mxu0 0.0
      %1472 = vmatprep.subr.mxu0 0.0
      %1473 = vmatpush1.msra.mxu0 0.0
      %1474 = vmatprep.subr.mxu0 0.0
      %1475 = vmatpush1.msra.mxu0 0.0
      %1476 = vmatprep.subr.mxu0 0.0
      %1477 = vmatpush1.msra.mxu0 0.0
      %1478 = vmatprep.subr.mxu0 0.0
      %1479 = vmatpush1.msra.mxu0 0.0
      %1480 = vmatprep.subr.mxu0 0.0
      %1481 = vmatpush1.msra.mxu0 0.0
      %1482 = vmatprep.subr.mxu0 0.0
      %1483 = vmatpush1.msra.mxu0 0.0
      %1484 = vmatprep.subr.mxu0 0.0
      %1485 = vmatpush1.msra.mxu0 0.0
      %1486 = vmatprep.mubr.f32.mxu0 0.0
      %1487 = vmatmul.mubr.f32.gmra.mrb[0].mxu0 %v1327
      %v1488 = vpop.f32.mrb[0].mxu0
      %v1489 = vadd.f32 %v1168, %v1488
      %v1490 = vpop.f32.mrb[0].mxu0
      %1491 = vmatprep.mubr.f32.mxu0 0.0
      %1492 = vmatmul.mubr.f32.gmra.mrb[0].mxu0 %v1330
      %v1493 = vpop.f32.mrb[0].mxu0
      %v1494 = vadd.f32 %v1173, %v1493
      %v1495 = vpop.f32.mrb[0].mxu0
      %1496 = vmatprep.mubr.f32.mxu0 0.0
      %1497 = vmatmul.mubr.f32.gmra.mrb[0].mxu0 %v1333
      %v1498 = vpop.f32.mrb[0].mxu0
      %v1499 = vadd.f32 %v1178, %v1498
      %v1500 = vpop.f32.mrb[0].mxu0
      %1501 = vmatprep.mubr.f32.mxu0 0.0
      %1502 = vmatmul.mubr.f32.gmra.mrb[0].mxu0 %v1336
      %v1503 = vpop.f32.mrb[0].mxu0
      %v1504 = vadd.f32 %v1183, %v1503
      %v1505 = vpop.f32.mrb[0].mxu0
      %1506 = vmatprep.mubr.f32.mxu0 0.0
      %1507 = vmatmul.mubr.f32.gmra.mrb[0].mxu0 %v1339
      %v1508 = vpop.f32.mrb[0].mxu0
      %v1509 = vadd.f32 %v1188, %v1508
      %v1510 = vpop.f32.mrb[0].mxu0
      %1511 = vmatprep.mubr.f32.mxu0 0.0
      %1512 = vmatmul.mubr.f32.gmra.mrb[0].mxu0 %v1342
      %v1513 = vpop.f32.mrb[0].mxu0
      %v1514 = vadd.f32 %v1193, %v1513
      %v1515 = vpop.f32.mrb[0].mxu0
      %1516 = vmatprep.mubr.f32.mxu0 0.0
      %1517 = vmatmul.mubr.f32.gmra.mrb[0].mxu0 %v1345
      %v1518 = vpop.f32.mrb[0].mxu0
      %v1519 = vadd.f32 %v1198, %v1518
      %v1520 = vpop.f32.mrb[0].mxu0
      %1521 = vmatprep.mubr.f32.mxu0 0.0
      %1522 = vmatmul.mubr.f32.gmra.mrb[0].mxu0 %v1348
      %v1523 = vpop.f32.mrb[0].mxu0
      %v1524 = vadd.f32 %v1203, %v1523
      %v1525 = vpop.f32.mrb[0].mxu0
      %1526 = vmatprep.mubr.f32.mxu0 0.0
      %1527 = vmatmul.mubr.f32.gmra.mrb[0].mxu0 %v1351
      %v1528 = vpop.f32.mrb[0].mxu0
      %v1529 = vadd.f32 %v1208, %v1528
      %v1530 = vpop.f32.mrb[0].mxu0
      %1531 = vmatprep.mubr.f32.mxu0 0.0
      %1532 = vmatmul.mubr.f32.gmra.mrb[0].mxu0 %v1354
      %v1533 = vpop.f32.mrb[0].mxu0
      %v1534 = vadd.f32 %v1213, %v1533
      %v1535 = vpop.f32.mrb[0].mxu0
      %1536 = vmatprep.mubr.f32.mxu0 0.0
      %1537 = vmatmul.mubr.f32.gmra.mrb[0].mxu0 %v1357
      %v1538 = vpop.f32.mrb[0].mxu0
      %v1539 = vadd.f32 %v1218, %v1538
      %v1540 = vpop.f32.mrb[0].mxu0
      %1541 = vmatprep.mubr.f32.mxu0 0.0
      %1542 = vmatmul.mubr.f32.gmra.mrb[0].mxu0 %v1360
      %v1543 = vpop.f32.mrb[0].mxu0
      %v1544 = vadd.f32 %v1223, %v1543
      %v1545 = vpop.f32.mrb[0].mxu0
      %1546 = vmatprep.mubr.f32.mxu0 0.0
      %1547 = vmatmul.mubr.f32.gmra.mrb[0].mxu0 %v1363
      %v1548 = vpop.f32.mrb[0].mxu0
      %v1549 = vadd.f32 %v1228, %v1548
      %v1550 = vpop.f32.mrb[0].mxu0
      %1551 = vmatprep.mubr.f32.mxu0 0.0
      %1552 = vmatmul.mubr.f32.gmra.mrb[0].mxu0 %v1366
      %v1553 = vpop.f32.mrb[0].mxu0
      %v1554 = vadd.f32 %v1233, %v1553
      %v1555 = vpop.f32.mrb[0].mxu0
      %1556 = vmatprep.mubr.f32.mxu0 0.0
      %1557 = vmatmul.mubr.f32.gmra.mrb[0].mxu0 %v1369
      %v1558 = vpop.f32.mrb[0].mxu0
      %v1559 = vadd.f32 %v1238, %v1558
      %v1560 = vpop.f32.mrb[0].mxu0
      %1561 = vmatprep.mubr.f32.mxu0 0.0
      %1562 = vmatmul.mubr.f32.gmra.mrb[0].mxu0 %v1372
      %v1563 = vpop.f32.mrb[0].mxu0
      %v1564 = vadd.f32 %v1243, %v1563
      %v1565 = vpop.f32.mrb[0].mxu0
      %1566 = vmatprep.mubr.f32.mxu0 0.0
      %1567 = vmatmul.mubr.f32.gmra.mrb[0].mxu0 %v1375
      %v1568 = vpop.f32.mrb[0].mxu0
      %v1569 = vadd.f32 %v1248, %v1568
      %v1570 = vpop.f32.mrb[0].mxu0
      %1571 = vmatprep.mubr.f32.mxu0 0.0
      %1572 = vmatmul.mubr.f32.gmra.mrb[0].mxu0 %v1378
      %v1573 = vpop.f32.mrb[0].mxu0
      %v1574 = vadd.f32 %v1253, %v1573
      %v1575 = vpop.f32.mrb[0].mxu0
      %1576 = vmatprep.mubr.f32.mxu0 0.0
      %1577 = vmatmul.mubr.f32.gmra.mrb[0].mxu0 %v1381
      %v1578 = vpop.f32.mrb[0].mxu0
      %v1579 = vadd.f32 %v1258, %v1578
      %v1580 = vpop.f32.mrb[0].mxu0
      %1581 = vmatprep.mubr.f32.mxu0 0.0
      %1582 = vmatmul.mubr.f32.gmra.mrb[0].mxu0 %v1384
      %v1583 = vpop.f32.mrb[0].mxu0
      %v1584 = vadd.f32 %v1263, %v1583
      %v1585 = vpop.f32.mrb[0].mxu0
      %1586 = vmatprep.mubr.f32.mxu0 0.0
      %1587 = vmatmul.mubr.f32.gmra.mrb[0].mxu0 %v1387
      %v1588 = vpop.f32.mrb[0].mxu0
      %v1589 = vadd.f32 %v1268, %v1588
      %v1590 = vpop.f32.mrb[0].mxu0
      %1591 = vmatprep.mubr.f32.mxu0 0.0
      %1592 = vmatmul.mubr.f32.gmra.mrb[0].mxu0 %v1390
      %v1593 = vpop.f32.mrb[0].mxu0
      %v1594 = vadd.f32 %v1273, %v1593
      %v1595 = vpop.f32.mrb[0].mxu0
      %1596 = vmatprep.mubr.f32.mxu0 0.0
      %1597 = vmatmul.mubr.f32.gmra.mrb[0].mxu0 %v1393
      %v1598 = vpop.f32.mrb[0].mxu0
      %v1599 = vadd.f32 %v1278, %v1598
      %v1600 = vpop.f32.mrb[0].mxu0
      %1601 = vmatprep.mubr.f32.mxu0 0.0
      %1602 = vmatmul.mubr.f32.gmra.mrb[0].mxu0 %v1396
      %v1603 = vpop.f32.mrb[0].mxu0
      %v1604 = vadd.f32 %v1283, %v1603
      %v1605 = vpop.f32.mrb[0].mxu0
      %1606 = vmatprep.mubr.f32.mxu0 0.0
      %1607 = vmatmul.mubr.f32.gmra.mrb[0].mxu0 %v1399
      %v1608 = vpop.f32.mrb[0].mxu0
      %v1609 = vadd.f32 %v1288, %v1608
      %v1610 = vpop.f32.mrb[0].mxu0
      %1611 = vmatprep.mubr.f32.mxu0 0.0
      %1612 = vmatmul.mubr.f32.gmra.mrb[0].mxu0 %v1402
      %v1613 = vpop.f32.mrb[0].mxu0
      %v1614 = vadd.f32 %v1293, %v1613
      %v1615 = vpop.f32.mrb[0].mxu0
      %1616 = vmatprep.mubr.f32.mxu0 0.0
      %1617 = vmatmul.mubr.f32.gmra.mrb[0].mxu0 %v1405
      %v1618 = vpop.f32.mrb[0].mxu0
      %v1619 = vadd.f32 %v1298, %v1618
      %v1620 = vpop.f32.mrb[0].mxu0
      %1621 = vmatprep.mubr.f32.mxu0 0.0
      %1622 = vmatmul.mubr.f32.gmra.mrb[0].mxu0 %v1408
      %v1623 = vpop.f32.mrb[0].mxu0
      %v1624 = vadd.f32 %v1303, %v1623
      %v1625 = vpop.f32.mrb[0].mxu0
      %1626 = vmatprep.mubr.f32.mxu0 0.0
      %1627 = vmatmul.mubr.f32.gmra.mrb[0].mxu0 %v1411
      %v1628 = vpop.f32.mrb[0].mxu0
      %v1629 = vadd.f32 %v1308, %v1628
      %v1630 = vpop.f32.mrb[0].mxu0
      %1631 = vmatprep.mubr.f32.mxu0 0.0
      %1632 = vmatmul.mubr.f32.gmra.mrb[0].mxu0 %v1414
      %v1633 = vpop.f32.mrb[0].mxu0
      %v1634 = vadd.f32 %v1313, %v1633
      %v1635 = vpop.f32.mrb[0].mxu0
      %1636 = vmatprep.mubr.f32.mxu0 0.0
      %1637 = vmatmul.mubr.f32.gmra.mrb[0].mxu0 %v1417
      %v1638 = vpop.f32.mrb[0].mxu0
      %v1639 = vadd.f32 %v1318, %v1638
      %v1640 = vpop.f32.mrb[0].mxu0
      %1641 = vmatprep.mubr.f32.mxu0 0.0
      %1642 = vmatmul.mubr.f32.gmra.mrb[0].mxu0 %v1420
      %v1643 = vpop.f32.mrb[0].mxu0
      %v1644 = vadd.f32 %v1323, %v1643
      %v1645 = vpop.f32.mrb[0].mxu0
      %1646 = vdwg.mxu0
      %v1647 = vld [vmem:[#allocation2 + $0x9] sm:$0xff]
      %v1648 = vld [vmem:[#allocation2 + $0x11] sm:$0xff]
      %v1649 = vld [vmem:[#allocation2 + $0x19] sm:$0xff]
      %v1650 = vld [vmem:[#allocation2 + $0x21] sm:$0xff]
      %v1651 = vld [vmem:[#allocation2 + $0x29] sm:$0xff]
      %v1652 = vld [vmem:[#allocation2 + $0x31] sm:$0xff]
      %v1653 = vld [vmem:[#allocation2 + $0x39] sm:$0xff]
      %v1654 = vld [vmem:[#allocation2 + $0x41] sm:$0xff]
      %v1655 = vld [vmem:[#allocation2 + $0x49] sm:$0xff]
      %v1656 = vld [vmem:[#allocation2 + $0x51] sm:$0xff]
      %v1657 = vld [vmem:[#allocation2 + $0x59] sm:$0xff]
      %v1658 = vld [vmem:[#allocation2 + $0x61] sm:$0xff]
      %v1659 = vld [vmem:[#allocation2 + $0x69] sm:$0xff]
      %v1660 = vld [vmem:[#allocation2 + $0x71] sm:$0xff]
      %v1661 = vld [vmem:[#allocation2 + $0x79] sm:$0xff]
      %v1662 = vld [vmem:[#allocation2 + $0x81] sm:$0xff]
      %v1663 = vld [vmem:[#allocation2 + $0x89] sm:$0xff]
      %v1664 = vld [vmem:[#allocation2 + $0x91] sm:$0xff]
      %v1665 = vld [vmem:[#allocation2 + $0x99] sm:$0xff]
      %v1666 = vld [vmem:[#allocation2 + $0xa1] sm:$0xff]
      %v1667 = vld [vmem:[#allocation2 + $0xa9] sm:$0xff]
      %v1668 = vld [vmem:[#allocation2 + $0xb1] sm:$0xff]
      %v1669 = vld [vmem:[#allocation2 + $0xb9] sm:$0xff]
      %v1670 = vld [vmem:[#allocation2 + $0xc1] sm:$0xff]
      %v1671 = vld [vmem:[#allocation2 + $0xc9] sm:$0xff]
      %v1672 = vld [vmem:[#allocation2 + $0xd1] sm:$0xff]
      %v1673 = vld [vmem:[#allocation2 + $0xd9] sm:$0xff]
      %v1674 = vld [vmem:[#allocation2 + $0xe1] sm:$0xff]
      %v1675 = vld [vmem:[#allocation2 + $0xe9] sm:$0xff]
      %v1676 = vld [vmem:[#allocation2 + $0xf1] sm:$0xff]
      %v1677 = vld [vmem:[#allocation2 + $0xf9] sm:$0xff]
      %v1678 = vld [vmem:[#allocation2 + $0x101] sm:$0xff]
      %v1679 = vsel %vm868, %v1647, 0.0
      %v1680 = vsel %vm869, %v1648, 0.0
      %v1681 = vsel %vm870, %v1649, 0.0
      %v1682 = vsel %vm871, %v1650, 0.0
      %v1683 = vsel %vm872, %v1651, 0.0
      %v1684 = vsel %vm873, %v1652, 0.0
      %v1685 = vsel %vm874, %v1653, 0.0
      %v1686 = vsel %vm875, %v1654, 0.0
      %v1687 = vsel %vm876, %v1655, 0.0
      %v1688 = vsel %vm877, %v1656, 0.0
      %v1689 = vsel %vm878, %v1657, 0.0
      %v1690 = vsel %vm879, %v1658, 0.0
      %v1691 = vsel %vm880, %v1659, 0.0
      %v1692 = vsel %vm881, %v1660, 0.0
      %v1693 = vsel %vm882, %v1661, 0.0
      %v1694 = vsel %vm883, %v1662, 0.0
      %v1695 = vsel %vm884, %v1663, 0.0
      %v1696 = vsel %vm885, %v1664, 0.0
      %v1697 = vsel %vm886, %v1665, 0.0
      %v1698 = vsel %vm887, %v1666, 0.0
      %v1699 = vsel %vm888, %v1667, 0.0
      %v1700 = vsel %vm889, %v1668, 0.0
      %v1701 = vsel %vm890, %v1669, 0.0
      %v1702 = vsel %vm891, %v1670, 0.0
      %v1703 = vsel %vm892, %v1671, 0.0
      %v1704 = vsel %vm893, %v1672, 0.0
      %v1705 = vsel %vm894, %v1673, 0.0
      %v1706 = vsel %vm895, %v1674, 0.0
      %v1707 = vsel %vm896, %v1675, 0.0
      %v1708 = vsel %vm897, %v1676, 0.0
      %v1709 = vsel %vm898, %v1677, 0.0
      %v1710 = vsel %vm899, %v1678, 0.0
      %s1711 = scalar_lea.vmem %s3, 64
      %v1712 = vld [vmem:[%s1711] sm:$0xff]
      %v1713 = vld [vmem:[%s1711 + $0x8] sm:$0xff]
      %v1714 = vld [vmem:[%s1711 + $0x10] sm:$0xff]
      %v1715 = vld [vmem:[%s1711 + $0x18] sm:$0xff]
      %v1717 = vsel %vm732, %v1679, 0
      %v1720 = vsel %vm732, %v1680, 0
      %v1723 = vsel %vm732, %v1681, 0
      %v1726 = vsel %vm732, %v1682, 0
      %v1729 = vsel %vm732, %v1683, 0
      %v1732 = vsel %vm732, %v1684, 0
      %v1735 = vsel %vm732, %v1685, 0
      %v1738 = vsel %vm732, %v1686, 0
      %v1741 = vsel %vm732, %v1687, 0
      %v1744 = vsel %vm732, %v1688, 0
      %v1747 = vsel %vm732, %v1689, 0
      %v1750 = vsel %vm732, %v1690, 0
      %v1753 = vsel %vm732, %v1691, 0
      %v1756 = vsel %vm732, %v1692, 0
      %v1759 = vsel %vm732, %v1693, 0
      %v1762 = vsel %vm732, %v1694, 0
      %v1765 = vsel %vm732, %v1695, 0
      %v1768 = vsel %vm732, %v1696, 0
      %v1771 = vsel %vm732, %v1697, 0
      %v1774 = vsel %vm732, %v1698, 0
      %v1777 = vsel %vm732, %v1699, 0
      %v1780 = vsel %vm732, %v1700, 0
      %v1783 = vsel %vm732, %v1701, 0
      %v1786 = vsel %vm732, %v1702, 0
      %v1789 = vsel %vm732, %v1703, 0
      %v1792 = vsel %vm732, %v1704, 0
      %v1795 = vsel %vm732, %v1705, 0
      %v1798 = vsel %vm732, %v1706, 0
      %v1801 = vsel %vm732, %v1707, 0
      %v1804 = vsel %vm732, %v1708, 0
      %v1807 = vsel %vm732, %v1709, 0
      %v1810 = vsel %vm732, %v1710, 0
      %1812 = vmatprep.subr.mxu0 0.0
      %1813 = vmatpush1.msra.mxu0 %v1712
      %1814 = vmatprep.subr.mxu0 0.0
      %1815 = vmatpush1.msra.mxu0 %v1713
      %1816 = vmatprep.subr.mxu0 0.0
      %1817 = vmatpush1.msra.mxu0 %v1714
      %1818 = vmatprep.subr.mxu0 0.0
      %1819 = vmatpush1.msra.mxu0 %v1715
      %1820 = vmatprep.subr.mxu0 0.0
      %1821 = vmatpush1.msra.mxu0 0.0
      %1822 = vmatprep.subr.mxu0 0.0
      %1823 = vmatpush1.msra.mxu0 0.0
      %1824 = vmatprep.subr.mxu0 0.0
      %1825 = vmatpush1.msra.mxu0 0.0
      %1826 = vmatprep.subr.mxu0 0.0
      %1827 = vmatpush1.msra.mxu0 0.0
      %1828 = vmatprep.subr.mxu0 0.0
      %1829 = vmatpush1.msra.mxu0 0.0
      %1830 = vmatprep.subr.mxu0 0.0
      %1831 = vmatpush1.msra.mxu0 0.0
      %1832 = vmatprep.subr.mxu0 0.0
      %1833 = vmatpush1.msra.mxu0 0.0
      %1834 = vmatprep.subr.mxu0 0.0
      %1835 = vmatpush1.msra.mxu0 0.0
      %1836 = vmatprep.subr.mxu0 0.0
      %1837 = vmatpush1.msra.mxu0 0.0
      %1838 = vmatprep.subr.mxu0 0.0
      %1839 = vmatpush1.msra.mxu0 0.0
      %1840 = vmatprep.subr.mxu0 0.0
      %1841 = vmatpush1.msra.mxu0 0.0
      %1842 = vmatprep.subr.mxu0 0.0
      %1843 = vmatpush1.msra.mxu0 0.0
      %1844 = vmatprep.subr.mxu0 0.0
      %1845 = vmatpush1.msra.mxu0 0.0
      %1846 = vmatprep.subr.mxu0 0.0
      %1847 = vmatpush1.msra.mxu0 0.0
      %1848 = vmatprep.subr.mxu0 0.0
      %1849 = vmatpush1.msra.mxu0 0.0
      %1850 = vmatprep.subr.mxu0 0.0
      %1851 = vmatpush1.msra.mxu0 0.0
      %1852 = vmatprep.subr.mxu0 0.0
      %1853 = vmatpush1.msra.mxu0 0.0
      %1854 = vmatprep.subr.mxu0 0.0
      %1855 = vmatpush1.msra.mxu0 0.0
      %1856 = vmatprep.subr.mxu0 0.0
      %1857 = vmatpush1.msra.mxu0 0.0
      %1858 = vmatprep.subr.mxu0 0.0
      %1859 = vmatpush1.msra.mxu0 0.0
      %1860 = vmatprep.subr.mxu0 0.0
      %1861 = vmatpush1.msra.mxu0 0.0
      %1862 = vmatprep.subr.mxu0 0.0
      %1863 = vmatpush1.msra.mxu0 0.0
      %1864 = vmatprep.subr.mxu0 0.0
      %1865 = vmatpush1.msra.mxu0 0.0
      %1866 = vmatprep.subr.mxu0 0.0
      %1867 = vmatpush1.msra.mxu0 0.0
      %1868 = vmatprep.subr.mxu0 0.0
      %1869 = vmatpush1.msra.mxu0 0.0
      %1870 = vmatprep.subr.mxu0 0.0
      %1871 = vmatpush1.msra.mxu0 0.0
      %1872 = vmatprep.subr.mxu0 0.0
      %1873 = vmatpush1.msra.mxu0 0.0
      %1874 = vmatprep.subr.mxu0 0.0
      %1875 = vmatpush1.msra.mxu0 0.0
      %1876 = vmatprep.mubr.f32.mxu0 0.0
      %1877 = vmatmul.mubr.f32.gmra.mrb[0].mxu0 %v1717
      %v1878 = vpop.f32.mrb[0].mxu0
      %v1879 = vadd.f32 0.0, %v1878
      %v1880 = vpop.f32.mrb[0].mxu0
      %1881 = vmatprep.mubr.f32.mxu0 0.0
      %1882 = vmatmul.mubr.f32.gmra.mrb[0].mxu0 %v1720
      %v1883 = vpop.f32.mrb[0].mxu0
      %v1884 = vadd.f32 0.0, %v1883
      %v1885 = vpop.f32.mrb[0].mxu0
      %1886 = vmatprep.mubr.f32.mxu0 0.0
      %1887 = vmatmul.mubr.f32.gmra.mrb[0].mxu0 %v1723
      %v1888 = vpop.f32.mrb[0].mxu0
      %v1889 = vadd.f32 0.0, %v1888
      %v1890 = vpop.f32.mrb[0].mxu0
      %1891 = vmatprep.mubr.f32.mxu0 0.0
      %1892 = vmatmul.mubr.f32.gmra.mrb[0].mxu0 %v1726
      %v1893 = vpop.f32.mrb[0].mxu0
      %v1894 = vadd.f32 0.0, %v1893
      %v1895 = vpop.f32.mrb[0].mxu0
      %1896 = vmatprep.mubr.f32.mxu0 0.0
      %1897 = vmatmul.mubr.f32.gmra.mrb[0].mxu0 %v1729
      %v1898 = vpop.f32.mrb[0].mxu0
      %v1899 = vadd.f32 0.0, %v1898
      %v1900 = vpop.f32.mrb[0].mxu0
      %1901 = vmatprep.mubr.f32.mxu0 0.0
      %1902 = vmatmul.mubr.f32.gmra.mrb[0].mxu0 %v1732
      %v1903 = vpop.f32.mrb[0].mxu0
      %v1904 = vadd.f32 0.0, %v1903
      %v1905 = vpop.f32.mrb[0].mxu0
      %1906 = vmatprep.mubr.f32.mxu0 0.0
      %1907 = vmatmul.mubr.f32.gmra.mrb[0].mxu0 %v1735
      %v1908 = vpop.f32.mrb[0].mxu0
      %v1909 = vadd.f32 0.0, %v1908
      %v1910 = vpop.f32.mrb[0].mxu0
      %1911 = vmatprep.mubr.f32.mxu0 0.0
      %1912 = vmatmul.mubr.f32.gmra.mrb[0].mxu0 %v1738
      %v1913 = vpop.f32.mrb[0].mxu0
      %v1914 = vadd.f32 0.0, %v1913
      %v1915 = vpop.f32.mrb[0].mxu0
      %1916 = vmatprep.mubr.f32.mxu0 0.0
      %1917 = vmatmul.mubr.f32.gmra.mrb[0].mxu0 %v1741
      %v1918 = vpop.f32.mrb[0].mxu0
      %v1919 = vadd.f32 0.0, %v1918
      %v1920 = vpop.f32.mrb[0].mxu0
      %1921 = vmatprep.mubr.f32.mxu0 0.0
      %1922 = vmatmul.mubr.f32.gmra.mrb[0].mxu0 %v1744
      %v1923 = vpop.f32.mrb[0].mxu0
      %v1924 = vadd.f32 0.0, %v1923
      %v1925 = vpop.f32.mrb[0].mxu0
      %1926 = vmatprep.mubr.f32.mxu0 0.0
      %1927 = vmatmul.mubr.f32.gmra.mrb[0].mxu0 %v1747
      %v1928 = vpop.f32.mrb[0].mxu0
      %v1929 = vadd.f32 0.0, %v1928
      %v1930 = vpop.f32.mrb[0].mxu0
      %1931 = vmatprep.mubr.f32.mxu0 0.0
      %1932 = vmatmul.mubr.f32.gmra.mrb[0].mxu0 %v1750
      %v1933 = vpop.f32.mrb[0].mxu0
      %v1934 = vadd.f32 0.0, %v1933
      %v1935 = vpop.f32.mrb[0].mxu0
      %1936 = vmatprep.mubr.f32.mxu0 0.0
      %1937 = vmatmul.mubr.f32.gmra.mrb[0].mxu0 %v1753
      %v1938 = vpop.f32.mrb[0].mxu0
      %v1939 = vadd.f32 0.0, %v1938
      %v1940 = vpop.f32.mrb[0].mxu0
      %1941 = vmatprep.mubr.f32.mxu0 0.0
      %1942 = vmatmul.mubr.f32.gmra.mrb[0].mxu0 %v1756
      %v1943 = vpop.f32.mrb[0].mxu0
      %v1944 = vadd.f32 0.0, %v1943
      %v1945 = vpop.f32.mrb[0].mxu0
      %1946 = vmatprep.mubr.f32.mxu0 0.0
      %1947 = vmatmul.mubr.f32.gmra.mrb[0].mxu0 %v1759
      %v1948 = vpop.f32.mrb[0].mxu0
      %v1949 = vadd.f32 0.0, %v1948
      %v1950 = vpop.f32.mrb[0].mxu0
      %1951 = vmatprep.mubr.f32.mxu0 0.0
      %1952 = vmatmul.mubr.f32.gmra.mrb[0].mxu0 %v1762
      %v1953 = vpop.f32.mrb[0].mxu0
      %v1954 = vadd.f32 0.0, %v1953
      %v1955 = vpop.f32.mrb[0].mxu0
      %1956 = vmatprep.mubr.f32.mxu0 0.0
      %1957 = vmatmul.mubr.f32.gmra.mrb[0].mxu0 %v1765
      %v1958 = vpop.f32.mrb[0].mxu0
      %v1959 = vadd.f32 0.0, %v1958
      %v1960 = vpop.f32.mrb[0].mxu0
      %1961 = vmatprep.mubr.f32.mxu0 0.0
      %1962 = vmatmul.mubr.f32.gmra.mrb[0].mxu0 %v1768
      %v1963 = vpop.f32.mrb[0].mxu0
      %v1964 = vadd.f32 0.0, %v1963
      %v1965 = vpop.f32.mrb[0].mxu0
      %1966 = vmatprep.mubr.f32.mxu0 0.0
      %1967 = vmatmul.mubr.f32.gmra.mrb[0].mxu0 %v1771
      %v1968 = vpop.f32.mrb[0].mxu0
      %v1969 = vadd.f32 0.0, %v1968
      %v1970 = vpop.f32.mrb[0].mxu0
      %1971 = vmatprep.mubr.f32.mxu0 0.0
      %1972 = vmatmul.mubr.f32.gmra.mrb[0].mxu0 %v1774
      %v1973 = vpop.f32.mrb[0].mxu0
      %v1974 = vadd.f32 0.0, %v1973
      %v1975 = vpop.f32.mrb[0].mxu0
      %1976 = vmatprep.mubr.f32.mxu0 0.0
      %1977 = vmatmul.mubr.f32.gmra.mrb[0].mxu0 %v1777
      %v1978 = vpop.f32.mrb[0].mxu0
      %v1979 = vadd.f32 0.0, %v1978
      %v1980 = vpop.f32.mrb[0].mxu0
      %1981 = vmatprep.mubr.f32.mxu0 0.0
      %1982 = vmatmul.mubr.f32.gmra.mrb[0].mxu0 %v1780
      %v1983 = vpop.f32.mrb[0].mxu0
      %v1984 = vadd.f32 0.0, %v1983
      %v1985 = vpop.f32.mrb[0].mxu0
      %1986 = vmatprep.mubr.f32.mxu0 0.0
      %1987 = vmatmul.mubr.f32.gmra.mrb[0].mxu0 %v1783
      %v1988 = vpop.f32.mrb[0].mxu0
      %v1989 = vadd.f32 0.0, %v1988
      %v1990 = vpop.f32.mrb[0].mxu0
      %1991 = vmatprep.mubr.f32.mxu0 0.0
      %1992 = vmatmul.mubr.f32.gmra.mrb[0].mxu0 %v1786
      %v1993 = vpop.f32.mrb[0].mxu0
      %v1994 = vadd.f32 0.0, %v1993
      %v1995 = vpop.f32.mrb[0].mxu0
      %1996 = vmatprep.mubr.f32.mxu0 0.0
      %1997 = vmatmul.mubr.f32.gmra.mrb[0].mxu0 %v1789
      %v1998 = vpop.f32.mrb[0].mxu0
      %v1999 = vadd.f32 0.0, %v1998
      %v2000 = vpop.f32.mrb[0].mxu0
      %2001 = vmatprep.mubr.f32.mxu0 0.0
      %2002 = vmatmul.mubr.f32.gmra.mrb[0].mxu0 %v1792
      %v2003 = vpop.f32.mrb[0].mxu0
      %v2004 = vadd.f32 0.0, %v2003
      %v2005 = vpop.f32.mrb[0].mxu0
      %2006 = vmatprep.mubr.f32.mxu0 0.0
      %2007 = vmatmul.mubr.f32.gmra.mrb[0].mxu0 %v1795
      %v2008 = vpop.f32.mrb[0].mxu0
      %v2009 = vadd.f32 0.0, %v2008
      %v2010 = vpop.f32.mrb[0].mxu0
      %2011 = vmatprep.mubr.f32.mxu0 0.0
      %2012 = vmatmul.mubr.f32.gmra.mrb[0].mxu0 %v1798
      %v2013 = vpop.f32.mrb[0].mxu0
      %v2014 = vadd.f32 0.0, %v2013
      %v2015 = vpop.f32.mrb[0].mxu0
      %2016 = vmatprep.mubr.f32.mxu0 0.0
      %2017 = vmatmul.mubr.f32.gmra.mrb[0].mxu0 %v1801
      %v2018 = vpop.f32.mrb[0].mxu0
      %v2019 = vadd.f32 0.0, %v2018
      %v2020 = vpop.f32.mrb[0].mxu0
      %2021 = vmatprep.mubr.f32.mxu0 0.0
      %2022 = vmatmul.mubr.f32.gmra.mrb[0].mxu0 %v1804
      %v2023 = vpop.f32.mrb[0].mxu0
      %v2024 = vadd.f32 0.0, %v2023
      %v2025 = vpop.f32.mrb[0].mxu0
      %2026 = vmatprep.mubr.f32.mxu0 0.0
      %2027 = vmatmul.mubr.f32.gmra.mrb[0].mxu0 %v1807
      %v2028 = vpop.f32.mrb[0].mxu0
      %v2029 = vadd.f32 0.0, %v2028
      %v2030 = vpop.f32.mrb[0].mxu0
      %2031 = vmatprep.mubr.f32.mxu0 0.0
      %2032 = vmatmul.mubr.f32.gmra.mrb[0].mxu0 %v1810
      %v2033 = vpop.f32.mrb[0].mxu0
      %v2034 = vadd.f32 0.0, %v2033
      %v2035 = vpop.f32.mrb[0].mxu0
      %2036 = vdwg.mxu0
      %v2037 = vadd.f32 %v1489, %v1879
      %v2038 = vadd.f32 %v1494, %v1884
      %v2039 = vadd.f32 %v1499, %v1889
      %v2040 = vadd.f32 %v1504, %v1894
      %v2041 = vadd.f32 %v1509, %v1899
      %v2042 = vadd.f32 %v1514, %v1904
      %v2043 = vadd.f32 %v1519, %v1909
      %v2044 = vadd.f32 %v1524, %v1914
      %v2045 = vadd.f32 %v1529, %v1919
      %v2046 = vadd.f32 %v1534, %v1924
      %v2047 = vadd.f32 %v1539, %v1929
      %v2048 = vadd.f32 %v1544, %v1934
      %v2049 = vadd.f32 %v1549, %v1939
      %v2050 = vadd.f32 %v1554, %v1944
      %v2051 = vadd.f32 %v1559, %v1949
      %v2052 = vadd.f32 %v1564, %v1954
      %v2053 = vadd.f32 %v1569, %v1959
      %v2054 = vadd.f32 %v1574, %v1964
      %v2055 = vadd.f32 %v1579, %v1969
      %v2056 = vadd.f32 %v1584, %v1974
      %v2057 = vadd.f32 %v1589, %v1979
      %v2058 = vadd.f32 %v1594, %v1984
      %v2059 = vadd.f32 %v1599, %v1989
      %v2060 = vadd.f32 %v1604, %v1994
      %v2061 = vadd.f32 %v1609, %v1999
      %v2062 = vadd.f32 %v1614, %v2004
      %v2063 = vadd.f32 %v1619, %v2009
      %v2064 = vadd.f32 %v1624, %v2014
      %v2065 = vadd.f32 %v1629, %v2019
      %v2066 = vadd.f32 %v1634, %v2024
      %v2067 = vadd.f32 %v1639, %v2029
      %v2068 = vadd.f32 %v1644, %v2034
      %v2069 = vld [vmem:[#allocation2 + $0x17] sm:$0xff]
      %v2070 = vld [vmem:[#allocation2 + $0x1f] sm:$0xff]
      %v2071 = vld [vmem:[#allocation2 + $0x27] sm:$0xff]
      %v2072 = vld [vmem:[#allocation2 + $0x2f] sm:$0xff]
      %v2073 = vld [vmem:[#allocation2 + $0x37] sm:$0xff]
      %v2074 = vld [vmem:[#allocation2 + $0x3f] sm:$0xff]
      %v2075 = vld [vmem:[#allocation2 + $0x47] sm:$0xff]
      %v2076 = vld [vmem:[#allocation2 + $0x4f] sm:$0xff]
      %v2077 = vld [vmem:[#allocation2 + $0x57] sm:$0xff]
      %v2078 = vld [vmem:[#allocation2 + $0x5f] sm:$0xff]
      %v2079 = vld [vmem:[#allocation2 + $0x67] sm:$0xff]
      %v2080 = vld [vmem:[#allocation2 + $0x6f] sm:$0xff]
      %v2081 = vld [vmem:[#allocation2 + $0x77] sm:$0xff]
      %v2082 = vld [vmem:[#allocation2 + $0x7f] sm:$0xff]
      %v2083 = vld [vmem:[#allocation2 + $0x87] sm:$0xff]
      %v2084 = vld [vmem:[#allocation2 + $0x8f] sm:$0xff]
      %v2085 = vld [vmem:[#allocation2 + $0x97] sm:$0xff]
      %v2086 = vld [vmem:[#allocation2 + $0x9f] sm:$0xff]
      %v2087 = vld [vmem:[#allocation2 + $0xa7] sm:$0xff]
      %v2088 = vld [vmem:[#allocation2 + $0xaf] sm:$0xff]
      %v2089 = vld [vmem:[#allocation2 + $0xb7] sm:$0xff]
      %v2090 = vld [vmem:[#allocation2 + $0xbf] sm:$0xff]
      %v2091 = vld [vmem:[#allocation2 + $0xc7] sm:$0xff]
      %v2092 = vld [vmem:[#allocation2 + $0xcf] sm:$0xff]
      %v2093 = vld [vmem:[#allocation2 + $0xd7] sm:$0xff]
      %v2094 = vld [vmem:[#allocation2 + $0xdf] sm:$0xff]
      %v2095 = vld [vmem:[#allocation2 + $0xe7] sm:$0xff]
      %v2096 = vld [vmem:[#allocation2 + $0xef] sm:$0xff]
      %v2097 = vld [vmem:[#allocation2 + $0xf7] sm:$0xff]
      %v2098 = vld [vmem:[#allocation2 + $0xff] sm:$0xff]
      %v2099 = vld [vmem:[#allocation2 + $0x107] sm:$0xff]
      %v2100 = vld [vmem:[#allocation2 + $0x10f] sm:$0xff]
      %v2101 = vsel %vm836, %v2069, 0.0
      %v2102 = vsel %vm837, %v2070, 0.0
      %v2103 = vsel %vm838, %v2071, 0.0
      %v2104 = vsel %vm839, %v2072, 0.0
      %v2105 = vsel %vm840, %v2073, 0.0
      %v2106 = vsel %vm841, %v2074, 0.0
      %v2107 = vsel %vm842, %v2075, 0.0
      %v2108 = vsel %vm843, %v2076, 0.0
      %v2109 = vsel %vm844, %v2077, 0.0
      %v2110 = vsel %vm845, %v2078, 0.0
      %v2111 = vsel %vm846, %v2079, 0.0
      %v2112 = vsel %vm847, %v2080, 0.0
      %v2113 = vsel %vm848, %v2081, 0.0
      %v2114 = vsel %vm849, %v2082, 0.0
      %v2115 = vsel %vm850, %v2083, 0.0
      %v2116 = vsel %vm851, %v2084, 0.0
      %v2117 = vsel %vm852, %v2085, 0.0
      %v2118 = vsel %vm853, %v2086, 0.0
      %v2119 = vsel %vm854, %v2087, 0.0
      %v2120 = vsel %vm855, %v2088, 0.0
      %v2121 = vsel %vm856, %v2089, 0.0
      %v2122 = vsel %vm857, %v2090, 0.0
      %v2123 = vsel %vm858, %v2091, 0.0
      %v2124 = vsel %vm859, %v2092, 0.0
      %v2125 = vsel %vm860, %v2093, 0.0
      %v2126 = vsel %vm861, %v2094, 0.0
      %v2127 = vsel %vm862, %v2095, 0.0
      %v2128 = vsel %vm863, %v2096, 0.0
      %v2129 = vsel %vm864, %v2097, 0.0
      %v2130 = vsel %vm865, %v2098, 0.0
      %v2131 = vsel %vm866, %v2099, 0.0
      %v2132 = vsel %vm867, %v2100, 0.0
      %s2133 = scalar_lea.vmem %s3, 96
      %v2134 = vld [vmem:[%s2133] sm:$0xff]
      %v2135 = vld [vmem:[%s2133 + $0x8] sm:$0xff]
      %v2136 = vld [vmem:[%s2133 + $0x10] sm:$0xff]
      %v2137 = vld [vmem:[%s2133 + $0x18] sm:$0xff]
      %v2139 = vsel %vm732, %v2101, 0
      %v2142 = vsel %vm732, %v2102, 0
      %v2145 = vsel %vm732, %v2103, 0
      %v2148 = vsel %vm732, %v2104, 0
      %v2151 = vsel %vm732, %v2105, 0
      %v2154 = vsel %vm732, %v2106, 0
      %v2157 = vsel %vm732, %v2107, 0
      %v2160 = vsel %vm732, %v2108, 0
      %v2163 = vsel %vm732, %v2109, 0
      %v2166 = vsel %vm732, %v2110, 0
      %v2169 = vsel %vm732, %v2111, 0
      %v2172 = vsel %vm732, %v2112, 0
      %v2175 = vsel %vm732, %v2113, 0
      %v2178 = vsel %vm732, %v2114, 0
      %v2181 = vsel %vm732, %v2115, 0
      %v2184 = vsel %vm732, %v2116, 0
      %v2187 = vsel %vm732, %v2117, 0
      %v2190 = vsel %vm732, %v2118, 0
      %v2193 = vsel %vm732, %v2119, 0
      %v2196 = vsel %vm732, %v2120, 0
      %v2199 = vsel %vm732, %v2121, 0
      %v2202 = vsel %vm732, %v2122, 0
      %v2205 = vsel %vm732, %v2123, 0
      %v2208 = vsel %vm732, %v2124, 0
      %v2211 = vsel %vm732, %v2125, 0
      %v2214 = vsel %vm732, %v2126, 0
      %v2217 = vsel %vm732, %v2127, 0
      %v2220 = vsel %vm732, %v2128, 0
      %v2223 = vsel %vm732, %v2129, 0
      %v2226 = vsel %vm732, %v2130, 0
      %v2229 = vsel %vm732, %v2131, 0
      %v2232 = vsel %vm732, %v2132, 0
      %2234 = vmatprep.subr.mxu0 0.0
      %2235 = vmatpush1.msra.mxu0 %v2134
      %2236 = vmatprep.subr.mxu0 0.0
      %2237 = vmatpush1.msra.mxu0 %v2135
      %2238 = vmatprep.subr.mxu0 0.0
      %2239 = vmatpush1.msra.mxu0 %v2136
      %2240 = vmatprep.subr.mxu0 0.0
      %2241 = vmatpush1.msra.mxu0 %v2137
      %2242 = vmatprep.subr.mxu0 0.0
      %2243 = vmatpush1.msra.mxu0 0.0
      %2244 = vmatprep.subr.mxu0 0.0
      %2245 = vmatpush1.msra.mxu0 0.0
      %2246 = vmatprep.subr.mxu0 0.0
      %2247 = vmatpush1.msra.mxu0 0.0
      %2248 = vmatprep.subr.mxu0 0.0
      %2249 = vmatpush1.msra.mxu0 0.0
      %2250 = vmatprep.subr.mxu0 0.0
      %2251 = vmatpush1.msra.mxu0 0.0
      %2252 = vmatprep.subr.mxu0 0.0
      %2253 = vmatpush1.msra.mxu0 0.0
      %2254 = vmatprep.subr.mxu0 0.0
      %2255 = vmatpush1.msra.mxu0 0.0
      %2256 = vmatprep.subr.mxu0 0.0
      %2257 = vmatpush1.msra.mxu0 0.0
      %2258 = vmatprep.subr.mxu0 0.0
      %2259 = vmatpush1.msra.mxu0 0.0
      %2260 = vmatprep.subr.mxu0 0.0
      %2261 = vmatpush1.msra.mxu0 0.0
      %2262 = vmatprep.subr.mxu0 0.0
      %2263 = vmatpush1.msra.mxu0 0.0
      %2264 = vmatprep.subr.mxu0 0.0
      %2265 = vmatpush1.msra.mxu0 0.0
      %2266 = vmatprep.subr.mxu0 0.0
      %2267 = vmatpush1.msra.mxu0 0.0
      %2268 = vmatprep.subr.mxu0 0.0
      %2269 = vmatpush1.msra.mxu0 0.0
      %2270 = vmatprep.subr.mxu0 0.0
      %2271 = vmatpush1.msra.mxu0 0.0
      %2272 = vmatprep.subr.mxu0 0.0
      %2273 = vmatpush1.msra.mxu0 0.0
      %2274 = vmatprep.subr.mxu0 0.0
      %2275 = vmatpush1.msra.mxu0 0.0
      %2276 = vmatprep.subr.mxu0 0.0
      %2277 = vmatpush1.msra.mxu0 0.0
      %2278 = vmatprep.subr.mxu0 0.0
      %2279 = vmatpush1.msra.mxu0 0.0
      %2280 = vmatprep.subr.mxu0 0.0
      %2281 = vmatpush1.msra.mxu0 0.0
      %2282 = vmatprep.subr.mxu0 0.0
      %2283 = vmatpush1.msra.mxu0 0.0
      %2284 = vmatprep.subr.mxu0 0.0
      %2285 = vmatpush1.msra.mxu0 0.0
      %2286 = vmatprep.subr.mxu0 0.0
      %2287 = vmatpush1.msra.mxu0 0.0
      %2288 = vmatprep.subr.mxu0 0.0
      %2289 = vmatpush1.msra.mxu0 0.0
      %2290 = vmatprep.subr.mxu0 0.0
      %2291 = vmatpush1.msra.mxu0 0.0
      %2292 = vmatprep.subr.mxu0 0.0
      %2293 = vmatpush1.msra.mxu0 0.0
      %2294 = vmatprep.subr.mxu0 0.0
      %2295 = vmatpush1.msra.mxu0 0.0
      %2296 = vmatprep.subr.mxu0 0.0
      %2297 = vmatpush1.msra.mxu0 0.0
      %2298 = vmatprep.mubr.f32.mxu0 0.0
      %2299 = vmatmul.mubr.f32.gmra.mrb[0].mxu0 %v2139
      %v2300 = vpop.f32.mrb[0].mxu0
      %v2301 = vadd.f32 0.0, %v2300
      %v2302 = vpop.f32.mrb[0].mxu0
      %2303 = vmatprep.mubr.f32.mxu0 0.0
      %2304 = vmatmul.mubr.f32.gmra.mrb[0].mxu0 %v2142
      %v2305 = vpop.f32.mrb[0].mxu0
      %v2306 = vadd.f32 0.0, %v2305
      %v2307 = vpop.f32.mrb[0].mxu0
      %2308 = vmatprep.mubr.f32.mxu0 0.0
      %2309 = vmatmul.mubr.f32.gmra.mrb[0].mxu0 %v2145
      %v2310 = vpop.f32.mrb[0].mxu0
      %v2311 = vadd.f32 0.0, %v2310
      %v2312 = vpop.f32.mrb[0].mxu0
      %2313 = vmatprep.mubr.f32.mxu0 0.0
      %2314 = vmatmul.mubr.f32.gmra.mrb[0].mxu0 %v2148
      %v2315 = vpop.f32.mrb[0].mxu0
      %v2316 = vadd.f32 0.0, %v2315
      %v2317 = vpop.f32.mrb[0].mxu0
      %2318 = vmatprep.mubr.f32.mxu0 0.0
      %2319 = vmatmul.mubr.f32.gmra.mrb[0].mxu0 %v2151
      %v2320 = vpop.f32.mrb[0].mxu0
      %v2321 = vadd.f32 0.0, %v2320
      %v2322 = vpop.f32.mrb[0].mxu0
      %2323 = vmatprep.mubr.f32.mxu0 0.0
      %2324 = vmatmul.mubr.f32.gmra.mrb[0].mxu0 %v2154
      %v2325 = vpop.f32.mrb[0].mxu0
      %v2326 = vadd.f32 0.0, %v2325
      %v2327 = vpop.f32.mrb[0].mxu0
      %2328 = vmatprep.mubr.f32.mxu0 0.0
      %2329 = vmatmul.mubr.f32.gmra.mrb[0].mxu0 %v2157
      %v2330 = vpop.f32.mrb[0].mxu0
      %v2331 = vadd.f32 0.0, %v2330
      %v2332 = vpop.f32.mrb[0].mxu0
      %2333 = vmatprep.mubr.f32.mxu0 0.0
      %2334 = vmatmul.mubr.f32.gmra.mrb[0].mxu0 %v2160
      %v2335 = vpop.f32.mrb[0].mxu0
      %v2336 = vadd.f32 0.0, %v2335
      %v2337 = vpop.f32.mrb[0].mxu0
      %2338 = vmatprep.mubr.f32.mxu0 0.0
      %2339 = vmatmul.mubr.f32.gmra.mrb[0].mxu0 %v2163
      %v2340 = vpop.f32.mrb[0].mxu0
      %v2341 = vadd.f32 0.0, %v2340
      %v2342 = vpop.f32.mrb[0].mxu0
      %2343 = vmatprep.mubr.f32.mxu0 0.0
      %2344 = vmatmul.mubr.f32.gmra.mrb[0].mxu0 %v2166
      %v2345 = vpop.f32.mrb[0].mxu0
      %v2346 = vadd.f32 0.0, %v2345
      %v2347 = vpop.f32.mrb[0].mxu0
      %2348 = vmatprep.mubr.f32.mxu0 0.0
      %2349 = vmatmul.mubr.f32.gmra.mrb[0].mxu0 %v2169
      %v2350 = vpop.f32.mrb[0].mxu0
      %v2351 = vadd.f32 0.0, %v2350
      %v2352 = vpop.f32.mrb[0].mxu0
      %2353 = vmatprep.mubr.f32.mxu0 0.0
      %2354 = vmatmul.mubr.f32.gmra.mrb[0].mxu0 %v2172
      %v2355 = vpop.f32.mrb[0].mxu0
      %v2356 = vadd.f32 0.0, %v2355
      %v2357 = vpop.f32.mrb[0].mxu0
      %2358 = vmatprep.mubr.f32.mxu0 0.0
      %2359 = vmatmul.mubr.f32.gmra.mrb[0].mxu0 %v2175
      %v2360 = vpop.f32.mrb[0].mxu0
      %v2361 = vadd.f32 0.0, %v2360
      %v2362 = vpop.f32.mrb[0].mxu0
      %2363 = vmatprep.mubr.f32.mxu0 0.0
      %2364 = vmatmul.mubr.f32.gmra.mrb[0].mxu0 %v2178
      %v2365 = vpop.f32.mrb[0].mxu0
      %v2366 = vadd.f32 0.0, %v2365
      %v2367 = vpop.f32.mrb[0].mxu0
      %2368 = vmatprep.mubr.f32.mxu0 0.0
      %2369 = vmatmul.mubr.f32.gmra.mrb[0].mxu0 %v2181
      %v2370 = vpop.f32.mrb[0].mxu0
      %v2371 = vadd.f32 0.0, %v2370
      %v2372 = vpop.f32.mrb[0].mxu0
      %2373 = vmatprep.mubr.f32.mxu0 0.0
      %2374 = vmatmul.mubr.f32.gmra.mrb[0].mxu0 %v2184
      %v2375 = vpop.f32.mrb[0].mxu0
      %v2376 = vadd.f32 0.0, %v2375
      %v2377 = vpop.f32.mrb[0].mxu0
      %2378 = vmatprep.mubr.f32.mxu0 0.0
      %2379 = vmatmul.mubr.f32.gmra.mrb[0].mxu0 %v2187
      %v2380 = vpop.f32.mrb[0].mxu0
      %v2381 = vadd.f32 0.0, %v2380
      %v2382 = vpop.f32.mrb[0].mxu0
      %2383 = vmatprep.mubr.f32.mxu0 0.0
      %2384 = vmatmul.mubr.f32.gmra.mrb[0].mxu0 %v2190
      %v2385 = vpop.f32.mrb[0].mxu0
      %v2386 = vadd.f32 0.0, %v2385
      %v2387 = vpop.f32.mrb[0].mxu0
      %2388 = vmatprep.mubr.f32.mxu0 0.0
      %2389 = vmatmul.mubr.f32.gmra.mrb[0].mxu0 %v2193
      %v2390 = vpop.f32.mrb[0].mxu0
      %v2391 = vadd.f32 0.0, %v2390
      %v2392 = vpop.f32.mrb[0].mxu0
      %2393 = vmatprep.mubr.f32.mxu0 0.0
      %2394 = vmatmul.mubr.f32.gmra.mrb[0].mxu0 %v2196
      %v2395 = vpop.f32.mrb[0].mxu0
      %v2396 = vadd.f32 0.0, %v2395
      %v2397 = vpop.f32.mrb[0].mxu0
      %2398 = vmatprep.mubr.f32.mxu0 0.0
      %2399 = vmatmul.mubr.f32.gmra.mrb[0].mxu0 %v2199
      %v2400 = vpop.f32.mrb[0].mxu0
      %v2401 = vadd.f32 0.0, %v2400
      %v2402 = vpop.f32.mrb[0].mxu0
      %2403 = vmatprep.mubr.f32.mxu0 0.0
      %2404 = vmatmul.mubr.f32.gmra.mrb[0].mxu0 %v2202
      %v2405 = vpop.f32.mrb[0].mxu0
      %v2406 = vadd.f32 0.0, %v2405
      %v2407 = vpop.f32.mrb[0].mxu0
      %2408 = vmatprep.mubr.f32.mxu0 0.0
      %2409 = vmatmul.mubr.f32.gmra.mrb[0].mxu0 %v2205
      %v2410 = vpop.f32.mrb[0].mxu0
      %v2411 = vadd.f32 0.0, %v2410
      %v2412 = vpop.f32.mrb[0].mxu0
      %2413 = vmatprep.mubr.f32.mxu0 0.0
      %2414 = vmatmul.mubr.f32.gmra.mrb[0].mxu0 %v2208
      %v2415 = vpop.f32.mrb[0].mxu0
      %v2416 = vadd.f32 0.0, %v2415
      %v2417 = vpop.f32.mrb[0].mxu0
      %2418 = vmatprep.mubr.f32.mxu0 0.0
      %2419 = vmatmul.mubr.f32.gmra.mrb[0].mxu0 %v2211
      %v2420 = vpop.f32.mrb[0].mxu0
      %v2421 = vadd.f32 0.0, %v2420
      %v2422 = vpop.f32.mrb[0].mxu0
      %2423 = vmatprep.mubr.f32.mxu0 0.0
      %2424 = vmatmul.mubr.f32.gmra.mrb[0].mxu0 %v2214
      %v2425 = vpop.f32.mrb[0].mxu0
      %v2426 = vadd.f32 0.0, %v2425
      %v2427 = vpop.f32.mrb[0].mxu0
      %2428 = vmatprep.mubr.f32.mxu0 0.0
      %2429 = vmatmul.mubr.f32.gmra.mrb[0].mxu0 %v2217
      %v2430 = vpop.f32.mrb[0].mxu0
      %v2431 = vadd.f32 0.0, %v2430
      %v2432 = vpop.f32.mrb[0].mxu0
      %2433 = vmatprep.mubr.f32.mxu0 0.0
      %2434 = vmatmul.mubr.f32.gmra.mrb[0].mxu0 %v2220
      %v2435 = vpop.f32.mrb[0].mxu0
      %v2436 = vadd.f32 0.0, %v2435
      %v2437 = vpop.f32.mrb[0].mxu0
      %2438 = vmatprep.mubr.f32.mxu0 0.0
      %2439 = vmatmul.mubr.f32.gmra.mrb[0].mxu0 %v2223
      %v2440 = vpop.f32.mrb[0].mxu0
      %v2441 = vadd.f32 0.0, %v2440
      %v2442 = vpop.f32.mrb[0].mxu0
      %2443 = vmatprep.mubr.f32.mxu0 0.0
      %2444 = vmatmul.mubr.f32.gmra.mrb[0].mxu0 %v2226
      %v2445 = vpop.f32.mrb[0].mxu0
      %v2446 = vadd.f32 0.0, %v2445
      %v2447 = vpop.f32.mrb[0].mxu0
      %2448 = vmatprep.mubr.f32.mxu0 0.0
      %2449 = vmatmul.mubr.f32.gmra.mrb[0].mxu0 %v2229
      %v2450 = vpop.f32.mrb[0].mxu0
      %v2451 = vadd.f32 0.0, %v2450
      %v2452 = vpop.f32.mrb[0].mxu0
      %2453 = vmatprep.mubr.f32.mxu0 0.0
      %2454 = vmatmul.mubr.f32.gmra.mrb[0].mxu0 %v2232
      %v2455 = vpop.f32.mrb[0].mxu0
      %v2456 = vadd.f32 0.0, %v2455
      %v2457 = vpop.f32.mrb[0].mxu0
      %2458 = vdwg.mxu0
      %v2459 = vadd.f32 %v2037, %v2301
      %v2460 = vadd.f32 %v2038, %v2306
      %v2461 = vadd.f32 %v2039, %v2311
      %v2462 = vadd.f32 %v2040, %v2316
      %v2463 = vadd.f32 %v2041, %v2321
      %v2464 = vadd.f32 %v2042, %v2326
      %v2465 = vadd.f32 %v2043, %v2331
      %v2466 = vadd.f32 %v2044, %v2336
      %v2467 = vadd.f32 %v2045, %v2341
      %v2468 = vadd.f32 %v2046, %v2346
      %v2469 = vadd.f32 %v2047, %v2351
      %v2470 = vadd.f32 %v2048, %v2356
      %v2471 = vadd.f32 %v2049, %v2361
      %v2472 = vadd.f32 %v2050, %v2366
      %v2473 = vadd.f32 %v2051, %v2371
      %v2474 = vadd.f32 %v2052, %v2376
      %v2475 = vadd.f32 %v2053, %v2381
      %v2476 = vadd.f32 %v2054, %v2386
      %v2477 = vadd.f32 %v2055, %v2391
      %v2478 = vadd.f32 %v2056, %v2396
      %v2479 = vadd.f32 %v2057, %v2401
      %v2480 = vadd.f32 %v2058, %v2406
      %v2481 = vadd.f32 %v2059, %v2411
      %v2482 = vadd.f32 %v2060, %v2416
      %v2483 = vadd.f32 %v2061, %v2421
      %v2484 = vadd.f32 %v2062, %v2426
      %v2485 = vadd.f32 %v2063, %v2431
      %v2486 = vadd.f32 %v2064, %v2436
      %v2487 = vadd.f32 %v2065, %v2441
      %v2488 = vadd.f32 %v2066, %v2446
      %v2489 = vadd.f32 %v2067, %v2451
      %v2490 = vadd.f32 %v2068, %v2456
      %v2491 = vld [vmem:[#allocation2 + $0x18] sm:$0xff]
      %v2492 = vld [vmem:[#allocation2 + $0x20] sm:$0xff]
      %v2493 = vld [vmem:[#allocation2 + $0x28] sm:$0xff]
      %v2494 = vld [vmem:[#allocation2 + $0x30] sm:$0xff]
      %v2495 = vld [vmem:[#allocation2 + $0x38] sm:$0xff]
      %v2496 = vld [vmem:[#allocation2 + $0x40] sm:$0xff]
      %v2497 = vld [vmem:[#allocation2 + $0x48] sm:$0xff]
      %v2498 = vld [vmem:[#allocation2 + $0x50] sm:$0xff]
      %v2499 = vld [vmem:[#allocation2 + $0x58] sm:$0xff]
      %v2500 = vld [vmem:[#allocation2 + $0x60] sm:$0xff]
      %v2501 = vld [vmem:[#allocation2 + $0x68] sm:$0xff]
      %v2502 = vld [vmem:[#allocation2 + $0x70] sm:$0xff]
      %v2503 = vld [vmem:[#allocation2 + $0x78] sm:$0xff]
      %v2504 = vld [vmem:[#allocation2 + $0x80] sm:$0xff]
      %v2505 = vld [vmem:[#allocation2 + $0x88] sm:$0xff]
      %v2506 = vld [vmem:[#allocation2 + $0x90] sm:$0xff]
      %v2507 = vld [vmem:[#allocation2 + $0x98] sm:$0xff]
      %v2508 = vld [vmem:[#allocation2 + $0xa0] sm:$0xff]
      %v2509 = vld [vmem:[#allocation2 + $0xa8] sm:$0xff]
      %v2510 = vld [vmem:[#allocation2 + $0xb0] sm:$0xff]
      %v2511 = vld [vmem:[#allocation2 + $0xb8] sm:$0xff]
      %v2512 = vld [vmem:[#allocation2 + $0xc0] sm:$0xff]
      %v2513 = vld [vmem:[#allocation2 + $0xc8] sm:$0xff]
      %v2514 = vld [vmem:[#allocation2 + $0xd0] sm:$0xff]
      %v2515 = vld [vmem:[#allocation2 + $0xd8] sm:$0xff]
      %v2516 = vld [vmem:[#allocation2 + $0xe0] sm:$0xff]
      %v2517 = vld [vmem:[#allocation2 + $0xe8] sm:$0xff]
      %v2518 = vld [vmem:[#allocation2 + $0xf0] sm:$0xff]
      %v2519 = vld [vmem:[#allocation2 + $0xf8] sm:$0xff]
      %v2520 = vld [vmem:[#allocation2 + $0x100] sm:$0xff]
      %v2521 = vld [vmem:[#allocation2 + $0x108] sm:$0xff]
      %v2522 = vld [vmem:[#allocation2 + $0x110] sm:$0xff]
      %s2523 = scalar_lea.vmem %s3, 128
      %v2524 = vld [vmem:[%s2523] sm:$0xff]
      %v2525 = vld [vmem:[%s2523 + $0x8] sm:$0xff]
      %v2526 = vld [vmem:[%s2523 + $0x10] sm:$0xff]
      %v2527 = vld [vmem:[%s2523 + $0x18] sm:$0xff]
      %v2529 = vsel %vm732, %v2491, 0
      %v2532 = vsel %vm732, %v2492, 0
      %v2535 = vsel %vm732, %v2493, 0
      %v2538 = vsel %vm732, %v2494, 0
      %v2541 = vsel %vm732, %v2495, 0
      %v2544 = vsel %vm732, %v2496, 0
      %v2547 = vsel %vm732, %v2497, 0
      %v2550 = vsel %vm732, %v2498, 0
      %v2553 = vsel %vm732, %v2499, 0
      %v2556 = vsel %vm732, %v2500, 0
      %v2559 = vsel %vm732, %v2501, 0
      %v2562 = vsel %vm732, %v2502, 0
      %v2565 = vsel %vm732, %v2503, 0
      %v2568 = vsel %vm732, %v2504, 0
      %v2571 = vsel %vm732, %v2505, 0
      %v2574 = vsel %vm732, %v2506, 0
      %v2577 = vsel %vm732, %v2507, 0
      %v2580 = vsel %vm732, %v2508, 0
      %v2583 = vsel %vm732, %v2509, 0
      %v2586 = vsel %vm732, %v2510, 0
      %v2589 = vsel %vm732, %v2511, 0
      %v2592 = vsel %vm732, %v2512, 0
      %v2595 = vsel %vm732, %v2513, 0
      %v2598 = vsel %vm732, %v2514, 0
      %v2601 = vsel %vm732, %v2515, 0
      %v2604 = vsel %vm732, %v2516, 0
      %v2607 = vsel %vm732, %v2517, 0
      %v2610 = vsel %vm732, %v2518, 0
      %v2613 = vsel %vm732, %v2519, 0
      %v2616 = vsel %vm732, %v2520, 0
      %v2619 = vsel %vm732, %v2521, 0
      %v2622 = vsel %vm732, %v2522, 0
      %2624 = vmatprep.subr.mxu0 0.0
      %2625 = vmatpush1.msra.mxu0 %v2524
      %2626 = vmatprep.subr.mxu0 0.0
      %2627 = vmatpush1.msra.mxu0 %v2525
      %2628 = vmatprep.subr.mxu0 0.0
      %2629 = vmatpush1.msra.mxu0 %v2526
      %2630 = vmatprep.subr.mxu0 0.0
      %2631 = vmatpush1.msra.mxu0 %v2527
      %2632 = vmatprep.subr.mxu0 0.0
      %2633 = vmatpush1.msra.mxu0 0.0
      %2634 = vmatprep.subr.mxu0 0.0
      %2635 = vmatpush1.msra.mxu0 0.0
      %2636 = vmatprep.subr.mxu0 0.0
      %2637 = vmatpush1.msra.mxu0 0.0
      %2638 = vmatprep.subr.mxu0 0.0
      %2639 = vmatpush1.msra.mxu0 0.0
      %2640 = vmatprep.subr.mxu0 0.0
      %2641 = vmatpush1.msra.mxu0 0.0
      %2642 = vmatprep.subr.mxu0 0.0
      %2643 = vmatpush1.msra.mxu0 0.0
      %2644 = vmatprep.subr.mxu0 0.0
      %2645 = vmatpush1.msra.mxu0 0.0
      %2646 = vmatprep.subr.mxu0 0.0
      %2647 = vmatpush1.msra.mxu0 0.0
      %2648 = vmatprep.subr.mxu0 0.0
      %2649 = vmatpush1.msra.mxu0 0.0
      %2650 = vmatprep.subr.mxu0 0.0
      %2651 = vmatpush1.msra.mxu0 0.0
      %2652 = vmatprep.subr.mxu0 0.0
      %2653 = vmatpush1.msra.mxu0 0.0
      %2654 = vmatprep.subr.mxu0 0.0
      %2655 = vmatpush1.msra.mxu0 0.0
      %2656 = vmatprep.subr.mxu0 0.0
      %2657 = vmatpush1.msra.mxu0 0.0
      %2658 = vmatprep.subr.mxu0 0.0
      %2659 = vmatpush1.msra.mxu0 0.0
      %2660 = vmatprep.subr.mxu0 0.0
      %2661 = vmatpush1.msra.mxu0 0.0
      %2662 = vmatprep.subr.mxu0 0.0
      %2663 = vmatpush1.msra.mxu0 0.0
      %2664 = vmatprep.subr.mxu0 0.0
      %2665 = vmatpush1.msra.mxu0 0.0
      %2666 = vmatprep.subr.mxu0 0.0
      %2667 = vmatpush1.msra.mxu0 0.0
      %2668 = vmatprep.subr.mxu0 0.0
      %2669 = vmatpush1.msra.mxu0 0.0
      %2670 = vmatprep.subr.mxu0 0.0
      %2671 = vmatpush1.msra.mxu0 0.0
      %2672 = vmatprep.subr.mxu0 0.0
      %2673 = vmatpush1.msra.mxu0 0.0
      %2674 = vmatprep.subr.mxu0 0.0
      %2675 = vmatpush1.msra.mxu0 0.0
      %2676 = vmatprep.subr.mxu0 0.0
      %2677 = vmatpush1.msra.mxu0 0.0
      %2678 = vmatprep.subr.mxu0 0.0
      %2679 = vmatpush1.msra.mxu0 0.0
      %2680 = vmatprep.subr.mxu0 0.0
      %2681 = vmatpush1.msra.mxu0 0.0
      %2682 = vmatprep.subr.mxu0 0.0
      %2683 = vmatpush1.msra.mxu0 0.0
      %2684 = vmatprep.subr.mxu0 0.0
      %2685 = vmatpush1.msra.mxu0 0.0
      %2686 = vmatprep.subr.mxu0 0.0
      %2687 = vmatpush1.msra.mxu0 0.0
      %2688 = vmatprep.mubr.f32.mxu0 0.0
      %2689 = vmatmul.mubr.f32.gmra.mrb[0].mxu0 %v2529
      %v2690 = vpop.f32.mrb[0].mxu0
      %v2691 = vadd.f32 0.0, %v2690
      %v2692 = vpop.f32.mrb[0].mxu0
      %2693 = vmatprep.mubr.f32.mxu0 0.0
      %2694 = vmatmul.mubr.f32.gmra.mrb[0].mxu0 %v2532
      %v2695 = vpop.f32.mrb[0].mxu0
      %v2696 = vadd.f32 0.0, %v2695
      %v2697 = vpop.f32.mrb[0].mxu0
      %2698 = vmatprep.mubr.f32.mxu0 0.0
      %2699 = vmatmul.mubr.f32.gmra.mrb[0].mxu0 %v2535
      %v2700 = vpop.f32.mrb[0].mxu0
      %v2701 = vadd.f32 0.0, %v2700
      %v2702 = vpop.f32.mrb[0].mxu0
      %2703 = vmatprep.mubr.f32.mxu0 0.0
      %2704 = vmatmul.mubr.f32.gmra.mrb[0].mxu0 %v2538
      %v2705 = vpop.f32.mrb[0].mxu0
      %v2706 = vadd.f32 0.0, %v2705
      %v2707 = vpop.f32.mrb[0].mxu0
      %2708 = vmatprep.mubr.f32.mxu0 0.0
      %2709 = vmatmul.mubr.f32.gmra.mrb[0].mxu0 %v2541
      %v2710 = vpop.f32.mrb[0].mxu0
      %v2711 = vadd.f32 0.0, %v2710
      %v2712 = vpop.f32.mrb[0].mxu0
      %2713 = vmatprep.mubr.f32.mxu0 0.0
      %2714 = vmatmul.mubr.f32.gmra.mrb[0].mxu0 %v2544
      %v2715 = vpop.f32.mrb[0].mxu0
      %v2716 = vadd.f32 0.0, %v2715
      %v2717 = vpop.f32.mrb[0].mxu0
      %2718 = vmatprep.mubr.f32.mxu0 0.0
      %2719 = vmatmul.mubr.f32.gmra.mrb[0].mxu0 %v2547
      %v2720 = vpop.f32.mrb[0].mxu0
      %v2721 = vadd.f32 0.0, %v2720
      %v2722 = vpop.f32.mrb[0].mxu0
      %2723 = vmatprep.mubr.f32.mxu0 0.0
      %2724 = vmatmul.mubr.f32.gmra.mrb[0].mxu0 %v2550
      %v2725 = vpop.f32.mrb[0].mxu0
      %v2726 = vadd.f32 0.0, %v2725
      %v2727 = vpop.f32.mrb[0].mxu0
      %2728 = vmatprep.mubr.f32.mxu0 0.0
      %2729 = vmatmul.mubr.f32.gmra.mrb[0].mxu0 %v2553
      %v2730 = vpop.f32.mrb[0].mxu0
      %v2731 = vadd.f32 0.0, %v2730
      %v2732 = vpop.f32.mrb[0].mxu0
      %2733 = vmatprep.mubr.f32.mxu0 0.0
      %2734 = vmatmul.mubr.f32.gmra.mrb[0].mxu0 %v2556
      %v2735 = vpop.f32.mrb[0].mxu0
      %v2736 = vadd.f32 0.0, %v2735
      %v2737 = vpop.f32.mrb[0].mxu0
      %2738 = vmatprep.mubr.f32.mxu0 0.0
      %2739 = vmatmul.mubr.f32.gmra.mrb[0].mxu0 %v2559
      %v2740 = vpop.f32.mrb[0].mxu0
      %v2741 = vadd.f32 0.0, %v2740
      %v2742 = vpop.f32.mrb[0].mxu0
      %2743 = vmatprep.mubr.f32.mxu0 0.0
      %2744 = vmatmul.mubr.f32.gmra.mrb[0].mxu0 %v2562
      %v2745 = vpop.f32.mrb[0].mxu0
      %v2746 = vadd.f32 0.0, %v2745
      %v2747 = vpop.f32.mrb[0].mxu0
      %2748 = vmatprep.mubr.f32.mxu0 0.0
      %2749 = vmatmul.mubr.f32.gmra.mrb[0].mxu0 %v2565
      %v2750 = vpop.f32.mrb[0].mxu0
      %v2751 = vadd.f32 0.0, %v2750
      %v2752 = vpop.f32.mrb[0].mxu0
      %2753 = vmatprep.mubr.f32.mxu0 0.0
      %2754 = vmatmul.mubr.f32.gmra.mrb[0].mxu0 %v2568
      %v2755 = vpop.f32.mrb[0].mxu0
      %v2756 = vadd.f32 0.0, %v2755
      %v2757 = vpop.f32.mrb[0].mxu0
      %2758 = vmatprep.mubr.f32.mxu0 0.0
      %2759 = vmatmul.mubr.f32.gmra.mrb[0].mxu0 %v2571
      %v2760 = vpop.f32.mrb[0].mxu0
      %v2761 = vadd.f32 0.0, %v2760
      %v2762 = vpop.f32.mrb[0].mxu0
      %2763 = vmatprep.mubr.f32.mxu0 0.0
      %2764 = vmatmul.mubr.f32.gmra.mrb[0].mxu0 %v2574
      %v2765 = vpop.f32.mrb[0].mxu0
      %v2766 = vadd.f32 0.0, %v2765
      %v2767 = vpop.f32.mrb[0].mxu0
      %2768 = vmatprep.mubr.f32.mxu0 0.0
      %2769 = vmatmul.mubr.f32.gmra.mrb[0].mxu0 %v2577
      %v2770 = vpop.f32.mrb[0].mxu0
      %v2771 = vadd.f32 0.0, %v2770
      %v2772 = vpop.f32.mrb[0].mxu0
      %2773 = vmatprep.mubr.f32.mxu0 0.0
      %2774 = vmatmul.mubr.f32.gmra.mrb[0].mxu0 %v2580
      %v2775 = vpop.f32.mrb[0].mxu0
      %v2776 = vadd.f32 0.0, %v2775
      %v2777 = vpop.f32.mrb[0].mxu0
      %2778 = vmatprep.mubr.f32.mxu0 0.0
      %2779 = vmatmul.mubr.f32.gmra.mrb[0].mxu0 %v2583
      %v2780 = vpop.f32.mrb[0].mxu0
      %v2781 = vadd.f32 0.0, %v2780
      %v2782 = vpop.f32.mrb[0].mxu0
      %2783 = vmatprep.mubr.f32.mxu0 0.0
      %2784 = vmatmul.mubr.f32.gmra.mrb[0].mxu0 %v2586
      %v2785 = vpop.f32.mrb[0].mxu0
      %v2786 = vadd.f32 0.0, %v2785
      %v2787 = vpop.f32.mrb[0].mxu0
      %2788 = vmatprep.mubr.f32.mxu0 0.0
      %2789 = vmatmul.mubr.f32.gmra.mrb[0].mxu0 %v2589
      %v2790 = vpop.f32.mrb[0].mxu0
      %v2791 = vadd.f32 0.0, %v2790
      %v2792 = vpop.f32.mrb[0].mxu0
      %2793 = vmatprep.mubr.f32.mxu0 0.0
      %2794 = vmatmul.mubr.f32.gmra.mrb[0].mxu0 %v2592
      %v2795 = vpop.f32.mrb[0].mxu0
      %v2796 = vadd.f32 0.0, %v2795
      %v2797 = vpop.f32.mrb[0].mxu0
      %2798 = vmatprep.mubr.f32.mxu0 0.0
      %2799 = vmatmul.mubr.f32.gmra.mrb[0].mxu0 %v2595
      %v2800 = vpop.f32.mrb[0].mxu0
      %v2801 = vadd.f32 0.0, %v2800
      %v2802 = vpop.f32.mrb[0].mxu0
      %2803 = vmatprep.mubr.f32.mxu0 0.0
      %2804 = vmatmul.mubr.f32.gmra.mrb[0].mxu0 %v2598
      %v2805 = vpop.f32.mrb[0].mxu0
      %v2806 = vadd.f32 0.0, %v2805
      %v2807 = vpop.f32.mrb[0].mxu0
      %2808 = vmatprep.mubr.f32.mxu0 0.0
      %2809 = vmatmul.mubr.f32.gmra.mrb[0].mxu0 %v2601
      %v2810 = vpop.f32.mrb[0].mxu0
      %v2811 = vadd.f32 0.0, %v2810
      %v2812 = vpop.f32.mrb[0].mxu0
      %2813 = vmatprep.mubr.f32.mxu0 0.0
      %2814 = vmatmul.mubr.f32.gmra.mrb[0].mxu0 %v2604
      %v2815 = vpop.f32.mrb[0].mxu0
      %v2816 = vadd.f32 0.0, %v2815
      %v2817 = vpop.f32.mrb[0].mxu0
      %2818 = vmatprep.mubr.f32.mxu0 0.0
      %2819 = vmatmul.mubr.f32.gmra.mrb[0].mxu0 %v2607
      %v2820 = vpop.f32.mrb[0].mxu0
      %v2821 = vadd.f32 0.0, %v2820
      %v2822 = vpop.f32.mrb[0].mxu0
      %2823 = vmatprep.mubr.f32.mxu0 0.0
      %2824 = vmatmul.mubr.f32.gmra.mrb[0].mxu0 %v2610
      %v2825 = vpop.f32.mrb[0].mxu0
      %v2826 = vadd.f32 0.0, %v2825
      %v2827 = vpop.f32.mrb[0].mxu0
      %2828 = vmatprep.mubr.f32.mxu0 0.0
      %2829 = vmatmul.mubr.f32.gmra.mrb[0].mxu0 %v2613
      %v2830 = vpop.f32.mrb[0].mxu0
      %v2831 = vadd.f32 0.0, %v2830
      %v2832 = vpop.f32.mrb[0].mxu0
      %2833 = vmatprep.mubr.f32.mxu0 0.0
      %2834 = vmatmul.mubr.f32.gmra.mrb[0].mxu0 %v2616
      %v2835 = vpop.f32.mrb[0].mxu0
      %v2836 = vadd.f32 0.0, %v2835
      %v2837 = vpop.f32.mrb[0].mxu0
      %2838 = vmatprep.mubr.f32.mxu0 0.0
      %2839 = vmatmul.mubr.f32.gmra.mrb[0].mxu0 %v2619
      %v2840 = vpop.f32.mrb[0].mxu0
      %v2841 = vadd.f32 0.0, %v2840
      %v2842 = vpop.f32.mrb[0].mxu0
      %2843 = vmatprep.mubr.f32.mxu0 0.0
      %2844 = vmatmul.mubr.f32.gmra.mrb[0].mxu0 %v2622
      %v2845 = vpop.f32.mrb[0].mxu0
      %v2846 = vadd.f32 0.0, %v2845
      %v2847 = vpop.f32.mrb[0].mxu0
      %2848 = vdwg.mxu0
      %v2849 = vadd.f32 %v2459, %v2691
      %v2850 = vadd.f32 %v2460, %v2696
      %v2851 = vadd.f32 %v2461, %v2701
      %v2852 = vadd.f32 %v2462, %v2706
      %v2853 = vadd.f32 %v2463, %v2711
      %v2854 = vadd.f32 %v2464, %v2716
      %v2855 = vadd.f32 %v2465, %v2721
      %v2856 = vadd.f32 %v2466, %v2726
      %v2857 = vadd.f32 %v2467, %v2731
      %v2858 = vadd.f32 %v2468, %v2736
      %v2859 = vadd.f32 %v2469, %v2741
      %v2860 = vadd.f32 %v2470, %v2746
      %v2861 = vadd.f32 %v2471, %v2751
      %v2862 = vadd.f32 %v2472, %v2756
      %v2863 = vadd.f32 %v2473, %v2761
      %v2864 = vadd.f32 %v2474, %v2766
      %v2865 = vadd.f32 %v2475, %v2771
      %v2866 = vadd.f32 %v2476, %v2776
      %v2867 = vadd.f32 %v2477, %v2781
      %v2868 = vadd.f32 %v2478, %v2786
      %v2869 = vadd.f32 %v2479, %v2791
      %v2870 = vadd.f32 %v2480, %v2796
      %v2871 = vadd.f32 %v2481, %v2801
      %v2872 = vadd.f32 %v2482, %v2806
      %v2873 = vadd.f32 %v2483, %v2811
      %v2874 = vadd.f32 %v2484, %v2816
      %v2875 = vadd.f32 %v2485, %v2821
      %v2876 = vadd.f32 %v2486, %v2826
      %v2877 = vadd.f32 %v2487, %v2831
      %v2878 = vadd.f32 %v2488, %v2836
      %v2879 = vadd.f32 %v2489, %v2841
      %v2880 = vadd.f32 %v2490, %v2846
      %v2881 = vld [vmem:[#allocation2 + $0x19] sm:$0xff]
      %v2882 = vld [vmem:[#allocation2 + $0x21] sm:$0xff]
      %v2883 = vld [vmem:[#allocation2 + $0x29] sm:$0xff]
      %v2884 = vld [vmem:[#allocation2 + $0x31] sm:$0xff]
      %v2885 = vld [vmem:[#allocation2 + $0x39] sm:$0xff]
      %v2886 = vld [vmem:[#allocation2 + $0x41] sm:$0xff]
      %v2887 = vld [vmem:[#allocation2 + $0x49] sm:$0xff]
      %v2888 = vld [vmem:[#allocation2 + $0x51] sm:$0xff]
      %v2889 = vld [vmem:[#allocation2 + $0x59] sm:$0xff]
      %v2890 = vld [vmem:[#allocation2 + $0x61] sm:$0xff]
      %v2891 = vld [vmem:[#allocation2 + $0x69] sm:$0xff]
      %v2892 = vld [vmem:[#allocation2 + $0x71] sm:$0xff]
      %v2893 = vld [vmem:[#allocation2 + $0x79] sm:$0xff]
      %v2894 = vld [vmem:[#allocation2 + $0x81] sm:$0xff]
      %v2895 = vld [vmem:[#allocation2 + $0x89] sm:$0xff]
      %v2896 = vld [vmem:[#allocation2 + $0x91] sm:$0xff]
      %v2897 = vld [vmem:[#allocation2 + $0x99] sm:$0xff]
      %v2898 = vld [vmem:[#allocation2 + $0xa1] sm:$0xff]
      %v2899 = vld [vmem:[#allocation2 + $0xa9] sm:$0xff]
      %v2900 = vld [vmem:[#allocation2 + $0xb1] sm:$0xff]
      %v2901 = vld [vmem:[#allocation2 + $0xb9] sm:$0xff]
      %v2902 = vld [vmem:[#allocation2 + $0xc1] sm:$0xff]
      %v2903 = vld [vmem:[#allocation2 + $0xc9] sm:$0xff]
      %v2904 = vld [vmem:[#allocation2 + $0xd1] sm:$0xff]
      %v2905 = vld [vmem:[#allocation2 + $0xd9] sm:$0xff]
      %v2906 = vld [vmem:[#allocation2 + $0xe1] sm:$0xff]
      %v2907 = vld [vmem:[#allocation2 + $0xe9] sm:$0xff]
      %v2908 = vld [vmem:[#allocation2 + $0xf1] sm:$0xff]
      %v2909 = vld [vmem:[#allocation2 + $0xf9] sm:$0xff]
      %v2910 = vld [vmem:[#allocation2 + $0x101] sm:$0xff]
      %v2911 = vld [vmem:[#allocation2 + $0x109] sm:$0xff]
      %v2912 = vld [vmem:[#allocation2 + $0x111] sm:$0xff]
      %v2913 = vsel %vm868, %v2881, 0.0
      %v2914 = vsel %vm869, %v2882, 0.0
      %v2915 = vsel %vm870, %v2883, 0.0
      %v2916 = vsel %vm871, %v2884, 0.0
      %v2917 = vsel %vm872, %v2885, 0.0
      %v2918 = vsel %vm873, %v2886, 0.0
      %v2919 = vsel %vm874, %v2887, 0.0
      %v2920 = vsel %vm875, %v2888, 0.0
      %v2921 = vsel %vm876, %v2889, 0.0
      %v2922 = vsel %vm877, %v2890, 0.0
      %v2923 = vsel %vm878, %v2891, 0.0
      %v2924 = vsel %vm879, %v2892, 0.0
      %v2925 = vsel %vm880, %v2893, 0.0
      %v2926 = vsel %vm881, %v2894, 0.0
      %v2927 = vsel %vm882, %v2895, 0.0
      %v2928 = vsel %vm883, %v2896, 0.0
      %v2929 = vsel %vm884, %v2897, 0.0
      %v2930 = vsel %vm885, %v2898, 0.0
      %v2931 = vsel %vm886, %v2899, 0.0
      %v2932 = vsel %vm887, %v2900, 0.0
      %v2933 = vsel %vm888, %v2901, 0.0
      %v2934 = vsel %vm889, %v2902, 0.0
      %v2935 = vsel %vm890, %v2903, 0.0
      %v2936 = vsel %vm891, %v2904, 0.0
      %v2937 = vsel %vm892, %v2905, 0.0
      %v2938 = vsel %vm893, %v2906, 0.0
      %v2939 = vsel %vm894, %v2907, 0.0
      %v2940 = vsel %vm895, %v2908, 0.0
      %v2941 = vsel %vm896, %v2909, 0.0
      %v2942 = vsel %vm897, %v2910, 0.0
      %v2943 = vsel %vm898, %v2911, 0.0
      %v2944 = vsel %vm899, %v2912, 0.0
      %s2945 = scalar_lea.vmem %s3, 160
      %v2946 = vld [vmem:[%s2945] sm:$0xff]
      %v2947 = vld [vmem:[%s2945 + $0x8] sm:$0xff]
      %v2948 = vld [vmem:[%s2945 + $0x10] sm:$0xff]
      %v2949 = vld [vmem:[%s2945 + $0x18] sm:$0xff]
      %v2951 = vsel %vm732, %v2913, 0
      %v2954 = vsel %vm732, %v2914, 0
      %v2957 = vsel %vm732, %v2915, 0
      %v2960 = vsel %vm732, %v2916, 0
      %v2963 = vsel %vm732, %v2917, 0
      %v2966 = vsel %vm732, %v2918, 0
      %v2969 = vsel %vm732, %v2919, 0
      %v2972 = vsel %vm732, %v2920, 0
      %v2975 = vsel %vm732, %v2921, 0
      %v2978 = vsel %vm732, %v2922, 0
      %v2981 = vsel %vm732, %v2923, 0
      %v2984 = vsel %vm732, %v2924, 0
      %v2987 = vsel %vm732, %v2925, 0
      %v2990 = vsel %vm732, %v2926, 0
      %v2993 = vsel %vm732, %v2927, 0
      %v2996 = vsel %vm732, %v2928, 0
      %v2999 = vsel %vm732, %v2929, 0
      %v3002 = vsel %vm732, %v2930, 0
      %v3005 = vsel %vm732, %v2931, 0
      %v3008 = vsel %vm732, %v2932, 0
      %v3011 = vsel %vm732, %v2933, 0
      %v3014 = vsel %vm732, %v2934, 0
      %v3017 = vsel %vm732, %v2935, 0
      %v3020 = vsel %vm732, %v2936, 0
      %v3023 = vsel %vm732, %v2937, 0
      %v3026 = vsel %vm732, %v2938, 0
      %v3029 = vsel %vm732, %v2939, 0
      %v3032 = vsel %vm732, %v2940, 0
      %v3035 = vsel %vm732, %v2941, 0
      %v3038 = vsel %vm732, %v2942, 0
      %v3041 = vsel %vm732, %v2943, 0
      %v3044 = vsel %vm732, %v2944, 0
      %3046 = vmatprep.subr.mxu0 0.0
      %3047 = vmatpush1.msra.mxu0 %v2946
      %3048 = vmatprep.subr.mxu0 0.0
      %3049 = vmatpush1.msra.mxu0 %v2947
      %3050 = vmatprep.subr.mxu0 0.0
      %3051 = vmatpush1.msra.mxu0 %v2948
      %3052 = vmatprep.subr.mxu0 0.0
      %3053 = vmatpush1.msra.mxu0 %v2949
      %3054 = vmatprep.subr.mxu0 0.0
      %3055 = vmatpush1.msra.mxu0 0.0
      %3056 = vmatprep.subr.mxu0 0.0
      %3057 = vmatpush1.msra.mxu0 0.0
      %3058 = vmatprep.subr.mxu0 0.0
      %3059 = vmatpush1.msra.mxu0 0.0
      %3060 = vmatprep.subr.mxu0 0.0
      %3061 = vmatpush1.msra.mxu0 0.0
      %3062 = vmatprep.subr.mxu0 0.0
      %3063 = vmatpush1.msra.mxu0 0.0
      %3064 = vmatprep.subr.mxu0 0.0
      %3065 = vmatpush1.msra.mxu0 0.0
      %3066 = vmatprep.subr.mxu0 0.0
      %3067 = vmatpush1.msra.mxu0 0.0
      %3068 = vmatprep.subr.mxu0 0.0
      %3069 = vmatpush1.msra.mxu0 0.0
      %3070 = vmatprep.subr.mxu0 0.0
      %3071 = vmatpush1.msra.mxu0 0.0
      %3072 = vmatprep.subr.mxu0 0.0
      %3073 = vmatpush1.msra.mxu0 0.0
      %3074 = vmatprep.subr.mxu0 0.0
      %3075 = vmatpush1.msra.mxu0 0.0
      %3076 = vmatprep.subr.mxu0 0.0
      %3077 = vmatpush1.msra.mxu0 0.0
      %3078 = vmatprep.subr.mxu0 0.0
      %3079 = vmatpush1.msra.mxu0 0.0
      %3080 = vmatprep.subr.mxu0 0.0
      %3081 = vmatpush1.msra.mxu0 0.0
      %3082 = vmatprep.subr.mxu0 0.0
      %3083 = vmatpush1.msra.mxu0 0.0
      %3084 = vmatprep.subr.mxu0 0.0
      %3085 = vmatpush1.msra.mxu0 0.0
      %3086 = vmatprep.subr.mxu0 0.0
      %3087 = vmatpush1.msra.mxu0 0.0
      %3088 = vmatprep.subr.mxu0 0.0
      %3089 = vmatpush1.msra.mxu0 0.0
      %3090 = vmatprep.subr.mxu0 0.0
      %3091 = vmatpush1.msra.mxu0 0.0
      %3092 = vmatprep.subr.mxu0 0.0
      %3093 = vmatpush1.msra.mxu0 0.0
      %3094 = vmatprep.subr.mxu0 0.0
      %3095 = vmatpush1.msra.mxu0 0.0
      %3096 = vmatprep.subr.mxu0 0.0
      %3097 = vmatpush1.msra.mxu0 0.0
      %3098 = vmatprep.subr.mxu0 0.0
      %3099 = vmatpush1.msra.mxu0 0.0
      %3100 = vmatprep.subr.mxu0 0.0
      %3101 = vmatpush1.msra.mxu0 0.0
      %3102 = vmatprep.subr.mxu0 0.0
      %3103 = vmatpush1.msra.mxu0 0.0
      %3104 = vmatprep.subr.mxu0 0.0
      %3105 = vmatpush1.msra.mxu0 0.0
      %3106 = vmatprep.subr.mxu0 0.0
      %3107 = vmatpush1.msra.mxu0 0.0
      %3108 = vmatprep.subr.mxu0 0.0
      %3109 = vmatpush1.msra.mxu0 0.0
      %3110 = vmatprep.mubr.f32.mxu0 0.0
      %3111 = vmatmul.mubr.f32.gmra.mrb[0].mxu0 %v2951
      %v3112 = vpop.f32.mrb[0].mxu0
      %v3113 = vadd.f32 0.0, %v3112
      %v3114 = vpop.f32.mrb[0].mxu0
      %3115 = vmatprep.mubr.f32.mxu0 0.0
      %3116 = vmatmul.mubr.f32.gmra.mrb[0].mxu0 %v2954
      %v3117 = vpop.f32.mrb[0].mxu0
      %v3118 = vadd.f32 0.0, %v3117
      %v3119 = vpop.f32.mrb[0].mxu0
      %3120 = vmatprep.mubr.f32.mxu0 0.0
      %3121 = vmatmul.mubr.f32.gmra.mrb[0].mxu0 %v2957
      %v3122 = vpop.f32.mrb[0].mxu0
      %v3123 = vadd.f32 0.0, %v3122
      %v3124 = vpop.f32.mrb[0].mxu0
      %3125 = vmatprep.mubr.f32.mxu0 0.0
      %3126 = vmatmul.mubr.f32.gmra.mrb[0].mxu0 %v2960
      %v3127 = vpop.f32.mrb[0].mxu0
      %v3128 = vadd.f32 0.0, %v3127
      %v3129 = vpop.f32.mrb[0].mxu0
      %3130 = vmatprep.mubr.f32.mxu0 0.0
      %3131 = vmatmul.mubr.f32.gmra.mrb[0].mxu0 %v2963
      %v3132 = vpop.f32.mrb[0].mxu0
      %v3133 = vadd.f32 0.0, %v3132
      %v3134 = vpop.f32.mrb[0].mxu0
      %3135 = vmatprep.mubr.f32.mxu0 0.0
      %3136 = vmatmul.mubr.f32.gmra.mrb[0].mxu0 %v2966
      %v3137 = vpop.f32.mrb[0].mxu0
      %v3138 = vadd.f32 0.0, %v3137
      %v3139 = vpop.f32.mrb[0].mxu0
      %3140 = vmatprep.mubr.f32.mxu0 0.0
      %3141 = vmatmul.mubr.f32.gmra.mrb[0].mxu0 %v2969
      %v3142 = vpop.f32.mrb[0].mxu0
      %v3143 = vadd.f32 0.0, %v3142
      %v3144 = vpop.f32.mrb[0].mxu0
      %3145 = vmatprep.mubr.f32.mxu0 0.0
      %3146 = vmatmul.mubr.f32.gmra.mrb[0].mxu0 %v2972
      %v3147 = vpop.f32.mrb[0].mxu0
      %v3148 = vadd.f32 0.0, %v3147
      %v3149 = vpop.f32.mrb[0].mxu0
      %3150 = vmatprep.mubr.f32.mxu0 0.0
      %3151 = vmatmul.mubr.f32.gmra.mrb[0].mxu0 %v2975
      %v3152 = vpop.f32.mrb[0].mxu0
      %v3153 = vadd.f32 0.0, %v3152
      %v3154 = vpop.f32.mrb[0].mxu0
      %3155 = vmatprep.mubr.f32.mxu0 0.0
      %3156 = vmatmul.mubr.f32.gmra.mrb[0].mxu0 %v2978
      %v3157 = vpop.f32.mrb[0].mxu0
      %v3158 = vadd.f32 0.0, %v3157
      %v3159 = vpop.f32.mrb[0].mxu0
      %3160 = vmatprep.mubr.f32.mxu0 0.0
      %3161 = vmatmul.mubr.f32.gmra.mrb[0].mxu0 %v2981
      %v3162 = vpop.f32.mrb[0].mxu0
      %v3163 = vadd.f32 0.0, %v3162
      %v3164 = vpop.f32.mrb[0].mxu0
      %3165 = vmatprep.mubr.f32.mxu0 0.0
      %3166 = vmatmul.mubr.f32.gmra.mrb[0].mxu0 %v2984
      %v3167 = vpop.f32.mrb[0].mxu0
      %v3168 = vadd.f32 0.0, %v3167
      %v3169 = vpop.f32.mrb[0].mxu0
      %3170 = vmatprep.mubr.f32.mxu0 0.0
      %3171 = vmatmul.mubr.f32.gmra.mrb[0].mxu0 %v2987
      %v3172 = vpop.f32.mrb[0].mxu0
      %v3173 = vadd.f32 0.0, %v3172
      %v3174 = vpop.f32.mrb[0].mxu0
      %3175 = vmatprep.mubr.f32.mxu0 0.0
      %3176 = vmatmul.mubr.f32.gmra.mrb[0].mxu0 %v2990
      %v3177 = vpop.f32.mrb[0].mxu0
      %v3178 = vadd.f32 0.0, %v3177
      %v3179 = vpop.f32.mrb[0].mxu0
      %3180 = vmatprep.mubr.f32.mxu0 0.0
      %3181 = vmatmul.mubr.f32.gmra.mrb[0].mxu0 %v2993
      %v3182 = vpop.f32.mrb[0].mxu0
      %v3183 = vadd.f32 0.0, %v3182
      %v3184 = vpop.f32.mrb[0].mxu0
      %3185 = vmatprep.mubr.f32.mxu0 0.0
      %3186 = vmatmul.mubr.f32.gmra.mrb[0].mxu0 %v2996
      %v3187 = vpop.f32.mrb[0].mxu0
      %v3188 = vadd.f32 0.0, %v3187
      %v3189 = vpop.f32.mrb[0].mxu0
      %3190 = vmatprep.mubr.f32.mxu0 0.0
      %3191 = vmatmul.mubr.f32.gmra.mrb[0].mxu0 %v2999
      %v3192 = vpop.f32.mrb[0].mxu0
      %v3193 = vadd.f32 0.0, %v3192
      %v3194 = vpop.f32.mrb[0].mxu0
      %3195 = vmatprep.mubr.f32.mxu0 0.0
      %3196 = vmatmul.mubr.f32.gmra.mrb[0].mxu0 %v3002
      %v3197 = vpop.f32.mrb[0].mxu0
      %v3198 = vadd.f32 0.0, %v3197
      %v3199 = vpop.f32.mrb[0].mxu0
      %3200 = vmatprep.mubr.f32.mxu0 0.0
      %3201 = vmatmul.mubr.f32.gmra.mrb[0].mxu0 %v3005
      %v3202 = vpop.f32.mrb[0].mxu0
      %v3203 = vadd.f32 0.0, %v3202
      %v3204 = vpop.f32.mrb[0].mxu0
      %3205 = vmatprep.mubr.f32.mxu0 0.0
      %3206 = vmatmul.mubr.f32.gmra.mrb[0].mxu0 %v3008
      %v3207 = vpop.f32.mrb[0].mxu0
      %v3208 = vadd.f32 0.0, %v3207
      %v3209 = vpop.f32.mrb[0].mxu0
      %3210 = vmatprep.mubr.f32.mxu0 0.0
      %3211 = vmatmul.mubr.f32.gmra.mrb[0].mxu0 %v3011
      %v3212 = vpop.f32.mrb[0].mxu0
      %v3213 = vadd.f32 0.0, %v3212
      %v3214 = vpop.f32.mrb[0].mxu0
      %3215 = vmatprep.mubr.f32.mxu0 0.0
      %3216 = vmatmul.mubr.f32.gmra.mrb[0].mxu0 %v3014
      %v3217 = vpop.f32.mrb[0].mxu0
      %v3218 = vadd.f32 0.0, %v3217
      %v3219 = vpop.f32.mrb[0].mxu0
      %3220 = vmatprep.mubr.f32.mxu0 0.0
      %3221 = vmatmul.mubr.f32.gmra.mrb[0].mxu0 %v3017
      %v3222 = vpop.f32.mrb[0].mxu0
      %v3223 = vadd.f32 0.0, %v3222
      %v3224 = vpop.f32.mrb[0].mxu0
      %3225 = vmatprep.mubr.f32.mxu0 0.0
      %3226 = vmatmul.mubr.f32.gmra.mrb[0].mxu0 %v3020
      %v3227 = vpop.f32.mrb[0].mxu0
      %v3228 = vadd.f32 0.0, %v3227
      %v3229 = vpop.f32.mrb[0].mxu0
      %3230 = vmatprep.mubr.f32.mxu0 0.0
      %3231 = vmatmul.mubr.f32.gmra.mrb[0].mxu0 %v3023
      %v3232 = vpop.f32.mrb[0].mxu0
      %v3233 = vadd.f32 0.0, %v3232
      %v3234 = vpop.f32.mrb[0].mxu0
      %3235 = vmatprep.mubr.f32.mxu0 0.0
      %3236 = vmatmul.mubr.f32.gmra.mrb[0].mxu0 %v3026
      %v3237 = vpop.f32.mrb[0].mxu0
      %v3238 = vadd.f32 0.0, %v3237
      %v3239 = vpop.f32.mrb[0].mxu0
      %3240 = vmatprep.mubr.f32.mxu0 0.0
      %3241 = vmatmul.mubr.f32.gmra.mrb[0].mxu0 %v3029
      %v3242 = vpop.f32.mrb[0].mxu0
      %v3243 = vadd.f32 0.0, %v3242
      %v3244 = vpop.f32.mrb[0].mxu0
      %3245 = vmatprep.mubr.f32.mxu0 0.0
      %3246 = vmatmul.mubr.f32.gmra.mrb[0].mxu0 %v3032
      %v3247 = vpop.f32.mrb[0].mxu0
      %v3248 = vadd.f32 0.0, %v3247
      %v3249 = vpop.f32.mrb[0].mxu0
      %3250 = vmatprep.mubr.f32.mxu0 0.0
      %3251 = vmatmul.mubr.f32.gmra.mrb[0].mxu0 %v3035
      %v3252 = vpop.f32.mrb[0].mxu0
      %v3253 = vadd.f32 0.0, %v3252
      %v3254 = vpop.f32.mrb[0].mxu0
      %3255 = vmatprep.mubr.f32.mxu0 0.0
      %3256 = vmatmul.mubr.f32.gmra.mrb[0].mxu0 %v3038
      %v3257 = vpop.f32.mrb[0].mxu0
      %v3258 = vadd.f32 0.0, %v3257
      %v3259 = vpop.f32.mrb[0].mxu0
      %3260 = vmatprep.mubr.f32.mxu0 0.0
      %3261 = vmatmul.mubr.f32.gmra.mrb[0].mxu0 %v3041
      %v3262 = vpop.f32.mrb[0].mxu0
      %v3263 = vadd.f32 0.0, %v3262
      %v3264 = vpop.f32.mrb[0].mxu0
      %3265 = vmatprep.mubr.f32.mxu0 0.0
      %3266 = vmatmul.mubr.f32.gmra.mrb[0].mxu0 %v3044
      %v3267 = vpop.f32.mrb[0].mxu0
      %v3268 = vadd.f32 0.0, %v3267
      %v3269 = vpop.f32.mrb[0].mxu0
      %3270 = vdwg.mxu0
      %v3271 = vadd.f32 %v2849, %v3113
      %v3272 = vadd.f32 %v2850, %v3118
      %v3273 = vadd.f32 %v2851, %v3123
      %v3274 = vadd.f32 %v2852, %v3128
      %v3275 = vadd.f32 %v2853, %v3133
      %v3276 = vadd.f32 %v2854, %v3138
      %v3277 = vadd.f32 %v2855, %v3143
      %v3278 = vadd.f32 %v2856, %v3148
      %v3279 = vadd.f32 %v2857, %v3153
      %v3280 = vadd.f32 %v2858, %v3158
      %v3281 = vadd.f32 %v2859, %v3163
      %v3282 = vadd.f32 %v2860, %v3168
      %v3283 = vadd.f32 %v2861, %v3173
      %v3284 = vadd.f32 %v2862, %v3178
      %v3285 = vadd.f32 %v2863, %v3183
      %v3286 = vadd.f32 %v2864, %v3188
      %v3287 = vadd.f32 %v2865, %v3193
      %v3288 = vadd.f32 %v2866, %v3198
      %v3289 = vadd.f32 %v2867, %v3203
      %v3290 = vadd.f32 %v2868, %v3208
      %v3291 = vadd.f32 %v2869, %v3213
      %v3292 = vadd.f32 %v2870, %v3218
      %v3293 = vadd.f32 %v2871, %v3223
      %v3294 = vadd.f32 %v2872, %v3228
      %v3295 = vadd.f32 %v2873, %v3233
      %v3296 = vadd.f32 %v2874, %v3238
      %v3297 = vadd.f32 %v2875, %v3243
      %v3298 = vadd.f32 %v2876, %v3248
      %v3299 = vadd.f32 %v2877, %v3253
      %v3300 = vadd.f32 %v2878, %v3258
      %v3301 = vadd.f32 %v2879, %v3263
      %v3302 = vadd.f32 %v2880, %v3268
      %v3303 = vld [vmem:[#allocation2 + $0x27] sm:$0xff]
      %v3304 = vld [vmem:[#allocation2 + $0x2f] sm:$0xff]
      %v3305 = vld [vmem:[#allocation2 + $0x37] sm:$0xff]
      %v3306 = vld [vmem:[#allocation2 + $0x3f] sm:$0xff]
      %v3307 = vld [vmem:[#allocation2 + $0x47] sm:$0xff]
      %v3308 = vld [vmem:[#allocation2 + $0x4f] sm:$0xff]
      %v3309 = vld [vmem:[#allocation2 + $0x57] sm:$0xff]
      %v3310 = vld [vmem:[#allocation2 + $0x5f] sm:$0xff]
      %v3311 = vld [vmem:[#allocation2 + $0x67] sm:$0xff]
      %v3312 = vld [vmem:[#allocation2 + $0x6f] sm:$0xff]
      %v3313 = vld [vmem:[#allocation2 + $0x77] sm:$0xff]
      %v3314 = vld [vmem:[#allocation2 + $0x7f] sm:$0xff]
      %v3315 = vld [vmem:[#allocation2 + $0x87] sm:$0xff]
      %v3316 = vld [vmem:[#allocation2 + $0x8f] sm:$0xff]
      %v3317 = vld [vmem:[#allocation2 + $0x97] sm:$0xff]
      %v3318 = vld [vmem:[#allocation2 + $0x9f] sm:$0xff]
      %v3319 = vld [vmem:[#allocation2 + $0xa7] sm:$0xff]
      %v3320 = vld [vmem:[#allocation2 + $0xaf] sm:$0xff]
      %v3321 = vld [vmem:[#allocation2 + $0xb7] sm:$0xff]
      %v3322 = vld [vmem:[#allocation2 + $0xbf] sm:$0xff]
      %v3323 = vld [vmem:[#allocation2 + $0xc7] sm:$0xff]
      %v3324 = vld [vmem:[#allocation2 + $0xcf] sm:$0xff]
      %v3325 = vld [vmem:[#allocation2 + $0xd7] sm:$0xff]
      %v3326 = vld [vmem:[#allocation2 + $0xdf] sm:$0xff]
      %v3327 = vld [vmem:[#allocation2 + $0xe7] sm:$0xff]
      %v3328 = vld [vmem:[#allocation2 + $0xef] sm:$0xff]
      %v3329 = vld [vmem:[#allocation2 + $0xf7] sm:$0xff]
      %v3330 = vld [vmem:[#allocation2 + $0xff] sm:$0xff]
      %v3331 = vld [vmem:[#allocation2 + $0x107] sm:$0xff]
      %v3332 = vld [vmem:[#allocation2 + $0x10f] sm:$0xff]
      %v3333 = vld [vmem:[#allocation2 + $0x117] sm:$0xff]
      %v3334 = vld [vmem:[#allocation2 + $0x11f] sm:$0xff]
      %v3335 = vsel %vm836, %v3303, 0.0
      %v3336 = vsel %vm837, %v3304, 0.0
      %v3337 = vsel %vm838, %v3305, 0.0
      %v3338 = vsel %vm839, %v3306, 0.0
      %v3339 = vsel %vm840, %v3307, 0.0
      %v3340 = vsel %vm841, %v3308, 0.0
      %v3341 = vsel %vm842, %v3309, 0.0
      %v3342 = vsel %vm843, %v3310, 0.0
      %v3343 = vsel %vm844, %v3311, 0.0
      %v3344 = vsel %vm845, %v3312, 0.0
      %v3345 = vsel %vm846, %v3313, 0.0
      %v3346 = vsel %vm847, %v3314, 0.0
      %v3347 = vsel %vm848, %v3315, 0.0
      %v3348 = vsel %vm849, %v3316, 0.0
      %v3349 = vsel %vm850, %v3317, 0.0
      %v3350 = vsel %vm851, %v3318, 0.0
      %v3351 = vsel %vm852, %v3319, 0.0
      %v3352 = vsel %vm853, %v3320, 0.0
      %v3353 = vsel %vm854, %v3321, 0.0
      %v3354 = vsel %vm855, %v3322, 0.0
      %v3355 = vsel %vm856, %v3323, 0.0
      %v3356 = vsel %vm857, %v3324, 0.0
      %v3357 = vsel %vm858, %v3325, 0.0
      %v3358 = vsel %vm859, %v3326, 0.0
      %v3359 = vsel %vm860, %v3327, 0.0
      %v3360 = vsel %vm861, %v3328, 0.0
      %v3361 = vsel %vm862, %v3329, 0.0
      %v3362 = vsel %vm863, %v3330, 0.0
      %v3363 = vsel %vm864, %v3331, 0.0
      %v3364 = vsel %vm865, %v3332, 0.0
      %v3365 = vsel %vm866, %v3333, 0.0
      %v3366 = vsel %vm867, %v3334, 0.0
      %s3367 = scalar_lea.vmem %s3, 192
      %v3368 = vld [vmem:[%s3367] sm:$0xff]
      %v3369 = vld [vmem:[%s3367 + $0x8] sm:$0xff]
      %v3370 = vld [vmem:[%s3367 + $0x10] sm:$0xff]
      %v3371 = vld [vmem:[%s3367 + $0x18] sm:$0xff]
      %v3373 = vsel %vm732, %v3335, 0
      %v3376 = vsel %vm732, %v3336, 0
      %v3379 = vsel %vm732, %v3337, 0
      %v3382 = vsel %vm732, %v3338, 0
      %v3385 = vsel %vm732, %v3339, 0
      %v3388 = vsel %vm732, %v3340, 0
      %v3391 = vsel %vm732, %v3341, 0
      %v3394 = vsel %vm732, %v3342, 0
      %v3397 = vsel %vm732, %v3343, 0
      %v3400 = vsel %vm732, %v3344, 0
      %v3403 = vsel %vm732, %v3345, 0
      %v3406 = vsel %vm732, %v3346, 0
      %v3409 = vsel %vm732, %v3347, 0
      %v3412 = vsel %vm732, %v3348, 0
      %v3415 = vsel %vm732, %v3349, 0
      %v3418 = vsel %vm732, %v3350, 0
      %v3421 = vsel %vm732, %v3351, 0
      %v3424 = vsel %vm732, %v3352, 0
      %v3427 = vsel %vm732, %v3353, 0
      %v3430 = vsel %vm732, %v3354, 0
      %v3433 = vsel %vm732, %v3355, 0
      %v3436 = vsel %vm732, %v3356, 0
      %v3439 = vsel %vm732, %v3357, 0
      %v3442 = vsel %vm732, %v3358, 0
      %v3445 = vsel %vm732, %v3359, 0
      %v3448 = vsel %vm732, %v3360, 0
      %v3451 = vsel %vm732, %v3361, 0
      %v3454 = vsel %vm732, %v3362, 0
      %v3457 = vsel %vm732, %v3363, 0
      %v3460 = vsel %vm732, %v3364, 0
      %v3463 = vsel %vm732, %v3365, 0
      %v3466 = vsel %vm732, %v3366, 0
      %3468 = vmatprep.subr.mxu0 0.0
      %3469 = vmatpush1.msra.mxu0 %v3368
      %3470 = vmatprep.subr.mxu0 0.0
      %3471 = vmatpush1.msra.mxu0 %v3369
      %3472 = vmatprep.subr.mxu0 0.0
      %3473 = vmatpush1.msra.mxu0 %v3370
      %3474 = vmatprep.subr.mxu0 0.0
      %3475 = vmatpush1.msra.mxu0 %v3371
      %3476 = vmatprep.subr.mxu0 0.0
      %3477 = vmatpush1.msra.mxu0 0.0
      %3478 = vmatprep.subr.mxu0 0.0
      %3479 = vmatpush1.msra.mxu0 0.0
      %3480 = vmatprep.subr.mxu0 0.0
      %3481 = vmatpush1.msra.mxu0 0.0
      %3482 = vmatprep.subr.mxu0 0.0
      %3483 = vmatpush1.msra.mxu0 0.0
      %3484 = vmatprep.subr.mxu0 0.0
      %3485 = vmatpush1.msra.mxu0 0.0
      %3486 = vmatprep.subr.mxu0 0.0
      %3487 = vmatpush1.msra.mxu0 0.0
      %3488 = vmatprep.subr.mxu0 0.0
      %3489 = vmatpush1.msra.mxu0 0.0
      %3490 = vmatprep.subr.mxu0 0.0
      %3491 = vmatpush1.msra.mxu0 0.0
      %3492 = vmatprep.subr.mxu0 0.0
      %3493 = vmatpush1.msra.mxu0 0.0
      %3494 = vmatprep.subr.mxu0 0.0
      %3495 = vmatpush1.msra.mxu0 0.0
      %3496 = vmatprep.subr.mxu0 0.0
      %3497 = vmatpush1.msra.mxu0 0.0
      %3498 = vmatprep.subr.mxu0 0.0
      %3499 = vmatpush1.msra.mxu0 0.0
      %3500 = vmatprep.subr.mxu0 0.0
      %3501 = vmatpush1.msra.mxu0 0.0
      %3502 = vmatprep.subr.mxu0 0.0
      %3503 = vmatpush1.msra.mxu0 0.0
      %3504 = vmatprep.subr.mxu0 0.0
      %3505 = vmatpush1.msra.mxu0 0.0
      %3506 = vmatprep.subr.mxu0 0.0
      %3507 = vmatpush1.msra.mxu0 0.0
      %3508 = vmatprep.subr.mxu0 0.0
      %3509 = vmatpush1.msra.mxu0 0.0
      %3510 = vmatprep.subr.mxu0 0.0
      %3511 = vmatpush1.msra.mxu0 0.0
      %3512 = vmatprep.subr.mxu0 0.0
      %3513 = vmatpush1.msra.mxu0 0.0
      %3514 = vmatprep.subr.mxu0 0.0
      %3515 = vmatpush1.msra.mxu0 0.0
      %3516 = vmatprep.subr.mxu0 0.0
      %3517 = vmatpush1.msra.mxu0 0.0
      %3518 = vmatprep.subr.mxu0 0.0
      %3519 = vmatpush1.msra.mxu0 0.0
      %3520 = vmatprep.subr.mxu0 0.0
      %3521 = vmatpush1.msra.mxu0 0.0
      %3522 = vmatprep.subr.mxu0 0.0
      %3523 = vmatpush1.msra.mxu0 0.0
      %3524 = vmatprep.subr.mxu0 0.0
      %3525 = vmatpush1.msra.mxu0 0.0
      %3526 = vmatprep.subr.mxu0 0.0
      %3527 = vmatpush1.msra.mxu0 0.0
      %3528 = vmatprep.subr.mxu0 0.0
      %3529 = vmatpush1.msra.mxu0 0.0
      %3530 = vmatprep.subr.mxu0 0.0
      %3531 = vmatpush1.msra.mxu0 0.0
      %3532 = vmatprep.mubr.f32.mxu0 0.0
      %3533 = vmatmul.mubr.f32.gmra.mrb[0].mxu0 %v3373
      %v3534 = vpop.f32.mrb[0].mxu0
      %v3535 = vadd.f32 0.0, %v3534
      %v3536 = vpop.f32.mrb[0].mxu0
      %3537 = vmatprep.mubr.f32.mxu0 0.0
      %3538 = vmatmul.mubr.f32.gmra.mrb[0].mxu0 %v3376
      %v3539 = vpop.f32.mrb[0].mxu0
      %v3540 = vadd.f32 0.0, %v3539
      %v3541 = vpop.f32.mrb[0].mxu0
      %3542 = vmatprep.mubr.f32.mxu0 0.0
      %3543 = vmatmul.mubr.f32.gmra.mrb[0].mxu0 %v3379
      %v3544 = vpop.f32.mrb[0].mxu0
      %v3545 = vadd.f32 0.0, %v3544
      %v3546 = vpop.f32.mrb[0].mxu0
      %3547 = vmatprep.mubr.f32.mxu0 0.0
      %3548 = vmatmul.mubr.f32.gmra.mrb[0].mxu0 %v3382
      %v3549 = vpop.f32.mrb[0].mxu0
      %v3550 = vadd.f32 0.0, %v3549
      %v3551 = vpop.f32.mrb[0].mxu0
      %3552 = vmatprep.mubr.f32.mxu0 0.0
      %3553 = vmatmul.mubr.f32.gmra.mrb[0].mxu0 %v3385
      %v3554 = vpop.f32.mrb[0].mxu0
      %v3555 = vadd.f32 0.0, %v3554
      %v3556 = vpop.f32.mrb[0].mxu0
      %3557 = vmatprep.mubr.f32.mxu0 0.0
      %3558 = vmatmul.mubr.f32.gmra.mrb[0].mxu0 %v3388
      %v3559 = vpop.f32.mrb[0].mxu0
      %v3560 = vadd.f32 0.0, %v3559
      %v3561 = vpop.f32.mrb[0].mxu0
      %3562 = vmatprep.mubr.f32.mxu0 0.0
      %3563 = vmatmul.mubr.f32.gmra.mrb[0].mxu0 %v3391
      %v3564 = vpop.f32.mrb[0].mxu0
      %v3565 = vadd.f32 0.0, %v3564
      %v3566 = vpop.f32.mrb[0].mxu0
      %3567 = vmatprep.mubr.f32.mxu0 0.0
      %3568 = vmatmul.mubr.f32.gmra.mrb[0].mxu0 %v3394
      %v3569 = vpop.f32.mrb[0].mxu0
      %v3570 = vadd.f32 0.0, %v3569
      %v3571 = vpop.f32.mrb[0].mxu0
      %3572 = vmatprep.mubr.f32.mxu0 0.0
      %3573 = vmatmul.mubr.f32.gmra.mrb[0].mxu0 %v3397
      %v3574 = vpop.f32.mrb[0].mxu0
      %v3575 = vadd.f32 0.0, %v3574
      %v3576 = vpop.f32.mrb[0].mxu0
      %3577 = vmatprep.mubr.f32.mxu0 0.0
      %3578 = vmatmul.mubr.f32.gmra.mrb[0].mxu0 %v3400
      %v3579 = vpop.f32.mrb[0].mxu0
      %v3580 = vadd.f32 0.0, %v3579
      %v3581 = vpop.f32.mrb[0].mxu0
      %3582 = vmatprep.mubr.f32.mxu0 0.0
      %3583 = vmatmul.mubr.f32.gmra.mrb[0].mxu0 %v3403
      %v3584 = vpop.f32.mrb[0].mxu0
      %v3585 = vadd.f32 0.0, %v3584
      %v3586 = vpop.f32.mrb[0].mxu0
      %3587 = vmatprep.mubr.f32.mxu0 0.0
      %3588 = vmatmul.mubr.f32.gmra.mrb[0].mxu0 %v3406
      %v3589 = vpop.f32.mrb[0].mxu0
      %v3590 = vadd.f32 0.0, %v3589
      %v3591 = vpop.f32.mrb[0].mxu0
      %3592 = vmatprep.mubr.f32.mxu0 0.0
      %3593 = vmatmul.mubr.f32.gmra.mrb[0].mxu0 %v3409
      %v3594 = vpop.f32.mrb[0].mxu0
      %v3595 = vadd.f32 0.0, %v3594
      %v3596 = vpop.f32.mrb[0].mxu0
      %3597 = vmatprep.mubr.f32.mxu0 0.0
      %3598 = vmatmul.mubr.f32.gmra.mrb[0].mxu0 %v3412
      %v3599 = vpop.f32.mrb[0].mxu0
      %v3600 = vadd.f32 0.0, %v3599
      %v3601 = vpop.f32.mrb[0].mxu0
      %3602 = vmatprep.mubr.f32.mxu0 0.0
      %3603 = vmatmul.mubr.f32.gmra.mrb[0].mxu0 %v3415
      %v3604 = vpop.f32.mrb[0].mxu0
      %v3605 = vadd.f32 0.0, %v3604
      %v3606 = vpop.f32.mrb[0].mxu0
      %3607 = vmatprep.mubr.f32.mxu0 0.0
      %3608 = vmatmul.mubr.f32.gmra.mrb[0].mxu0 %v3418
      %v3609 = vpop.f32.mrb[0].mxu0
      %v3610 = vadd.f32 0.0, %v3609
      %v3611 = vpop.f32.mrb[0].mxu0
      %3612 = vmatprep.mubr.f32.mxu0 0.0
      %3613 = vmatmul.mubr.f32.gmra.mrb[0].mxu0 %v3421
      %v3614 = vpop.f32.mrb[0].mxu0
      %v3615 = vadd.f32 0.0, %v3614
      %v3616 = vpop.f32.mrb[0].mxu0
      %3617 = vmatprep.mubr.f32.mxu0 0.0
      %3618 = vmatmul.mubr.f32.gmra.mrb[0].mxu0 %v3424
      %v3619 = vpop.f32.mrb[0].mxu0
      %v3620 = vadd.f32 0.0, %v3619
      %v3621 = vpop.f32.mrb[0].mxu0
      %3622 = vmatprep.mubr.f32.mxu0 0.0
      %3623 = vmatmul.mubr.f32.gmra.mrb[0].mxu0 %v3427
      %v3624 = vpop.f32.mrb[0].mxu0
      %v3625 = vadd.f32 0.0, %v3624
      %v3626 = vpop.f32.mrb[0].mxu0
      %3627 = vmatprep.mubr.f32.mxu0 0.0
      %3628 = vmatmul.mubr.f32.gmra.mrb[0].mxu0 %v3430
      %v3629 = vpop.f32.mrb[0].mxu0
      %v3630 = vadd.f32 0.0, %v3629
      %v3631 = vpop.f32.mrb[0].mxu0
      %3632 = vmatprep.mubr.f32.mxu0 0.0
      %3633 = vmatmul.mubr.f32.gmra.mrb[0].mxu0 %v3433
      %v3634 = vpop.f32.mrb[0].mxu0
      %v3635 = vadd.f32 0.0, %v3634
      %v3636 = vpop.f32.mrb[0].mxu0
      %3637 = vmatprep.mubr.f32.mxu0 0.0
      %3638 = vmatmul.mubr.f32.gmra.mrb[0].mxu0 %v3436
      %v3639 = vpop.f32.mrb[0].mxu0
      %v3640 = vadd.f32 0.0, %v3639
      %v3641 = vpop.f32.mrb[0].mxu0
      %3642 = vmatprep.mubr.f32.mxu0 0.0
      %3643 = vmatmul.mubr.f32.gmra.mrb[0].mxu0 %v3439
      %v3644 = vpop.f32.mrb[0].mxu0
      %v3645 = vadd.f32 0.0, %v3644
      %v3646 = vpop.f32.mrb[0].mxu0
      %3647 = vmatprep.mubr.f32.mxu0 0.0
      %3648 = vmatmul.mubr.f32.gmra.mrb[0].mxu0 %v3442
      %v3649 = vpop.f32.mrb[0].mxu0
      %v3650 = vadd.f32 0.0, %v3649
      %v3651 = vpop.f32.mrb[0].mxu0
      %3652 = vmatprep.mubr.f32.mxu0 0.0
      %3653 = vmatmul.mubr.f32.gmra.mrb[0].mxu0 %v3445
      %v3654 = vpop.f32.mrb[0].mxu0
      %v3655 = vadd.f32 0.0, %v3654
      %v3656 = vpop.f32.mrb[0].mxu0
      %3657 = vmatprep.mubr.f32.mxu0 0.0
      %3658 = vmatmul.mubr.f32.gmra.mrb[0].mxu0 %v3448
      %v3659 = vpop.f32.mrb[0].mxu0
      %v3660 = vadd.f32 0.0, %v3659
      %v3661 = vpop.f32.mrb[0].mxu0
      %3662 = vmatprep.mubr.f32.mxu0 0.0
      %3663 = vmatmul.mubr.f32.gmra.mrb[0].mxu0 %v3451
      %v3664 = vpop.f32.mrb[0].mxu0
      %v3665 = vadd.f32 0.0, %v3664
      %v3666 = vpop.f32.mrb[0].mxu0
      %3667 = vmatprep.mubr.f32.mxu0 0.0
      %3668 = vmatmul.mubr.f32.gmra.mrb[0].mxu0 %v3454
      %v3669 = vpop.f32.mrb[0].mxu0
      %v3670 = vadd.f32 0.0, %v3669
      %v3671 = vpop.f32.mrb[0].mxu0
      %3672 = vmatprep.mubr.f32.mxu0 0.0
      %3673 = vmatmul.mubr.f32.gmra.mrb[0].mxu0 %v3457
      %v3674 = vpop.f32.mrb[0].mxu0
      %v3675 = vadd.f32 0.0, %v3674
      %v3676 = vpop.f32.mrb[0].mxu0
      %3677 = vmatprep.mubr.f32.mxu0 0.0
      %3678 = vmatmul.mubr.f32.gmra.mrb[0].mxu0 %v3460
      %v3679 = vpop.f32.mrb[0].mxu0
      %v3680 = vadd.f32 0.0, %v3679
      %v3681 = vpop.f32.mrb[0].mxu0
      %3682 = vmatprep.mubr.f32.mxu0 0.0
      %3683 = vmatmul.mubr.f32.gmra.mrb[0].mxu0 %v3463
      %v3684 = vpop.f32.mrb[0].mxu0
      %v3685 = vadd.f32 0.0, %v3684
      %v3686 = vpop.f32.mrb[0].mxu0
      %3687 = vmatprep.mubr.f32.mxu0 0.0
      %3688 = vmatmul.mubr.f32.gmra.mrb[0].mxu0 %v3466
      %v3689 = vpop.f32.mrb[0].mxu0
      %v3690 = vadd.f32 0.0, %v3689
      %v3691 = vpop.f32.mrb[0].mxu0
      %3692 = vdwg.mxu0
      %v3693 = vadd.f32 %v3271, %v3535
      %v3694 = vadd.f32 %v3272, %v3540
      %v3695 = vadd.f32 %v3273, %v3545
      %v3696 = vadd.f32 %v3274, %v3550
      %v3697 = vadd.f32 %v3275, %v3555
      %v3698 = vadd.f32 %v3276, %v3560
      %v3699 = vadd.f32 %v3277, %v3565
      %v3700 = vadd.f32 %v3278, %v3570
      %v3701 = vadd.f32 %v3279, %v3575
      %v3702 = vadd.f32 %v3280, %v3580
      %v3703 = vadd.f32 %v3281, %v3585
      %v3704 = vadd.f32 %v3282, %v3590
      %v3705 = vadd.f32 %v3283, %v3595
      %v3706 = vadd.f32 %v3284, %v3600
      %v3707 = vadd.f32 %v3285, %v3605
      %v3708 = vadd.f32 %v3286, %v3610
      %v3709 = vadd.f32 %v3287, %v3615
      %v3710 = vadd.f32 %v3288, %v3620
      %v3711 = vadd.f32 %v3289, %v3625
      %v3712 = vadd.f32 %v3290, %v3630
      %v3713 = vadd.f32 %v3291, %v3635
      %v3714 = vadd.f32 %v3292, %v3640
      %v3715 = vadd.f32 %v3293, %v3645
      %v3716 = vadd.f32 %v3294, %v3650
      %v3717 = vadd.f32 %v3295, %v3655
      %v3718 = vadd.f32 %v3296, %v3660
      %v3719 = vadd.f32 %v3297, %v3665
      %v3720 = vadd.f32 %v3298, %v3670
      %v3721 = vadd.f32 %v3299, %v3675
      %v3722 = vadd.f32 %v3300, %v3680
      %v3723 = vadd.f32 %v3301, %v3685
      %v3724 = vadd.f32 %v3302, %v3690
      %v3725 = vld [vmem:[#allocation2 + $0x28] sm:$0xff]
      %v3726 = vld [vmem:[#allocation2 + $0x30] sm:$0xff]
      %v3727 = vld [vmem:[#allocation2 + $0x38] sm:$0xff]
      %v3728 = vld [vmem:[#allocation2 + $0x40] sm:$0xff]
      %v3729 = vld [vmem:[#allocation2 + $0x48] sm:$0xff]
      %v3730 = vld [vmem:[#allocation2 + $0x50] sm:$0xff]
      %v3731 = vld [vmem:[#allocation2 + $0x58] sm:$0xff]
      %v3732 = vld [vmem:[#allocation2 + $0x60] sm:$0xff]
      %v3733 = vld [vmem:[#allocation2 + $0x68] sm:$0xff]
      %v3734 = vld [vmem:[#allocation2 + $0x70] sm:$0xff]
      %v3735 = vld [vmem:[#allocation2 + $0x78] sm:$0xff]
      %v3736 = vld [vmem:[#allocation2 + $0x80] sm:$0xff]
      %v3737 = vld [vmem:[#allocation2 + $0x88] sm:$0xff]
      %v3738 = vld [vmem:[#allocation2 + $0x90] sm:$0xff]
      %v3739 = vld [vmem:[#allocation2 + $0x98] sm:$0xff]
      %v3740 = vld [vmem:[#allocation2 + $0xa0] sm:$0xff]
      %v3741 = vld [vmem:[#allocation2 + $0xa8] sm:$0xff]
      %v3742 = vld [vmem:[#allocation2 + $0xb0] sm:$0xff]
      %v3743 = vld [vmem:[#allocation2 + $0xb8] sm:$0xff]
      %v3744 = vld [vmem:[#allocation2 + $0xc0] sm:$0xff]
      %v3745 = vld [vmem:[#allocation2 + $0xc8] sm:$0xff]
      %v3746 = vld [vmem:[#allocation2 + $0xd0] sm:$0xff]
      %v3747 = vld [vmem:[#allocation2 + $0xd8] sm:$0xff]
      %v3748 = vld [vmem:[#allocation2 + $0xe0] sm:$0xff]
      %v3749 = vld [vmem:[#allocation2 + $0xe8] sm:$0xff]
      %v3750 = vld [vmem:[#allocation2 + $0xf0] sm:$0xff]
      %v3751 = vld [vmem:[#allocation2 + $0xf8] sm:$0xff]
      %v3752 = vld [vmem:[#allocation2 + $0x100] sm:$0xff]
      %v3753 = vld [vmem:[#allocation2 + $0x108] sm:$0xff]
      %v3754 = vld [vmem:[#allocation2 + $0x110] sm:$0xff]
      %v3755 = vld [vmem:[#allocation2 + $0x118] sm:$0xff]
      %v3756 = vld [vmem:[#allocation2 + $0x120] sm:$0xff]
      %s3757 = scalar_lea.vmem %s3, 224
      %v3758 = vld [vmem:[%s3757] sm:$0xff]
      %v3759 = vld [vmem:[%s3757 + $0x8] sm:$0xff]
      %v3760 = vld [vmem:[%s3757 + $0x10] sm:$0xff]
      %v3761 = vld [vmem:[%s3757 + $0x18] sm:$0xff]
      %v3763 = vsel %vm732, %v3725, 0
      %v3766 = vsel %vm732, %v3726, 0
      %v3769 = vsel %vm732, %v3727, 0
      %v3772 = vsel %vm732, %v3728, 0
      %v3775 = vsel %vm732, %v3729, 0
      %v3778 = vsel %vm732, %v3730, 0
      %v3781 = vsel %vm732, %v3731, 0
      %v3784 = vsel %vm732, %v3732, 0
      %v3787 = vsel %vm732, %v3733, 0
      %v3790 = vsel %vm732, %v3734, 0
      %v3793 = vsel %vm732, %v3735, 0
      %v3796 = vsel %vm732, %v3736, 0
      %v3799 = vsel %vm732, %v3737, 0
      %v3802 = vsel %vm732, %v3738, 0
      %v3805 = vsel %vm732, %v3739, 0
      %v3808 = vsel %vm732, %v3740, 0
      %v3811 = vsel %vm732, %v3741, 0
      %v3814 = vsel %vm732, %v3742, 0
      %v3817 = vsel %vm732, %v3743, 0
      %v3820 = vsel %vm732, %v3744, 0
      %v3823 = vsel %vm732, %v3745, 0
      %v3826 = vsel %vm732, %v3746, 0
      %v3829 = vsel %vm732, %v3747, 0
      %v3832 = vsel %vm732, %v3748, 0
      %v3835 = vsel %vm732, %v3749, 0
      %v3838 = vsel %vm732, %v3750, 0
      %v3841 = vsel %vm732, %v3751, 0
      %v3844 = vsel %vm732, %v3752, 0
      %v3847 = vsel %vm732, %v3753, 0
      %v3850 = vsel %vm732, %v3754, 0
      %v3853 = vsel %vm732, %v3755, 0
      %v3856 = vsel %vm732, %v3756, 0
      %3858 = vmatprep.subr.mxu0 0.0
      %3859 = vmatpush1.msra.mxu0 %v3758
      %3860 = vmatprep.subr.mxu0 0.0
      %3861 = vmatpush1.msra.mxu0 %v3759
      %3862 = vmatprep.subr.mxu0 0.0
      %3863 = vmatpush1.msra.mxu0 %v3760
      %3864 = vmatprep.subr.mxu0 0.0
      %3865 = vmatpush1.msra.mxu0 %v3761
      %3866 = vmatprep.subr.mxu0 0.0
      %3867 = vmatpush1.msra.mxu0 0.0
      %3868 = vmatprep.subr.mxu0 0.0
      %3869 = vmatpush1.msra.mxu0 0.0
      %3870 = vmatprep.subr.mxu0 0.0
      %3871 = vmatpush1.msra.mxu0 0.0
      %3872 = vmatprep.subr.mxu0 0.0
      %3873 = vmatpush1.msra.mxu0 0.0
      %3874 = vmatprep.subr.mxu0 0.0
      %3875 = vmatpush1.msra.mxu0 0.0
      %3876 = vmatprep.subr.mxu0 0.0
      %3877 = vmatpush1.msra.mxu0 0.0
      %3878 = vmatprep.subr.mxu0 0.0
      %3879 = vmatpush1.msra.mxu0 0.0
      %3880 = vmatprep.subr.mxu0 0.0
      %3881 = vmatpush1.msra.mxu0 0.0
      %3882 = vmatprep.subr.mxu0 0.0
      %3883 = vmatpush1.msra.mxu0 0.0
      %3884 = vmatprep.subr.mxu0 0.0
      %3885 = vmatpush1.msra.mxu0 0.0
      %3886 = vmatprep.subr.mxu0 0.0
      %3887 = vmatpush1.msra.mxu0 0.0
      %3888 = vmatprep.subr.mxu0 0.0
      %3889 = vmatpush1.msra.mxu0 0.0
      %3890 = vmatprep.subr.mxu0 0.0
      %3891 = vmatpush1.msra.mxu0 0.0
      %3892 = vmatprep.subr.mxu0 0.0
      %3893 = vmatpush1.msra.mxu0 0.0
      %3894 = vmatprep.subr.mxu0 0.0
      %3895 = vmatpush1.msra.mxu0 0.0
      %3896 = vmatprep.subr.mxu0 0.0
      %3897 = vmatpush1.msra.mxu0 0.0
      %3898 = vmatprep.subr.mxu0 0.0
      %3899 = vmatpush1.msra.mxu0 0.0
      %3900 = vmatprep.subr.mxu0 0.0
      %3901 = vmatpush1.msra.mxu0 0.0
      %3902 = vmatprep.subr.mxu0 0.0
      %3903 = vmatpush1.msra.mxu0 0.0
      %3904 = vmatprep.subr.mxu0 0.0
      %3905 = vmatpush1.msra.mxu0 0.0
      %3906 = vmatprep.subr.mxu0 0.0
      %3907 = vmatpush1.msra.mxu0 0.0
      %3908 = vmatprep.subr.mxu0 0.0
      %3909 = vmatpush1.msra.mxu0 0.0
      %3910 = vmatprep.subr.mxu0 0.0
      %3911 = vmatpush1.msra.mxu0 0.0
      %3912 = vmatprep.subr.mxu0 0.0
      %3913 = vmatpush1.msra.mxu0 0.0
      %3914 = vmatprep.subr.mxu0 0.0
      %3915 = vmatpush1.msra.mxu0 0.0
      %3916 = vmatprep.subr.mxu0 0.0
      %3917 = vmatpush1.msra.mxu0 0.0
      %3918 = vmatprep.subr.mxu0 0.0
      %3919 = vmatpush1.msra.mxu0 0.0
      %3920 = vmatprep.subr.mxu0 0.0
      %3921 = vmatpush1.msra.mxu0 0.0
      %3922 = vmatprep.mubr.f32.mxu0 0.0
      %3923 = vmatmul.mubr.f32.gmra.mrb[0].mxu0 %v3763
      %v3924 = vpop.f32.mrb[0].mxu0
      %v3925 = vadd.f32 0.0, %v3924
      %v3926 = vpop.f32.mrb[0].mxu0
      %3927 = vmatprep.mubr.f32.mxu0 0.0
      %3928 = vmatmul.mubr.f32.gmra.mrb[0].mxu0 %v3766
      %v3929 = vpop.f32.mrb[0].mxu0
      %v3930 = vadd.f32 0.0, %v3929
      %v3931 = vpop.f32.mrb[0].mxu0
      %3932 = vmatprep.mubr.f32.mxu0 0.0
      %3933 = vmatmul.mubr.f32.gmra.mrb[0].mxu0 %v3769
      %v3934 = vpop.f32.mrb[0].mxu0
      %v3935 = vadd.f32 0.0, %v3934
      %v3936 = vpop.f32.mrb[0].mxu0
      %3937 = vmatprep.mubr.f32.mxu0 0.0
      %3938 = vmatmul.mubr.f32.gmra.mrb[0].mxu0 %v3772
      %v3939 = vpop.f32.mrb[0].mxu0
      %v3940 = vadd.f32 0.0, %v3939
      %v3941 = vpop.f32.mrb[0].mxu0
      %3942 = vmatprep.mubr.f32.mxu0 0.0
      %3943 = vmatmul.mubr.f32.gmra.mrb[0].mxu0 %v3775
      %v3944 = vpop.f32.mrb[0].mxu0
      %v3945 = vadd.f32 0.0, %v3944
      %v3946 = vpop.f32.mrb[0].mxu0
      %3947 = vmatprep.mubr.f32.mxu0 0.0
      %3948 = vmatmul.mubr.f32.gmra.mrb[0].mxu0 %v3778
      %v3949 = vpop.f32.mrb[0].mxu0
      %v3950 = vadd.f32 0.0, %v3949
      %v3951 = vpop.f32.mrb[0].mxu0
      %3952 = vmatprep.mubr.f32.mxu0 0.0
      %3953 = vmatmul.mubr.f32.gmra.mrb[0].mxu0 %v3781
      %v3954 = vpop.f32.mrb[0].mxu0
      %v3955 = vadd.f32 0.0, %v3954
      %v3956 = vpop.f32.mrb[0].mxu0
      %3957 = vmatprep.mubr.f32.mxu0 0.0
      %3958 = vmatmul.mubr.f32.gmra.mrb[0].mxu0 %v3784
      %v3959 = vpop.f32.mrb[0].mxu0
      %v3960 = vadd.f32 0.0, %v3959
      %v3961 = vpop.f32.mrb[0].mxu0
      %3962 = vmatprep.mubr.f32.mxu0 0.0
      %3963 = vmatmul.mubr.f32.gmra.mrb[0].mxu0 %v3787
      %v3964 = vpop.f32.mrb[0].mxu0
      %v3965 = vadd.f32 0.0, %v3964
      %v3966 = vpop.f32.mrb[0].mxu0
      %3967 = vmatprep.mubr.f32.mxu0 0.0
      %3968 = vmatmul.mubr.f32.gmra.mrb[0].mxu0 %v3790
      %v3969 = vpop.f32.mrb[0].mxu0
      %v3970 = vadd.f32 0.0, %v3969
      %v3971 = vpop.f32.mrb[0].mxu0
      %3972 = vmatprep.mubr.f32.mxu0 0.0
      %3973 = vmatmul.mubr.f32.gmra.mrb[0].mxu0 %v3793
      %v3974 = vpop.f32.mrb[0].mxu0
      %v3975 = vadd.f32 0.0, %v3974
      %v3976 = vpop.f32.mrb[0].mxu0
      %3977 = vmatprep.mubr.f32.mxu0 0.0
      %3978 = vmatmul.mubr.f32.gmra.mrb[0].mxu0 %v3796
      %v3979 = vpop.f32.mrb[0].mxu0
      %v3980 = vadd.f32 0.0, %v3979
      %v3981 = vpop.f32.mrb[0].mxu0
      %3982 = vmatprep.mubr.f32.mxu0 0.0
      %3983 = vmatmul.mubr.f32.gmra.mrb[0].mxu0 %v3799
      %v3984 = vpop.f32.mrb[0].mxu0
      %v3985 = vadd.f32 0.0, %v3984
      %v3986 = vpop.f32.mrb[0].mxu0
      %3987 = vmatprep.mubr.f32.mxu0 0.0
      %3988 = vmatmul.mubr.f32.gmra.mrb[0].mxu0 %v3802
      %v3989 = vpop.f32.mrb[0].mxu0
      %v3990 = vadd.f32 0.0, %v3989
      %v3991 = vpop.f32.mrb[0].mxu0
      %3992 = vmatprep.mubr.f32.mxu0 0.0
      %3993 = vmatmul.mubr.f32.gmra.mrb[0].mxu0 %v3805
      %v3994 = vpop.f32.mrb[0].mxu0
      %v3995 = vadd.f32 0.0, %v3994
      %v3996 = vpop.f32.mrb[0].mxu0
      %3997 = vmatprep.mubr.f32.mxu0 0.0
      %3998 = vmatmul.mubr.f32.gmra.mrb[0].mxu0 %v3808
      %v3999 = vpop.f32.mrb[0].mxu0
      %v4000 = vadd.f32 0.0, %v3999
      %v4001 = vpop.f32.mrb[0].mxu0
      %4002 = vmatprep.mubr.f32.mxu0 0.0
      %4003 = vmatmul.mubr.f32.gmra.mrb[0].mxu0 %v3811
      %v4004 = vpop.f32.mrb[0].mxu0
      %v4005 = vadd.f32 0.0, %v4004
      %v4006 = vpop.f32.mrb[0].mxu0
      %4007 = vmatprep.mubr.f32.mxu0 0.0
      %4008 = vmatmul.mubr.f32.gmra.mrb[0].mxu0 %v3814
      %v4009 = vpop.f32.mrb[0].mxu0
      %v4010 = vadd.f32 0.0, %v4009
      %v4011 = vpop.f32.mrb[0].mxu0
      %4012 = vmatprep.mubr.f32.mxu0 0.0
      %4013 = vmatmul.mubr.f32.gmra.mrb[0].mxu0 %v3817
      %v4014 = vpop.f32.mrb[0].mxu0
      %v4015 = vadd.f32 0.0, %v4014
      %v4016 = vpop.f32.mrb[0].mxu0
      %4017 = vmatprep.mubr.f32.mxu0 0.0
      %4018 = vmatmul.mubr.f32.gmra.mrb[0].mxu0 %v3820
      %v4019 = vpop.f32.mrb[0].mxu0
      %v4020 = vadd.f32 0.0, %v4019
      %v4021 = vpop.f32.mrb[0].mxu0
      %4022 = vmatprep.mubr.f32.mxu0 0.0
      %4023 = vmatmul.mubr.f32.gmra.mrb[0].mxu0 %v3823
      %v4024 = vpop.f32.mrb[0].mxu0
      %v4025 = vadd.f32 0.0, %v4024
      %v4026 = vpop.f32.mrb[0].mxu0
      %4027 = vmatprep.mubr.f32.mxu0 0.0
      %4028 = vmatmul.mubr.f32.gmra.mrb[0].mxu0 %v3826
      %v4029 = vpop.f32.mrb[0].mxu0
      %v4030 = vadd.f32 0.0, %v4029
      %v4031 = vpop.f32.mrb[0].mxu0
      %4032 = vmatprep.mubr.f32.mxu0 0.0
      %4033 = vmatmul.mubr.f32.gmra.mrb[0].mxu0 %v3829
      %v4034 = vpop.f32.mrb[0].mxu0
      %v4035 = vadd.f32 0.0, %v4034
      %v4036 = vpop.f32.mrb[0].mxu0
      %4037 = vmatprep.mubr.f32.mxu0 0.0
      %4038 = vmatmul.mubr.f32.gmra.mrb[0].mxu0 %v3832
      %v4039 = vpop.f32.mrb[0].mxu0
      %v4040 = vadd.f32 0.0, %v4039
      %v4041 = vpop.f32.mrb[0].mxu0
      %4042 = vmatprep.mubr.f32.mxu0 0.0
      %4043 = vmatmul.mubr.f32.gmra.mrb[0].mxu0 %v3835
      %v4044 = vpop.f32.mrb[0].mxu0
      %v4045 = vadd.f32 0.0, %v4044
      %v4046 = vpop.f32.mrb[0].mxu0
      %4047 = vmatprep.mubr.f32.mxu0 0.0
      %4048 = vmatmul.mubr.f32.gmra.mrb[0].mxu0 %v3838
      %v4049 = vpop.f32.mrb[0].mxu0
      %v4050 = vadd.f32 0.0, %v4049
      %v4051 = vpop.f32.mrb[0].mxu0
      %4052 = vmatprep.mubr.f32.mxu0 0.0
      %4053 = vmatmul.mubr.f32.gmra.mrb[0].mxu0 %v3841
      %v4054 = vpop.f32.mrb[0].mxu0
      %v4055 = vadd.f32 0.0, %v4054
      %v4056 = vpop.f32.mrb[0].mxu0
      %4057 = vmatprep.mubr.f32.mxu0 0.0
      %4058 = vmatmul.mubr.f32.gmra.mrb[0].mxu0 %v3844
      %v4059 = vpop.f32.mrb[0].mxu0
      %v4060 = vadd.f32 0.0, %v4059
      %v4061 = vpop.f32.mrb[0].mxu0
      %4062 = vmatprep.mubr.f32.mxu0 0.0
      %4063 = vmatmul.mubr.f32.gmra.mrb[0].mxu0 %v3847
      %v4064 = vpop.f32.mrb[0].mxu0
      %v4065 = vadd.f32 0.0, %v4064
      %v4066 = vpop.f32.mrb[0].mxu0
      %4067 = vmatprep.mubr.f32.mxu0 0.0
      %4068 = vmatmul.mubr.f32.gmra.mrb[0].mxu0 %v3850
      %v4069 = vpop.f32.mrb[0].mxu0
      %v4070 = vadd.f32 0.0, %v4069
      %v4071 = vpop.f32.mrb[0].mxu0
      %4072 = vmatprep.mubr.f32.mxu0 0.0
      %4073 = vmatmul.mubr.f32.gmra.mrb[0].mxu0 %v3853
      %v4074 = vpop.f32.mrb[0].mxu0
      %v4075 = vadd.f32 0.0, %v4074
      %v4076 = vpop.f32.mrb[0].mxu0
      %4077 = vmatprep.mubr.f32.mxu0 0.0
      %4078 = vmatmul.mubr.f32.gmra.mrb[0].mxu0 %v3856
      %v4079 = vpop.f32.mrb[0].mxu0
      %v4080 = vadd.f32 0.0, %v4079
      %v4081 = vpop.f32.mrb[0].mxu0
      %4082 = vdwg.mxu0
      %v4083 = vadd.f32 %v3693, %v3925
      %v4084 = vadd.f32 %v3694, %v3930
      %v4085 = vadd.f32 %v3695, %v3935
      %v4086 = vadd.f32 %v3696, %v3940
      %v4087 = vadd.f32 %v3697, %v3945
      %v4088 = vadd.f32 %v3698, %v3950
      %v4089 = vadd.f32 %v3699, %v3955
      %v4090 = vadd.f32 %v3700, %v3960
      %v4091 = vadd.f32 %v3701, %v3965
      %v4092 = vadd.f32 %v3702, %v3970
      %v4093 = vadd.f32 %v3703, %v3975
      %v4094 = vadd.f32 %v3704, %v3980
      %v4095 = vadd.f32 %v3705, %v3985
      %v4096 = vadd.f32 %v3706, %v3990
      %v4097 = vadd.f32 %v3707, %v3995
      %v4098 = vadd.f32 %v3708, %v4000
      %v4099 = vadd.f32 %v3709, %v4005
      %v4100 = vadd.f32 %v3710, %v4010
      %v4101 = vadd.f32 %v3711, %v4015
      %v4102 = vadd.f32 %v3712, %v4020
      %v4103 = vadd.f32 %v3713, %v4025
      %v4104 = vadd.f32 %v3714, %v4030
      %v4105 = vadd.f32 %v3715, %v4035
      %v4106 = vadd.f32 %v3716, %v4040
      %v4107 = vadd.f32 %v3717, %v4045
      %v4108 = vadd.f32 %v3718, %v4050
      %v4109 = vadd.f32 %v3719, %v4055
      %v4110 = vadd.f32 %v3720, %v4060
      %v4111 = vadd.f32 %v3721, %v4065
      %v4112 = vadd.f32 %v3722, %v4070
      %v4113 = vadd.f32 %v3723, %v4075
      %v4114 = vadd.f32 %v3724, %v4080
      %v4115 = vld [vmem:[#allocation2 + $0x29] sm:$0xff]
      %v4116 = vld [vmem:[#allocation2 + $0x31] sm:$0xff]
      %v4117 = vld [vmem:[#allocation2 + $0x39] sm:$0xff]
      %v4118 = vld [vmem:[#allocation2 + $0x41] sm:$0xff]
      %v4119 = vld [vmem:[#allocation2 + $0x49] sm:$0xff]
      %v4120 = vld [vmem:[#allocation2 + $0x51] sm:$0xff]
      %v4121 = vld [vmem:[#allocation2 + $0x59] sm:$0xff]
      %v4122 = vld [vmem:[#allocation2 + $0x61] sm:$0xff]
      %v4123 = vld [vmem:[#allocation2 + $0x69] sm:$0xff]
      %v4124 = vld [vmem:[#allocation2 + $0x71] sm:$0xff]
      %v4125 = vld [vmem:[#allocation2 + $0x79] sm:$0xff]
      %v4126 = vld [vmem:[#allocation2 + $0x81] sm:$0xff]
      %v4127 = vld [vmem:[#allocation2 + $0x89] sm:$0xff]
      %v4128 = vld [vmem:[#allocation2 + $0x91] sm:$0xff]
      %v4129 = vld [vmem:[#allocation2 + $0x99] sm:$0xff]
      %v4130 = vld [vmem:[#allocation2 + $0xa1] sm:$0xff]
      %v4131 = vld [vmem:[#allocation2 + $0xa9] sm:$0xff]
      %v4132 = vld [vmem:[#allocation2 + $0xb1] sm:$0xff]
      %v4133 = vld [vmem:[#allocation2 + $0xb9] sm:$0xff]
      %v4134 = vld [vmem:[#allocation2 + $0xc1] sm:$0xff]
      %v4135 = vld [vmem:[#allocation2 + $0xc9] sm:$0xff]
      %v4136 = vld [vmem:[#allocation2 + $0xd1] sm:$0xff]
      %v4137 = vld [vmem:[#allocation2 + $0xd9] sm:$0xff]
      %v4138 = vld [vmem:[#allocation2 + $0xe1] sm:$0xff]
      %v4139 = vld [vmem:[#allocation2 + $0xe9] sm:$0xff]
      %v4140 = vld [vmem:[#allocation2 + $0xf1] sm:$0xff]
      %v4141 = vld [vmem:[#allocation2 + $0xf9] sm:$0xff]
      %v4142 = vld [vmem:[#allocation2 + $0x101] sm:$0xff]
      %v4143 = vld [vmem:[#allocation2 + $0x109] sm:$0xff]
      %v4144 = vld [vmem:[#allocation2 + $0x111] sm:$0xff]
      %v4145 = vld [vmem:[#allocation2 + $0x119] sm:$0xff]
      %v4146 = vld [vmem:[#allocation2 + $0x121] sm:$0xff]
      %v4147 = vsel %vm868, %v4115, 0.0
      %v4148 = vsel %vm869, %v4116, 0.0
      %v4149 = vsel %vm870, %v4117, 0.0
      %v4150 = vsel %vm871, %v4118, 0.0
      %v4151 = vsel %vm872, %v4119, 0.0
      %v4152 = vsel %vm873, %v4120, 0.0
      %v4153 = vsel %vm874, %v4121, 0.0
      %v4154 = vsel %vm875, %v4122, 0.0
      %v4155 = vsel %vm876, %v4123, 0.0
      %v4156 = vsel %vm877, %v4124, 0.0
      %v4157 = vsel %vm878, %v4125, 0.0
      %v4158 = vsel %vm879, %v4126, 0.0
      %v4159 = vsel %vm880, %v4127, 0.0
      %v4160 = vsel %vm881, %v4128, 0.0
      %v4161 = vsel %vm882, %v4129, 0.0
      %v4162 = vsel %vm883, %v4130, 0.0
      %v4163 = vsel %vm884, %v4131, 0.0
      %v4164 = vsel %vm885, %v4132, 0.0
      %v4165 = vsel %vm886, %v4133, 0.0
      %v4166 = vsel %vm887, %v4134, 0.0
      %v4167 = vsel %vm888, %v4135, 0.0
      %v4168 = vsel %vm889, %v4136, 0.0
      %v4169 = vsel %vm890, %v4137, 0.0
      %v4170 = vsel %vm891, %v4138, 0.0
      %v4171 = vsel %vm892, %v4139, 0.0
      %v4172 = vsel %vm893, %v4140, 0.0
      %v4173 = vsel %vm894, %v4141, 0.0
      %v4174 = vsel %vm895, %v4142, 0.0
      %v4175 = vsel %vm896, %v4143, 0.0
      %v4176 = vsel %vm897, %v4144, 0.0
      %v4177 = vsel %vm898, %v4145, 0.0
      %v4178 = vsel %vm899, %v4146, 0.0
      %s4179 = scalar_lea.vmem %s3, 256
      %v4180 = vld [vmem:[%s4179] sm:$0xff]
      %v4181 = vld [vmem:[%s4179 + $0x8] sm:$0xff]
      %v4182 = vld [vmem:[%s4179 + $0x10] sm:$0xff]
      %v4183 = vld [vmem:[%s4179 + $0x18] sm:$0xff]
      %v4185 = vsel %vm732, %v4147, 0
      %v4188 = vsel %vm732, %v4148, 0
      %v4191 = vsel %vm732, %v4149, 0
      %v4194 = vsel %vm732, %v4150, 0
      %v4197 = vsel %vm732, %v4151, 0
      %v4200 = vsel %vm732, %v4152, 0
      %v4203 = vsel %vm732, %v4153, 0
      %v4206 = vsel %vm732, %v4154, 0
      %v4209 = vsel %vm732, %v4155, 0
      %v4212 = vsel %vm732, %v4156, 0
      %v4215 = vsel %vm732, %v4157, 0
      %v4218 = vsel %vm732, %v4158, 0
      %v4221 = vsel %vm732, %v4159, 0
      %v4224 = vsel %vm732, %v4160, 0
      %v4227 = vsel %vm732, %v4161, 0
      %v4230 = vsel %vm732, %v4162, 0
      %v4233 = vsel %vm732, %v4163, 0
      %v4236 = vsel %vm732, %v4164, 0
      %v4239 = vsel %vm732, %v4165, 0
      %v4242 = vsel %vm732, %v4166, 0
      %v4245 = vsel %vm732, %v4167, 0
      %v4248 = vsel %vm732, %v4168, 0
      %v4251 = vsel %vm732, %v4169, 0
      %v4254 = vsel %vm732, %v4170, 0
      %v4257 = vsel %vm732, %v4171, 0
      %v4260 = vsel %vm732, %v4172, 0
      %v4263 = vsel %vm732, %v4173, 0
      %v4266 = vsel %vm732, %v4174, 0
      %v4269 = vsel %vm732, %v4175, 0
      %v4272 = vsel %vm732, %v4176, 0
      %v4275 = vsel %vm732, %v4177, 0
      %v4278 = vsel %vm732, %v4178, 0
      %4280 = vmatprep.subr.mxu0 0.0
      %4281 = vmatpush1.msra.mxu0 %v4180
      %4282 = vmatprep.subr.mxu0 0.0
      %4283 = vmatpush1.msra.mxu0 %v4181
      %4284 = vmatprep.subr.mxu0 0.0
      %4285 = vmatpush1.msra.mxu0 %v4182
      %4286 = vmatprep.subr.mxu0 0.0
      %4287 = vmatpush1.msra.mxu0 %v4183
      %4288 = vmatprep.subr.mxu0 0.0
      %4289 = vmatpush1.msra.mxu0 0.0
      %4290 = vmatprep.subr.mxu0 0.0
      %4291 = vmatpush1.msra.mxu0 0.0
      %4292 = vmatprep.subr.mxu0 0.0
      %4293 = vmatpush1.msra.mxu0 0.0
      %4294 = vmatprep.subr.mxu0 0.0
      %4295 = vmatpush1.msra.mxu0 0.0
      %4296 = vmatprep.subr.mxu0 0.0
      %4297 = vmatpush1.msra.mxu0 0.0
      %4298 = vmatprep.subr.mxu0 0.0
      %4299 = vmatpush1.msra.mxu0 0.0
      %4300 = vmatprep.subr.mxu0 0.0
      %4301 = vmatpush1.msra.mxu0 0.0
      %4302 = vmatprep.subr.mxu0 0.0
      %4303 = vmatpush1.msra.mxu0 0.0
      %4304 = vmatprep.subr.mxu0 0.0
      %4305 = vmatpush1.msra.mxu0 0.0
      %4306 = vmatprep.subr.mxu0 0.0
      %4307 = vmatpush1.msra.mxu0 0.0
      %4308 = vmatprep.subr.mxu0 0.0
      %4309 = vmatpush1.msra.mxu0 0.0
      %4310 = vmatprep.subr.mxu0 0.0
      %4311 = vmatpush1.msra.mxu0 0.0
      %4312 = vmatprep.subr.mxu0 0.0
      %4313 = vmatpush1.msra.mxu0 0.0
      %4314 = vmatprep.subr.mxu0 0.0
      %4315 = vmatpush1.msra.mxu0 0.0
      %4316 = vmatprep.subr.mxu0 0.0
      %4317 = vmatpush1.msra.mxu0 0.0
      %4318 = vmatprep.subr.mxu0 0.0
      %4319 = vmatpush1.msra.mxu0 0.0
      %4320 = vmatprep.subr.mxu0 0.0
      %4321 = vmatpush1.msra.mxu0 0.0
      %4322 = vmatprep.subr.mxu0 0.0
      %4323 = vmatpush1.msra.mxu0 0.0
      %4324 = vmatprep.subr.mxu0 0.0
      %4325 = vmatpush1.msra.mxu0 0.0
      %4326 = vmatprep.subr.mxu0 0.0
      %4327 = vmatpush1.msra.mxu0 0.0
      %4328 = vmatprep.subr.mxu0 0.0
      %4329 = vmatpush1.msra.mxu0 0.0
      %4330 = vmatprep.subr.mxu0 0.0
      %4331 = vmatpush1.msra.mxu0 0.0
      %4332 = vmatprep.subr.mxu0 0.0
      %4333 = vmatpush1.msra.mxu0 0.0
      %4334 = vmatprep.subr.mxu0 0.0
      %4335 = vmatpush1.msra.mxu0 0.0
      %4336 = vmatprep.subr.mxu0 0.0
      %4337 = vmatpush1.msra.mxu0 0.0
      %4338 = vmatprep.subr.mxu0 0.0
      %4339 = vmatpush1.msra.mxu0 0.0
      %4340 = vmatprep.subr.mxu0 0.0
      %4341 = vmatpush1.msra.mxu0 0.0
      %4342 = vmatprep.subr.mxu0 0.0
      %4343 = vmatpush1.msra.mxu0 0.0
      %4344 = vmatprep.mubr.f32.mxu0 0.0
      %4345 = vmatmul.mubr.f32.gmra.mrb[0].mxu0 %v4185
      %v4346 = vpop.f32.mrb[0].mxu0
      %v4347 = vadd.f32 0.0, %v4346
      %v4348 = vpop.f32.mrb[0].mxu0
      %4349 = vmatprep.mubr.f32.mxu0 0.0
      %4350 = vmatmul.mubr.f32.gmra.mrb[0].mxu0 %v4188
      %v4351 = vpop.f32.mrb[0].mxu0
      %v4352 = vadd.f32 0.0, %v4351
      %v4353 = vpop.f32.mrb[0].mxu0
      %4354 = vmatprep.mubr.f32.mxu0 0.0
      %4355 = vmatmul.mubr.f32.gmra.mrb[0].mxu0 %v4191
      %v4356 = vpop.f32.mrb[0].mxu0
      %v4357 = vadd.f32 0.0, %v4356
      %v4358 = vpop.f32.mrb[0].mxu0
      %4359 = vmatprep.mubr.f32.mxu0 0.0
      %4360 = vmatmul.mubr.f32.gmra.mrb[0].mxu0 %v4194
      %v4361 = vpop.f32.mrb[0].mxu0
      %v4362 = vadd.f32 0.0, %v4361
      %v4363 = vpop.f32.mrb[0].mxu0
      %4364 = vmatprep.mubr.f32.mxu0 0.0
      %4365 = vmatmul.mubr.f32.gmra.mrb[0].mxu0 %v4197
      %v4366 = vpop.f32.mrb[0].mxu0
      %v4367 = vadd.f32 0.0, %v4366
      %v4368 = vpop.f32.mrb[0].mxu0
      %4369 = vmatprep.mubr.f32.mxu0 0.0
      %4370 = vmatmul.mubr.f32.gmra.mrb[0].mxu0 %v4200
      %v4371 = vpop.f32.mrb[0].mxu0
      %v4372 = vadd.f32 0.0, %v4371
      %v4373 = vpop.f32.mrb[0].mxu0
      %4374 = vmatprep.mubr.f32.mxu0 0.0
      %4375 = vmatmul.mubr.f32.gmra.mrb[0].mxu0 %v4203
      %v4376 = vpop.f32.mrb[0].mxu0
      %v4377 = vadd.f32 0.0, %v4376
      %v4378 = vpop.f32.mrb[0].mxu0
      %4379 = vmatprep.mubr.f32.mxu0 0.0
      %4380 = vmatmul.mubr.f32.gmra.mrb[0].mxu0 %v4206
      %v4381 = vpop.f32.mrb[0].mxu0
      %v4382 = vadd.f32 0.0, %v4381
      %v4383 = vpop.f32.mrb[0].mxu0
      %4384 = vmatprep.mubr.f32.mxu0 0.0
      %4385 = vmatmul.mubr.f32.gmra.mrb[0].mxu0 %v4209
      %v4386 = vpop.f32.mrb[0].mxu0
      %v4387 = vadd.f32 0.0, %v4386
      %v4388 = vpop.f32.mrb[0].mxu0
      %4389 = vmatprep.mubr.f32.mxu0 0.0
      %4390 = vmatmul.mubr.f32.gmra.mrb[0].mxu0 %v4212
      %v4391 = vpop.f32.mrb[0].mxu0
      %v4392 = vadd.f32 0.0, %v4391
      %v4393 = vpop.f32.mrb[0].mxu0
      %4394 = vmatprep.mubr.f32.mxu0 0.0
      %4395 = vmatmul.mubr.f32.gmra.mrb[0].mxu0 %v4215
      %v4396 = vpop.f32.mrb[0].mxu0
      %v4397 = vadd.f32 0.0, %v4396
      %v4398 = vpop.f32.mrb[0].mxu0
      %4399 = vmatprep.mubr.f32.mxu0 0.0
      %4400 = vmatmul.mubr.f32.gmra.mrb[0].mxu0 %v4218
      %v4401 = vpop.f32.mrb[0].mxu0
      %v4402 = vadd.f32 0.0, %v4401
      %v4403 = vpop.f32.mrb[0].mxu0
      %4404 = vmatprep.mubr.f32.mxu0 0.0
      %4405 = vmatmul.mubr.f32.gmra.mrb[0].mxu0 %v4221
      %v4406 = vpop.f32.mrb[0].mxu0
      %v4407 = vadd.f32 0.0, %v4406
      %v4408 = vpop.f32.mrb[0].mxu0
      %4409 = vmatprep.mubr.f32.mxu0 0.0
      %4410 = vmatmul.mubr.f32.gmra.mrb[0].mxu0 %v4224
      %v4411 = vpop.f32.mrb[0].mxu0
      %v4412 = vadd.f32 0.0, %v4411
      %v4413 = vpop.f32.mrb[0].mxu0
      %4414 = vmatprep.mubr.f32.mxu0 0.0
      %4415 = vmatmul.mubr.f32.gmra.mrb[0].mxu0 %v4227
      %v4416 = vpop.f32.mrb[0].mxu0
      %v4417 = vadd.f32 0.0, %v4416
      %v4418 = vpop.f32.mrb[0].mxu0
      %4419 = vmatprep.mubr.f32.mxu0 0.0
      %4420 = vmatmul.mubr.f32.gmra.mrb[0].mxu0 %v4230
      %v4421 = vpop.f32.mrb[0].mxu0
      %v4422 = vadd.f32 0.0, %v4421
      %v4423 = vpop.f32.mrb[0].mxu0
      %4424 = vmatprep.mubr.f32.mxu0 0.0
      %4425 = vmatmul.mubr.f32.gmra.mrb[0].mxu0 %v4233
      %v4426 = vpop.f32.mrb[0].mxu0
      %v4427 = vadd.f32 0.0, %v4426
      %v4428 = vpop.f32.mrb[0].mxu0
      %4429 = vmatprep.mubr.f32.mxu0 0.0
      %4430 = vmatmul.mubr.f32.gmra.mrb[0].mxu0 %v4236
      %v4431 = vpop.f32.mrb[0].mxu0
      %v4432 = vadd.f32 0.0, %v4431
      %v4433 = vpop.f32.mrb[0].mxu0
      %4434 = vmatprep.mubr.f32.mxu0 0.0
      %4435 = vmatmul.mubr.f32.gmra.mrb[0].mxu0 %v4239
      %v4436 = vpop.f32.mrb[0].mxu0
      %v4437 = vadd.f32 0.0, %v4436
      %v4438 = vpop.f32.mrb[0].mxu0
      %4439 = vmatprep.mubr.f32.mxu0 0.0
      %4440 = vmatmul.mubr.f32.gmra.mrb[0].mxu0 %v4242
      %v4441 = vpop.f32.mrb[0].mxu0
      %v4442 = vadd.f32 0.0, %v4441
      %v4443 = vpop.f32.mrb[0].mxu0
      %4444 = vmatprep.mubr.f32.mxu0 0.0
      %4445 = vmatmul.mubr.f32.gmra.mrb[0].mxu0 %v4245
      %v4446 = vpop.f32.mrb[0].mxu0
      %v4447 = vadd.f32 0.0, %v4446
      %v4448 = vpop.f32.mrb[0].mxu0
      %4449 = vmatprep.mubr.f32.mxu0 0.0
      %4450 = vmatmul.mubr.f32.gmra.mrb[0].mxu0 %v4248
      %v4451 = vpop.f32.mrb[0].mxu0
      %v4452 = vadd.f32 0.0, %v4451
      %v4453 = vpop.f32.mrb[0].mxu0
      %4454 = vmatprep.mubr.f32.mxu0 0.0
      %4455 = vmatmul.mubr.f32.gmra.mrb[0].mxu0 %v4251
      %v4456 = vpop.f32.mrb[0].mxu0
      %v4457 = vadd.f32 0.0, %v4456
      %v4458 = vpop.f32.mrb[0].mxu0
      %4459 = vmatprep.mubr.f32.mxu0 0.0
      %4460 = vmatmul.mubr.f32.gmra.mrb[0].mxu0 %v4254
      %v4461 = vpop.f32.mrb[0].mxu0
      %v4462 = vadd.f32 0.0, %v4461
      %v4463 = vpop.f32.mrb[0].mxu0
      %4464 = vmatprep.mubr.f32.mxu0 0.0
      %4465 = vmatmul.mubr.f32.gmra.mrb[0].mxu0 %v4257
      %v4466 = vpop.f32.mrb[0].mxu0
      %v4467 = vadd.f32 0.0, %v4466
      %v4468 = vpop.f32.mrb[0].mxu0
      %4469 = vmatprep.mubr.f32.mxu0 0.0
      %4470 = vmatmul.mubr.f32.gmra.mrb[0].mxu0 %v4260
      %v4471 = vpop.f32.mrb[0].mxu0
      %v4472 = vadd.f32 0.0, %v4471
      %v4473 = vpop.f32.mrb[0].mxu0
      %4474 = vmatprep.mubr.f32.mxu0 0.0
      %4475 = vmatmul.mubr.f32.gmra.mrb[0].mxu0 %v4263
      %v4476 = vpop.f32.mrb[0].mxu0
      %v4477 = vadd.f32 0.0, %v4476
      %v4478 = vpop.f32.mrb[0].mxu0
      %4479 = vmatprep.mubr.f32.mxu0 0.0
      %4480 = vmatmul.mubr.f32.gmra.mrb[0].mxu0 %v4266
      %v4481 = vpop.f32.mrb[0].mxu0
      %v4482 = vadd.f32 0.0, %v4481
      %v4483 = vpop.f32.mrb[0].mxu0
      %4484 = vmatprep.mubr.f32.mxu0 0.0
      %4485 = vmatmul.mubr.f32.gmra.mrb[0].mxu0 %v4269
      %v4486 = vpop.f32.mrb[0].mxu0
      %v4487 = vadd.f32 0.0, %v4486
      %v4488 = vpop.f32.mrb[0].mxu0
      %4489 = vmatprep.mubr.f32.mxu0 0.0
      %4490 = vmatmul.mubr.f32.gmra.mrb[0].mxu0 %v4272
      %v4491 = vpop.f32.mrb[0].mxu0
      %v4492 = vadd.f32 0.0, %v4491
      %v4493 = vpop.f32.mrb[0].mxu0
      %4494 = vmatprep.mubr.f32.mxu0 0.0
      %4495 = vmatmul.mubr.f32.gmra.mrb[0].mxu0 %v4275
      %v4496 = vpop.f32.mrb[0].mxu0
      %v4497 = vadd.f32 0.0, %v4496
      %v4498 = vpop.f32.mrb[0].mxu0
      %4499 = vmatprep.mubr.f32.mxu0 0.0
      %4500 = vmatmul.mubr.f32.gmra.mrb[0].mxu0 %v4278
      %v4501 = vpop.f32.mrb[0].mxu0
      %v4502 = vadd.f32 0.0, %v4501
      %v4503 = vpop.f32.mrb[0].mxu0
      %4504 = vdwg.mxu0
      %v4505 = vadd.f32 %v4083, %v4347
      %v4506 = vadd.f32 %v4084, %v4352
      %v4507 = vadd.f32 %v4085, %v4357
      %v4508 = vadd.f32 %v4086, %v4362
      %v4509 = vadd.f32 %v4087, %v4367
      %v4510 = vadd.f32 %v4088, %v4372
      %v4511 = vadd.f32 %v4089, %v4377
      %v4512 = vadd.f32 %v4090, %v4382
      %v4513 = vadd.f32 %v4091, %v4387
      %v4514 = vadd.f32 %v4092, %v4392
      %v4515 = vadd.f32 %v4093, %v4397
      %v4516 = vadd.f32 %v4094, %v4402
      %v4517 = vadd.f32 %v4095, %v4407
      %v4518 = vadd.f32 %v4096, %v4412
      %v4519 = vadd.f32 %v4097, %v4417
      %v4520 = vadd.f32 %v4098, %v4422
      %v4521 = vadd.f32 %v4099, %v4427
      %v4522 = vadd.f32 %v4100, %v4432
      %v4523 = vadd.f32 %v4101, %v4437
      %v4524 = vadd.f32 %v4102, %v4442
      %v4525 = vadd.f32 %v4103, %v4447
      %v4526 = vadd.f32 %v4104, %v4452
      %v4527 = vadd.f32 %v4105, %v4457
      %v4528 = vadd.f32 %v4106, %v4462
      %v4529 = vadd.f32 %v4107, %v4467
      %v4530 = vadd.f32 %v4108, %v4472
      %v4531 = vadd.f32 %v4109, %v4477
      %v4532 = vadd.f32 %v4110, %v4482
      %v4533 = vadd.f32 %v4111, %v4487
      %v4534 = vadd.f32 %v4112, %v4492
      %v4535 = vadd.f32 %v4113, %v4497
      %v4536 = vadd.f32 %v4114, %v4502
      %v4537 = vld [vmem:[%s4] sm:$0x1]
      %v4539 = vlaneseq
      %v4540 = vshrl.u32 %v4539, 7
      %v4541 = vsub.s32 0, %v4540
      %v4542 = vrot.slane %v4537, %v4541
      %v4544 = vadd.f32 %v4505, %v4542
      %v4545 = vadd.f32 %v4506, %v4542
      %v4546 = vadd.f32 %v4507, %v4542
      %v4547 = vadd.f32 %v4508, %v4542
      %v4548 = vadd.f32 %v4509, %v4542
      %v4549 = vadd.f32 %v4510, %v4542
      %v4550 = vadd.f32 %v4511, %v4542
      %v4551 = vadd.f32 %v4512, %v4542
      %v4552 = vadd.f32 %v4513, %v4542
      %v4553 = vadd.f32 %v4514, %v4542
      %v4554 = vadd.f32 %v4515, %v4542
      %v4555 = vadd.f32 %v4516, %v4542
      %v4556 = vadd.f32 %v4517, %v4542
      %v4557 = vadd.f32 %v4518, %v4542
      %v4558 = vadd.f32 %v4519, %v4542
      %v4559 = vadd.f32 %v4520, %v4542
      %v4560 = vadd.f32 %v4521, %v4542
      %v4561 = vadd.f32 %v4522, %v4542
      %v4562 = vadd.f32 %v4523, %v4542
      %v4563 = vadd.f32 %v4524, %v4542
      %v4564 = vadd.f32 %v4525, %v4542
      %v4565 = vadd.f32 %v4526, %v4542
      %v4566 = vadd.f32 %v4527, %v4542
      %v4567 = vadd.f32 %v4528, %v4542
      %v4568 = vadd.f32 %v4529, %v4542
      %v4569 = vadd.f32 %v4530, %v4542
      %v4570 = vadd.f32 %v4531, %v4542
      %v4571 = vadd.f32 %v4532, %v4542
      %v4572 = vadd.f32 %v4533, %v4542
      %v4573 = vadd.f32 %v4534, %v4542
      %v4574 = vadd.f32 %v4535, %v4542
      %v4575 = vadd.f32 %v4536, %v4542
      %v4576 = vmax.f32 %v4544, 0.0
      %v4577 = vmax.f32 %v4545, 0.0
      %v4578 = vmax.f32 %v4546, 0.0
      %v4579 = vmax.f32 %v4547, 0.0
      %v4580 = vmax.f32 %v4548, 0.0
      %v4581 = vmax.f32 %v4549, 0.0
      %v4582 = vmax.f32 %v4550, 0.0
      %v4583 = vmax.f32 %v4551, 0.0
      %v4584 = vmax.f32 %v4552, 0.0
      %v4585 = vmax.f32 %v4553, 0.0
      %v4586 = vmax.f32 %v4554, 0.0
      %v4587 = vmax.f32 %v4555, 0.0
      %v4588 = vmax.f32 %v4556, 0.0
      %v4589 = vmax.f32 %v4557, 0.0
      %v4590 = vmax.f32 %v4558, 0.0
      %v4591 = vmax.f32 %v4559, 0.0
      %v4592 = vmax.f32 %v4560, 0.0
      %v4593 = vmax.f32 %v4561, 0.0
      %v4594 = vmax.f32 %v4562, 0.0
      %v4595 = vmax.f32 %v4563, 0.0
      %v4596 = vmax.f32 %v4564, 0.0
      %v4597 = vmax.f32 %v4565, 0.0
      %v4598 = vmax.f32 %v4566, 0.0
      %v4599 = vmax.f32 %v4567, 0.0
      %v4600 = vmax.f32 %v4568, 0.0
      %v4601 = vmax.f32 %v4569, 0.0
      %v4602 = vmax.f32 %v4570, 0.0
      %v4603 = vmax.f32 %v4571, 0.0
      %v4604 = vmax.f32 %v4572, 0.0
      %v4605 = vmax.f32 %v4573, 0.0
      %v4606 = vmax.f32 %v4574, 0.0
      %v4607 = vmax.f32 %v4575, 0.0
      %v4608 = vld [vmem:[%s7] sm:$0xff]
      %v4609 = vld [vmem:[%s7 + $0x8] sm:$0xff]
      %v4610 = vld [vmem:[%s7 + $0x10] sm:$0xff]
      %v4611 = vld [vmem:[%s7 + $0x18] sm:$0xff]
      %v4612 = vld [vmem:[%s7 + $0x20] sm:$0xff]
      %v4613 = vld [vmem:[%s7 + $0x28] sm:$0xff]
      %v4614 = vld [vmem:[%s7 + $0x30] sm:$0xff]
      %v4615 = vld [vmem:[%s7 + $0x38] sm:$0xff]
      %v4616 = vld [vmem:[%s7 + $0x40] sm:$0xff]
      %v4617 = vld [vmem:[%s7 + $0x48] sm:$0xff]
      %v4618 = vld [vmem:[%s7 + $0x50] sm:$0xff]
      %v4619 = vld [vmem:[%s7 + $0x58] sm:$0xff]
      %v4620 = vld [vmem:[%s7 + $0x60] sm:$0xff]
      %v4621 = vld [vmem:[%s7 + $0x68] sm:$0xff]
      %v4622 = vld [vmem:[%s7 + $0x70] sm:$0xff]
      %v4623 = vld [vmem:[%s7 + $0x78] sm:$0xff]
      %4624 = vmatprep.subr.mxu0 0.0
      %4625 = vmatpush1.msra.mxu0 %v4576
      %4626 = vmatprep.subr.mxu0 0.0
      %4627 = vmatpush1.msra.mxu0 %v4577
      %4628 = vmatprep.subr.mxu0 0.0
      %4629 = vmatpush1.msra.mxu0 %v4578
      %4630 = vmatprep.subr.mxu0 0.0
      %4631 = vmatpush1.msra.mxu0 %v4579
      %4632 = vmatprep.subr.mxu0 0.0
      %4633 = vmatpush1.msra.mxu0 %v4580
      %4634 = vmatprep.subr.mxu0 0.0
      %4635 = vmatpush1.msra.mxu0 %v4581
      %4636 = vmatprep.subr.mxu0 0.0
      %4637 = vmatpush1.msra.mxu0 %v4582
      %4638 = vmatprep.subr.mxu0 0.0
      %4639 = vmatpush1.msra.mxu0 %v4583
      %4640 = vmatprep.subr.mxu0 0.0
      %4641 = vmatpush1.msra.mxu0 %v4584
      %4642 = vmatprep.subr.mxu0 0.0
      %4643 = vmatpush1.msra.mxu0 %v4585
      %4644 = vmatprep.subr.mxu0 0.0
      %4645 = vmatpush1.msra.mxu0 %v4586
      %4646 = vmatprep.subr.mxu0 0.0
      %4647 = vmatpush1.msra.mxu0 %v4587
      %4648 = vmatprep.subr.mxu0 0.0
      %4649 = vmatpush1.msra.mxu0 %v4588
      %4650 = vmatprep.subr.mxu0 0.0
      %4651 = vmatpush1.msra.mxu0 %v4589
      %4652 = vmatprep.subr.mxu0 0.0
      %4653 = vmatpush1.msra.mxu0 %v4590
      %4654 = vmatprep.subr.mxu0 0.0
      %4655 = vmatpush1.msra.mxu0 %v4591
      %4656 = vmatprep.subr.mxu0 0.0
      %4657 = vmatpush1.msra.mxu0 %v4592
      %4658 = vmatprep.subr.mxu0 0.0
      %4659 = vmatpush1.msra.mxu0 %v4593
      %4660 = vmatprep.subr.mxu0 0.0
      %4661 = vmatpush1.msra.mxu0 %v4594
      %4662 = vmatprep.subr.mxu0 0.0
      %4663 = vmatpush1.msra.mxu0 %v4595
      %4664 = vmatprep.subr.mxu0 0.0
      %4665 = vmatpush1.msra.mxu0 %v4596
      %4666 = vmatprep.subr.mxu0 0.0
      %4667 = vmatpush1.msra.mxu0 %v4597
      %4668 = vmatprep.subr.mxu0 0.0
      %4669 = vmatpush1.msra.mxu0 %v4598
      %4670 = vmatprep.subr.mxu0 0.0
      %4671 = vmatpush1.msra.mxu0 %v4599
      %4672 = vmatprep.subr.mxu0 0.0
      %4673 = vmatpush1.msra.mxu0 %v4600
      %4674 = vmatprep.subr.mxu0 0.0
      %4675 = vmatpush1.msra.mxu0 %v4601
      %4676 = vmatprep.subr.mxu0 0.0
      %4677 = vmatpush1.msra.mxu0 %v4602
      %4678 = vmatprep.subr.mxu0 0.0
      %4679 = vmatpush1.msra.mxu0 %v4603
      %4680 = vmatprep.subr.mxu0 0.0
      %4681 = vmatpush1.msra.mxu0 %v4604
      %4682 = vmatprep.subr.mxu0 0.0
      %4683 = vmatpush1.msra.mxu0 %v4605
      %4684 = vmatprep.subr.mxu0 0.0
      %4685 = vmatpush1.msra.mxu0 %v4606
      %4686 = vmatprep.subr.mxu0 0.0
      %4687 = vmatpush1.msra.mxu0 %v4607
      %4688 = vmatprep.mubr.f32.mxu0 %v4609
      %4689 = vmatmul.mubr.f32.gmra.mrb[0].mxu0 %v4608
      %v4690 = vpop.f32.mrb[0].mxu0
      %v4691 = vadd.f32 0.0, %v4690
      %v4692 = vpop.f32.mrb[0].mxu0
      %4693 = vmatprep.mubr.f32.mxu0 %v4611
      %4694 = vmatmul.mubr.f32.gmra.mrb[0].mxu0 %v4610
      %v4695 = vpop.f32.mrb[0].mxu0
      %v4696 = vadd.f32 0.0, %v4695
      %v4697 = vpop.f32.mrb[0].mxu0
      %4698 = vmatprep.mubr.f32.mxu0 %v4613
      %4699 = vmatmul.mubr.f32.gmra.mrb[0].mxu0 %v4612
      %v4700 = vpop.f32.mrb[0].mxu0
      %v4701 = vadd.f32 0.0, %v4700
      %v4702 = vpop.f32.mrb[0].mxu0
      %4703 = vmatprep.mubr.f32.mxu0 %v4615
      %4704 = vmatmul.mubr.f32.gmra.mrb[0].mxu0 %v4614
      %v4705 = vpop.f32.mrb[0].mxu0
      %v4706 = vadd.f32 0.0, %v4705
      %v4707 = vpop.f32.mrb[0].mxu0
      %4708 = vmatprep.mubr.f32.mxu0 %v4617
      %4709 = vmatmul.mubr.f32.gmra.mrb[0].mxu0 %v4616
      %v4710 = vpop.f32.mrb[0].mxu0
      %v4711 = vadd.f32 0.0, %v4710
      %v4712 = vpop.f32.mrb[0].mxu0
      %4713 = vmatprep.mubr.f32.mxu0 %v4619
      %4714 = vmatmul.mubr.f32.gmra.mrb[0].mxu0 %v4618
      %v4715 = vpop.f32.mrb[0].mxu0
      %v4716 = vadd.f32 0.0, %v4715
      %v4717 = vpop.f32.mrb[0].mxu0
      %4718 = vmatprep.mubr.f32.mxu0 %v4621
      %4719 = vmatmul.mubr.f32.gmra.mrb[0].mxu0 %v4620
      %v4720 = vpop.f32.mrb[0].mxu0
      %v4721 = vadd.f32 0.0, %v4720
      %v4722 = vpop.f32.mrb[0].mxu0
      %4723 = vmatprep.mubr.f32.mxu0 %v4623
      %4724 = vmatmul.mubr.f32.gmra.mrb[0].mxu0 %v4622
      %v4725 = vpop.f32.mrb[0].mxu0
      %v4726 = vadd.f32 0.0, %v4725
      %v4727 = vpop.f32.mrb[0].mxu0
      %4728 = vdwg.mxu0
      %s4729 = scalar_lea.vmem %s7, 128
      %v4730 = vld [vmem:[%s4729] sm:$0xff]
      %v4731 = vld [vmem:[%s4729 + $0x8] sm:$0xff]
      %v4732 = vld [vmem:[%s4729 + $0x10] sm:$0xff]
      %v4733 = vld [vmem:[%s4729 + $0x18] sm:$0xff]
      %v4734 = vld [vmem:[%s4729 + $0x20] sm:$0xff]
      %v4735 = vld [vmem:[%s4729 + $0x28] sm:$0xff]
      %v4736 = vld [vmem:[%s4729 + $0x30] sm:$0xff]
      %v4737 = vld [vmem:[%s4729 + $0x38] sm:$0xff]
      %v4738 = vld [vmem:[%s4729 + $0x40] sm:$0xff]
      %v4739 = vld [vmem:[%s4729 + $0x48] sm:$0xff]
      %v4740 = vld [vmem:[%s4729 + $0x50] sm:$0xff]
      %v4741 = vld [vmem:[%s4729 + $0x58] sm:$0xff]
      %v4742 = vld [vmem:[%s4729 + $0x60] sm:$0xff]
      %v4743 = vld [vmem:[%s4729 + $0x68] sm:$0xff]
      %v4744 = vld [vmem:[%s4729 + $0x70] sm:$0xff]
      %v4745 = vld [vmem:[%s4729 + $0x78] sm:$0xff]
      %4746 = vmatprep.subr.mxu0 0.0
      %4747 = vmatpush1.msra.mxu0 %v4576
      %4748 = vmatprep.subr.mxu0 0.0
      %4749 = vmatpush1.msra.mxu0 %v4577
      %4750 = vmatprep.subr.mxu0 0.0
      %4751 = vmatpush1.msra.mxu0 %v4578
      %4752 = vmatprep.subr.mxu0 0.0
      %4753 = vmatpush1.msra.mxu0 %v4579
      %4754 = vmatprep.subr.mxu0 0.0
      %4755 = vmatpush1.msra.mxu0 %v4580
      %4756 = vmatprep.subr.mxu0 0.0
      %4757 = vmatpush1.msra.mxu0 %v4581
      %4758 = vmatprep.subr.mxu0 0.0
      %4759 = vmatpush1.msra.mxu0 %v4582
      %4760 = vmatprep.subr.mxu0 0.0
      %4761 = vmatpush1.msra.mxu0 %v4583
      %4762 = vmatprep.subr.mxu0 0.0
      %4763 = vmatpush1.msra.mxu0 %v4584
      %4764 = vmatprep.subr.mxu0 0.0
      %4765 = vmatpush1.msra.mxu0 %v4585
      %4766 = vmatprep.subr.mxu0 0.0
      %4767 = vmatpush1.msra.mxu0 %v4586
      %4768 = vmatprep.subr.mxu0 0.0
      %4769 = vmatpush1.msra.mxu0 %v4587
      %4770 = vmatprep.subr.mxu0 0.0
      %4771 = vmatpush1.msra.mxu0 %v4588
      %4772 = vmatprep.subr.mxu0 0.0
      %4773 = vmatpush1.msra.mxu0 %v4589
      %4774 = vmatprep.subr.mxu0 0.0
      %4775 = vmatpush1.msra.mxu0 %v4590
      %4776 = vmatprep.subr.mxu0 0.0
      %4777 = vmatpush1.msra.mxu0 %v4591
      %4778 = vmatprep.subr.mxu0 0.0
      %4779 = vmatpush1.msra.mxu0 %v4592
      %4780 = vmatprep.subr.mxu0 0.0
      %4781 = vmatpush1.msra.mxu0 %v4593
      %4782 = vmatprep.subr.mxu0 0.0
      %4783 = vmatpush1.msra.mxu0 %v4594
      %4784 = vmatprep.subr.mxu0 0.0
      %4785 = vmatpush1.msra.mxu0 %v4595
      %4786 = vmatprep.subr.mxu0 0.0
      %4787 = vmatpush1.msra.mxu0 %v4596
      %4788 = vmatprep.subr.mxu0 0.0
      %4789 = vmatpush1.msra.mxu0 %v4597
      %4790 = vmatprep.subr.mxu0 0.0
      %4791 = vmatpush1.msra.mxu0 %v4598
      %4792 = vmatprep.subr.mxu0 0.0
      %4793 = vmatpush1.msra.mxu0 %v4599
      %4794 = vmatprep.subr.mxu0 0.0
      %4795 = vmatpush1.msra.mxu0 %v4600
      %4796 = vmatprep.subr.mxu0 0.0
      %4797 = vmatpush1.msra.mxu0 %v4601
      %4798 = vmatprep.subr.mxu0 0.0
      %4799 = vmatpush1.msra.mxu0 %v4602
      %4800 = vmatprep.subr.mxu0 0.0
      %4801 = vmatpush1.msra.mxu0 %v4603
      %4802 = vmatprep.subr.mxu0 0.0
      %4803 = vmatpush1.msra.mxu0 %v4604
      %4804 = vmatprep.subr.mxu0 0.0
      %4805 = vmatpush1.msra.mxu0 %v4605
      %4806 = vmatprep.subr.mxu0 0.0
      %4807 = vmatpush1.msra.mxu0 %v4606
      %4808 = vmatprep.subr.mxu0 0.0
      %4809 = vmatpush1.msra.mxu0 %v4607
      %4810 = vmatprep.mubr.f32.mxu0 %v4731
      %4811 = vmatmul.mubr.f32.gmra.mrb[0].mxu0 %v4730
      %v4812 = vpop.f32.mrb[0].mxu0
      %v4813 = vadd.f32 0.0, %v4812
      %v4814 = vpop.f32.mrb[0].mxu0
      %4815 = vmatprep.mubr.f32.mxu0 %v4733
      %4816 = vmatmul.mubr.f32.gmra.mrb[0].mxu0 %v4732
      %v4817 = vpop.f32.mrb[0].mxu0
      %v4818 = vadd.f32 0.0, %v4817
      %v4819 = vpop.f32.mrb[0].mxu0
      %4820 = vmatprep.mubr.f32.mxu0 %v4735
      %4821 = vmatmul.mubr.f32.gmra.mrb[0].mxu0 %v4734
      %v4822 = vpop.f32.mrb[0].mxu0
      %v4823 = vadd.f32 0.0, %v4822
      %v4824 = vpop.f32.mrb[0].mxu0
      %4825 = vmatprep.mubr.f32.mxu0 %v4737
      %4826 = vmatmul.mubr.f32.gmra.mrb[0].mxu0 %v4736
      %v4827 = vpop.f32.mrb[0].mxu0
      %v4828 = vadd.f32 0.0, %v4827
      %v4829 = vpop.f32.mrb[0].mxu0
      %4830 = vmatprep.mubr.f32.mxu0 %v4739
      %4831 = vmatmul.mubr.f32.gmra.mrb[0].mxu0 %v4738
      %v4832 = vpop.f32.mrb[0].mxu0
      %v4833 = vadd.f32 0.0, %v4832
      %v4834 = vpop.f32.mrb[0].mxu0
      %4835 = vmatprep.mubr.f32.mxu0 %v4741
      %4836 = vmatmul.mubr.f32.gmra.mrb[0].mxu0 %v4740
      %v4837 = vpop.f32.mrb[0].mxu0
      %v4838 = vadd.f32 0.0, %v4837
      %v4839 = vpop.f32.mrb[0].mxu0
      %4840 = vmatprep.mubr.f32.mxu0 %v4743
      %4841 = vmatmul.mubr.f32.gmra.mrb[0].mxu0 %v4742
      %v4842 = vpop.f32.mrb[0].mxu0
      %v4843 = vadd.f32 0.0, %v4842
      %v4844 = vpop.f32.mrb[0].mxu0
      %4845 = vmatprep.mubr.f32.mxu0 %v4745
      %4846 = vmatmul.mubr.f32.gmra.mrb[0].mxu0 %v4744
      %v4847 = vpop.f32.mrb[0].mxu0
      %v4848 = vadd.f32 0.0, %v4847
      %v4849 = vpop.f32.mrb[0].mxu0
      %4850 = vdwg.mxu0
      %v4851 = vmax.f32 %v4691, %v4813
      %v4852 = vmax.f32 %v4696, %v4818
      %v4853 = vmax.f32 %v4701, %v4823
      %v4854 = vmax.f32 %v4706, %v4828
      %v4855 = vmax.f32 %v4711, %v4833
      %v4856 = vmax.f32 %v4716, %v4838
      %v4857 = vmax.f32 %v4721, %v4843
      %v4858 = vmax.f32 %v4726, %v4848
      %s4859 = scalar_lea.vmem %s7, 256
      %v4860 = vld [vmem:[%s4859] sm:$0xff]
      %v4861 = vld [vmem:[%s4859 + $0x8] sm:$0xff]
      %v4862 = vld [vmem:[%s4859 + $0x10] sm:$0xff]
      %v4863 = vld [vmem:[%s4859 + $0x18] sm:$0xff]
      %v4864 = vld [vmem:[%s4859 + $0x20] sm:$0xff]
      %v4865 = vld [vmem:[%s4859 + $0x28] sm:$0xff]
      %v4866 = vld [vmem:[%s4859 + $0x30] sm:$0xff]
      %v4867 = vld [vmem:[%s4859 + $0x38] sm:$0xff]
      %v4868 = vld [vmem:[%s4859 + $0x40] sm:$0xff]
      %v4869 = vld [vmem:[%s4859 + $0x48] sm:$0xff]
      %v4870 = vld [vmem:[%s4859 + $0x50] sm:$0xff]
      %v4871 = vld [vmem:[%s4859 + $0x58] sm:$0xff]
      %v4872 = vld [vmem:[%s4859 + $0x60] sm:$0xff]
      %v4873 = vld [vmem:[%s4859 + $0x68] sm:$0xff]
      %v4874 = vld [vmem:[%s4859 + $0x70] sm:$0xff]
      %v4875 = vld [vmem:[%s4859 + $0x78] sm:$0xff]
      %4876 = vmatprep.subr.mxu0 0.0
      %4877 = vmatpush1.msra.mxu0 %v4576
      %4878 = vmatprep.subr.mxu0 0.0
      %4879 = vmatpush1.msra.mxu0 %v4577
      %4880 = vmatprep.subr.mxu0 0.0
      %4881 = vmatpush1.msra.mxu0 %v4578
      %4882 = vmatprep.subr.mxu0 0.0
      %4883 = vmatpush1.msra.mxu0 %v4579
      %4884 = vmatprep.subr.mxu0 0.0
      %4885 = vmatpush1.msra.mxu0 %v4580
      %4886 = vmatprep.subr.mxu0 0.0
      %4887 = vmatpush1.msra.mxu0 %v4581
      %4888 = vmatprep.subr.mxu0 0.0
      %4889 = vmatpush1.msra.mxu0 %v4582
      %4890 = vmatprep.subr.mxu0 0.0
      %4891 = vmatpush1.msra.mxu0 %v4583
      %4892 = vmatprep.subr.mxu0 0.0
      %4893 = vmatpush1.msra.mxu0 %v4584
      %4894 = vmatprep.subr.mxu0 0.0
      %4895 = vmatpush1.msra.mxu0 %v4585
      %4896 = vmatprep.subr.mxu0 0.0
      %4897 = vmatpush1.msra.mxu0 %v4586
      %4898 = vmatprep.subr.mxu0 0.0
      %4899 = vmatpush1.msra.mxu0 %v4587
      %4900 = vmatprep.subr.mxu0 0.0
      %4901 = vmatpush1.msra.mxu0 %v4588
      %4902 = vmatprep.subr.mxu0 0.0
      %4903 = vmatpush1.msra.mxu0 %v4589
      %4904 = vmatprep.subr.mxu0 0.0
      %4905 = vmatpush1.msra.mxu0 %v4590
      %4906 = vmatprep.subr.mxu0 0.0
      %4907 = vmatpush1.msra.mxu0 %v4591
      %4908 = vmatprep.subr.mxu0 0.0
      %4909 = vmatpush1.msra.mxu0 %v4592
      %4910 = vmatprep.subr.mxu0 0.0
      %4911 = vmatpush1.msra.mxu0 %v4593
      %4912 = vmatprep.subr.mxu0 0.0
      %4913 = vmatpush1.msra.mxu0 %v4594
      %4914 = vmatprep.subr.mxu0 0.0
      %4915 = vmatpush1.msra.mxu0 %v4595
      %4916 = vmatprep.subr.mxu0 0.0
      %4917 = vmatpush1.msra.mxu0 %v4596
      %4918 = vmatprep.subr.mxu0 0.0
      %4919 = vmatpush1.msra.mxu0 %v4597
      %4920 = vmatprep.subr.mxu0 0.0
      %4921 = vmatpush1.msra.mxu0 %v4598
      %4922 = vmatprep.subr.mxu0 0.0
      %4923 = vmatpush1.msra.mxu0 %v4599
      %4924 = vmatprep.subr.mxu0 0.0
      %4925 = vmatpush1.msra.mxu0 %v4600
      %4926 = vmatprep.subr.mxu0 0.0
      %4927 = vmatpush1.msra.mxu0 %v4601
      %4928 = vmatprep.subr.mxu0 0.0
      %4929 = vmatpush1.msra.mxu0 %v4602
      %4930 = vmatprep.subr.mxu0 0.0
      %4931 = vmatpush1.msra.mxu0 %v4603
      %4932 = vmatprep.subr.mxu0 0.0
      %4933 = vmatpush1.msra.mxu0 %v4604
      %4934 = vmatprep.subr.mxu0 0.0
      %4935 = vmatpush1.msra.mxu0 %v4605
      %4936 = vmatprep.subr.mxu0 0.0
      %4937 = vmatpush1.msra.mxu0 %v4606
      %4938 = vmatprep.subr.mxu0 0.0
      %4939 = vmatpush1.msra.mxu0 %v4607
      %4940 = vmatprep.mubr.f32.mxu0 %v4861
      %4941 = vmatmul.mubr.f32.gmra.mrb[0].mxu0 %v4860
      %v4942 = vpop.f32.mrb[0].mxu0
      %v4943 = vadd.f32 0.0, %v4942
      %v4944 = vpop.f32.mrb[0].mxu0
      %4945 = vmatprep.mubr.f32.mxu0 %v4863
      %4946 = vmatmul.mubr.f32.gmra.mrb[0].mxu0 %v4862
      %v4947 = vpop.f32.mrb[0].mxu0
      %v4948 = vadd.f32 0.0, %v4947
      %v4949 = vpop.f32.mrb[0].mxu0
      %4950 = vmatprep.mubr.f32.mxu0 %v4865
      %4951 = vmatmul.mubr.f32.gmra.mrb[0].mxu0 %v4864
      %v4952 = vpop.f32.mrb[0].mxu0
      %v4953 = vadd.f32 0.0, %v4952
      %v4954 = vpop.f32.mrb[0].mxu0
      %4955 = vmatprep.mubr.f32.mxu0 %v4867
      %4956 = vmatmul.mubr.f32.gmra.mrb[0].mxu0 %v4866
      %v4957 = vpop.f32.mrb[0].mxu0
      %v4958 = vadd.f32 0.0, %v4957
      %v4959 = vpop.f32.mrb[0].mxu0
      %4960 = vmatprep.mubr.f32.mxu0 %v4869
      %4961 = vmatmul.mubr.f32.gmra.mrb[0].mxu0 %v4868
      %v4962 = vpop.f32.mrb[0].mxu0
      %v4963 = vadd.f32 0.0, %v4962
      %v4964 = vpop.f32.mrb[0].mxu0
      %4965 = vmatprep.mubr.f32.mxu0 %v4871
      %4966 = vmatmul.mubr.f32.gmra.mrb[0].mxu0 %v4870
      %v4967 = vpop.f32.mrb[0].mxu0
      %v4968 = vadd.f32 0.0, %v4967
      %v4969 = vpop.f32.mrb[0].mxu0
      %4970 = vmatprep.mubr.f32.mxu0 %v4873
      %4971 = vmatmul.mubr.f32.gmra.mrb[0].mxu0 %v4872
      %v4972 = vpop.f32.mrb[0].mxu0
      %v4973 = vadd.f32 0.0, %v4972
      %v4974 = vpop.f32.mrb[0].mxu0
      %4975 = vmatprep.mubr.f32.mxu0 %v4875
      %4976 = vmatmul.mubr.f32.gmra.mrb[0].mxu0 %v4874
      %v4977 = vpop.f32.mrb[0].mxu0
      %v4978 = vadd.f32 0.0, %v4977
      %v4979 = vpop.f32.mrb[0].mxu0
      %4980 = vdwg.mxu0
      %v4981 = vmax.f32 %v4851, %v4943
      %v4982 = vmax.f32 %v4852, %v4948
      %v4983 = vmax.f32 %v4853, %v4953
      %v4984 = vmax.f32 %v4854, %v4958
      %v4985 = vmax.f32 %v4855, %v4963
      %v4986 = vmax.f32 %v4856, %v4968
      %v4987 = vmax.f32 %v4857, %v4973
      %v4988 = vmax.f32 %v4858, %v4978
      %s4989 = scalar_lea.vmem %s7, 384
      %v4990 = vld [vmem:[%s4989] sm:$0xff]
      %v4991 = vld [vmem:[%s4989 + $0x8] sm:$0xff]
      %v4992 = vld [vmem:[%s4989 + $0x10] sm:$0xff]
      %v4993 = vld [vmem:[%s4989 + $0x18] sm:$0xff]
      %v4994 = vld [vmem:[%s4989 + $0x20] sm:$0xff]
      %v4995 = vld [vmem:[%s4989 + $0x28] sm:$0xff]
      %v4996 = vld [vmem:[%s4989 + $0x30] sm:$0xff]
      %v4997 = vld [vmem:[%s4989 + $0x38] sm:$0xff]
      %v4998 = vld [vmem:[%s4989 + $0x40] sm:$0xff]
      %v4999 = vld [vmem:[%s4989 + $0x48] sm:$0xff]
      %v5000 = vld [vmem:[%s4989 + $0x50] sm:$0xff]
      %v5001 = vld [vmem:[%s4989 + $0x58] sm:$0xff]
      %v5002 = vld [vmem:[%s4989 + $0x60] sm:$0xff]
      %v5003 = vld [vmem:[%s4989 + $0x68] sm:$0xff]
      %v5004 = vld [vmem:[%s4989 + $0x70] sm:$0xff]
      %v5005 = vld [vmem:[%s4989 + $0x78] sm:$0xff]
      %5006 = vmatprep.subr.mxu0 0.0
      %5007 = vmatpush1.msra.mxu0 %v4576
      %5008 = vmatprep.subr.mxu0 0.0
      %5009 = vmatpush1.msra.mxu0 %v4577
      %5010 = vmatprep.subr.mxu0 0.0
      %5011 = vmatpush1.msra.mxu0 %v4578
      %5012 = vmatprep.subr.mxu0 0.0
      %5013 = vmatpush1.msra.mxu0 %v4579
      %5014 = vmatprep.subr.mxu0 0.0
      %5015 = vmatpush1.msra.mxu0 %v4580
      %5016 = vmatprep.subr.mxu0 0.0
      %5017 = vmatpush1.msra.mxu0 %v4581
      %5018 = vmatprep.subr.mxu0 0.0
      %5019 = vmatpush1.msra.mxu0 %v4582
      %5020 = vmatprep.subr.mxu0 0.0
      %5021 = vmatpush1.msra.mxu0 %v4583
      %5022 = vmatprep.subr.mxu0 0.0
      %5023 = vmatpush1.msra.mxu0 %v4584
      %5024 = vmatprep.subr.mxu0 0.0
      %5025 = vmatpush1.msra.mxu0 %v4585
      %5026 = vmatprep.subr.mxu0 0.0
      %5027 = vmatpush1.msra.mxu0 %v4586
      %5028 = vmatprep.subr.mxu0 0.0
      %5029 = vmatpush1.msra.mxu0 %v4587
      %5030 = vmatprep.subr.mxu0 0.0
      %5031 = vmatpush1.msra.mxu0 %v4588
      %5032 = vmatprep.subr.mxu0 0.0
      %5033 = vmatpush1.msra.mxu0 %v4589
      %5034 = vmatprep.subr.mxu0 0.0
      %5035 = vmatpush1.msra.mxu0 %v4590
      %5036 = vmatprep.subr.mxu0 0.0
      %5037 = vmatpush1.msra.mxu0 %v4591
      %5038 = vmatprep.subr.mxu0 0.0
      %5039 = vmatpush1.msra.mxu0 %v4592
      %5040 = vmatprep.subr.mxu0 0.0
      %5041 = vmatpush1.msra.mxu0 %v4593
      %5042 = vmatprep.subr.mxu0 0.0
      %5043 = vmatpush1.msra.mxu0 %v4594
      %5044 = vmatprep.subr.mxu0 0.0
      %5045 = vmatpush1.msra.mxu0 %v4595
      %5046 = vmatprep.subr.mxu0 0.0
      %5047 = vmatpush1.msra.mxu0 %v4596
      %5048 = vmatprep.subr.mxu0 0.0
      %5049 = vmatpush1.msra.mxu0 %v4597
      %5050 = vmatprep.subr.mxu0 0.0
      %5051 = vmatpush1.msra.mxu0 %v4598
      %5052 = vmatprep.subr.mxu0 0.0
      %5053 = vmatpush1.msra.mxu0 %v4599
      %5054 = vmatprep.subr.mxu0 0.0
      %5055 = vmatpush1.msra.mxu0 %v4600
      %5056 = vmatprep.subr.mxu0 0.0
      %5057 = vmatpush1.msra.mxu0 %v4601
      %5058 = vmatprep.subr.mxu0 0.0
      %5059 = vmatpush1.msra.mxu0 %v4602
      %5060 = vmatprep.subr.mxu0 0.0
      %5061 = vmatpush1.msra.mxu0 %v4603
      %5062 = vmatprep.subr.mxu0 0.0
      %5063 = vmatpush1.msra.mxu0 %v4604
      %5064 = vmatprep.subr.mxu0 0.0
      %5065 = vmatpush1.msra.mxu0 %v4605
      %5066 = vmatprep.subr.mxu0 0.0
      %5067 = vmatpush1.msra.mxu0 %v4606
      %5068 = vmatprep.subr.mxu0 0.0
      %5069 = vmatpush1.msra.mxu0 %v4607
      %5070 = vmatprep.mubr.f32.mxu0 %v4991
      %5071 = vmatmul.mubr.f32.gmra.mrb[0].mxu0 %v4990
      %v5072 = vpop.f32.mrb[0].mxu0
      %v5073 = vadd.f32 0.0, %v5072
      %v5074 = vpop.f32.mrb[0].mxu0
      %5075 = vmatprep.mubr.f32.mxu0 %v4993
      %5076 = vmatmul.mubr.f32.gmra.mrb[0].mxu0 %v4992
      %v5077 = vpop.f32.mrb[0].mxu0
      %v5078 = vadd.f32 0.0, %v5077
      %v5079 = vpop.f32.mrb[0].mxu0
      %5080 = vmatprep.mubr.f32.mxu0 %v4995
      %5081 = vmatmul.mubr.f32.gmra.mrb[0].mxu0 %v4994
      %v5082 = vpop.f32.mrb[0].mxu0
      %v5083 = vadd.f32 0.0, %v5082
      %v5084 = vpop.f32.mrb[0].mxu0
      %5085 = vmatprep.mubr.f32.mxu0 %v4997
      %5086 = vmatmul.mubr.f32.gmra.mrb[0].mxu0 %v4996
      %v5087 = vpop.f32.mrb[0].mxu0
      %v5088 = vadd.f32 0.0, %v5087
      %v5089 = vpop.f32.mrb[0].mxu0
      %5090 = vmatprep.mubr.f32.mxu0 %v4999
      %5091 = vmatmul.mubr.f32.gmra.mrb[0].mxu0 %v4998
      %v5092 = vpop.f32.mrb[0].mxu0
      %v5093 = vadd.f32 0.0, %v5092
      %v5094 = vpop.f32.mrb[0].mxu0
      %5095 = vmatprep.mubr.f32.mxu0 %v5001
      %5096 = vmatmul.mubr.f32.gmra.mrb[0].mxu0 %v5000
      %v5097 = vpop.f32.mrb[0].mxu0
      %v5098 = vadd.f32 0.0, %v5097
      %v5099 = vpop.f32.mrb[0].mxu0
      %5100 = vmatprep.mubr.f32.mxu0 %v5003
      %5101 = vmatmul.mubr.f32.gmra.mrb[0].mxu0 %v5002
      %v5102 = vpop.f32.mrb[0].mxu0
      %v5103 = vadd.f32 0.0, %v5102
      %v5104 = vpop.f32.mrb[0].mxu0
      %5105 = vmatprep.mubr.f32.mxu0 %v5005
      %5106 = vmatmul.mubr.f32.gmra.mrb[0].mxu0 %v5004
      %v5107 = vpop.f32.mrb[0].mxu0
      %v5108 = vadd.f32 0.0, %v5107
      %v5109 = vpop.f32.mrb[0].mxu0
      %5110 = vdwg.mxu0
      %v5111 = vmax.f32 %v4981, %v5073
      %v5112 = vmax.f32 %v4982, %v5078
      %v5113 = vmax.f32 %v4983, %v5083
      %v5114 = vmax.f32 %v4984, %v5088
      %v5115 = vmax.f32 %v4985, %v5093
      %v5116 = vmax.f32 %v4986, %v5098
      %v5117 = vmax.f32 %v4987, %v5103
      %v5118 = vmax.f32 %v4988, %v5108
      %vm5119 = vcmask 523264
      %5120 = vst.msk [vmem:[#allocation3] sm:$0xff] %vm5119, 0.0
      %5121 = vst.msk [vmem:[#allocation3 + $0x8] sm:$0xff] %vm5119, 0.0
      %5122 = vst.msk [vmem:[#allocation3 + $0x10] sm:$0xff] %vm5119, %v5111
      %5123 = vst.msk [vmem:[#allocation3 + $0x18] sm:$0xff] %vm5119, %v5112
      %5124 = vst.msk [vmem:[#allocation3 + $0x20] sm:$0xff] %vm5119, %v5113
      %5125 = vst.msk [vmem:[#allocation3 + $0x28] sm:$0xff] %vm5119, %v5114
      %5126 = vst.msk [vmem:[#allocation3 + $0x30] sm:$0xff] %vm5119, %v5115
      %5127 = vst.msk [vmem:[#allocation3 + $0x38] sm:$0xff] %vm5119, %v5116
      %5128 = vst.msk [vmem:[#allocation3 + $0x40] sm:$0xff] %vm5119, %v5117
      %5129 = vst.msk [vmem:[#allocation3 + $0x48] sm:$0xff] %vm5119, %v5118
      %5130 = vst.msk [vmem:[#allocation3 + $0x50] sm:$0xff] %vm5119, 0.0
      %5131 = vst.msk [vmem:[#allocation3 + $0x58] sm:$0xff] %vm5119, 0.0
      %v5132 = vand.u32 %v772, 7
      %v5133 = vand.u32 %v773, 7
      %v5134 = vand.u32 %v774, 7
      %v5135 = vand.u32 %v775, 7
      %v5136 = vand.u32 %v776, 7
      %v5137 = vand.u32 %v777, 7
      %v5138 = vand.u32 %v778, 7
      %v5139 = vand.u32 %v779, 7
      %vm5140 = vcmp.ge.s32.totalorder %v5132, 1
      %vm5141 = vcmp.ge.s32.totalorder %v5133, 1
      %vm5142 = vcmp.ge.s32.totalorder %v5134, 1
      %vm5143 = vcmp.ge.s32.totalorder %v5135, 1
      %vm5144 = vcmp.ge.s32.totalorder %v5136, 1
      %vm5145 = vcmp.ge.s32.totalorder %v5137, 1
      %vm5146 = vcmp.ge.s32.totalorder %v5138, 1
      %vm5147 = vcmp.ge.s32.totalorder %v5139, 1
      %vm5148 = vcmp.le.s32.totalorder %v5132, 6
      %vm5149 = vcmp.le.s32.totalorder %v5133, 6
      %vm5150 = vcmp.le.s32.totalorder %v5134, 6
      %vm5151 = vcmp.le.s32.totalorder %v5135, 6
      %vm5152 = vcmp.le.s32.totalorder %v5136, 6
      %vm5153 = vcmp.le.s32.totalorder %v5137, 6
      %vm5154 = vcmp.le.s32.totalorder %v5138, 6
      %vm5155 = vcmp.le.s32.totalorder %v5139, 6
      %v5156 = vld [vmem:[#allocation3 + $0x7] sm:$0xff]
      %v5157 = vld [vmem:[#allocation3 + $0xf] sm:$0xff]
      %v5158 = vld [vmem:[#allocation3 + $0x17] sm:$0xff]
      %v5159 = vld [vmem:[#allocation3 + $0x1f] sm:$0xff]
      %v5160 = vld [vmem:[#allocation3 + $0x27] sm:$0xff]
      %v5161 = vld [vmem:[#allocation3 + $0x2f] sm:$0xff]
      %v5162 = vld [vmem:[#allocation3 + $0x37] sm:$0xff]
      %v5163 = vld [vmem:[#allocation3 + $0x3f] sm:$0xff]
      %v5164 = vsel %vm5140, %v5156, 0.0
      %v5165 = vsel %vm5141, %v5157, 0.0
      %v5166 = vsel %vm5142, %v5158, 0.0
      %v5167 = vsel %vm5143, %v5159, 0.0
      %v5168 = vsel %vm5144, %v5160, 0.0
      %v5169 = vsel %vm5145, %v5161, 0.0
      %v5170 = vsel %vm5146, %v5162, 0.0
      %v5171 = vsel %vm5147, %v5163, 0.0
      %v5172 = vld [vmem:[%s5] sm:$0xff]
      %v5173 = vld [vmem:[%s5 + $0x8] sm:$0xff]
      %v5174 = vld [vmem:[%s5 + $0x10] sm:$0xff]
      %v5175 = vld [vmem:[%s5 + $0x18] sm:$0xff]
      %v5176 = vld [vmem:[%s5 + $0x20] sm:$0xff]
      %v5177 = vld [vmem:[%s5 + $0x28] sm:$0xff]
      %v5178 = vld [vmem:[%s5 + $0x30] sm:$0xff]
      %v5179 = vld [vmem:[%s5 + $0x38] sm:$0xff]
      %v5180 = vld [vmem:[#allocation3 + $0x8] sm:$0xff]
      %v5181 = vld [vmem:[#allocation3 + $0x10] sm:$0xff]
      %v5182 = vld [vmem:[#allocation3 + $0x18] sm:$0xff]
      %v5183 = vld [vmem:[#allocation3 + $0x20] sm:$0xff]
      %v5184 = vld [vmem:[#allocation3 + $0x28] sm:$0xff]
      %v5185 = vld [vmem:[#allocation3 + $0x30] sm:$0xff]
      %v5186 = vld [vmem:[#allocation3 + $0x38] sm:$0xff]
      %v5187 = vld [vmem:[#allocation3 + $0x40] sm:$0xff]
      %s5188 = scalar_lea.vmem %s5, 64
      %v5189 = vld [vmem:[%s5188] sm:$0xff]
      %v5190 = vld [vmem:[%s5188 + $0x8] sm:$0xff]
      %v5191 = vld [vmem:[%s5188 + $0x10] sm:$0xff]
      %v5192 = vld [vmem:[%s5188 + $0x18] sm:$0xff]
      %v5193 = vld [vmem:[%s5188 + $0x20] sm:$0xff]
      %v5194 = vld [vmem:[%s5188 + $0x28] sm:$0xff]
      %v5195 = vld [vmem:[%s5188 + $0x30] sm:$0xff]
      %v5196 = vld [vmem:[%s5188 + $0x38] sm:$0xff]
      %v5198 = vsel %vm5119, %v5180, 0
      %v5201 = vsel %vm5119, %v5181, 0
      %v5204 = vsel %vm5119, %v5182, 0
      %v5207 = vsel %vm5119, %v5183, 0
      %v5210 = vsel %vm5119, %v5184, 0
      %v5213 = vsel %vm5119, %v5185, 0
      %v5216 = vsel %vm5119, %v5186, 0
      %v5219 = vsel %vm5119, %v5187, 0
      %5221 = vmatprep.subr.mxu0 0.0
      %5222 = vmatpush1.msra.mxu0 %v5189
      %5223 = vmatprep.subr.mxu0 0.0
      %5224 = vmatpush1.msra.mxu0 %v5190
      %5225 = vmatprep.subr.mxu0 0.0
      %5226 = vmatpush1.msra.mxu0 %v5191
      %5227 = vmatprep.subr.mxu0 0.0
      %5228 = vmatpush1.msra.mxu0 %v5192
      %5229 = vmatprep.subr.mxu0 0.0
      %5230 = vmatpush1.msra.mxu0 %v5193
      %5231 = vmatprep.subr.mxu0 0.0
      %5232 = vmatpush1.msra.mxu0 %v5194
      %5233 = vmatprep.subr.mxu0 0.0
      %5234 = vmatpush1.msra.mxu0 %v5195
      %5235 = vmatprep.subr.mxu0 0.0
      %5236 = vmatpush1.msra.mxu0 %v5196
      %5237 = vmatprep.subr.mxu0 0.0
      %5238 = vmatpush1.msra.mxu0 0.0
      %5239 = vmatprep.subr.mxu0 0.0
      %5240 = vmatpush1.msra.mxu0 0.0
      %5241 = vmatprep.subr.mxu0 0.0
      %5242 = vmatpush1.msra.mxu0 0.0
      %5243 = vmatprep.subr.mxu0 0.0
      %5244 = vmatpush1.msra.mxu0 0.0
      %5245 = vmatprep.subr.mxu0 0.0
      %5246 = vmatpush1.msra.mxu0 0.0
      %5247 = vmatprep.subr.mxu0 0.0
      %5248 = vmatpush1.msra.mxu0 0.0
      %5249 = vmatprep.subr.mxu0 0.0
      %5250 = vmatpush1.msra.mxu0 0.0
      %5251 = vmatprep.subr.mxu0 0.0
      %5252 = vmatpush1.msra.mxu0 0.0
      %5253 = vmatprep.subr.mxu0 0.0
      %5254 = vmatpush1.msra.mxu0 0.0
      %5255 = vmatprep.subr.mxu0 0.0
      %5256 = vmatpush1.msra.mxu0 0.0
      %5257 = vmatprep.subr.mxu0 0.0
      %5258 = vmatpush1.msra.mxu0 0.0
      %5259 = vmatprep.subr.mxu0 0.0
      %5260 = vmatpush1.msra.mxu0 0.0
      %5261 = vmatprep.subr.mxu0 0.0
      %5262 = vmatpush1.msra.mxu0 0.0
      %5263 = vmatprep.subr.mxu0 0.0
      %5264 = vmatpush1.msra.mxu0 0.0
      %5265 = vmatprep.subr.mxu0 0.0
      %5266 = vmatpush1.msra.mxu0 0.0
      %5267 = vmatprep.subr.mxu0 0.0
      %5268 = vmatpush1.msra.mxu0 0.0
      %5269 = vmatprep.subr.mxu0 0.0
      %5270 = vmatpush1.msra.mxu0 0.0
      %5271 = vmatprep.subr.mxu0 0.0
      %5272 = vmatpush1.msra.mxu0 0.0
      %5273 = vmatprep.subr.mxu0 0.0
      %5274 = vmatpush1.msra.mxu0 0.0
      %5275 = vmatprep.subr.mxu0 0.0
      %5276 = vmatpush1.msra.mxu0 0.0
      %5277 = vmatprep.subr.mxu0 0.0
      %5278 = vmatpush1.msra.mxu0 0.0
      %5279 = vmatprep.subr.mxu0 0.0
      %5280 = vmatpush1.msra.mxu0 0.0
      %5281 = vmatprep.subr.mxu0 0.0
      %5282 = vmatpush1.msra.mxu0 0.0
      %5283 = vmatprep.subr.mxu0 0.0
      %5284 = vmatpush1.msra.mxu0 0.0
      %5285 = vmatprep.mubr.f32.mxu0 0.0
      %5286 = vmatmul.mubr.f32.gmra.mrb[0].mxu0 %v5198
      %v5287 = vpop.f32.mrb[0].mxu0
      %v5288 = vadd.f32 0.0, %v5287
      %v5289 = vpop.f32.mrb[0].mxu0
      %5290 = vmatprep.mubr.f32.mxu0 0.0
      %5291 = vmatmul.mubr.f32.gmra.mrb[0].mxu0 %v5201
      %v5292 = vpop.f32.mrb[0].mxu0
      %v5293 = vadd.f32 0.0, %v5292
      %v5294 = vpop.f32.mrb[0].mxu0
      %5295 = vmatprep.mubr.f32.mxu0 0.0
      %5296 = vmatmul.mubr.f32.gmra.mrb[0].mxu0 %v5204
      %v5297 = vpop.f32.mrb[0].mxu0
      %v5298 = vadd.f32 0.0, %v5297
      %v5299 = vpop.f32.mrb[0].mxu0
      %5300 = vmatprep.mubr.f32.mxu0 0.0
      %5301 = vmatmul.mubr.f32.gmra.mrb[0].mxu0 %v5207
      %v5302 = vpop.f32.mrb[0].mxu0
      %v5303 = vadd.f32 0.0, %v5302
      %v5304 = vpop.f32.mrb[0].mxu0
      %5305 = vmatprep.mubr.f32.mxu0 0.0
      %5306 = vmatmul.mubr.f32.gmra.mrb[0].mxu0 %v5210
      %v5307 = vpop.f32.mrb[0].mxu0
      %v5308 = vadd.f32 0.0, %v5307
      %v5309 = vpop.f32.mrb[0].mxu0
      %5310 = vmatprep.mubr.f32.mxu0 0.0
      %5311 = vmatmul.mubr.f32.gmra.mrb[0].mxu0 %v5213
      %v5312 = vpop.f32.mrb[0].mxu0
      %v5313 = vadd.f32 0.0, %v5312
      %v5314 = vpop.f32.mrb[0].mxu0
      %5315 = vmatprep.mubr.f32.mxu0 0.0
      %5316 = vmatmul.mubr.f32.gmra.mrb[0].mxu0 %v5216
      %v5317 = vpop.f32.mrb[0].mxu0
      %v5318 = vadd.f32 0.0, %v5317
      %v5319 = vpop.f32.mrb[0].mxu0
      %5320 = vmatprep.mubr.f32.mxu0 0.0
      %5321 = vmatmul.mubr.f32.gmra.mrb[0].mxu0 %v5219
      %v5322 = vpop.f32.mrb[0].mxu0
      %v5323 = vadd.f32 0.0, %v5322
      %v5324 = vpop.f32.mrb[0].mxu0
      %5325 = vdwg.mxu0
      %v5327 = vsel %vm5119, %v5164, 0
      %v5330 = vsel %vm5119, %v5165, 0
      %v5333 = vsel %vm5119, %v5166, 0
      %v5336 = vsel %vm5119, %v5167, 0
      %v5339 = vsel %vm5119, %v5168, 0
      %v5342 = vsel %vm5119, %v5169, 0
      %v5345 = vsel %vm5119, %v5170, 0
      %v5348 = vsel %vm5119, %v5171, 0
      %5350 = vmatprep.subr.mxu0 0.0
      %5351 = vmatpush1.msra.mxu0 %v5172
      %5352 = vmatprep.subr.mxu0 0.0
      %5353 = vmatpush1.msra.mxu0 %v5173
      %5354 = vmatprep.subr.mxu0 0.0
      %5355 = vmatpush1.msra.mxu0 %v5174
      %5356 = vmatprep.subr.mxu0 0.0
      %5357 = vmatpush1.msra.mxu0 %v5175
      %5358 = vmatprep.subr.mxu0 0.0
      %5359 = vmatpush1.msra.mxu0 %v5176
      %5360 = vmatprep.subr.mxu0 0.0
      %5361 = vmatpush1.msra.mxu0 %v5177
      %5362 = vmatprep.subr.mxu0 0.0
      %5363 = vmatpush1.msra.mxu0 %v5178
      %5364 = vmatprep.subr.mxu0 0.0
      %5365 = vmatpush1.msra.mxu0 %v5179
      %5366 = vmatprep.subr.mxu0 0.0
      %5367 = vmatpush1.msra.mxu0 0.0
      %5368 = vmatprep.subr.mxu0 0.0
      %5369 = vmatpush1.msra.mxu0 0.0
      %5370 = vmatprep.subr.mxu0 0.0
      %5371 = vmatpush1.msra.mxu0 0.0
      %5372 = vmatprep.subr.mxu0 0.0
      %5373 = vmatpush1.msra.mxu0 0.0
      %5374 = vmatprep.subr.mxu0 0.0
      %5375 = vmatpush1.msra.mxu0 0.0
      %5376 = vmatprep.subr.mxu0 0.0
      %5377 = vmatpush1.msra.mxu0 0.0
      %5378 = vmatprep.subr.mxu0 0.0
      %5379 = vmatpush1.msra.mxu0 0.0
      %5380 = vmatprep.subr.mxu0 0.0
      %5381 = vmatpush1.msra.mxu0 0.0
      %5382 = vmatprep.subr.mxu0 0.0
      %5383 = vmatpush1.msra.mxu0 0.0
      %5384 = vmatprep.subr.mxu0 0.0
      %5385 = vmatpush1.msra.mxu0 0.0
      %5386 = vmatprep.subr.mxu0 0.0
      %5387 = vmatpush1.msra.mxu0 0.0
      %5388 = vmatprep.subr.mxu0 0.0
      %5389 = vmatpush1.msra.mxu0 0.0
      %5390 = vmatprep.subr.mxu0 0.0
      %5391 = vmatpush1.msra.mxu0 0.0
      %5392 = vmatprep.subr.mxu0 0.0
      %5393 = vmatpush1.msra.mxu0 0.0
      %5394 = vmatprep.subr.mxu0 0.0
      %5395 = vmatpush1.msra.mxu0 0.0
      %5396 = vmatprep.subr.mxu0 0.0
      %5397 = vmatpush1.msra.mxu0 0.0
      %5398 = vmatprep.subr.mxu0 0.0
      %5399 = vmatpush1.msra.mxu0 0.0
      %5400 = vmatprep.subr.mxu0 0.0
      %5401 = vmatpush1.msra.mxu0 0.0
      %5402 = vmatprep.subr.mxu0 0.0
      %5403 = vmatpush1.msra.mxu0 0.0
      %5404 = vmatprep.subr.mxu0 0.0
      %5405 = vmatpush1.msra.mxu0 0.0
      %5406 = vmatprep.subr.mxu0 0.0
      %5407 = vmatpush1.msra.mxu0 0.0
      %5408 = vmatprep.subr.mxu0 0.0
      %5409 = vmatpush1.msra.mxu0 0.0
      %5410 = vmatprep.subr.mxu0 0.0
      %5411 = vmatpush1.msra.mxu0 0.0
      %5412 = vmatprep.subr.mxu0 0.0
      %5413 = vmatpush1.msra.mxu0 0.0
      %5414 = vmatprep.mubr.f32.mxu0 0.0
      %5415 = vmatmul.mubr.f32.gmra.mrb[0].mxu0 %v5327
      %v5416 = vpop.f32.mrb[0].mxu0
      %v5417 = vadd.f32 %v5288, %v5416
      %v5418 = vpop.f32.mrb[0].mxu0
      %5419 = vmatprep.mubr.f32.mxu0 0.0
      %5420 = vmatmul.mubr.f32.gmra.mrb[0].mxu0 %v5330
      %v5421 = vpop.f32.mrb[0].mxu0
      %v5422 = vadd.f32 %v5293, %v5421
      %v5423 = vpop.f32.mrb[0].mxu0
      %5424 = vmatprep.mubr.f32.mxu0 0.0
      %5425 = vmatmul.mubr.f32.gmra.mrb[0].mxu0 %v5333
      %v5426 = vpop.f32.mrb[0].mxu0
      %v5427 = vadd.f32 %v5298, %v5426
      %v5428 = vpop.f32.mrb[0].mxu0
      %5429 = vmatprep.mubr.f32.mxu0 0.0
      %5430 = vmatmul.mubr.f32.gmra.mrb[0].mxu0 %v5336
      %v5431 = vpop.f32.mrb[0].mxu0
      %v5432 = vadd.f32 %v5303, %v5431
      %v5433 = vpop.f32.mrb[0].mxu0
      %5434 = vmatprep.mubr.f32.mxu0 0.0
      %5435 = vmatmul.mubr.f32.gmra.mrb[0].mxu0 %v5339
      %v5436 = vpop.f32.mrb[0].mxu0
      %v5437 = vadd.f32 %v5308, %v5436
      %v5438 = vpop.f32.mrb[0].mxu0
      %5439 = vmatprep.mubr.f32.mxu0 0.0
      %5440 = vmatmul.mubr.f32.gmra.mrb[0].mxu0 %v5342
      %v5441 = vpop.f32.mrb[0].mxu0
      %v5442 = vadd.f32 %v5313, %v5441
      %v5443 = vpop.f32.mrb[0].mxu0
      %5444 = vmatprep.mubr.f32.mxu0 0.0
      %5445 = vmatmul.mubr.f32.gmra.mrb[0].mxu0 %v5345
      %v5446 = vpop.f32.mrb[0].mxu0
      %v5447 = vadd.f32 %v5318, %v5446
      %v5448 = vpop.f32.mrb[0].mxu0
      %5449 = vmatprep.mubr.f32.mxu0 0.0
      %5450 = vmatmul.mubr.f32.gmra.mrb[0].mxu0 %v5348
      %v5451 = vpop.f32.mrb[0].mxu0
      %v5452 = vadd.f32 %v5323, %v5451
      %v5453 = vpop.f32.mrb[0].mxu0
      %5454 = vdwg.mxu0
      %v5455 = vld [vmem:[#allocation3 + $0x9] sm:$0xff]
      %v5456 = vld [vmem:[#allocation3 + $0x11] sm:$0xff]
      %v5457 = vld [vmem:[#allocation3 + $0x19] sm:$0xff]
      %v5458 = vld [vmem:[#allocation3 + $0x21] sm:$0xff]
      %v5459 = vld [vmem:[#allocation3 + $0x29] sm:$0xff]
      %v5460 = vld [vmem:[#allocation3 + $0x31] sm:$0xff]
      %v5461 = vld [vmem:[#allocation3 + $0x39] sm:$0xff]
      %v5462 = vld [vmem:[#allocation3 + $0x41] sm:$0xff]
      %v5463 = vsel %vm5148, %v5455, 0.0
      %v5464 = vsel %vm5149, %v5456, 0.0
      %v5465 = vsel %vm5150, %v5457, 0.0
      %v5466 = vsel %vm5151, %v5458, 0.0
      %v5467 = vsel %vm5152, %v5459, 0.0
      %v5468 = vsel %vm5153, %v5460, 0.0
      %v5469 = vsel %vm5154, %v5461, 0.0
      %v5470 = vsel %vm5155, %v5462, 0.0
      %s5471 = scalar_lea.vmem %s5, 128
      %v5472 = vld [vmem:[%s5471] sm:$0xff]
      %v5473 = vld [vmem:[%s5471 + $0x8] sm:$0xff]
      %v5474 = vld [vmem:[%s5471 + $0x10] sm:$0xff]
      %v5475 = vld [vmem:[%s5471 + $0x18] sm:$0xff]
      %v5476 = vld [vmem:[%s5471 + $0x20] sm:$0xff]
      %v5477 = vld [vmem:[%s5471 + $0x28] sm:$0xff]
      %v5478 = vld [vmem:[%s5471 + $0x30] sm:$0xff]
      %v5479 = vld [vmem:[%s5471 + $0x38] sm:$0xff]
      %v5481 = vsel %vm5119, %v5463, 0
      %v5484 = vsel %vm5119, %v5464, 0
      %v5487 = vsel %vm5119, %v5465, 0
      %v5490 = vsel %vm5119, %v5466, 0
      %v5493 = vsel %vm5119, %v5467, 0
      %v5496 = vsel %vm5119, %v5468, 0
      %v5499 = vsel %vm5119, %v5469, 0
      %v5502 = vsel %vm5119, %v5470, 0
      %5504 = vmatprep.subr.mxu0 0.0
      %5505 = vmatpush1.msra.mxu0 %v5472
      %5506 = vmatprep.subr.mxu0 0.0
      %5507 = vmatpush1.msra.mxu0 %v5473
      %5508 = vmatprep.subr.mxu0 0.0
      %5509 = vmatpush1.msra.mxu0 %v5474
      %5510 = vmatprep.subr.mxu0 0.0
      %5511 = vmatpush1.msra.mxu0 %v5475
      %5512 = vmatprep.subr.mxu0 0.0
      %5513 = vmatpush1.msra.mxu0 %v5476
      %5514 = vmatprep.subr.mxu0 0.0
      %5515 = vmatpush1.msra.mxu0 %v5477
      %5516 = vmatprep.subr.mxu0 0.0
      %5517 = vmatpush1.msra.mxu0 %v5478
      %5518 = vmatprep.subr.mxu0 0.0
      %5519 = vmatpush1.msra.mxu0 %v5479
      %5520 = vmatprep.subr.mxu0 0.0
      %5521 = vmatpush1.msra.mxu0 0.0
      %5522 = vmatprep.subr.mxu0 0.0
      %5523 = vmatpush1.msra.mxu0 0.0
      %5524 = vmatprep.subr.mxu0 0.0
      %5525 = vmatpush1.msra.mxu0 0.0
      %5526 = vmatprep.subr.mxu0 0.0
      %5527 = vmatpush1.msra.mxu0 0.0
      %5528 = vmatprep.subr.mxu0 0.0
      %5529 = vmatpush1.msra.mxu0 0.0
      %5530 = vmatprep.subr.mxu0 0.0
      %5531 = vmatpush1.msra.mxu0 0.0
      %5532 = vmatprep.subr.mxu0 0.0
      %5533 = vmatpush1.msra.mxu0 0.0
      %5534 = vmatprep.subr.mxu0 0.0
      %5535 = vmatpush1.msra.mxu0 0.0
      %5536 = vmatprep.subr.mxu0 0.0
      %5537 = vmatpush1.msra.mxu0 0.0
      %5538 = vmatprep.subr.mxu0 0.0
      %5539 = vmatpush1.msra.mxu0 0.0
      %5540 = vmatprep.subr.mxu0 0.0
      %5541 = vmatpush1.msra.mxu0 0.0
      %5542 = vmatprep.subr.mxu0 0.0
      %5543 = vmatpush1.msra.mxu0 0.0
      %5544 = vmatprep.subr.mxu0 0.0
      %5545 = vmatpush1.msra.mxu0 0.0
      %5546 = vmatprep.subr.mxu0 0.0
      %5547 = vmatpush1.msra.mxu0 0.0
      %5548 = vmatprep.subr.mxu0 0.0
      %5549 = vmatpush1.msra.mxu0 0.0
      %5550 = vmatprep.subr.mxu0 0.0
      %5551 = vmatpush1.msra.mxu0 0.0
      %5552 = vmatprep.subr.mxu0 0.0
      %5553 = vmatpush1.msra.mxu0 0.0
      %5554 = vmatprep.subr.mxu0 0.0
      %5555 = vmatpush1.msra.mxu0 0.0
      %5556 = vmatprep.subr.mxu0 0.0
      %5557 = vmatpush1.msra.mxu0 0.0
      %5558 = vmatprep.subr.mxu0 0.0
      %5559 = vmatpush1.msra.mxu0 0.0
      %5560 = vmatprep.subr.mxu0 0.0
      %5561 = vmatpush1.msra.mxu0 0.0
      %5562 = vmatprep.subr.mxu0 0.0
      %5563 = vmatpush1.msra.mxu0 0.0
      %5564 = vmatprep.subr.mxu0 0.0
      %5565 = vmatpush1.msra.mxu0 0.0
      %5566 = vmatprep.subr.mxu0 0.0
      %5567 = vmatpush1.msra.mxu0 0.0
      %5568 = vmatprep.mubr.f32.mxu0 0.0
      %5569 = vmatmul.mubr.f32.gmra.mrb[0].mxu0 %v5481
      %v5570 = vpop.f32.mrb[0].mxu0
      %v5571 = vadd.f32 0.0, %v5570
      %v5572 = vpop.f32.mrb[0].mxu0
      %5573 = vmatprep.mubr.f32.mxu0 0.0
      %5574 = vmatmul.mubr.f32.gmra.mrb[0].mxu0 %v5484
      %v5575 = vpop.f32.mrb[0].mxu0
      %v5576 = vadd.f32 0.0, %v5575
      %v5577 = vpop.f32.mrb[0].mxu0
      %5578 = vmatprep.mubr.f32.mxu0 0.0
      %5579 = vmatmul.mubr.f32.gmra.mrb[0].mxu0 %v5487
      %v5580 = vpop.f32.mrb[0].mxu0
      %v5581 = vadd.f32 0.0, %v5580
      %v5582 = vpop.f32.mrb[0].mxu0
      %5583 = vmatprep.mubr.f32.mxu0 0.0
      %5584 = vmatmul.mubr.f32.gmra.mrb[0].mxu0 %v5490
      %v5585 = vpop.f32.mrb[0].mxu0
      %v5586 = vadd.f32 0.0, %v5585
      %v5587 = vpop.f32.mrb[0].mxu0
      %5588 = vmatprep.mubr.f32.mxu0 0.0
      %5589 = vmatmul.mubr.f32.gmra.mrb[0].mxu0 %v5493
      %v5590 = vpop.f32.mrb[0].mxu0
      %v5591 = vadd.f32 0.0, %v5590
      %v5592 = vpop.f32.mrb[0].mxu0
      %5593 = vmatprep.mubr.f32.mxu0 0.0
      %5594 = vmatmul.mubr.f32.gmra.mrb[0].mxu0 %v5496
      %v5595 = vpop.f32.mrb[0].mxu0
      %v5596 = vadd.f32 0.0, %v5595
      %v5597 = vpop.f32.mrb[0].mxu0
      %5598 = vmatprep.mubr.f32.mxu0 0.0
      %5599 = vmatmul.mubr.f32.gmra.mrb[0].mxu0 %v5499
      %v5600 = vpop.f32.mrb[0].mxu0
      %v5601 = vadd.f32 0.0, %v5600
      %v5602 = vpop.f32.mrb[0].mxu0
      %5603 = vmatprep.mubr.f32.mxu0 0.0
      %5604 = vmatmul.mubr.f32.gmra.mrb[0].mxu0 %v5502
      %v5605 = vpop.f32.mrb[0].mxu0
      %v5606 = vadd.f32 0.0, %v5605
      %v5607 = vpop.f32.mrb[0].mxu0
      %5608 = vdwg.mxu0
      %v5609 = vadd.f32 %v5417, %v5571
      %v5610 = vadd.f32 %v5422, %v5576
      %v5611 = vadd.f32 %v5427, %v5581
      %v5612 = vadd.f32 %v5432, %v5586
      %v5613 = vadd.f32 %v5437, %v5591
      %v5614 = vadd.f32 %v5442, %v5596
      %v5615 = vadd.f32 %v5447, %v5601
      %v5616 = vadd.f32 %v5452, %v5606
      %v5617 = vld [vmem:[#allocation3 + $0xf] sm:$0xff]
      %v5618 = vld [vmem:[#allocation3 + $0x17] sm:$0xff]
      %v5619 = vld [vmem:[#allocation3 + $0x1f] sm:$0xff]
      %v5620 = vld [vmem:[#allocation3 + $0x27] sm:$0xff]
      %v5621 = vld [vmem:[#allocation3 + $0x2f] sm:$0xff]
      %v5622 = vld [vmem:[#allocation3 + $0x37] sm:$0xff]
      %v5623 = vld [vmem:[#allocation3 + $0x3f] sm:$0xff]
      %v5624 = vld [vmem:[#allocation3 + $0x47] sm:$0xff]
      %v5625 = vsel %vm5140, %v5617, 0.0
      %v5626 = vsel %vm5141, %v5618, 0.0
      %v5627 = vsel %vm5142, %v5619, 0.0
      %v5628 = vsel %vm5143, %v5620, 0.0
      %v5629 = vsel %vm5144, %v5621, 0.0
      %v5630 = vsel %vm5145, %v5622, 0.0
      %v5631 = vsel %vm5146, %v5623, 0.0
      %v5632 = vsel %vm5147, %v5624, 0.0
      %s5633 = scalar_lea.vmem %s5, 192
      %v5634 = vld [vmem:[%s5633] sm:$0xff]
      %v5635 = vld [vmem:[%s5633 + $0x8] sm:$0xff]
      %v5636 = vld [vmem:[%s5633 + $0x10] sm:$0xff]
      %v5637 = vld [vmem:[%s5633 + $0x18] sm:$0xff]
      %v5638 = vld [vmem:[%s5633 + $0x20] sm:$0xff]
      %v5639 = vld [vmem:[%s5633 + $0x28] sm:$0xff]
      %v5640 = vld [vmem:[%s5633 + $0x30] sm:$0xff]
      %v5641 = vld [vmem:[%s5633 + $0x38] sm:$0xff]
      %v5643 = vsel %vm5119, %v5625, 0
      %v5646 = vsel %vm5119, %v5626, 0
      %v5649 = vsel %vm5119, %v5627, 0
      %v5652 = vsel %vm5119, %v5628, 0
      %v5655 = vsel %vm5119, %v5629, 0
      %v5658 = vsel %vm5119, %v5630, 0
      %v5661 = vsel %vm5119, %v5631, 0
      %v5664 = vsel %vm5119, %v5632, 0
      %5666 = vmatprep.subr.mxu0 0.0
      %5667 = vmatpush1.msra.mxu0 %v5634
      %5668 = vmatprep.subr.mxu0 0.0
      %5669 = vmatpush1.msra.mxu0 %v5635
      %5670 = vmatprep.subr.mxu0 0.0
      %5671 = vmatpush1.msra.mxu0 %v5636
      %5672 = vmatprep.subr.mxu0 0.0
      %5673 = vmatpush1.msra.mxu0 %v5637
      %5674 = vmatprep.subr.mxu0 0.0
      %5675 = vmatpush1.msra.mxu0 %v5638
      %5676 = vmatprep.subr.mxu0 0.0
      %5677 = vmatpush1.msra.mxu0 %v5639
      %5678 = vmatprep.subr.mxu0 0.0
      %5679 = vmatpush1.msra.mxu0 %v5640
      %5680 = vmatprep.subr.mxu0 0.0
      %5681 = vmatpush1.msra.mxu0 %v5641
      %5682 = vmatprep.subr.mxu0 0.0
      %5683 = vmatpush1.msra.mxu0 0.0
      %5684 = vmatprep.subr.mxu0 0.0
      %5685 = vmatpush1.msra.mxu0 0.0
      %5686 = vmatprep.subr.mxu0 0.0
      %5687 = vmatpush1.msra.mxu0 0.0
      %5688 = vmatprep.subr.mxu0 0.0
      %5689 = vmatpush1.msra.mxu0 0.0
      %5690 = vmatprep.subr.mxu0 0.0
      %5691 = vmatpush1.msra.mxu0 0.0
      %5692 = vmatprep.subr.mxu0 0.0
      %5693 = vmatpush1.msra.mxu0 0.0
      %5694 = vmatprep.subr.mxu0 0.0
      %5695 = vmatpush1.msra.mxu0 0.0
      %5696 = vmatprep.subr.mxu0 0.0
      %5697 = vmatpush1.msra.mxu0 0.0
      %5698 = vmatprep.subr.mxu0 0.0
      %5699 = vmatpush1.msra.mxu0 0.0
      %5700 = vmatprep.subr.mxu0 0.0
      %5701 = vmatpush1.msra.mxu0 0.0
      %5702 = vmatprep.subr.mxu0 0.0
      %5703 = vmatpush1.msra.mxu0 0.0
      %5704 = vmatprep.subr.mxu0 0.0
      %5705 = vmatpush1.msra.mxu0 0.0
      %5706 = vmatprep.subr.mxu0 0.0
      %5707 = vmatpush1.msra.mxu0 0.0
      %5708 = vmatprep.subr.mxu0 0.0
      %5709 = vmatpush1.msra.mxu0 0.0
      %5710 = vmatprep.subr.mxu0 0.0
      %5711 = vmatpush1.msra.mxu0 0.0
      %5712 = vmatprep.subr.mxu0 0.0
      %5713 = vmatpush1.msra.mxu0 0.0
      %5714 = vmatprep.subr.mxu0 0.0
      %5715 = vmatpush1.msra.mxu0 0.0
      %5716 = vmatprep.subr.mxu0 0.0
      %5717 = vmatpush1.msra.mxu0 0.0
      %5718 = vmatprep.subr.mxu0 0.0
      %5719 = vmatpush1.msra.mxu0 0.0
      %5720 = vmatprep.subr.mxu0 0.0
      %5721 = vmatpush1.msra.mxu0 0.0
      %5722 = vmatprep.subr.mxu0 0.0
      %5723 = vmatpush1.msra.mxu0 0.0
      %5724 = vmatprep.subr.mxu0 0.0
      %5725 = vmatpush1.msra.mxu0 0.0
      %5726 = vmatprep.subr.mxu0 0.0
      %5727 = vmatpush1.msra.mxu0 0.0
      %5728 = vmatprep.subr.mxu0 0.0
      %5729 = vmatpush1.msra.mxu0 0.0
      %5730 = vmatprep.mubr.f32.mxu0 0.0
      %5731 = vmatmul.mubr.f32.gmra.mrb[0].mxu0 %v5643
      %v5732 = vpop.f32.mrb[0].mxu0
      %v5733 = vadd.f32 0.0, %v5732
      %v5734 = vpop.f32.mrb[0].mxu0
      %5735 = vmatprep.mubr.f32.mxu0 0.0
      %5736 = vmatmul.mubr.f32.gmra.mrb[0].mxu0 %v5646
      %v5737 = vpop.f32.mrb[0].mxu0
      %v5738 = vadd.f32 0.0, %v5737
      %v5739 = vpop.f32.mrb[0].mxu0
      %5740 = vmatprep.mubr.f32.mxu0 0.0
      %5741 = vmatmul.mubr.f32.gmra.mrb[0].mxu0 %v5649
      %v5742 = vpop.f32.mrb[0].mxu0
      %v5743 = vadd.f32 0.0, %v5742
      %v5744 = vpop.f32.mrb[0].mxu0
      %5745 = vmatprep.mubr.f32.mxu0 0.0
      %5746 = vmatmul.mubr.f32.gmra.mrb[0].mxu0 %v5652
      %v5747 = vpop.f32.mrb[0].mxu0
      %v5748 = vadd.f32 0.0, %v5747
      %v5749 = vpop.f32.mrb[0].mxu0
      %5750 = vmatprep.mubr.f32.mxu0 0.0
      %5751 = vmatmul.mubr.f32.gmra.mrb[0].mxu0 %v5655
      %v5752 = vpop.f32.mrb[0].mxu0
      %v5753 = vadd.f32 0.0, %v5752
      %v5754 = vpop.f32.mrb[0].mxu0
      %5755 = vmatprep.mubr.f32.mxu0 0.0
      %5756 = vmatmul.mubr.f32.gmra.mrb[0].mxu0 %v5658
      %v5757 = vpop.f32.mrb[0].mxu0
      %v5758 = vadd.f32 0.0, %v5757
      %v5759 = vpop.f32.mrb[0].mxu0
      %5760 = vmatprep.mubr.f32.mxu0 0.0
      %5761 = vmatmul.mubr.f32.gmra.mrb[0].mxu0 %v5661
      %v5762 = vpop.f32.mrb[0].mxu0
      %v5763 = vadd.f32 0.0, %v5762
      %v5764 = vpop.f32.mrb[0].mxu0
      %5765 = vmatprep.mubr.f32.mxu0 0.0
      %5766 = vmatmul.mubr.f32.gmra.mrb[0].mxu0 %v5664
      %v5767 = vpop.f32.mrb[0].mxu0
      %v5768 = vadd.f32 0.0, %v5767
      %v5769 = vpop.f32.mrb[0].mxu0
      %5770 = vdwg.mxu0
      %v5771 = vadd.f32 %v5609, %v5733
      %v5772 = vadd.f32 %v5610, %v5738
      %v5773 = vadd.f32 %v5611, %v5743
      %v5774 = vadd.f32 %v5612, %v5748
      %v5775 = vadd.f32 %v5613, %v5753
      %v5776 = vadd.f32 %v5614, %v5758
      %v5777 = vadd.f32 %v5615, %v5763
      %v5778 = vadd.f32 %v5616, %v5768
      %v5779 = vld [vmem:[#allocation3 + $0x10] sm:$0xff]
      %v5780 = vld [vmem:[#allocation3 + $0x18] sm:$0xff]
      %v5781 = vld [vmem:[#allocation3 + $0x20] sm:$0xff]
      %v5782 = vld [vmem:[#allocation3 + $0x28] sm:$0xff]
      %v5783 = vld [vmem:[#allocation3 + $0x30] sm:$0xff]
      %v5784 = vld [vmem:[#allocation3 + $0x38] sm:$0xff]
      %v5785 = vld [vmem:[#allocation3 + $0x40] sm:$0xff]
      %v5786 = vld [vmem:[#allocation3 + $0x48] sm:$0xff]
      %s5787 = scalar_lea.vmem %s5, 256
      %v5788 = vld [vmem:[%s5787] sm:$0xff]
      %v5789 = vld [vmem:[%s5787 + $0x8] sm:$0xff]
      %v5790 = vld [vmem:[%s5787 + $0x10] sm:$0xff]
      %v5791 = vld [vmem:[%s5787 + $0x18] sm:$0xff]
      %v5792 = vld [vmem:[%s5787 + $0x20] sm:$0xff]
      %v5793 = vld [vmem:[%s5787 + $0x28] sm:$0xff]
      %v5794 = vld [vmem:[%s5787 + $0x30] sm:$0xff]
      %v5795 = vld [vmem:[%s5787 + $0x38] sm:$0xff]
      %v5797 = vsel %vm5119, %v5779, 0
      %v5800 = vsel %vm5119, %v5780, 0
      %v5803 = vsel %vm5119, %v5781, 0
      %v5806 = vsel %vm5119, %v5782, 0
      %v5809 = vsel %vm5119, %v5783, 0
      %v5812 = vsel %vm5119, %v5784, 0
      %v5815 = vsel %vm5119, %v5785, 0
      %v5818 = vsel %vm5119, %v5786, 0
      %5820 = vmatprep.subr.mxu0 0.0
      %5821 = vmatpush1.msra.mxu0 %v5788
      %5822 = vmatprep.subr.mxu0 0.0
      %5823 = vmatpush1.msra.mxu0 %v5789
      %5824 = vmatprep.subr.mxu0 0.0
      %5825 = vmatpush1.msra.mxu0 %v5790
      %5826 = vmatprep.subr.mxu0 0.0
      %5827 = vmatpush1.msra.mxu0 %v5791
      %5828 = vmatprep.subr.mxu0 0.0
      %5829 = vmatpush1.msra.mxu0 %v5792
      %5830 = vmatprep.subr.mxu0 0.0
      %5831 = vmatpush1.msra.mxu0 %v5793
      %5832 = vmatprep.subr.mxu0 0.0
      %5833 = vmatpush1.msra.mxu0 %v5794
      %5834 = vmatprep.subr.mxu0 0.0
      %5835 = vmatpush1.msra.mxu0 %v5795
      %5836 = vmatprep.subr.mxu0 0.0
      %5837 = vmatpush1.msra.mxu0 0.0
      %5838 = vmatprep.subr.mxu0 0.0
      %5839 = vmatpush1.msra.mxu0 0.0
      %5840 = vmatprep.subr.mxu0 0.0
      %5841 = vmatpush1.msra.mxu0 0.0
      %5842 = vmatprep.subr.mxu0 0.0
      %5843 = vmatpush1.msra.mxu0 0.0
      %5844 = vmatprep.subr.mxu0 0.0
      %5845 = vmatpush1.msra.mxu0 0.0
      %5846 = vmatprep.subr.mxu0 0.0
      %5847 = vmatpush1.msra.mxu0 0.0
      %5848 = vmatprep.subr.mxu0 0.0
      %5849 = vmatpush1.msra.mxu0 0.0
      %5850 = vmatprep.subr.mxu0 0.0
      %5851 = vmatpush1.msra.mxu0 0.0
      %5852 = vmatprep.subr.mxu0 0.0
      %5853 = vmatpush1.msra.mxu0 0.0
      %5854 = vmatprep.subr.mxu0 0.0
      %5855 = vmatpush1.msra.mxu0 0.0
      %5856 = vmatprep.subr.mxu0 0.0
      %5857 = vmatpush1.msra.mxu0 0.0
      %5858 = vmatprep.subr.mxu0 0.0
      %5859 = vmatpush1.msra.mxu0 0.0
      %5860 = vmatprep.subr.mxu0 0.0
      %5861 = vmatpush1.msra.mxu0 0.0
      %5862 = vmatprep.subr.mxu0 0.0
      %5863 = vmatpush1.msra.mxu0 0.0
      %5864 = vmatprep.subr.mxu0 0.0
      %5865 = vmatpush1.msra.mxu0 0.0
      %5866 = vmatprep.subr.mxu0 0.0
      %5867 = vmatpush1.msra.mxu0 0.0
      %5868 = vmatprep.subr.mxu0 0.0
      %5869 = vmatpush1.msra.mxu0 0.0
      %5870 = vmatprep.subr.mxu0 0.0
      %5871 = vmatpush1.msra.mxu0 0.0
      %5872 = vmatprep.subr.mxu0 0.0
      %5873 = vmatpush1.msra.mxu0 0.0
      %5874 = vmatprep.subr.mxu0 0.0
      %5875 = vmatpush1.msra.mxu0 0.0
      %5876 = vmatprep.subr.mxu0 0.0
      %5877 = vmatpush1.msra.mxu0 0.0
      %5878 = vmatprep.subr.mxu0 0.0
      %5879 = vmatpush1.msra.mxu0 0.0
      %5880 = vmatprep.subr.mxu0 0.0
      %5881 = vmatpush1.msra.mxu0 0.0
      %5882 = vmatprep.subr.mxu0 0.0
      %5883 = vmatpush1.msra.mxu0 0.0
      %5884 = vmatprep.mubr.f32.mxu0 0.0
      %5885 = vmatmul.mubr.f32.gmra.mrb[0].mxu0 %v5797
      %v5886 = vpop.f32.mrb[0].mxu0
      %v5887 = vadd.f32 0.0, %v5886
      %v5888 = vpop.f32.mrb[0].mxu0
      %5889 = vmatprep.mubr.f32.mxu0 0.0
      %5890 = vmatmul.mubr.f32.gmra.mrb[0].mxu0 %v5800
      %v5891 = vpop.f32.mrb[0].mxu0
      %v5892 = vadd.f32 0.0, %v5891
      %v5893 = vpop.f32.mrb[0].mxu0
      %5894 = vmatprep.mubr.f32.mxu0 0.0
      %5895 = vmatmul.mubr.f32.gmra.mrb[0].mxu0 %v5803
      %v5896 = vpop.f32.mrb[0].mxu0
      %v5897 = vadd.f32 0.0, %v5896
      %v5898 = vpop.f32.mrb[0].mxu0
      %5899 = vmatprep.mubr.f32.mxu0 0.0
      %5900 = vmatmul.mubr.f32.gmra.mrb[0].mxu0 %v5806
      %v5901 = vpop.f32.mrb[0].mxu0
      %v5902 = vadd.f32 0.0, %v5901
      %v5903 = vpop.f32.mrb[0].mxu0
      %5904 = vmatprep.mubr.f32.mxu0 0.0
      %5905 = vmatmul.mubr.f32.gmra.mrb[0].mxu0 %v5809
      %v5906 = vpop.f32.mrb[0].mxu0
      %v5907 = vadd.f32 0.0, %v5906
      %v5908 = vpop.f32.mrb[0].mxu0
      %5909 = vmatprep.mubr.f32.mxu0 0.0
      %5910 = vmatmul.mubr.f32.gmra.mrb[0].mxu0 %v5812
      %v5911 = vpop.f32.mrb[0].mxu0
      %v5912 = vadd.f32 0.0, %v5911
      %v5913 = vpop.f32.mrb[0].mxu0
      %5914 = vmatprep.mubr.f32.mxu0 0.0
      %5915 = vmatmul.mubr.f32.gmra.mrb[0].mxu0 %v5815
      %v5916 = vpop.f32.mrb[0].mxu0
      %v5917 = vadd.f32 0.0, %v5916
      %v5918 = vpop.f32.mrb[0].mxu0
      %5919 = vmatprep.mubr.f32.mxu0 0.0
      %5920 = vmatmul.mubr.f32.gmra.mrb[0].mxu0 %v5818
      %v5921 = vpop.f32.mrb[0].mxu0
      %v5922 = vadd.f32 0.0, %v5921
      %v5923 = vpop.f32.mrb[0].mxu0
      %5924 = vdwg.mxu0
      %v5925 = vadd.f32 %v5771, %v5887
      %v5926 = vadd.f32 %v5772, %v5892
      %v5927 = vadd.f32 %v5773, %v5897
      %v5928 = vadd.f32 %v5774, %v5902
      %v5929 = vadd.f32 %v5775, %v5907
      %v5930 = vadd.f32 %v5776, %v5912
      %v5931 = vadd.f32 %v5777, %v5917
      %v5932 = vadd.f32 %v5778, %v5922
      %v5933 = vld [vmem:[#allocation3 + $0x11] sm:$0xff]
      %v5934 = vld [vmem:[#allocation3 + $0x19] sm:$0xff]
      %v5935 = vld [vmem:[#allocation3 + $0x21] sm:$0xff]
      %v5936 = vld [vmem:[#allocation3 + $0x29] sm:$0xff]
      %v5937 = vld [vmem:[#allocation3 + $0x31] sm:$0xff]
      %v5938 = vld [vmem:[#allocation3 + $0x39] sm:$0xff]
      %v5939 = vld [vmem:[#allocation3 + $0x41] sm:$0xff]
      %v5940 = vld [vmem:[#allocation3 + $0x49] sm:$0xff]
      %v5941 = vsel %vm5148, %v5933, 0.0
      %v5942 = vsel %vm5149, %v5934, 0.0
      %v5943 = vsel %vm5150, %v5935, 0.0
      %v5944 = vsel %vm5151, %v5936, 0.0
      %v5945 = vsel %vm5152, %v5937, 0.0
      %v5946 = vsel %vm5153, %v5938, 0.0
      %v5947 = vsel %vm5154, %v5939, 0.0
      %v5948 = vsel %vm5155, %v5940, 0.0
      %s5949 = scalar_lea.vmem %s5, 320
      %v5950 = vld [vmem:[%s5949] sm:$0xff]
      %v5951 = vld [vmem:[%s5949 + $0x8] sm:$0xff]
      %v5952 = vld [vmem:[%s5949 + $0x10] sm:$0xff]
      %v5953 = vld [vmem:[%s5949 + $0x18] sm:$0xff]
      %v5954 = vld [vmem:[%s5949 + $0x20] sm:$0xff]
      %v5955 = vld [vmem:[%s5949 + $0x28] sm:$0xff]
      %v5956 = vld [vmem:[%s5949 + $0x30] sm:$0xff]
      %v5957 = vld [vmem:[%s5949 + $0x38] sm:$0xff]
      %v5959 = vsel %vm5119, %v5941, 0
      %v5962 = vsel %vm5119, %v5942, 0
      %v5965 = vsel %vm5119, %v5943, 0
      %v5968 = vsel %vm5119, %v5944, 0
      %v5971 = vsel %vm5119, %v5945, 0
      %v5974 = vsel %vm5119, %v5946, 0
      %v5977 = vsel %vm5119, %v5947, 0
      %v5980 = vsel %vm5119, %v5948, 0
      %5982 = vmatprep.subr.mxu0 0.0
      %5983 = vmatpush1.msra.mxu0 %v5950
      %5984 = vmatprep.subr.mxu0 0.0
      %5985 = vmatpush1.msra.mxu0 %v5951
      %5986 = vmatprep.subr.mxu0 0.0
      %5987 = vmatpush1.msra.mxu0 %v5952
      %5988 = vmatprep.subr.mxu0 0.0
      %5989 = vmatpush1.msra.mxu0 %v5953
      %5990 = vmatprep.subr.mxu0 0.0
      %5991 = vmatpush1.msra.mxu0 %v5954
      %5992 = vmatprep.subr.mxu0 0.0
      %5993 = vmatpush1.msra.mxu0 %v5955
      %5994 = vmatprep.subr.mxu0 0.0
      %5995 = vmatpush1.msra.mxu0 %v5956
      %5996 = vmatprep.subr.mxu0 0.0
      %5997 = vmatpush1.msra.mxu0 %v5957
      %5998 = vmatprep.subr.mxu0 0.0
      %5999 = vmatpush1.msra.mxu0 0.0
      %6000 = vmatprep.subr.mxu0 0.0
      %6001 = vmatpush1.msra.mxu0 0.0
      %6002 = vmatprep.subr.mxu0 0.0
      %6003 = vmatpush1.msra.mxu0 0.0
      %6004 = vmatprep.subr.mxu0 0.0
      %6005 = vmatpush1.msra.mxu0 0.0
      %6006 = vmatprep.subr.mxu0 0.0
      %6007 = vmatpush1.msra.mxu0 0.0
      %6008 = vmatprep.subr.mxu0 0.0
      %6009 = vmatpush1.msra.mxu0 0.0
      %6010 = vmatprep.subr.mxu0 0.0
      %6011 = vmatpush1.msra.mxu0 0.0
      %6012 = vmatprep.subr.mxu0 0.0
      %6013 = vmatpush1.msra.mxu0 0.0
      %6014 = vmatprep.subr.mxu0 0.0
      %6015 = vmatpush1.msra.mxu0 0.0
      %6016 = vmatprep.subr.mxu0 0.0
      %6017 = vmatpush1.msra.mxu0 0.0
      %6018 = vmatprep.subr.mxu0 0.0
      %6019 = vmatpush1.msra.mxu0 0.0
      %6020 = vmatprep.subr.mxu0 0.0
      %6021 = vmatpush1.msra.mxu0 0.0
      %6022 = vmatprep.subr.mxu0 0.0
      %6023 = vmatpush1.msra.mxu0 0.0
      %6024 = vmatprep.subr.mxu0 0.0
      %6025 = vmatpush1.msra.mxu0 0.0
      %6026 = vmatprep.subr.mxu0 0.0
      %6027 = vmatpush1.msra.mxu0 0.0
      %6028 = vmatprep.subr.mxu0 0.0
      %6029 = vmatpush1.msra.mxu0 0.0
      %6030 = vmatprep.subr.mxu0 0.0
      %6031 = vmatpush1.msra.mxu0 0.0
      %6032 = vmatprep.subr.mxu0 0.0
      %6033 = vmatpush1.msra.mxu0 0.0
      %6034 = vmatprep.subr.mxu0 0.0
      %6035 = vmatpush1.msra.mxu0 0.0
      %6036 = vmatprep.subr.mxu0 0.0
      %6037 = vmatpush1.msra.mxu0 0.0
      %6038 = vmatprep.subr.mxu0 0.0
      %6039 = vmatpush1.msra.mxu0 0.0
      %6040 = vmatprep.subr.mxu0 0.0
      %6041 = vmatpush1.msra.mxu0 0.0
      %6042 = vmatprep.subr.mxu0 0.0
      %6043 = vmatpush1.msra.mxu0 0.0
      %6044 = vmatprep.subr.mxu0 0.0
      %6045 = vmatpush1.msra.mxu0 0.0
      %6046 = vmatprep.mubr.f32.mxu0 0.0
      %6047 = vmatmul.mubr.f32.gmra.mrb[0].mxu0 %v5959
      %v6048 = vpop.f32.mrb[0].mxu0
      %v6049 = vadd.f32 0.0, %v6048
      %v6050 = vpop.f32.mrb[0].mxu0
      %6051 = vmatprep.mubr.f32.mxu0 0.0
      %6052 = vmatmul.mubr.f32.gmra.mrb[0].mxu0 %v5962
      %v6053 = vpop.f32.mrb[0].mxu0
      %v6054 = vadd.f32 0.0, %v6053
      %v6055 = vpop.f32.mrb[0].mxu0
      %6056 = vmatprep.mubr.f32.mxu0 0.0
      %6057 = vmatmul.mubr.f32.gmra.mrb[0].mxu0 %v5965
      %v6058 = vpop.f32.mrb[0].mxu0
      %v6059 = vadd.f32 0.0, %v6058
      %v6060 = vpop.f32.mrb[0].mxu0
      %6061 = vmatprep.mubr.f32.mxu0 0.0
      %6062 = vmatmul.mubr.f32.gmra.mrb[0].mxu0 %v5968
      %v6063 = vpop.f32.mrb[0].mxu0
      %v6064 = vadd.f32 0.0, %v6063
      %v6065 = vpop.f32.mrb[0].mxu0
      %6066 = vmatprep.mubr.f32.mxu0 0.0
      %6067 = vmatmul.mubr.f32.gmra.mrb[0].mxu0 %v5971
      %v6068 = vpop.f32.mrb[0].mxu0
      %v6069 = vadd.f32 0.0, %v6068
      %v6070 = vpop.f32.mrb[0].mxu0
      %6071 = vmatprep.mubr.f32.mxu0 0.0
      %6072 = vmatmul.mubr.f32.gmra.mrb[0].mxu0 %v5974
      %v6073 = vpop.f32.mrb[0].mxu0
      %v6074 = vadd.f32 0.0, %v6073
      %v6075 = vpop.f32.mrb[0].mxu0
      %6076 = vmatprep.mubr.f32.mxu0 0.0
      %6077 = vmatmul.mubr.f32.gmra.mrb[0].mxu0 %v5977
      %v6078 = vpop.f32.mrb[0].mxu0
      %v6079 = vadd.f32 0.0, %v6078
      %v6080 = vpop.f32.mrb[0].mxu0
      %6081 = vmatprep.mubr.f32.mxu0 0.0
      %6082 = vmatmul.mubr.f32.gmra.mrb[0].mxu0 %v5980
      %v6083 = vpop.f32.mrb[0].mxu0
      %v6084 = vadd.f32 0.0, %v6083
      %v6085 = vpop.f32.mrb[0].mxu0
      %6086 = vdwg.mxu0
      %v6087 = vadd.f32 %v5925, %v6049
      %v6088 = vadd.f32 %v5926, %v6054
      %v6089 = vadd.f32 %v5927, %v6059
      %v6090 = vadd.f32 %v5928, %v6064
      %v6091 = vadd.f32 %v5929, %v6069
      %v6092 = vadd.f32 %v5930, %v6074
      %v6093 = vadd.f32 %v5931, %v6079
      %v6094 = vadd.f32 %v5932, %v6084
      %v6095 = vld [vmem:[#allocation3 + $0x17] sm:$0xff]
      %v6096 = vld [vmem:[#allocation3 + $0x1f] sm:$0xff]
      %v6097 = vld [vmem:[#allocation3 + $0x27] sm:$0xff]
      %v6098 = vld [vmem:[#allocation3 + $0x2f] sm:$0xff]
      %v6099 = vld [vmem:[#allocation3 + $0x37] sm:$0xff]
      %v6100 = vld [vmem:[#allocation3 + $0x3f] sm:$0xff]
      %v6101 = vld [vmem:[#allocation3 + $0x47] sm:$0xff]
      %v6102 = vld [vmem:[#allocation3 + $0x4f] sm:$0xff]
      %v6103 = vsel %vm5140, %v6095, 0.0
      %v6104 = vsel %vm5141, %v6096, 0.0
      %v6105 = vsel %vm5142, %v6097, 0.0
      %v6106 = vsel %vm5143, %v6098, 0.0
      %v6107 = vsel %vm5144, %v6099, 0.0
      %v6108 = vsel %vm5145, %v6100, 0.0
      %v6109 = vsel %vm5146, %v6101, 0.0
      %v6110 = vsel %vm5147, %v6102, 0.0
      %s6111 = scalar_lea.vmem %s5, 384
      %v6112 = vld [vmem:[%s6111] sm:$0xff]
      %v6113 = vld [vmem:[%s6111 + $0x8] sm:$0xff]
      %v6114 = vld [vmem:[%s6111 + $0x10] sm:$0xff]
      %v6115 = vld [vmem:[%s6111 + $0x18] sm:$0xff]
      %v6116 = vld [vmem:[%s6111 + $0x20] sm:$0xff]
      %v6117 = vld [vmem:[%s6111 + $0x28] sm:$0xff]
      %v6118 = vld [vmem:[%s6111 + $0x30] sm:$0xff]
      %v6119 = vld [vmem:[%s6111 + $0x38] sm:$0xff]
      %v6121 = vsel %vm5119, %v6103, 0
      %v6124 = vsel %vm5119, %v6104, 0
      %v6127 = vsel %vm5119, %v6105, 0
      %v6130 = vsel %vm5119, %v6106, 0
      %v6133 = vsel %vm5119, %v6107, 0
      %v6136 = vsel %vm5119, %v6108, 0
      %v6139 = vsel %vm5119, %v6109, 0
      %v6142 = vsel %vm5119, %v6110, 0
      %6144 = vmatprep.subr.mxu0 0.0
      %6145 = vmatpush1.msra.mxu0 %v6112
      %6146 = vmatprep.subr.mxu0 0.0
      %6147 = vmatpush1.msra.mxu0 %v6113
      %6148 = vmatprep.subr.mxu0 0.0
      %6149 = vmatpush1.msra.mxu0 %v6114
      %6150 = vmatprep.subr.mxu0 0.0
      %6151 = vmatpush1.msra.mxu0 %v6115
      %6152 = vmatprep.subr.mxu0 0.0
      %6153 = vmatpush1.msra.mxu0 %v6116
      %6154 = vmatprep.subr.mxu0 0.0
      %6155 = vmatpush1.msra.mxu0 %v6117
      %6156 = vmatprep.subr.mxu0 0.0
      %6157 = vmatpush1.msra.mxu0 %v6118
      %6158 = vmatprep.subr.mxu0 0.0
      %6159 = vmatpush1.msra.mxu0 %v6119
      %6160 = vmatprep.subr.mxu0 0.0
      %6161 = vmatpush1.msra.mxu0 0.0
      %6162 = vmatprep.subr.mxu0 0.0
      %6163 = vmatpush1.msra.mxu0 0.0
      %6164 = vmatprep.subr.mxu0 0.0
      %6165 = vmatpush1.msra.mxu0 0.0
      %6166 = vmatprep.subr.mxu0 0.0
      %6167 = vmatpush1.msra.mxu0 0.0
      %6168 = vmatprep.subr.mxu0 0.0
      %6169 = vmatpush1.msra.mxu0 0.0
      %6170 = vmatprep.subr.mxu0 0.0
      %6171 = vmatpush1.msra.mxu0 0.0
      %6172 = vmatprep.subr.mxu0 0.0
      %6173 = vmatpush1.msra.mxu0 0.0
      %6174 = vmatprep.subr.mxu0 0.0
      %6175 = vmatpush1.msra.mxu0 0.0
      %6176 = vmatprep.subr.mxu0 0.0
      %6177 = vmatpush1.msra.mxu0 0.0
      %6178 = vmatprep.subr.mxu0 0.0
      %6179 = vmatpush1.msra.mxu0 0.0
      %6180 = vmatprep.subr.mxu0 0.0
      %6181 = vmatpush1.msra.mxu0 0.0
      %6182 = vmatprep.subr.mxu0 0.0
      %6183 = vmatpush1.msra.mxu0 0.0
      %6184 = vmatprep.subr.mxu0 0.0
      %6185 = vmatpush1.msra.mxu0 0.0
      %6186 = vmatprep.subr.mxu0 0.0
      %6187 = vmatpush1.msra.mxu0 0.0
      %6188 = vmatprep.subr.mxu0 0.0
      %6189 = vmatpush1.msra.mxu0 0.0
      %6190 = vmatprep.subr.mxu0 0.0
      %6191 = vmatpush1.msra.mxu0 0.0
      %6192 = vmatprep.subr.mxu0 0.0
      %6193 = vmatpush1.msra.mxu0 0.0
      %6194 = vmatprep.subr.mxu0 0.0
      %6195 = vmatpush1.msra.mxu0 0.0
      %6196 = vmatprep.subr.mxu0 0.0
      %6197 = vmatpush1.msra.mxu0 0.0
      %6198 = vmatprep.subr.mxu0 0.0
      %6199 = vmatpush1.msra.mxu0 0.0
      %6200 = vmatprep.subr.mxu0 0.0
      %6201 = vmatpush1.msra.mxu0 0.0
      %6202 = vmatprep.subr.mxu0 0.0
      %6203 = vmatpush1.msra.mxu0 0.0
      %6204 = vmatprep.subr.mxu0 0.0
      %6205 = vmatpush1.msra.mxu0 0.0
      %6206 = vmatprep.subr.mxu0 0.0
      %6207 = vmatpush1.msra.mxu0 0.0
      %6208 = vmatprep.mubr.f32.mxu0 0.0
      %6209 = vmatmul.mubr.f32.gmra.mrb[0].mxu0 %v6121
      %v6210 = vpop.f32.mrb[0].mxu0
      %v6211 = vadd.f32 0.0, %v6210
      %v6212 = vpop.f32.mrb[0].mxu0
      %6213 = vmatprep.mubr.f32.mxu0 0.0
      %6214 = vmatmul.mubr.f32.gmra.mrb[0].mxu0 %v6124
      %v6215 = vpop.f32.mrb[0].mxu0
      %v6216 = vadd.f32 0.0, %v6215
      %v6217 = vpop.f32.mrb[0].mxu0
      %6218 = vmatprep.mubr.f32.mxu0 0.0
      %6219 = vmatmul.mubr.f32.gmra.mrb[0].mxu0 %v6127
      %v6220 = vpop.f32.mrb[0].mxu0
      %v6221 = vadd.f32 0.0, %v6220
      %v6222 = vpop.f32.mrb[0].mxu0
      %6223 = vmatprep.mubr.f32.mxu0 0.0
      %6224 = vmatmul.mubr.f32.gmra.mrb[0].mxu0 %v6130
      %v6225 = vpop.f32.mrb[0].mxu0
      %v6226 = vadd.f32 0.0, %v6225
      %v6227 = vpop.f32.mrb[0].mxu0
      %6228 = vmatprep.mubr.f32.mxu0 0.0
      %6229 = vmatmul.mubr.f32.gmra.mrb[0].mxu0 %v6133
      %v6230 = vpop.f32.mrb[0].mxu0
      %v6231 = vadd.f32 0.0, %v6230
      %v6232 = vpop.f32.mrb[0].mxu0
      %6233 = vmatprep.mubr.f32.mxu0 0.0
      %6234 = vmatmul.mubr.f32.gmra.mrb[0].mxu0 %v6136
      %v6235 = vpop.f32.mrb[0].mxu0
      %v6236 = vadd.f32 0.0, %v6235
      %v6237 = vpop.f32.mrb[0].mxu0
      %6238 = vmatprep.mubr.f32.mxu0 0.0
      %6239 = vmatmul.mubr.f32.gmra.mrb[0].mxu0 %v6139
      %v6240 = vpop.f32.mrb[0].mxu0
      %v6241 = vadd.f32 0.0, %v6240
      %v6242 = vpop.f32.mrb[0].mxu0
      %6243 = vmatprep.mubr.f32.mxu0 0.0
      %6244 = vmatmul.mubr.f32.gmra.mrb[0].mxu0 %v6142
      %v6245 = vpop.f32.mrb[0].mxu0
      %v6246 = vadd.f32 0.0, %v6245
      %v6247 = vpop.f32.mrb[0].mxu0
      %6248 = vdwg.mxu0
      %v6249 = vadd.f32 %v6087, %v6211
      %v6250 = vadd.f32 %v6088, %v6216
      %v6251 = vadd.f32 %v6089, %v6221
      %v6252 = vadd.f32 %v6090, %v6226
      %v6253 = vadd.f32 %v6091, %v6231
      %v6254 = vadd.f32 %v6092, %v6236
      %v6255 = vadd.f32 %v6093, %v6241
      %v6256 = vadd.f32 %v6094, %v6246
      %v6257 = vld [vmem:[#allocation3 + $0x18] sm:$0xff]
      %v6258 = vld [vmem:[#allocation3 + $0x20] sm:$0xff]
      %v6259 = vld [vmem:[#allocation3 + $0x28] sm:$0xff]
      %v6260 = vld [vmem:[#allocation3 + $0x30] sm:$0xff]
      %v6261 = vld [vmem:[#allocation3 + $0x38] sm:$0xff]
      %v6262 = vld [vmem:[#allocation3 + $0x40] sm:$0xff]
      %v6263 = vld [vmem:[#allocation3 + $0x48] sm:$0xff]
      %v6264 = vld [vmem:[#allocation3 + $0x50] sm:$0xff]
      %s6265 = scalar_lea.vmem %s5, 448
      %v6266 = vld [vmem:[%s6265] sm:$0xff]
      %v6267 = vld [vmem:[%s6265 + $0x8] sm:$0xff]
      %v6268 = vld [vmem:[%s6265 + $0x10] sm:$0xff]
      %v6269 = vld [vmem:[%s6265 + $0x18] sm:$0xff]
      %v6270 = vld [vmem:[%s6265 + $0x20] sm:$0xff]
      %v6271 = vld [vmem:[%s6265 + $0x28] sm:$0xff]
      %v6272 = vld [vmem:[%s6265 + $0x30] sm:$0xff]
      %v6273 = vld [vmem:[%s6265 + $0x38] sm:$0xff]
      %v6275 = vsel %vm5119, %v6257, 0
      %v6278 = vsel %vm5119, %v6258, 0
      %v6281 = vsel %vm5119, %v6259, 0
      %v6284 = vsel %vm5119, %v6260, 0
      %v6287 = vsel %vm5119, %v6261, 0
      %v6290 = vsel %vm5119, %v6262, 0
      %v6293 = vsel %vm5119, %v6263, 0
      %v6296 = vsel %vm5119, %v6264, 0
      %6298 = vmatprep.subr.mxu0 0.0
      %6299 = vmatpush1.msra.mxu0 %v6266
      %6300 = vmatprep.subr.mxu0 0.0
      %6301 = vmatpush1.msra.mxu0 %v6267
      %6302 = vmatprep.subr.mxu0 0.0
      %6303 = vmatpush1.msra.mxu0 %v6268
      %6304 = vmatprep.subr.mxu0 0.0
      %6305 = vmatpush1.msra.mxu0 %v6269
      %6306 = vmatprep.subr.mxu0 0.0
      %6307 = vmatpush1.msra.mxu0 %v6270
      %6308 = vmatprep.subr.mxu0 0.0
      %6309 = vmatpush1.msra.mxu0 %v6271
      %6310 = vmatprep.subr.mxu0 0.0
      %6311 = vmatpush1.msra.mxu0 %v6272
      %6312 = vmatprep.subr.mxu0 0.0
      %6313 = vmatpush1.msra.mxu0 %v6273
      %6314 = vmatprep.subr.mxu0 0.0
      %6315 = vmatpush1.msra.mxu0 0.0
      %6316 = vmatprep.subr.mxu0 0.0
      %6317 = vmatpush1.msra.mxu0 0.0
      %6318 = vmatprep.subr.mxu0 0.0
      %6319 = vmatpush1.msra.mxu0 0.0
      %6320 = vmatprep.subr.mxu0 0.0
      %6321 = vmatpush1.msra.mxu0 0.0
      %6322 = vmatprep.subr.mxu0 0.0
      %6323 = vmatpush1.msra.mxu0 0.0
      %6324 = vmatprep.subr.mxu0 0.0
      %6325 = vmatpush1.msra.mxu0 0.0
      %6326 = vmatprep.subr.mxu0 0.0
      %6327 = vmatpush1.msra.mxu0 0.0
      %6328 = vmatprep.subr.mxu0 0.0
      %6329 = vmatpush1.msra.mxu0 0.0
      %6330 = vmatprep.subr.mxu0 0.0
      %6331 = vmatpush1.msra.mxu0 0.0
      %6332 = vmatprep.subr.mxu0 0.0
      %6333 = vmatpush1.msra.mxu0 0.0
      %6334 = vmatprep.subr.mxu0 0.0
      %6335 = vmatpush1.msra.mxu0 0.0
      %6336 = vmatprep.subr.mxu0 0.0
      %6337 = vmatpush1.msra.mxu0 0.0
      %6338 = vmatprep.subr.mxu0 0.0
      %6339 = vmatpush1.msra.mxu0 0.0
      %6340 = vmatprep.subr.mxu0 0.0
      %6341 = vmatpush1.msra.mxu0 0.0
      %6342 = vmatprep.subr.mxu0 0.0
      %6343 = vmatpush1.msra.mxu0 0.0
      %6344 = vmatprep.subr.mxu0 0.0
      %6345 = vmatpush1.msra.mxu0 0.0
      %6346 = vmatprep.subr.mxu0 0.0
      %6347 = vmatpush1.msra.mxu0 0.0
      %6348 = vmatprep.subr.mxu0 0.0
      %6349 = vmatpush1.msra.mxu0 0.0
      %6350 = vmatprep.subr.mxu0 0.0
      %6351 = vmatpush1.msra.mxu0 0.0
      %6352 = vmatprep.subr.mxu0 0.0
      %6353 = vmatpush1.msra.mxu0 0.0
      %6354 = vmatprep.subr.mxu0 0.0
      %6355 = vmatpush1.msra.mxu0 0.0
      %6356 = vmatprep.subr.mxu0 0.0
      %6357 = vmatpush1.msra.mxu0 0.0
      %6358 = vmatprep.subr.mxu0 0.0
      %6359 = vmatpush1.msra.mxu0 0.0
      %6360 = vmatprep.subr.mxu0 0.0
      %6361 = vmatpush1.msra.mxu0 0.0
      %6362 = vmatprep.mubr.f32.mxu0 0.0
      %6363 = vmatmul.mubr.f32.gmra.mrb[0].mxu0 %v6275
      %v6364 = vpop.f32.mrb[0].mxu0
      %v6365 = vadd.f32 0.0, %v6364
      %v6366 = vpop.f32.mrb[0].mxu0
      %6367 = vmatprep.mubr.f32.mxu0 0.0
      %6368 = vmatmul.mubr.f32.gmra.mrb[0].mxu0 %v6278
      %v6369 = vpop.f32.mrb[0].mxu0
      %v6370 = vadd.f32 0.0, %v6369
      %v6371 = vpop.f32.mrb[0].mxu0
      %6372 = vmatprep.mubr.f32.mxu0 0.0
      %6373 = vmatmul.mubr.f32.gmra.mrb[0].mxu0 %v6281
      %v6374 = vpop.f32.mrb[0].mxu0
      %v6375 = vadd.f32 0.0, %v6374
      %v6376 = vpop.f32.mrb[0].mxu0
      %6377 = vmatprep.mubr.f32.mxu0 0.0
      %6378 = vmatmul.mubr.f32.gmra.mrb[0].mxu0 %v6284
      %v6379 = vpop.f32.mrb[0].mxu0
      %v6380 = vadd.f32 0.0, %v6379
      %v6381 = vpop.f32.mrb[0].mxu0
      %6382 = vmatprep.mubr.f32.mxu0 0.0
      %6383 = vmatmul.mubr.f32.gmra.mrb[0].mxu0 %v6287
      %v6384 = vpop.f32.mrb[0].mxu0
      %v6385 = vadd.f32 0.0, %v6384
      %v6386 = vpop.f32.mrb[0].mxu0
      %6387 = vmatprep.mubr.f32.mxu0 0.0
      %6388 = vmatmul.mubr.f32.gmra.mrb[0].mxu0 %v6290
      %v6389 = vpop.f32.mrb[0].mxu0
      %v6390 = vadd.f32 0.0, %v6389
      %v6391 = vpop.f32.mrb[0].mxu0
      %6392 = vmatprep.mubr.f32.mxu0 0.0
      %6393 = vmatmul.mubr.f32.gmra.mrb[0].mxu0 %v6293
      %v6394 = vpop.f32.mrb[0].mxu0
      %v6395 = vadd.f32 0.0, %v6394
      %v6396 = vpop.f32.mrb[0].mxu0
      %6397 = vmatprep.mubr.f32.mxu0 0.0
      %6398 = vmatmul.mubr.f32.gmra.mrb[0].mxu0 %v6296
      %v6399 = vpop.f32.mrb[0].mxu0
      %v6400 = vadd.f32 0.0, %v6399
      %v6401 = vpop.f32.mrb[0].mxu0
      %6402 = vdwg.mxu0
      %v6403 = vadd.f32 %v6249, %v6365
      %v6404 = vadd.f32 %v6250, %v6370
      %v6405 = vadd.f32 %v6251, %v6375
      %v6406 = vadd.f32 %v6252, %v6380
      %v6407 = vadd.f32 %v6253, %v6385
      %v6408 = vadd.f32 %v6254, %v6390
      %v6409 = vadd.f32 %v6255, %v6395
      %v6410 = vadd.f32 %v6256, %v6400
      %v6411 = vld [vmem:[#allocation3 + $0x19] sm:$0xff]
      %v6412 = vld [vmem:[#allocation3 + $0x21] sm:$0xff]
      %v6413 = vld [vmem:[#allocation3 + $0x29] sm:$0xff]
      %v6414 = vld [vmem:[#allocation3 + $0x31] sm:$0xff]
      %v6415 = vld [vmem:[#allocation3 + $0x39] sm:$0xff]
      %v6416 = vld [vmem:[#allocation3 + $0x41] sm:$0xff]
      %v6417 = vld [vmem:[#allocation3 + $0x49] sm:$0xff]
      %v6418 = vld [vmem:[#allocation3 + $0x51] sm:$0xff]
      %v6419 = vsel %vm5148, %v6411, 0.0
      %v6420 = vsel %vm5149, %v6412, 0.0
      %v6421 = vsel %vm5150, %v6413, 0.0
      %v6422 = vsel %vm5151, %v6414, 0.0
      %v6423 = vsel %vm5152, %v6415, 0.0
      %v6424 = vsel %vm5153, %v6416, 0.0
      %v6425 = vsel %vm5154, %v6417, 0.0
      %v6426 = vsel %vm5155, %v6418, 0.0
      %s6427 = scalar_lea.vmem %s5, 512
      %v6428 = vld [vmem:[%s6427] sm:$0xff]
      %v6429 = vld [vmem:[%s6427 + $0x8] sm:$0xff]
      %v6430 = vld [vmem:[%s6427 + $0x10] sm:$0xff]
      %v6431 = vld [vmem:[%s6427 + $0x18] sm:$0xff]
      %v6432 = vld [vmem:[%s6427 + $0x20] sm:$0xff]
      %v6433 = vld [vmem:[%s6427 + $0x28] sm:$0xff]
      %v6434 = vld [vmem:[%s6427 + $0x30] sm:$0xff]
      %v6435 = vld [vmem:[%s6427 + $0x38] sm:$0xff]
      %v6437 = vsel %vm5119, %v6419, 0
      %v6440 = vsel %vm5119, %v6420, 0
      %v6443 = vsel %vm5119, %v6421, 0
      %v6446 = vsel %vm5119, %v6422, 0
      %v6449 = vsel %vm5119, %v6423, 0
      %v6452 = vsel %vm5119, %v6424, 0
      %v6455 = vsel %vm5119, %v6425, 0
      %v6458 = vsel %vm5119, %v6426, 0
      %6460 = vmatprep.subr.mxu0 0.0
      %6461 = vmatpush1.msra.mxu0 %v6428
      %6462 = vmatprep.subr.mxu0 0.0
      %6463 = vmatpush1.msra.mxu0 %v6429
      %6464 = vmatprep.subr.mxu0 0.0
      %6465 = vmatpush1.msra.mxu0 %v6430
      %6466 = vmatprep.subr.mxu0 0.0
      %6467 = vmatpush1.msra.mxu0 %v6431
      %6468 = vmatprep.subr.mxu0 0.0
      %6469 = vmatpush1.msra.mxu0 %v6432
      %6470 = vmatprep.subr.mxu0 0.0
      %6471 = vmatpush1.msra.mxu0 %v6433
      %6472 = vmatprep.subr.mxu0 0.0
      %6473 = vmatpush1.msra.mxu0 %v6434
      %6474 = vmatprep.subr.mxu0 0.0
      %6475 = vmatpush1.msra.mxu0 %v6435
      %6476 = vmatprep.subr.mxu0 0.0
      %6477 = vmatpush1.msra.mxu0 0.0
      %6478 = vmatprep.subr.mxu0 0.0
      %6479 = vmatpush1.msra.mxu0 0.0
      %6480 = vmatprep.subr.mxu0 0.0
      %6481 = vmatpush1.msra.mxu0 0.0
      %6482 = vmatprep.subr.mxu0 0.0
      %6483 = vmatpush1.msra.mxu0 0.0
      %6484 = vmatprep.subr.mxu0 0.0
      %6485 = vmatpush1.msra.mxu0 0.0
      %6486 = vmatprep.subr.mxu0 0.0
      %6487 = vmatpush1.msra.mxu0 0.0
      %6488 = vmatprep.subr.mxu0 0.0
      %6489 = vmatpush1.msra.mxu0 0.0
      %6490 = vmatprep.subr.mxu0 0.0
      %6491 = vmatpush1.msra.mxu0 0.0
      %6492 = vmatprep.subr.mxu0 0.0
      %6493 = vmatpush1.msra.mxu0 0.0
      %6494 = vmatprep.subr.mxu0 0.0
      %6495 = vmatpush1.msra.mxu0 0.0
      %6496 = vmatprep.subr.mxu0 0.0
      %6497 = vmatpush1.msra.mxu0 0.0
      %6498 = vmatprep.subr.mxu0 0.0
      %6499 = vmatpush1.msra.mxu0 0.0
      %6500 = vmatprep.subr.mxu0 0.0
      %6501 = vmatpush1.msra.mxu0 0.0
      %6502 = vmatprep.subr.mxu0 0.0
      %6503 = vmatpush1.msra.mxu0 0.0
      %6504 = vmatprep.subr.mxu0 0.0
      %6505 = vmatpush1.msra.mxu0 0.0
      %6506 = vmatprep.subr.mxu0 0.0
      %6507 = vmatpush1.msra.mxu0 0.0
      %6508 = vmatprep.subr.mxu0 0.0
      %6509 = vmatpush1.msra.mxu0 0.0
      %6510 = vmatprep.subr.mxu0 0.0
      %6511 = vmatpush1.msra.mxu0 0.0
      %6512 = vmatprep.subr.mxu0 0.0
      %6513 = vmatpush1.msra.mxu0 0.0
      %6514 = vmatprep.subr.mxu0 0.0
      %6515 = vmatpush1.msra.mxu0 0.0
      %6516 = vmatprep.subr.mxu0 0.0
      %6517 = vmatpush1.msra.mxu0 0.0
      %6518 = vmatprep.subr.mxu0 0.0
      %6519 = vmatpush1.msra.mxu0 0.0
      %6520 = vmatprep.subr.mxu0 0.0
      %6521 = vmatpush1.msra.mxu0 0.0
      %6522 = vmatprep.subr.mxu0 0.0
      %6523 = vmatpush1.msra.mxu0 0.0
      %6524 = vmatprep.mubr.f32.mxu0 0.0
      %6525 = vmatmul.mubr.f32.gmra.mrb[0].mxu0 %v6437
      %v6526 = vpop.f32.mrb[0].mxu0
      %v6527 = vadd.f32 0.0, %v6526
      %v6528 = vpop.f32.mrb[0].mxu0
      %6529 = vmatprep.mubr.f32.mxu0 0.0
      %6530 = vmatmul.mubr.f32.gmra.mrb[0].mxu0 %v6440
      %v6531 = vpop.f32.mrb[0].mxu0
      %v6532 = vadd.f32 0.0, %v6531
      %v6533 = vpop.f32.mrb[0].mxu0
      %6534 = vmatprep.mubr.f32.mxu0 0.0
      %6535 = vmatmul.mubr.f32.gmra.mrb[0].mxu0 %v6443
      %v6536 = vpop.f32.mrb[0].mxu0
      %v6537 = vadd.f32 0.0, %v6536
      %v6538 = vpop.f32.mrb[0].mxu0
      %6539 = vmatprep.mubr.f32.mxu0 0.0
      %6540 = vmatmul.mubr.f32.gmra.mrb[0].mxu0 %v6446
      %v6541 = vpop.f32.mrb[0].mxu0
      %v6542 = vadd.f32 0.0, %v6541
      %v6543 = vpop.f32.mrb[0].mxu0
      %6544 = vmatprep.mubr.f32.mxu0 0.0
      %6545 = vmatmul.mubr.f32.gmra.mrb[0].mxu0 %v6449
      %v6546 = vpop.f32.mrb[0].mxu0
      %v6547 = vadd.f32 0.0, %v6546
      %v6548 = vpop.f32.mrb[0].mxu0
      %6549 = vmatprep.mubr.f32.mxu0 0.0
      %6550 = vmatmul.mubr.f32.gmra.mrb[0].mxu0 %v6452
      %v6551 = vpop.f32.mrb[0].mxu0
      %v6552 = vadd.f32 0.0, %v6551
      %v6553 = vpop.f32.mrb[0].mxu0
      %6554 = vmatprep.mubr.f32.mxu0 0.0
      %6555 = vmatmul.mubr.f32.gmra.mrb[0].mxu0 %v6455
      %v6556 = vpop.f32.mrb[0].mxu0
      %v6557 = vadd.f32 0.0, %v6556
      %v6558 = vpop.f32.mrb[0].mxu0
      %6559 = vmatprep.mubr.f32.mxu0 0.0
      %6560 = vmatmul.mubr.f32.gmra.mrb[0].mxu0 %v6458
      %v6561 = vpop.f32.mrb[0].mxu0
      %v6562 = vadd.f32 0.0, %v6561
      %v6563 = vpop.f32.mrb[0].mxu0
      %6564 = vdwg.mxu0
      %v6565 = vadd.f32 %v6403, %v6527
      %v6566 = vadd.f32 %v6404, %v6532
      %v6567 = vadd.f32 %v6405, %v6537
      %v6568 = vadd.f32 %v6406, %v6542
      %v6569 = vadd.f32 %v6407, %v6547
      %v6570 = vadd.f32 %v6408, %v6552
      %v6571 = vadd.f32 %v6409, %v6557
      %v6572 = vadd.f32 %v6410, %v6562
      %v6573 = vld [vmem:[%s6] sm:$0x1]
      %v6575 = vlaneseq
      %v6576 = vshrl.u32 %v6575, 7
      %v6577 = vsub.s32 0, %v6576
      %v6578 = vrot.slane %v6573, %v6577
      %v6580 = vadd.f32 %v6565, %v6578
      %v6581 = vadd.f32 %v6566, %v6578
      %v6582 = vadd.f32 %v6567, %v6578
      %v6583 = vadd.f32 %v6568, %v6578
      %v6584 = vadd.f32 %v6569, %v6578
      %v6585 = vadd.f32 %v6570, %v6578
      %v6586 = vadd.f32 %v6571, %v6578
      %v6587 = vadd.f32 %v6572, %v6578
      %v6588 = vmax.f32 %v6580, 0.0
      %v6589 = vmax.f32 %v6581, 0.0
      %v6590 = vmax.f32 %v6582, 0.0
      %v6591 = vmax.f32 %v6583, 0.0
      %v6592 = vmax.f32 %v6584, 0.0
      %v6593 = vmax.f32 %v6585, 0.0
      %v6594 = vmax.f32 %v6586, 0.0
      %v6595 = vmax.f32 %v6587, 0.0
      %v6596 = vld [vmem:[%s8] sm:$0xff]
      %v6597 = vld [vmem:[%s8 + $0x8] sm:$0xff]
      %v6598 = vld [vmem:[%s8 + $0x10] sm:$0xff]
      %v6599 = vld [vmem:[%s8 + $0x18] sm:$0x1]
      %v6601 = vsel %vm5119, %v6596, 0
      %v6604 = vsel %vm5119, %v6597, 0
      %v6607 = vsel %vm5119, %v6598, 0
      %v6610 = vsel %vm5119, %v6599, 0
      %6612 = vmatprep.subr.mxu0 0.0
      %6613 = vmatpush1.msra.mxu0 %v6588
      %6614 = vmatprep.subr.mxu0 0.0
      %6615 = vmatpush1.msra.mxu0 %v6589
      %6616 = vmatprep.subr.mxu0 0.0
      %6617 = vmatpush1.msra.mxu0 %v6590
      %6618 = vmatprep.subr.mxu0 0.0
      %6619 = vmatpush1.msra.mxu0 %v6591
      %6620 = vmatprep.subr.mxu0 0.0
      %6621 = vmatpush1.msra.mxu0 %v6592
      %6622 = vmatprep.subr.mxu0 0.0
      %6623 = vmatpush1.msra.mxu0 %v6593
      %6624 = vmatprep.subr.mxu0 0.0
      %6625 = vmatpush1.msra.mxu0 %v6594
      %6626 = vmatprep.subr.mxu0 0.0
      %6627 = vmatpush1.msra.mxu0 %v6595
      %6628 = vmatprep.subr.mxu0 0.0
      %6629 = vmatpush1.msra.mxu0 0.0
      %6630 = vmatprep.subr.mxu0 0.0
      %6631 = vmatpush1.msra.mxu0 0.0
      %6632 = vmatprep.subr.mxu0 0.0
      %6633 = vmatpush1.msra.mxu0 0.0
      %6634 = vmatprep.subr.mxu0 0.0
      %6635 = vmatpush1.msra.mxu0 0.0
      %6636 = vmatprep.subr.mxu0 0.0
      %6637 = vmatpush1.msra.mxu0 0.0
      %6638 = vmatprep.subr.mxu0 0.0
      %6639 = vmatpush1.msra.mxu0 0.0
      %6640 = vmatprep.subr.mxu0 0.0
      %6641 = vmatpush1.msra.mxu0 0.0
      %6642 = vmatprep.subr.mxu0 0.0
      %6643 = vmatpush1.msra.mxu0 0.0
      %6644 = vmatprep.subr.mxu0 0.0
      %6645 = vmatpush1.msra.mxu0 0.0
      %6646 = vmatprep.subr.mxu0 0.0
      %6647 = vmatpush1.msra.mxu0 0.0
      %6648 = vmatprep.subr.mxu0 0.0
      %6649 = vmatpush1.msra.mxu0 0.0
      %6650 = vmatprep.subr.mxu0 0.0
      %6651 = vmatpush1.msra.mxu0 0.0
      %6652 = vmatprep.subr.mxu0 0.0
      %6653 = vmatpush1.msra.mxu0 0.0
      %6654 = vmatprep.subr.mxu0 0.0
      %6655 = vmatpush1.msra.mxu0 0.0
      %6656 = vmatprep.subr.mxu0 0.0
      %6657 = vmatpush1.msra.mxu0 0.0
      %6658 = vmatprep.subr.mxu0 0.0
      %6659 = vmatpush1.msra.mxu0 0.0
      %6660 = vmatprep.subr.mxu0 0.0
      %6661 = vmatpush1.msra.mxu0 0.0
      %6662 = vmatprep.subr.mxu0 0.0
      %6663 = vmatpush1.msra.mxu0 0.0
      %6664 = vmatprep.subr.mxu0 0.0
      %6665 = vmatpush1.msra.mxu0 0.0
      %6666 = vmatprep.subr.mxu0 0.0
      %6667 = vmatpush1.msra.mxu0 0.0
      %6668 = vmatprep.subr.mxu0 0.0
      %6669 = vmatpush1.msra.mxu0 0.0
      %6670 = vmatprep.subr.mxu0 0.0
      %6671 = vmatpush1.msra.mxu0 0.0
      %6672 = vmatprep.subr.mxu0 0.0
      %6673 = vmatpush1.msra.mxu0 0.0
      %6674 = vmatprep.subr.mxu0 0.0
      %6675 = vmatpush1.msra.mxu0 0.0
      %6676 = vmatprep.mubr.f32.mxu0 0.0
      %6677 = vmatmul.mubr.f32.gmra.mrb[0].mxu0 %v6601
      %v6678 = vpop.f32.mrb[0].mxu0
      %v6679 = vadd.f32 0.0, %v6678
      %v6680 = vpop.f32.mrb[0].mxu0
      %6681 = vmatprep.mubr.f32.mxu0 0.0
      %6682 = vmatmul.mubr.f32.gmra.mrb[0].mxu0 %v6604
      %v6683 = vpop.f32.mrb[0].mxu0
      %v6684 = vadd.f32 0.0, %v6683
      %v6685 = vpop.f32.mrb[0].mxu0
      %6686 = vmatprep.mubr.f32.mxu0 0.0
      %6687 = vmatmul.mubr.f32.gmra.mrb[0].mxu0 %v6607
      %v6688 = vpop.f32.mrb[0].mxu0
      %v6689 = vadd.f32 0.0, %v6688
      %v6690 = vpop.f32.mrb[0].mxu0
      %6691 = vmatprep.mubr.f32.mxu0 0.0
      %6692 = vmatmul.mubr.f32.gmra.mrb[0].mxu0 %v6610
      %v6693 = vpop.f32.mrb[0].mxu0
      %v6694 = vadd.f32 0.0, %v6693
      %v6695 = vpop.f32.mrb[0].mxu0
      %6696 = vdwg.mxu0
      %s6697 = scalar_lea.vmem %s8, 32
      %v6698 = vld [vmem:[%s6697] sm:$0xff]
      %v6699 = vld [vmem:[%s6697 + $0x8] sm:$0xff]
      %v6700 = vld [vmem:[%s6697 + $0x10] sm:$0xff]
      %v6701 = vld [vmem:[%s6697 + $0x18] sm:$0x1]
      %v6703 = vsel %vm5119, %v6698, 0
      %v6706 = vsel %vm5119, %v6699, 0
      %v6709 = vsel %vm5119, %v6700, 0
      %v6712 = vsel %vm5119, %v6701, 0
      %6714 = vmatprep.subr.mxu0 0.0
      %6715 = vmatpush1.msra.mxu0 %v6588
      %6716 = vmatprep.subr.mxu0 0.0
      %6717 = vmatpush1.msra.mxu0 %v6589
      %6718 = vmatprep.subr.mxu0 0.0
      %6719 = vmatpush1.msra.mxu0 %v6590
      %6720 = vmatprep.subr.mxu0 0.0
      %6721 = vmatpush1.msra.mxu0 %v6591
      %6722 = vmatprep.subr.mxu0 0.0
      %6723 = vmatpush1.msra.mxu0 %v6592
      %6724 = vmatprep.subr.mxu0 0.0
      %6725 = vmatpush1.msra.mxu0 %v6593
      %6726 = vmatprep.subr.mxu0 0.0
      %6727 = vmatpush1.msra.mxu0 %v6594
      %6728 = vmatprep.subr.mxu0 0.0
      %6729 = vmatpush1.msra.mxu0 %v6595
      %6730 = vmatprep.subr.mxu0 0.0
      %6731 = vmatpush1.msra.mxu0 0.0
      %6732 = vmatprep.subr.mxu0 0.0
      %6733 = vmatpush1.msra.mxu0 0.0
      %6734 = vmatprep.subr.mxu0 0.0
      %6735 = vmatpush1.msra.mxu0 0.0
      %6736 = vmatprep.subr.mxu0 0.0
      %6737 = vmatpush1.msra.mxu0 0.0
      %6738 = vmatprep.subr.mxu0 0.0
      %6739 = vmatpush1.msra.mxu0 0.0
      %6740 = vmatprep.subr.mxu0 0.0
      %6741 = vmatpush1.msra.mxu0 0.0
      %6742 = vmatprep.subr.mxu0 0.0
      %6743 = vmatpush1.msra.mxu0 0.0
      %6744 = vmatprep.subr.mxu0 0.0
      %6745 = vmatpush1.msra.mxu0 0.0
      %6746 = vmatprep.subr.mxu0 0.0
      %6747 = vmatpush1.msra.mxu0 0.0
      %6748 = vmatprep.subr.mxu0 0.0
      %6749 = vmatpush1.msra.mxu0 0.0
      %6750 = vmatprep.subr.mxu0 0.0
      %6751 = vmatpush1.msra.mxu0 0.0
      %6752 = vmatprep.subr.mxu0 0.0
      %6753 = vmatpush1.msra.mxu0 0.0
      %6754 = vmatprep.subr.mxu0 0.0
      %6755 = vmatpush1.msra.mxu0 0.0
      %6756 = vmatprep.subr.mxu0 0.0
      %6757 = vmatpush1.msra.mxu0 0.0
      %6758 = vmatprep.subr.mxu0 0.0
      %6759 = vmatpush1.msra.mxu0 0.0
      %6760 = vmatprep.subr.mxu0 0.0
      %6761 = vmatpush1.msra.mxu0 0.0
      %6762 = vmatprep.subr.mxu0 0.0
      %6763 = vmatpush1.msra.mxu0 0.0
      %6764 = vmatprep.subr.mxu0 0.0
      %6765 = vmatpush1.msra.mxu0 0.0
      %6766 = vmatprep.subr.mxu0 0.0
      %6767 = vmatpush1.msra.mxu0 0.0
      %6768 = vmatprep.subr.mxu0 0.0
      %6769 = vmatpush1.msra.mxu0 0.0
      %6770 = vmatprep.subr.mxu0 0.0
      %6771 = vmatpush1.msra.mxu0 0.0
      %6772 = vmatprep.subr.mxu0 0.0
      %6773 = vmatpush1.msra.mxu0 0.0
      %6774 = vmatprep.subr.mxu0 0.0
      %6775 = vmatpush1.msra.mxu0 0.0
      %6776 = vmatprep.subr.mxu0 0.0
      %6777 = vmatpush1.msra.mxu0 0.0
      %6778 = vmatprep.mubr.f32.mxu0 0.0
      %6779 = vmatmul.mubr.f32.gmra.mrb[0].mxu0 %v6703
      %v6780 = vpop.f32.mrb[0].mxu0
      %v6781 = vadd.f32 0.0, %v6780
      %v6782 = vpop.f32.mrb[0].mxu0
      %6783 = vmatprep.mubr.f32.mxu0 0.0
      %6784 = vmatmul.mubr.f32.gmra.mrb[0].mxu0 %v6706
      %v6785 = vpop.f32.mrb[0].mxu0
      %v6786 = vadd.f32 0.0, %v6785
      %v6787 = vpop.f32.mrb[0].mxu0
      %6788 = vmatprep.mubr.f32.mxu0 0.0
      %6789 = vmatmul.mubr.f32.gmra.mrb[0].mxu0 %v6709
      %v6790 = vpop.f32.mrb[0].mxu0
      %v6791 = vadd.f32 0.0, %v6790
      %v6792 = vpop.f32.mrb[0].mxu0
      %6793 = vmatprep.mubr.f32.mxu0 0.0
      %6794 = vmatmul.mubr.f32.gmra.mrb[0].mxu0 %v6712
      %v6795 = vpop.f32.mrb[0].mxu0
      %v6796 = vadd.f32 0.0, %v6795
      %v6797 = vpop.f32.mrb[0].mxu0
      %6798 = vdwg.mxu0
      %v6799 = vmax.f32 %v6679, %v6781
      %v6800 = vmax.f32 %v6684, %v6786
      %v6801 = vmax.f32 %v6689, %v6791
      %v6802 = vmax.f32 %v6694, %v6796
      %s6803 = scalar_lea.vmem %s8, 64
      %v6804 = vld [vmem:[%s6803] sm:$0xff]
      %v6805 = vld [vmem:[%s6803 + $0x8] sm:$0xff]
      %v6806 = vld [vmem:[%s6803 + $0x10] sm:$0xff]
      %v6807 = vld [vmem:[%s6803 + $0x18] sm:$0x1]
      %v6809 = vsel %vm5119, %v6804, 0
      %v6812 = vsel %vm5119, %v6805, 0
      %v6815 = vsel %vm5119, %v6806, 0
      %v6818 = vsel %vm5119, %v6807, 0
      %6820 = vmatprep.subr.mxu0 0.0
      %6821 = vmatpush1.msra.mxu0 %v6588
      %6822 = vmatprep.subr.mxu0 0.0
      %6823 = vmatpush1.msra.mxu0 %v6589
      %6824 = vmatprep.subr.mxu0 0.0
      %6825 = vmatpush1.msra.mxu0 %v6590
      %6826 = vmatprep.subr.mxu0 0.0
      %6827 = vmatpush1.msra.mxu0 %v6591
      %6828 = vmatprep.subr.mxu0 0.0
      %6829 = vmatpush1.msra.mxu0 %v6592
      %6830 = vmatprep.subr.mxu0 0.0
      %6831 = vmatpush1.msra.mxu0 %v6593
      %6832 = vmatprep.subr.mxu0 0.0
      %6833 = vmatpush1.msra.mxu0 %v6594
      %6834 = vmatprep.subr.mxu0 0.0
      %6835 = vmatpush1.msra.mxu0 %v6595
      %6836 = vmatprep.subr.mxu0 0.0
      %6837 = vmatpush1.msra.mxu0 0.0
      %6838 = vmatprep.subr.mxu0 0.0
      %6839 = vmatpush1.msra.mxu0 0.0
      %6840 = vmatprep.subr.mxu0 0.0
      %6841 = vmatpush1.msra.mxu0 0.0
      %6842 = vmatprep.subr.mxu0 0.0
      %6843 = vmatpush1.msra.mxu0 0.0
      %6844 = vmatprep.subr.mxu0 0.0
      %6845 = vmatpush1.msra.mxu0 0.0
      %6846 = vmatprep.subr.mxu0 0.0
      %6847 = vmatpush1.msra.mxu0 0.0
      %6848 = vmatprep.subr.mxu0 0.0
      %6849 = vmatpush1.msra.mxu0 0.0
      %6850 = vmatprep.subr.mxu0 0.0
      %6851 = vmatpush1.msra.mxu0 0.0
      %6852 = vmatprep.subr.mxu0 0.0
      %6853 = vmatpush1.msra.mxu0 0.0
      %6854 = vmatprep.subr.mxu0 0.0
      %6855 = vmatpush1.msra.mxu0 0.0
      %6856 = vmatprep.subr.mxu0 0.0
      %6857 = vmatpush1.msra.mxu0 0.0
      %6858 = vmatprep.subr.mxu0 0.0
      %6859 = vmatpush1.msra.mxu0 0.0
      %6860 = vmatprep.subr.mxu0 0.0
      %6861 = vmatpush1.msra.mxu0 0.0
      %6862 = vmatprep.subr.mxu0 0.0
      %6863 = vmatpush1.msra.mxu0 0.0
      %6864 = vmatprep.subr.mxu0 0.0
      %6865 = vmatpush1.msra.mxu0 0.0
      %6866 = vmatprep.subr.mxu0 0.0
      %6867 = vmatpush1.msra.mxu0 0.0
      %6868 = vmatprep.subr.mxu0 0.0
      %6869 = vmatpush1.msra.mxu0 0.0
      %6870 = vmatprep.subr.mxu0 0.0
      %6871 = vmatpush1.msra.mxu0 0.0
      %6872 = vmatprep.subr.mxu0 0.0
      %6873 = vmatpush1.msra.mxu0 0.0
      %6874 = vmatprep.subr.mxu0 0.0
      %6875 = vmatpush1.msra.mxu0 0.0
      %6876 = vmatprep.subr.mxu0 0.0
      %6877 = vmatpush1.msra.mxu0 0.0
      %6878 = vmatprep.subr.mxu0 0.0
      %6879 = vmatpush1.msra.mxu0 0.0
      %6880 = vmatprep.subr.mxu0 0.0
      %6881 = vmatpush1.msra.mxu0 0.0
      %6882 = vmatprep.subr.mxu0 0.0
      %6883 = vmatpush1.msra.mxu0 0.0
      %6884 = vmatprep.mubr.f32.mxu0 0.0
      %6885 = vmatmul.mubr.f32.gmra.mrb[0].mxu0 %v6809
      %v6886 = vpop.f32.mrb[0].mxu0
      %v6887 = vadd.f32 0.0, %v6886
      %v6888 = vpop.f32.mrb[0].mxu0
      %6889 = vmatprep.mubr.f32.mxu0 0.0
      %6890 = vmatmul.mubr.f32.gmra.mrb[0].mxu0 %v6812
      %v6891 = vpop.f32.mrb[0].mxu0
      %v6892 = vadd.f32 0.0, %v6891
      %v6893 = vpop.f32.mrb[0].mxu0
      %6894 = vmatprep.mubr.f32.mxu0 0.0
      %6895 = vmatmul.mubr.f32.gmra.mrb[0].mxu0 %v6815
      %v6896 = vpop.f32.mrb[0].mxu0
      %v6897 = vadd.f32 0.0, %v6896
      %v6898 = vpop.f32.mrb[0].mxu0
      %6899 = vmatprep.mubr.f32.mxu0 0.0
      %6900 = vmatmul.mubr.f32.gmra.mrb[0].mxu0 %v6818
      %v6901 = vpop.f32.mrb[0].mxu0
      %v6902 = vadd.f32 0.0, %v6901
      %v6903 = vpop.f32.mrb[0].mxu0
      %6904 = vdwg.mxu0
      %v6905 = vmax.f32 %v6799, %v6887
      %v6906 = vmax.f32 %v6800, %v6892
      %v6907 = vmax.f32 %v6801, %v6897
      %v6908 = vmax.f32 %v6802, %v6902
      %s6909 = scalar_lea.vmem %s8, 96
      %v6910 = vld [vmem:[%s6909] sm:$0xff]
      %v6911 = vld [vmem:[%s6909 + $0x8] sm:$0xff]
      %v6912 = vld [vmem:[%s6909 + $0x10] sm:$0xff]
      %v6913 = vld [vmem:[%s6909 + $0x18] sm:$0x1]
      %v6915 = vsel %vm5119, %v6910, 0
      %v6918 = vsel %vm5119, %v6911, 0
      %v6921 = vsel %vm5119, %v6912, 0
      %v6924 = vsel %vm5119, %v6913, 0
      %6926 = vmatprep.subr.mxu0 0.0
      %6927 = vmatpush1.msra.mxu0 %v6588
      %6928 = vmatprep.subr.mxu0 0.0
      %6929 = vmatpush1.msra.mxu0 %v6589
      %6930 = vmatprep.subr.mxu0 0.0
      %6931 = vmatpush1.msra.mxu0 %v6590
      %6932 = vmatprep.subr.mxu0 0.0
      %6933 = vmatpush1.msra.mxu0 %v6591
      %6934 = vmatprep.subr.mxu0 0.0
      %6935 = vmatpush1.msra.mxu0 %v6592
      %6936 = vmatprep.subr.mxu0 0.0
      %6937 = vmatpush1.msra.mxu0 %v6593
      %6938 = vmatprep.subr.mxu0 0.0
      %6939 = vmatpush1.msra.mxu0 %v6594
      %6940 = vmatprep.subr.mxu0 0.0
      %6941 = vmatpush1.msra.mxu0 %v6595
      %6942 = vmatprep.subr.mxu0 0.0
      %6943 = vmatpush1.msra.mxu0 0.0
      %6944 = vmatprep.subr.mxu0 0.0
      %6945 = vmatpush1.msra.mxu0 0.0
      %6946 = vmatprep.subr.mxu0 0.0
      %6947 = vmatpush1.msra.mxu0 0.0
      %6948 = vmatprep.subr.mxu0 0.0
      %6949 = vmatpush1.msra.mxu0 0.0
      %6950 = vmatprep.subr.mxu0 0.0
      %6951 = vmatpush1.msra.mxu0 0.0
      %6952 = vmatprep.subr.mxu0 0.0
      %6953 = vmatpush1.msra.mxu0 0.0
      %6954 = vmatprep.subr.mxu0 0.0
      %6955 = vmatpush1.msra.mxu0 0.0
      %6956 = vmatprep.subr.mxu0 0.0
      %6957 = vmatpush1.msra.mxu0 0.0
      %6958 = vmatprep.subr.mxu0 0.0
      %6959 = vmatpush1.msra.mxu0 0.0
      %6960 = vmatprep.subr.mxu0 0.0
      %6961 = vmatpush1.msra.mxu0 0.0
      %6962 = vmatprep.subr.mxu0 0.0
      %6963 = vmatpush1.msra.mxu0 0.0
      %6964 = vmatprep.subr.mxu0 0.0
      %6965 = vmatpush1.msra.mxu0 0.0
      %6966 = vmatprep.subr.mxu0 0.0
      %6967 = vmatpush1.msra.mxu0 0.0
      %6968 = vmatprep.subr.mxu0 0.0
      %6969 = vmatpush1.msra.mxu0 0.0
      %6970 = vmatprep.subr.mxu0 0.0
      %6971 = vmatpush1.msra.mxu0 0.0
      %6972 = vmatprep.subr.mxu0 0.0
      %6973 = vmatpush1.msra.mxu0 0.0
      %6974 = vmatprep.subr.mxu0 0.0
      %6975 = vmatpush1.msra.mxu0 0.0
      %6976 = vmatprep.subr.mxu0 0.0
      %6977 = vmatpush1.msra.mxu0 0.0
      %6978 = vmatprep.subr.mxu0 0.0
      %6979 = vmatpush1.msra.mxu0 0.0
      %6980 = vmatprep.subr.mxu0 0.0
      %6981 = vmatpush1.msra.mxu0 0.0
      %6982 = vmatprep.subr.mxu0 0.0
      %6983 = vmatpush1.msra.mxu0 0.0
      %6984 = vmatprep.subr.mxu0 0.0
      %6985 = vmatpush1.msra.mxu0 0.0
      %6986 = vmatprep.subr.mxu0 0.0
      %6987 = vmatpush1.msra.mxu0 0.0
      %6988 = vmatprep.subr.mxu0 0.0
      %6989 = vmatpush1.msra.mxu0 0.0
      %6990 = vmatprep.mubr.f32.mxu0 0.0
      %6991 = vmatmul.mubr.f32.gmra.mrb[0].mxu0 %v6915
      %v6992 = vpop.f32.mrb[0].mxu0
      %v6993 = vadd.f32 0.0, %v6992
      %v6994 = vpop.f32.mrb[0].mxu0
      %6995 = vmatprep.mubr.f32.mxu0 0.0
      %6996 = vmatmul.mubr.f32.gmra.mrb[0].mxu0 %v6918
      %v6997 = vpop.f32.mrb[0].mxu0
      %v6998 = vadd.f32 0.0, %v6997
      %v6999 = vpop.f32.mrb[0].mxu0
      %7000 = vmatprep.mubr.f32.mxu0 0.0
      %7001 = vmatmul.mubr.f32.gmra.mrb[0].mxu0 %v6921
      %v7002 = vpop.f32.mrb[0].mxu0
      %v7003 = vadd.f32 0.0, %v7002
      %v7004 = vpop.f32.mrb[0].mxu0
      %7005 = vmatprep.mubr.f32.mxu0 0.0
      %7006 = vmatmul.mubr.f32.gmra.mrb[0].mxu0 %v6924
      %v7007 = vpop.f32.mrb[0].mxu0
      %v7008 = vadd.f32 0.0, %v7007
      %v7009 = vpop.f32.mrb[0].mxu0
      %7010 = vdwg.mxu0
      %v7011 = vmax.f32 %v6905, %v6993
      %v7012 = vmax.f32 %v6906, %v6998
      %v7013 = vmax.f32 %v6907, %v7003
      %v7014 = vmax.f32 %v6908, %v7008
      %7015 = vst [vmem:[%s332] sm:$0xff] %v7011
      %7016 = vst [vmem:[%s332 + $0x8] sm:$0xff] %v7012
      %7017 = vst [vmem:[%s332 + $0x10] sm:$0xff] %v7013
      %7018 = vst [vmem:[%s332 + $0x18] sm:$0x1] %v7014
      %p7019 = scmp.lt.s32.totalorder %s20, 1
      %s7020 = scalar_select %p7019, %s20, 1
      %s7021 = smul.addr %s7020, 4
      %s7022 = smul.addr %s7021, 8
      %s7023 = scalar_lea.vmem %s9, %s7022
      // Predicated region
      $region57: #{quant_weight_net_forward.1} parent=55 // pred_check
        %p7024 = pneg %p232
      $region58: #{quant_weight_net_forward.1} parent=55 // pred_check_branch
        %7026 = sbr.rel (%p7024) target = $region60
      $region59: #{quant_weight_net_forward.1} parent=55 // pred_region
        _
      $region60: #{quant_weight_net_forward.1} parent=55 // pred_fallthru
        _
    $region56: #{quant_weight_net_forward.1} parent=5 // pred_fallthru
      _
    %p7027 = scmp.le.s32.totalorder 2, %s15
    // Predicated region
    $region61: #{quant_weight_net_forward.1} parent=5 // pred_check
      %p7028 = pneg %p7027
    $region62: #{quant_weight_net_forward.1} parent=5 // pred_check_branch
      %7030 = sbr.rel (%p7028) target = $region64
    $region63: #{quant_weight_net_forward.1} parent=5 // pred_region
      %s7031 = ssub.s32 %s15, 2
      // Predicated region
      $region65: #{quant_weight_net_forward.1} parent=63 // pred_check
        %p7032 = pneg %p238
      $region66: #{quant_weight_net_forward.1} parent=63 // pred_check_branch
        %7034 = sbr.rel (%p7032) target = $region68
      $region67: #{quant_weight_net_forward.1} parent=63 // pred_region
        %p7035 = scmp.lt.s32.totalorder %s21, 1
        %s7036 = scalar_select %p7035, %s21, 1
        %s7037 = smul.addr %s7036, 4
        %s7038 = smul.addr %s7037, 8
        %s7039 = scalar_lea.vmem %s9, %s7038
      $region68: #{quant_weight_net_forward.1} parent=63 // pred_fallthru
        _
    $region64: #{quant_weight_net_forward.1} parent=5 // pred_fallthru
      _
  $region6: #{quant_weight_net_forward.1} parent=0 // loop_footer
    %s19 = sadd.s32 1, %s15
  $region7: #{quant_weight_net_forward.1} parent=0 // loop_footer_branch
    %14 = sbr.rel target = $region3
  $region8: #{quant_weight_net_forward.1} parent=0 // loop_exit
    _

</llo_original>
